<compile_context>
chip_gen: v7x
topology: tpu7x:2x2x1
jax: 0.10.0
libtpu: 0.0.40
codegen_flags: <defaults>
</compile_context>

<pallas_src>
import jax
import jax.numpy as jnp
from jax.experimental import pallas as pl
from jax.experimental.pallas import tpu as pltpu

EPS = 1e-5


# ---------------------------------------------------------------------------
# In-kernel 3x3 conv on a row-flattened, zero-padded image
# ---------------------------------------------------------------------------
def _conv3x3_rowflat(xf, w, mask_l, mask_r, H, W, C):
    """3x3 / pad=1 conv from 9 shifted slices (no im2col in HBM).

    xf:     (H*W + 2*(W+1), C) -- rows [W+1, W+1+H*W) hold the image in
            row-major order, all other rows are zero (top/bottom padding).
    w:      (9*C, C), tap t = 3*dy + dx occupies rows [t*C, (t+1)*C).
    mask_l: (H*W, 1), zero where x-coord == 0     (kills left-edge wrap reads)
    mask_r: (H*W, 1), zero where x-coord == W-1   (kills right-edge wrap reads)
    Returns (H*W, C) float32 conv output (no bias -- cancelled by BN).
    """
    HW = H * W
    acc = jnp.zeros((HW, C), jnp.float32)
    for dy in range(3):
        for dx in range(3):
            t = 3 * dy + dx
            s = dy * W + dx
            patch = xf[s:s + HW, :]                       # (HW, C) shifted view
            if dx == 0:
                patch = patch * mask_l
            elif dx == 2:
                patch = patch * mask_r
            acc = acc + jnp.dot(patch, w[t * C:(t + 1) * C, :],
                                preferred_element_type=jnp.float32)
    return acc


# ---------------------------------------------------------------------------
# Pallas kernels (one grid step == one image)
# ---------------------------------------------------------------------------
def _make_conv1_kernel(H, W, C):
    HW = H * W
    P = W + 1
    HWP = HW + 2 * P

    def kernel(xf_ref, w_ref, ml_ref, mr_ref, yp_ref, ps_ref, pq_ref):
        y = _conv3x3_rowflat(xf_ref[...], w_ref[...], ml_ref[...], mr_ref[...],
                             H, W, C)
        # Emit conv1 output already in the padded row-flat layout so pass 2
        # can consume it without a scratch copy.
        yp_ref[:P, :] = jnp.zeros((P, C), jnp.float32)
        yp_ref[P:P + HW, :] = y
        yp_ref[P + HW:HWP, :] = jnp.zeros((P, C), jnp.float32)
        ps_ref[...] = jnp.sum(y, axis=0, keepdims=True)       # per-image sum
        pq_ref[...] = jnp.sum(y * y, axis=0, keepdims=True)   # per-image sumsq
    return kernel


def _make_conv2_kernel(H, W, C):
    def kernel(y1p_ref, sc_ref, sh_ref, im_ref, w_ref, ml_ref, mr_ref,
               y2_ref, ps_ref, pq_ref):
        # bn1 (per-channel affine) + relu, fused; interior mask re-zeroes the
        # top/bottom pad rows so the padded conv stays correct.
        g = jnp.maximum(y1p_ref[...] * sc_ref[...] + sh_ref[...], 0.0) * im_ref[...]
        y2 = _conv3x3_rowflat(g, w_ref[...], ml_ref[...], mr_ref[...], H, W, C)
        y2_ref[...] = y2
        ps_ref[...] = jnp.sum(y2, axis=0, keepdims=True)
        pq_ref[...] = jnp.sum(y2 * y2, axis=0, keepdims=True)
    return kernel


def _bn_residual_kernel(x_ref, y2_ref, sc_ref, sh_ref, o_ref):
    # out = x + bn2(conv2_out) with bn2 folded to per-channel scale/shift.
    o_ref[...] = x_ref[...] + y2_ref[...] * sc_ref[...] + sh_ref[...]


# ---------------------------------------------------------------------------
# Host-side wrapper
# ---------------------------------------------------------------------------
def _wmat(w):
    """PyTorch conv weight (Cout, Cin, 3, 3) -> (9*Cin, Cout), tap-major."""
    c_out = w.shape[0]
    return jnp.transpose(w, (2, 3, 1, 0)).reshape(-1, c_out).astype(jnp.float32)


def residual_block(x_nchw, params):
    N, C, H, W = x_nchw.shape
    HW = H * W
    P = W + 1
    HWP = HW + 2 * P
    M = N * HW

    x_nhwc = jnp.transpose(x_nchw, (0, 2, 3, 1)).astype(jnp.float32)
    x_flat = x_nhwc.reshape(N, HW, C)
    zpad = jnp.zeros((N, P, C), jnp.float32)
    x_padf = jnp.concatenate([zpad, x_flat, zpad], axis=1)     # (N, HWP, C)

    # Edge / interior masks for the row-major flattening trick (tiny, built once).
    wpos = jnp.arange(HW, dtype=jnp.int32).reshape(HW, 1) % W
    mask_l = (wpos > 0).astype(jnp.float32)
    mask_r = (wpos < W - 1).astype(jnp.float32)
    rows = jnp.arange(HWP, dtype=jnp.int32).reshape(HWP, 1)
    interior = ((rows >= P) & (rows < P + HW)).astype(jnp.float32)

    w1m = _wmat(params["w1"])
    w2m = _wmat(params["w2"])
    # NOTE: conv biases b1/b2 are intentionally unused -- BatchNorm subtracts
    # the per-channel batch mean, so a per-channel conv bias cancels exactly.

    cparams = pltpu.CompilerParams(
        dimension_semantics=("parallel",),          # batch axis -> megacore
        vmem_limit_bytes=32 * 1024 * 1024)

    def img_spec(r):
        return pl.BlockSpec((None, r, C), lambda n: (n, 0, 0))

    def full2d(r, c):
        return pl.BlockSpec((r, c), lambda n: (0, 0))

    stat_spec = pl.BlockSpec((None, 1, C), lambda n: (n, 0, 0))
    stat_shape = jax.ShapeDtypeStruct((N, 1, C), jnp.float32)
    act_shape = jax.ShapeDtypeStruct((N, HW, C), jnp.float32)
    pad_shape = jax.ShapeDtypeStruct((N, HWP, C), jnp.float32)

    # ---- pass 1: conv1 + per-image channel sums (padded-layout output) ------
    y1p, ps1, pq1 = pl.pallas_call(
        _make_conv1_kernel(H, W, C),
        grid_spec=pltpu.PrefetchScalarGridSpec(
            num_scalar_prefetch=0, grid=(N,),
            in_specs=[img_spec(HWP), full2d(9 * C, C),
                      full2d(HW, 1), full2d(HW, 1)],
            out_specs=(img_spec(HWP), stat_spec, stat_spec)),
        out_shape=(pad_shape, stat_shape, stat_shape),
        compiler_params=cparams,
    )(x_padf, w1m, mask_l, mask_r)

    def bn_affine(ps, pq, gamma, beta):
        mean = jnp.sum(ps, axis=(0, 1)) / M
        var = jnp.sum(pq, axis=(0, 1)) / M - mean * mean       # biased variance
        scale = gamma.astype(jnp.float32) * jax.lax.rsqrt(var + EPS)
        shift = beta.astype(jnp.float32) - mean * scale
        return scale.reshape(1, C), shift.reshape(1, C)

    sc1, sh1 = bn_affine(ps1, pq1, params["g1"], params["beta1"])

    # ---- pass 2: bn1 + relu + conv2 + per-image channel sums (fused) --------
    y2, ps2, pq2 = pl.pallas_call(
        _make_conv2_kernel(H, W, C),
        grid_spec=pltpu.PrefetchScalarGridSpec(
            num_scalar_prefetch=0, grid=(N,),
            in_specs=[img_spec(HWP), full2d(1, C), full2d(1, C),
                      full2d(HWP, 1), full2d(9 * C, C),
                      full2d(HW, 1), full2d(HW, 1)],
            out_specs=(img_spec(HW), stat_spec, stat_spec)),
        out_shape=(act_shape, stat_shape, stat_shape),
        compiler_params=cparams,
    )(y1p, sc1, sh1, interior, w2m, mask_l, mask_r)

    sc2, sh2 = bn_affine(ps2, pq2, params["g2"], params["beta2"])

    # ---- pass 3: bn2 + residual add (alias y2 -> output, P8) -----------------
    out_flat = pl.pallas_call(
        _bn_residual_kernel,
        grid_spec=pltpu.PrefetchScalarGridSpec(
            num_scalar_prefetch=0, grid=(N,),
            in_specs=[img_spec(HW), img_spec(HW), full2d(1, C), full2d(1, C)],
            out_specs=img_spec(HW)),
        out_shape=act_shape,
        input_output_aliases={1: 0},
        compiler_params=cparams,
    )(x_flat, y2, sc2, sh2)

    out = jnp.transpose(out_flat.reshape(N, H, W, C), (0, 3, 1, 2))
    return out.astype(x_nchw.dtype)


# ---------------------------------------------------------------------------
# Pure-JAX reference (for sanity check)
# ---------------------------------------------------------------------------
def _reference(x_nchw, params):
    x = x_nchw.astype(jnp.float32)

    def conv(inp, w, b):
        y = jax.lax.conv_general_dilated(
            inp, w, (1, 1), ((1, 1), (1, 1)),
            dimension_numbers=("NCHW", "OIHW", "NCHW"),
            precision=jax.lax.Precision.HIGHEST)
        return y + b.reshape(1, -1, 1, 1)

    def bn(y, g, beta):
        mean = jnp.mean(y, axis=(0, 2, 3), keepdims=True)
        var = jnp.mean(jnp.square(y - mean), axis=(0, 2, 3), keepdims=True)
        return ((y - mean) * jax.lax.rsqrt(var + EPS)
                * g.reshape(1, -1, 1, 1) + beta.reshape(1, -1, 1, 1))

    r = jnp.maximum(bn(conv(x, params["w1"], params["b1"]),
                       params["g1"], params["beta1"]), 0.0)
    r = bn(conv(r, params["w2"], params["b2"]), params["g2"], params["beta2"])
    return x + r


# ---------------------------------------------------------------------------
if __name__ == "__main__":
    N, C, H, W = 2, 4, 16, 16
    key = jax.random.PRNGKey(0)
    k = jax.random.split(key, 6)

    x = jax.random.normal(k[0], (N, C, H, W), jnp.float32)
    params = dict(
        w1=jax.random.normal(k[1], (C, C, 3, 3), jnp.float32) * 0.1,
        b1=jax.random.normal(k[2], (C,), jnp.float32) * 0.1,
        g1=jnp.ones((C,), jnp.float32),
        beta1=jnp.zeros((C,), jnp.float32),
        w2=jax.random.normal(k[3], (C, C, 3, 3), jnp.float32) * 0.1,
        b2=jax.random.normal(k[4], (C,), jnp.float32) * 0.1,
        g2=jnp.ones((C,), jnp.float32),
        beta2=jnp.zeros((C,), jnp.float32),
    )

    out = jax.jit(residual_block)(x, params)
    jax.block_until_ready(out)

    ref = _reference(x, params)
    assert out.shape == x.shape and out.dtype == jnp.float32
    err = float(jnp.max(jnp.abs(out - ref)))
    assert jnp.allclose(out, ref, atol=2e-3, rtol=2e-3), f"max abs err {err}"

    print("KERNEL_OK")
</pallas_src>

<mosaic_0001>
module attributes {stable_mosaic.version = 11 : i64} {
  func.func @kernel(%arg0: i32, %arg1: memref<1x290x4xf32, #tpu.memory_space<vmem>>, %arg2: memref<36x4xf32, #tpu.memory_space<vmem>>, %arg3: memref<256x1xf32, #tpu.memory_space<vmem>>, %arg4: memref<256x1xf32, #tpu.memory_space<vmem>>, %arg5: memref<1x290x4xf32, #tpu.memory_space<vmem>>, %arg6: memref<1x1x4xf32, #tpu.memory_space<vmem>>, %arg7: memref<1x1x4xf32, #tpu.memory_space<vmem>>) attributes {dimension_semantics = [#tpu.dimension_semantics<parallel>], iteration_bounds = array<i64: 2>, scalar_prefetch = 0 : i64, scratch_operands = 0 : i64, tpu.core_type = #tpu.core_type<tc>, window_params = [{transform_indices = @transform_0, window_bounds = array<i64: 1, 290, 4>}, {pipeline_mode = #tpu.pipeline_mode<synchronous>, transform_indices = @transform_1, window_bounds = array<i64: 36, 4>}, {pipeline_mode = #tpu.pipeline_mode<synchronous>, transform_indices = @transform_2, window_bounds = array<i64: 256, 1>}, {pipeline_mode = #tpu.pipeline_mode<synchronous>, transform_indices = @transform_3, window_bounds = array<i64: 256, 1>}, {transform_indices = @transform_4, window_bounds = array<i64: 1, 290, 4>}, {transform_indices = @transform_5, window_bounds = array<i64: 1, 1, 4>}, {transform_indices = @transform_6, window_bounds = array<i64: 1, 1, 4>}]} {
    %c0 = arith.constant 0 : index
    %c0_0 = arith.constant 0 : index
    %c0_1 = arith.constant 0 : index
    %0 = vector.load %arg1[%c0, %c0_0, %c0_1] : memref<1x290x4xf32, #tpu.memory_space<vmem>>, vector<1x290x4xf32>
    %1 = vector.shape_cast %0 : vector<1x290x4xf32> to vector<290x4xf32>
    %c0_2 = arith.constant 0 : index
    %c0_3 = arith.constant 0 : index
    %2 = vector.load %arg2[%c0_2, %c0_3] : memref<36x4xf32, #tpu.memory_space<vmem>>, vector<36x4xf32>
    %c0_4 = arith.constant 0 : index
    %c0_5 = arith.constant 0 : index
    %3 = vector.load %arg3[%c0_4, %c0_5] : memref<256x1xf32, #tpu.memory_space<vmem>>, vector<256x1xf32>
    %c0_6 = arith.constant 0 : index
    %c0_7 = arith.constant 0 : index
    %4 = vector.load %arg4[%c0_6, %c0_7] : memref<256x1xf32, #tpu.memory_space<vmem>>, vector<256x1xf32>
    %cst = arith.constant 0.000000e+00 : f32
    %5 = vector.broadcast %cst : f32 to vector<256x4xf32>
    %6 = vector.extract_strided_slice %1 {offsets = [0, 0], sizes = [256, 4], strides = [1, 1]} : vector<290x4xf32> to vector<256x4xf32>
    %7 = vector.broadcast %3 : vector<256x1xf32> to vector<256x4xf32>
    %8 = arith.mulf %6, %7 : vector<256x4xf32>
    %9 = vector.extract_strided_slice %2 {offsets = [0, 0], sizes = [4, 4], strides = [1, 1]} : vector<36x4xf32> to vector<4x4xf32>
    %cst_8 = arith.constant dense<0.000000e+00> : vector<256x4xf32>
    %10 = tpu.matmul %8, %9, %cst_8 {dimension_numbers = #tpu.dot_dimension_numbers<[1], [0], [0], [1], [0, 0, 1, 1], [], []>} : vector<256x4xf32>, vector<4x4xf32>, vector<256x4xf32> -> vector<256x4xf32>
    %11 = arith.addf %5, %10 : vector<256x4xf32>
    %12 = vector.extract_strided_slice %1 {offsets = [1, 0], sizes = [256, 4], strides = [1, 1]} : vector<290x4xf32> to vector<256x4xf32>
    %13 = vector.extract_strided_slice %2 {offsets = [4, 0], sizes = [4, 4], strides = [1, 1]} : vector<36x4xf32> to vector<4x4xf32>
    %cst_9 = arith.constant dense<0.000000e+00> : vector<256x4xf32>
    %14 = tpu.matmul %12, %13, %cst_9 {dimension_numbers = #tpu.dot_dimension_numbers<[1], [0], [0], [1], [0, 0, 1, 1], [], []>} : vector<256x4xf32>, vector<4x4xf32>, vector<256x4xf32> -> vector<256x4xf32>
    %15 = arith.addf %11, %14 : vector<256x4xf32>
    %16 = vector.extract_strided_slice %1 {offsets = [2, 0], sizes = [256, 4], strides = [1, 1]} : vector<290x4xf32> to vector<256x4xf32>
    %17 = vector.broadcast %4 : vector<256x1xf32> to vector<256x4xf32>
    %18 = arith.mulf %16, %17 : vector<256x4xf32>
    %19 = vector.extract_strided_slice %2 {offsets = [8, 0], sizes = [4, 4], strides = [1, 1]} : vector<36x4xf32> to vector<4x4xf32>
    %cst_10 = arith.constant dense<0.000000e+00> : vector<256x4xf32>
    %20 = tpu.matmul %18, %19, %cst_10 {dimension_numbers = #tpu.dot_dimension_numbers<[1], [0], [0], [1], [0, 0, 1, 1], [], []>} : vector<256x4xf32>, vector<4x4xf32>, vector<256x4xf32> -> vector<256x4xf32>
    %21 = arith.addf %15, %20 : vector<256x4xf32>
    %22 = vector.extract_strided_slice %1 {offsets = [16, 0], sizes = [256, 4], strides = [1, 1]} : vector<290x4xf32> to vector<256x4xf32>
    %23 = vector.broadcast %3 : vector<256x1xf32> to vector<256x4xf32>
    %24 = arith.mulf %22, %23 : vector<256x4xf32>
    %25 = vector.extract_strided_slice %2 {offsets = [12, 0], sizes = [4, 4], strides = [1, 1]} : vector<36x4xf32> to vector<4x4xf32>
    %cst_11 = arith.constant dense<0.000000e+00> : vector<256x4xf32>
    %26 = tpu.matmul %24, %25, %cst_11 {dimension_numbers = #tpu.dot_dimension_numbers<[1], [0], [0], [1], [0, 0, 1, 1], [], []>} : vector<256x4xf32>, vector<4x4xf32>, vector<256x4xf32> -> vector<256x4xf32>
    %27 = arith.addf %21, %26 : vector<256x4xf32>
    %28 = vector.extract_strided_slice %1 {offsets = [17, 0], sizes = [256, 4], strides = [1, 1]} : vector<290x4xf32> to vector<256x4xf32>
    %29 = vector.extract_strided_slice %2 {offsets = [16, 0], sizes = [4, 4], strides = [1, 1]} : vector<36x4xf32> to vector<4x4xf32>
    %cst_12 = arith.constant dense<0.000000e+00> : vector<256x4xf32>
    %30 = tpu.matmul %28, %29, %cst_12 {dimension_numbers = #tpu.dot_dimension_numbers<[1], [0], [0], [1], [0, 0, 1, 1], [], []>} : vector<256x4xf32>, vector<4x4xf32>, vector<256x4xf32> -> vector<256x4xf32>
    %31 = arith.addf %27, %30 : vector<256x4xf32>
    %32 = vector.extract_strided_slice %1 {offsets = [18, 0], sizes = [256, 4], strides = [1, 1]} : vector<290x4xf32> to vector<256x4xf32>
    %33 = vector.broadcast %4 : vector<256x1xf32> to vector<256x4xf32>
    %34 = arith.mulf %32, %33 : vector<256x4xf32>
    %35 = vector.extract_strided_slice %2 {offsets = [20, 0], sizes = [4, 4], strides = [1, 1]} : vector<36x4xf32> to vector<4x4xf32>
    %cst_13 = arith.constant dense<0.000000e+00> : vector<256x4xf32>
    %36 = tpu.matmul %34, %35, %cst_13 {dimension_numbers = #tpu.dot_dimension_numbers<[1], [0], [0], [1], [0, 0, 1, 1], [], []>} : vector<256x4xf32>, vector<4x4xf32>, vector<256x4xf32> -> vector<256x4xf32>
    %37 = arith.addf %31, %36 : vector<256x4xf32>
    %38 = vector.extract_strided_slice %1 {offsets = [32, 0], sizes = [256, 4], strides = [1, 1]} : vector<290x4xf32> to vector<256x4xf32>
    %39 = vector.broadcast %3 : vector<256x1xf32> to vector<256x4xf32>
    %40 = arith.mulf %38, %39 : vector<256x4xf32>
    %41 = vector.extract_strided_slice %2 {offsets = [24, 0], sizes = [4, 4], strides = [1, 1]} : vector<36x4xf32> to vector<4x4xf32>
    %cst_14 = arith.constant dense<0.000000e+00> : vector<256x4xf32>
    %42 = tpu.matmul %40, %41, %cst_14 {dimension_numbers = #tpu.dot_dimension_numbers<[1], [0], [0], [1], [0, 0, 1, 1], [], []>} : vector<256x4xf32>, vector<4x4xf32>, vector<256x4xf32> -> vector<256x4xf32>
    %43 = arith.addf %37, %42 : vector<256x4xf32>
    %44 = vector.extract_strided_slice %1 {offsets = [33, 0], sizes = [256, 4], strides = [1, 1]} : vector<290x4xf32> to vector<256x4xf32>
    %45 = vector.extract_strided_slice %2 {offsets = [28, 0], sizes = [4, 4], strides = [1, 1]} : vector<36x4xf32> to vector<4x4xf32>
    %cst_15 = arith.constant dense<0.000000e+00> : vector<256x4xf32>
    %46 = tpu.matmul %44, %45, %cst_15 {dimension_numbers = #tpu.dot_dimension_numbers<[1], [0], [0], [1], [0, 0, 1, 1], [], []>} : vector<256x4xf32>, vector<4x4xf32>, vector<256x4xf32> -> vector<256x4xf32>
    %47 = arith.addf %43, %46 : vector<256x4xf32>
    %48 = vector.extract_strided_slice %1 {offsets = [34, 0], sizes = [256, 4], strides = [1, 1]} : vector<290x4xf32> to vector<256x4xf32>
    %49 = vector.broadcast %4 : vector<256x1xf32> to vector<256x4xf32>
    %50 = arith.mulf %48, %49 : vector<256x4xf32>
    %51 = vector.extract_strided_slice %2 {offsets = [32, 0], sizes = [4, 4], strides = [1, 1]} : vector<36x4xf32> to vector<4x4xf32>
    %cst_16 = arith.constant dense<0.000000e+00> : vector<256x4xf32>
    %52 = tpu.matmul %50, %51, %cst_16 {dimension_numbers = #tpu.dot_dimension_numbers<[1], [0], [0], [1], [0, 0, 1, 1], [], []>} : vector<256x4xf32>, vector<4x4xf32>, vector<256x4xf32> -> vector<256x4xf32>
    %53 = arith.addf %47, %52 : vector<256x4xf32>
    %cst_17 = arith.constant 0.000000e+00 : f32
    %54 = vector.broadcast %cst_17 : f32 to vector<17x4xf32>
    %c0_18 = arith.constant 0 : index
    %c0_19 = arith.constant 0 : index
    %c0_20 = arith.constant 0 : index
    %55 = vector.load %arg5[%c0_18, %c0_19, %c0_20] : memref<1x290x4xf32, #tpu.memory_space<vmem>>, vector<1x17x4xf32>
    %56 = vector.shape_cast %55 : vector<1x17x4xf32> to vector<17x4xf32>
    %57 = vector.shape_cast %54 : vector<17x4xf32> to vector<1x17x4xf32>
    tpu.vector_store %arg5[%c0_18, %c0_19, %c0_20], %57 {strides = array<i32>} : memref<1x290x4xf32, #tpu.memory_space<vmem>>, vector<1x17x4xf32>,
    %c0_21 = arith.constant 0 : index
    %c17 = arith.constant 17 : index
    %c0_22 = arith.constant 0 : index
    %58 = vector.load %arg5[%c0_21, %c17, %c0_22] : memref<1x290x4xf32, #tpu.memory_space<vmem>>, vector<1x256x4xf32>
    %59 = vector.shape_cast %58 : vector<1x256x4xf32> to vector<256x4xf32>
    %60 = vector.shape_cast %53 : vector<256x4xf32> to vector<1x256x4xf32>
    tpu.vector_store %arg5[%c0_21, %c17, %c0_22], %60 {strides = array<i32>} : memref<1x290x4xf32, #tpu.memory_space<vmem>>, vector<1x256x4xf32>,
    %cst_23 = arith.constant 0.000000e+00 : f32
    %61 = vector.broadcast %cst_23 : f32 to vector<17x4xf32>
    %c0_24 = arith.constant 0 : index
    %c273 = arith.constant 273 : index
    %c0_25 = arith.constant 0 : index
    %62 = vector.load %arg5[%c0_24, %c273, %c0_25] : memref<1x290x4xf32, #tpu.memory_space<vmem>>, vector<1x17x4xf32>
    %63 = vector.shape_cast %62 : vector<1x17x4xf32> to vector<17x4xf32>
    %64 = vector.shape_cast %61 : vector<17x4xf32> to vector<1x17x4xf32>
    tpu.vector_store %arg5[%c0_24, %c273, %c0_25], %64 {strides = array<i32>} : memref<1x290x4xf32, #tpu.memory_space<vmem>>, vector<1x17x4xf32>,
    %cst_26 = arith.constant dense<0.000000e+00> : vector<4xf32>
    %65 = vector.multi_reduction <add>, %53, %cst_26 [0] : vector<256x4xf32> to vector<4xf32>
    %66 = vector.shape_cast %65 : vector<4xf32> to vector<1x4xf32>
    %c0_27 = arith.constant 0 : index
    %c0_28 = arith.constant 0 : index
    %c0_29 = arith.constant 0 : index
    %67 = vector.load %arg6[%c0_27, %c0_28, %c0_29] : memref<1x1x4xf32, #tpu.memory_space<vmem>>, vector<1x1x4xf32>
    %68 = vector.shape_cast %67 : vector<1x1x4xf32> to vector<1x4xf32>
    %69 = vector.shape_cast %66 : vector<1x4xf32> to vector<1x1x4xf32>
    tpu.vector_store %arg6[%c0_27, %c0_28, %c0_29], %69 {strides = array<i32>} : memref<1x1x4xf32, #tpu.memory_space<vmem>>, vector<1x1x4xf32>,
    %70 = arith.mulf %53, %53 : vector<256x4xf32>
    %cst_30 = arith.constant dense<0.000000e+00> : vector<4xf32>
    %71 = vector.multi_reduction <add>, %70, %cst_30 [0] : vector<256x4xf32> to vector<4xf32>
    %72 = vector.shape_cast %71 : vector<4xf32> to vector<1x4xf32>
    %c0_31 = arith.constant 0 : index
    %c0_32 = arith.constant 0 : index
    %c0_33 = arith.constant 0 : index
    %73 = vector.load %arg7[%c0_31, %c0_32, %c0_33] : memref<1x1x4xf32, #tpu.memory_space<vmem>>, vector<1x1x4xf32>
    %74 = vector.shape_cast %73 : vector<1x1x4xf32> to vector<1x4xf32>
    %75 = vector.shape_cast %72 : vector<1x4xf32> to vector<1x1x4xf32>
    tpu.vector_store %arg7[%c0_31, %c0_32, %c0_33], %75 {strides = array<i32>} : memref<1x1x4xf32, #tpu.memory_space<vmem>>, vector<1x1x4xf32>,
    return
  }
  func.func @transform_0(%arg0: i32) -> (i32, i32, i32) {
    %c0_i32 = arith.constant 0 : i32
    %c0_i32_0 = arith.constant 0 : i32
    %c0_i32_1 = arith.constant 0 : i32
    return %arg0, %c0_i32, %c0_i32_0 : i32, i32, i32
  }
  func.func @transform_1(%arg0: i32) -> (i32, i32) {
    %c0_i32 = arith.constant 0 : i32
    %c0_i32_0 = arith.constant 0 : i32
    %c0_i32_1 = arith.constant 0 : i32
    return %c0_i32, %c0_i32_0 : i32, i32
  }
  func.func @transform_2(%arg0: i32) -> (i32, i32) {
    %c0_i32 = arith.constant 0 : i32
    %c0_i32_0 = arith.constant 0 : i32
    %c0_i32_1 = arith.constant 0 : i32
    return %c0_i32, %c0_i32_0 : i32, i32
  }
  func.func @transform_3(%arg0: i32) -> (i32, i32) {
    %c0_i32 = arith.constant 0 : i32
    %c0_i32_0 = arith.constant 0 : i32
    %c0_i32_1 = arith.constant 0 : i32
    return %c0_i32, %c0_i32_0 : i32, i32
  }
  func.func @transform_4(%arg0: i32) -> (i32, i32, i32) {
    %c0_i32 = arith.constant 0 : i32
    %c0_i32_0 = arith.constant 0 : i32
    %c0_i32_1 = arith.constant 0 : i32
    return %arg0, %c0_i32, %c0_i32_0 : i32, i32, i32
  }
  func.func @transform_5(%arg0: i32) -> (i32, i32, i32) {
    %c0_i32 = arith.constant 0 : i32
    %c0_i32_0 = arith.constant 0 : i32
    %c0_i32_1 = arith.constant 0 : i32
    return %arg0, %c0_i32, %c0_i32_0 : i32, i32, i32
  }
  func.func @transform_6(%arg0: i32) -> (i32, i32, i32) {
    %c0_i32 = arith.constant 0 : i32
    %c0_i32_0 = arith.constant 0 : i32
    %c0_i32_1 = arith.constant 0 : i32
    return %arg0, %c0_i32, %c0_i32_0 : i32, i32, i32
  }
}

module attributes {stable_mosaic.version = 11 : i64} {
  func.func @_bn_residual_kernel(%arg0: i32, %arg1: memref<1x256x4xf32, #tpu.memory_space<vmem>>, %arg2: memref<1x256x4xf32, #tpu.memory_space<vmem>>, %arg3: memref<1x4xf32, #tpu.memory_space<vmem>>, %arg4: memref<1x4xf32, #tpu.memory_space<vmem>>, %arg5: memref<1x256x4xf32, #tpu.memory_space<vmem>>) attributes {dimension_semantics = [#tpu.dimension_semantics<parallel>], iteration_bounds = array<i64: 2>, scalar_prefetch = 0 : i64, scratch_operands = 0 : i64, tpu.core_type = #tpu.core_type<tc>, window_params = [{transform_indices = @transform_0, window_bounds = array<i64: 1, 256, 4>}, {transform_indices = @transform_1, window_bounds = array<i64: 1, 256, 4>}, {pipeline_mode = #tpu.pipeline_mode<synchronous>, transform_indices = @transform_2, window_bounds = array<i64: 1, 4>}, {pipeline_mode = #tpu.pipeline_mode<synchronous>, transform_indices = @transform_3, window_bounds = array<i64: 1, 4>}, {transform_indices = @transform_4, window_bounds = array<i64: 1, 256, 4>}]} {
    %c0 = arith.constant 0 : index
    %c0_0 = arith.constant 0 : index
    %c0_1 = arith.constant 0 : index
    %0 = vector.load %arg1[%c0, %c0_0, %c0_1] : memref<1x256x4xf32, #tpu.memory_space<vmem>>, vector<1x256x4xf32>
    %1 = vector.shape_cast %0 : vector<1x256x4xf32> to vector<256x4xf32>
    %c0_2 = arith.constant 0 : index
    %c0_3 = arith.constant 0 : index
    %c0_4 = arith.constant 0 : index
    %2 = vector.load %arg2[%c0_2, %c0_3, %c0_4] : memref<1x256x4xf32, #tpu.memory_space<vmem>>, vector<1x256x4xf32>
    %3 = vector.shape_cast %2 : vector<1x256x4xf32> to vector<256x4xf32>
    %c0_5 = arith.constant 0 : index
    %c0_6 = arith.constant 0 : index
    %4 = vector.load %arg3[%c0_5, %c0_6] : memref<1x4xf32, #tpu.memory_space<vmem>>, vector<1x4xf32>
    %5 = vector.broadcast %4 : vector<1x4xf32> to vector<256x4xf32>
    %6 = arith.mulf %3, %5 : vector<256x4xf32>
    %7 = arith.addf %1, %6 : vector<256x4xf32>
    %c0_7 = arith.constant 0 : index
    %c0_8 = arith.constant 0 : index
    %8 = vector.load %arg4[%c0_7, %c0_8] : memref<1x4xf32, #tpu.memory_space<vmem>>, vector<1x4xf32>
    %9 = vector.broadcast %8 : vector<1x4xf32> to vector<256x4xf32>
    %10 = arith.addf %7, %9 : vector<256x4xf32>
    %c0_9 = arith.constant 0 : index
    %c0_10 = arith.constant 0 : index
    %c0_11 = arith.constant 0 : index
    %11 = vector.load %arg5[%c0_9, %c0_10, %c0_11] : memref<1x256x4xf32, #tpu.memory_space<vmem>>, vector<1x256x4xf32>
    %12 = vector.shape_cast %11 : vector<1x256x4xf32> to vector<256x4xf32>
    %13 = vector.shape_cast %10 : vector<256x4xf32> to vector<1x256x4xf32>
    tpu.vector_store %arg5[%c0_9, %c0_10, %c0_11], %13 {strides = array<i32>} : memref<1x256x4xf32, #tpu.memory_space<vmem>>, vector<1x256x4xf32>,
    return
  }
  func.func @transform_0(%arg0: i32) -> (i32, i32, i32) {
    %c0_i32 = arith.constant 0 : i32
    %c0_i32_0 = arith.constant 0 : i32
    %c0_i32_1 = arith.constant 0 : i32
    return %arg0, %c0_i32, %c0_i32_0 : i32, i32, i32
  }
  func.func @transform_1(%arg0: i32) -> (i32, i32, i32) {
    %c0_i32 = arith.constant 0 : i32
    %c0_i32_0 = arith.constant 0 : i32
    %c0_i32_1 = arith.constant 0 : i32
    return %arg0, %c0_i32, %c0_i32_0 : i32, i32, i32
  }
  func.func @transform_2(%arg0: i32) -> (i32, i32) {
    %c0_i32 = arith.constant 0 : i32
    %c0_i32_0 = arith.constant 0 : i32
    %c0_i32_1 = arith.constant 0 : i32
    return %c0_i32, %c0_i32_0 : i32, i32
  }
  func.func @transform_3(%arg0: i32) -> (i32, i32) {
    %c0_i32 = arith.constant 0 : i32
    %c0_i32_0 = arith.constant 0 : i32
    %c0_i32_1 = arith.constant 0 : i32
    return %c0_i32, %c0_i32_0 : i32, i32
  }
  func.func @transform_4(%arg0: i32) -> (i32, i32, i32) {
    %c0_i32 = arith.constant 0 : i32
    %c0_i32_0 = arith.constant 0 : i32
    %c0_i32_1 = arith.constant 0 : i32
    return %arg0, %c0_i32, %c0_i32_0 : i32, i32, i32
  }
}

module attributes {stable_mosaic.version = 11 : i64} {
  func.func @kernel(%arg0: i32, %arg1: memref<1x290x4xf32, #tpu.memory_space<vmem>>, %arg2: memref<1x4xf32, #tpu.memory_space<vmem>>, %arg3: memref<1x4xf32, #tpu.memory_space<vmem>>, %arg4: memref<290x1xf32, #tpu.memory_space<vmem>>, %arg5: memref<36x4xf32, #tpu.memory_space<vmem>>, %arg6: memref<256x1xf32, #tpu.memory_space<vmem>>, %arg7: memref<256x1xf32, #tpu.memory_space<vmem>>, %arg8: memref<1x256x4xf32, #tpu.memory_space<vmem>>, %arg9: memref<1x1x4xf32, #tpu.memory_space<vmem>>, %arg10: memref<1x1x4xf32, #tpu.memory_space<vmem>>) attributes {dimension_semantics = [#tpu.dimension_semantics<parallel>], iteration_bounds = array<i64: 2>, scalar_prefetch = 0 : i64, scratch_operands = 0 : i64, tpu.core_type = #tpu.core_type<tc>, window_params = [{transform_indices = @transform_0, window_bounds = array<i64: 1, 290, 4>}, {pipeline_mode = #tpu.pipeline_mode<synchronous>, transform_indices = @transform_1, window_bounds = array<i64: 1, 4>}, {pipeline_mode = #tpu.pipeline_mode<synchronous>, transform_indices = @transform_2, window_bounds = array<i64: 1, 4>}, {pipeline_mode = #tpu.pipeline_mode<synchronous>, transform_indices = @transform_3, window_bounds = array<i64: 290, 1>}, {pipeline_mode = #tpu.pipeline_mode<synchronous>, transform_indices = @transform_4, window_bounds = array<i64: 36, 4>}, {pipeline_mode = #tpu.pipeline_mode<synchronous>, transform_indices = @transform_5, window_bounds = array<i64: 256, 1>}, {pipeline_mode = #tpu.pipeline_mode<synchronous>, transform_indices = @transform_6, window_bounds = array<i64: 256, 1>}, {transform_indices = @transform_7, window_bounds = array<i64: 1, 256, 4>}, {transform_indices = @transform_8, window_bounds = array<i64: 1, 1, 4>}, {transform_indices = @transform_9, window_bounds = array<i64: 1, 1, 4>}]} {
    %c0 = arith.constant 0 : index
    %c0_0 = arith.constant 0 : index
    %c0_1 = arith.constant 0 : index
    %0 = vector.load %arg1[%c0, %c0_0, %c0_1] : memref<1x290x4xf32, #tpu.memory_space<vmem>>, vector<1x290x4xf32>
    %1 = vector.shape_cast %0 : vector<1x290x4xf32> to vector<290x4xf32>
    %c0_2 = arith.constant 0 : index
    %c0_3 = arith.constant 0 : index
    %2 = vector.load %arg2[%c0_2, %c0_3] : memref<1x4xf32, #tpu.memory_space<vmem>>, vector<1x4xf32>
    %3 = vector.broadcast %2 : vector<1x4xf32> to vector<290x4xf32>
    %4 = arith.mulf %1, %3 : vector<290x4xf32>
    %c0_4 = arith.constant 0 : index
    %c0_5 = arith.constant 0 : index
    %5 = vector.load %arg3[%c0_4, %c0_5] : memref<1x4xf32, #tpu.memory_space<vmem>>, vector<1x4xf32>
    %6 = vector.broadcast %5 : vector<1x4xf32> to vector<290x4xf32>
    %7 = arith.addf %4, %6 : vector<290x4xf32>
    %cst = arith.constant 0.000000e+00 : f32
    %8 = vector.broadcast %cst : f32 to vector<290x4xf32>
    %9 = arith.maximumf %7, %8 : vector<290x4xf32>
    %c0_6 = arith.constant 0 : index
    %c0_7 = arith.constant 0 : index
    %10 = vector.load %arg4[%c0_6, %c0_7] : memref<290x1xf32, #tpu.memory_space<vmem>>, vector<290x1xf32>
    %11 = vector.broadcast %10 : vector<290x1xf32> to vector<290x4xf32>
    %12 = arith.mulf %9, %11 : vector<290x4xf32>
    %c0_8 = arith.constant 0 : index
    %c0_9 = arith.constant 0 : index
    %13 = vector.load %arg5[%c0_8, %c0_9] : memref<36x4xf32, #tpu.memory_space<vmem>>, vector<36x4xf32>
    %c0_10 = arith.constant 0 : index
    %c0_11 = arith.constant 0 : index
    %14 = vector.load %arg6[%c0_10, %c0_11] : memref<256x1xf32, #tpu.memory_space<vmem>>, vector<256x1xf32>
    %c0_12 = arith.constant 0 : index
    %c0_13 = arith.constant 0 : index
    %15 = vector.load %arg7[%c0_12, %c0_13] : memref<256x1xf32, #tpu.memory_space<vmem>>, vector<256x1xf32>
    %cst_14 = arith.constant 0.000000e+00 : f32
    %16 = vector.broadcast %cst_14 : f32 to vector<256x4xf32>
    %17 = vector.extract_strided_slice %12 {offsets = [0, 0], sizes = [256, 4], strides = [1, 1]} : vector<290x4xf32> to vector<256x4xf32>
    %18 = vector.broadcast %14 : vector<256x1xf32> to vector<256x4xf32>
    %19 = arith.mulf %17, %18 : vector<256x4xf32>
    %20 = vector.extract_strided_slice %13 {offsets = [0, 0], sizes = [4, 4], strides = [1, 1]} : vector<36x4xf32> to vector<4x4xf32>
    %cst_15 = arith.constant dense<0.000000e+00> : vector<256x4xf32>
    %21 = tpu.matmul %19, %20, %cst_15 {dimension_numbers = #tpu.dot_dimension_numbers<[1], [0], [0], [1], [0, 0, 1, 1], [], []>} : vector<256x4xf32>, vector<4x4xf32>, vector<256x4xf32> -> vector<256x4xf32>
    %22 = arith.addf %16, %21 : vector<256x4xf32>
    %23 = vector.extract_strided_slice %12 {offsets = [1, 0], sizes = [256, 4], strides = [1, 1]} : vector<290x4xf32> to vector<256x4xf32>
    %24 = vector.extract_strided_slice %13 {offsets = [4, 0], sizes = [4, 4], strides = [1, 1]} : vector<36x4xf32> to vector<4x4xf32>
    %cst_16 = arith.constant dense<0.000000e+00> : vector<256x4xf32>
    %25 = tpu.matmul %23, %24, %cst_16 {dimension_numbers = #tpu.dot_dimension_numbers<[1], [0], [0], [1], [0, 0, 1, 1], [], []>} : vector<256x4xf32>, vector<4x4xf32>, vector<256x4xf32> -> vector<256x4xf32>
    %26 = arith.addf %22, %25 : vector<256x4xf32>
    %27 = vector.extract_strided_slice %12 {offsets = [2, 0], sizes = [256, 4], strides = [1, 1]} : vector<290x4xf32> to vector<256x4xf32>
    %28 = vector.broadcast %15 : vector<256x1xf32> to vector<256x4xf32>
    %29 = arith.mulf %27, %28 : vector<256x4xf32>
    %30 = vector.extract_strided_slice %13 {offsets = [8, 0], sizes = [4, 4], strides = [1, 1]} : vector<36x4xf32> to vector<4x4xf32>
    %cst_17 = arith.constant dense<0.000000e+00> : vector<256x4xf32>
    %31 = tpu.matmul %29, %30, %cst_17 {dimension_numbers = #tpu.dot_dimension_numbers<[1], [0], [0], [1], [0, 0, 1, 1], [], []>} : vector<256x4xf32>, vector<4x4xf32>, vector<256x4xf32> -> vector<256x4xf32>
    %32 = arith.addf %26, %31 : vector<256x4xf32>
    %33 = vector.extract_strided_slice %12 {offsets = [16, 0], sizes = [256, 4], strides = [1, 1]} : vector<290x4xf32> to vector<256x4xf32>
    %34 = vector.broadcast %14 : vector<256x1xf32> to vector<256x4xf32>
    %35 = arith.mulf %33, %34 : vector<256x4xf32>
    %36 = vector.extract_strided_slice %13 {offsets = [12, 0], sizes = [4, 4], strides = [1, 1]} : vector<36x4xf32> to vector<4x4xf32>
    %cst_18 = arith.constant dense<0.000000e+00> : vector<256x4xf32>
    %37 = tpu.matmul %35, %36, %cst_18 {dimension_numbers = #tpu.dot_dimension_numbers<[1], [0], [0], [1], [0, 0, 1, 1], [], []>} : vector<256x4xf32>, vector<4x4xf32>, vector<256x4xf32> -> vector<256x4xf32>
    %38 = arith.addf %32, %37 : vector<256x4xf32>
    %39 = vector.extract_strided_slice %12 {offsets = [17, 0], sizes = [256, 4], strides = [1, 1]} : vector<290x4xf32> to vector<256x4xf32>
    %40 = vector.extract_strided_slice %13 {offsets = [16, 0], sizes = [4, 4], strides = [1, 1]} : vector<36x4xf32> to vector<4x4xf32>
    %cst_19 = arith.constant dense<0.000000e+00> : vector<256x4xf32>
    %41 = tpu.matmul %39, %40, %cst_19 {dimension_numbers = #tpu.dot_dimension_numbers<[1], [0], [0], [1], [0, 0, 1, 1], [], []>} : vector<256x4xf32>, vector<4x4xf32>, vector<256x4xf32> -> vector<256x4xf32>
    %42 = arith.addf %38, %41 : vector<256x4xf32>
    %43 = vector.extract_strided_slice %12 {offsets = [18, 0], sizes = [256, 4], strides = [1, 1]} : vector<290x4xf32> to vector<256x4xf32>
    %44 = vector.broadcast %15 : vector<256x1xf32> to vector<256x4xf32>
    %45 = arith.mulf %43, %44 : vector<256x4xf32>
    %46 = vector.extract_strided_slice %13 {offsets = [20, 0], sizes = [4, 4], strides = [1, 1]} : vector<36x4xf32> to vector<4x4xf32>
    %cst_20 = arith.constant dense<0.000000e+00> : vector<256x4xf32>
    %47 = tpu.matmul %45, %46, %cst_20 {dimension_numbers = #tpu.dot_dimension_numbers<[1], [0], [0], [1], [0, 0, 1, 1], [], []>} : vector<256x4xf32>, vector<4x4xf32>, vector<256x4xf32> -> vector<256x4xf32>
    %48 = arith.addf %42, %47 : vector<256x4xf32>
    %49 = vector.extract_strided_slice %12 {offsets = [32, 0], sizes = [256, 4], strides = [1, 1]} : vector<290x4xf32> to vector<256x4xf32>
    %50 = vector.broadcast %14 : vector<256x1xf32> to vector<256x4xf32>
    %51 = arith.mulf %49, %50 : vector<256x4xf32>
    %52 = vector.extract_strided_slice %13 {offsets = [24, 0], sizes = [4, 4], strides = [1, 1]} : vector<36x4xf32> to vector<4x4xf32>
    %cst_21 = arith.constant dense<0.000000e+00> : vector<256x4xf32>
    %53 = tpu.matmul %51, %52, %cst_21 {dimension_numbers = #tpu.dot_dimension_numbers<[1], [0], [0], [1], [0, 0, 1, 1], [], []>} : vector<256x4xf32>, vector<4x4xf32>, vector<256x4xf32> -> vector<256x4xf32>
    %54 = arith.addf %48, %53 : vector<256x4xf32>
    %55 = vector.extract_strided_slice %12 {offsets = [33, 0], sizes = [256, 4], strides = [1, 1]} : vector<290x4xf32> to vector<256x4xf32>
    %56 = vector.extract_strided_slice %13 {offsets = [28, 0], sizes = [4, 4], strides = [1, 1]} : vector<36x4xf32> to vector<4x4xf32>
    %cst_22 = arith.constant dense<0.000000e+00> : vector<256x4xf32>
    %57 = tpu.matmul %55, %56, %cst_22 {dimension_numbers = #tpu.dot_dimension_numbers<[1], [0], [0], [1], [0, 0, 1, 1], [], []>} : vector<256x4xf32>, vector<4x4xf32>, vector<256x4xf32> -> vector<256x4xf32>
    %58 = arith.addf %54, %57 : vector<256x4xf32>
    %59 = vector.extract_strided_slice %12 {offsets = [34, 0], sizes = [256, 4], strides = [1, 1]} : vector<290x4xf32> to vector<256x4xf32>
    %60 = vector.broadcast %15 : vector<256x1xf32> to vector<256x4xf32>
    %61 = arith.mulf %59, %60 : vector<256x4xf32>
    %62 = vector.extract_strided_slice %13 {offsets = [32, 0], sizes = [4, 4], strides = [1, 1]} : vector<36x4xf32> to vector<4x4xf32>
    %cst_23 = arith.constant dense<0.000000e+00> : vector<256x4xf32>
    %63 = tpu.matmul %61, %62, %cst_23 {dimension_numbers = #tpu.dot_dimension_numbers<[1], [0], [0], [1], [0, 0, 1, 1], [], []>} : vector<256x4xf32>, vector<4x4xf32>, vector<256x4xf32> -> vector<256x4xf32>
    %64 = arith.addf %58, %63 : vector<256x4xf32>
    %c0_24 = arith.constant 0 : index
    %c0_25 = arith.constant 0 : index
    %c0_26 = arith.constant 0 : index
    %65 = vector.load %arg8[%c0_24, %c0_25, %c0_26] : memref<1x256x4xf32, #tpu.memory_space<vmem>>, vector<1x256x4xf32>
    %66 = vector.shape_cast %65 : vector<1x256x4xf32> to vector<256x4xf32>
    %67 = vector.shape_cast %64 : vector<256x4xf32> to vector<1x256x4xf32>
    tpu.vector_store %arg8[%c0_24, %c0_25, %c0_26], %67 {strides = array<i32>} : memref<1x256x4xf32, #tpu.memory_space<vmem>>, vector<1x256x4xf32>,
    %cst_27 = arith.constant dense<0.000000e+00> : vector<4xf32>
    %68 = vector.multi_reduction <add>, %64, %cst_27 [0] : vector<256x4xf32> to vector<4xf32>
    %69 = vector.shape_cast %68 : vector<4xf32> to vector<1x4xf32>
    %c0_28 = arith.constant 0 : index
    %c0_29 = arith.constant 0 : index
    %c0_30 = arith.constant 0 : index
    %70 = vector.load %arg9[%c0_28, %c0_29, %c0_30] : memref<1x1x4xf32, #tpu.memory_space<vmem>>, vector<1x1x4xf32>
    %71 = vector.shape_cast %70 : vector<1x1x4xf32> to vector<1x4xf32>
    %72 = vector.shape_cast %69 : vector<1x4xf32> to vector<1x1x4xf32>
    tpu.vector_store %arg9[%c0_28, %c0_29, %c0_30], %72 {strides = array<i32>} : memref<1x1x4xf32, #tpu.memory_space<vmem>>, vector<1x1x4xf32>,
    %73 = arith.mulf %64, %64 : vector<256x4xf32>
    %cst_31 = arith.constant dense<0.000000e+00> : vector<4xf32>
    %74 = vector.multi_reduction <add>, %73, %cst_31 [0] : vector<256x4xf32> to vector<4xf32>
    %75 = vector.shape_cast %74 : vector<4xf32> to vector<1x4xf32>
    %c0_32 = arith.constant 0 : index
    %c0_33 = arith.constant 0 : index
    %c0_34 = arith.constant 0 : index
    %76 = vector.load %arg10[%c0_32, %c0_33, %c0_34] : memref<1x1x4xf32, #tpu.memory_space<vmem>>, vector<1x1x4xf32>
    %77 = vector.shape_cast %76 : vector<1x1x4xf32> to vector<1x4xf32>
    %78 = vector.shape_cast %75 : vector<1x4xf32> to vector<1x1x4xf32>
    tpu.vector_store %arg10[%c0_32, %c0_33, %c0_34], %78 {strides = array<i32>} : memref<1x1x4xf32, #tpu.memory_space<vmem>>, vector<1x1x4xf32>,
    return
  }
  func.func @transform_0(%arg0: i32) -> (i32, i32, i32) {
    %c0_i32 = arith.constant 0 : i32
    %c0_i32_0 = arith.constant 0 : i32
    %c0_i32_1 = arith.constant 0 : i32
    return %arg0, %c0_i32, %c0_i32_0 : i32, i32, i32
  }
  func.func @transform_1(%arg0: i32) -> (i32, i32) {
    %c0_i32 = arith.constant 0 : i32
    %c0_i32_0 = arith.constant 0 : i32
    %c0_i32_1 = arith.constant 0 : i32
    return %c0_i32, %c0_i32_0 : i32, i32
  }
  func.func @transform_2(%arg0: i32) -> (i32, i32) {
    %c0_i32 = arith.constant 0 : i32
    %c0_i32_0 = arith.constant 0 : i32
    %c0_i32_1 = arith.constant 0 : i32
    return %c0_i32, %c0_i32_0 : i32, i32
  }
  func.func @transform_3(%arg0: i32) -> (i32, i32) {
    %c0_i32 = arith.constant 0 : i32
    %c0_i32_0 = arith.constant 0 : i32
    %c0_i32_1 = arith.constant 0 : i32
    return %c0_i32, %c0_i32_0 : i32, i32
  }
  func.func @transform_4(%arg0: i32) -> (i32, i32) {
    %c0_i32 = arith.constant 0 : i32
    %c0_i32_0 = arith.constant 0 : i32
    %c0_i32_1 = arith.constant 0 : i32
    return %c0_i32, %c0_i32_0 : i32, i32
  }
  func.func @transform_5(%arg0: i32) -> (i32, i32) {
    %c0_i32 = arith.constant 0 : i32
    %c0_i32_0 = arith.constant 0 : i32
    %c0_i32_1 = arith.constant 0 : i32
    return %c0_i32, %c0_i32_0 : i32, i32
  }
  func.func @transform_6(%arg0: i32) -> (i32, i32) {
    %c0_i32 = arith.constant 0 : i32
    %c0_i32_0 = arith.constant 0 : i32
    %c0_i32_1 = arith.constant 0 : i32
    return %c0_i32, %c0_i32_0 : i32, i32
  }
  func.func @transform_7(%arg0: i32) -> (i32, i32, i32) {
    %c0_i32 = arith.constant 0 : i32
    %c0_i32_0 = arith.constant 0 : i32
    %c0_i32_1 = arith.constant 0 : i32
    return %arg0, %c0_i32, %c0_i32_0 : i32, i32, i32
  }
  func.func @transform_8(%arg0: i32) -> (i32, i32, i32) {
    %c0_i32 = arith.constant 0 : i32
    %c0_i32_0 = arith.constant 0 : i32
    %c0_i32_1 = arith.constant 0 : i32
    return %arg0, %c0_i32, %c0_i32_0 : i32, i32, i32
  }
  func.func @transform_9(%arg0: i32) -> (i32, i32, i32) {
    %c0_i32 = arith.constant 0 : i32
    %c0_i32_0 = arith.constant 0 : i32
    %c0_i32_1 = arith.constant 0 : i32
    return %arg0, %c0_i32, %c0_i32_0 : i32, i32, i32
  }
}

</mosaic_0001>

<llo_original>
// kernel: residual_block.5
$region0: #{residual_block.5}
  #allocation0 [shape = 'u32[]', space=smem, size = 0x4, offset = 0x4, fixed_abs, tag = 'smem constant byte address 0x4 - core index']
  #allocation1 [shape = 'u32[144,128]{1,0:T(1,128)}', space=vmem, size = 0x12000, scoped, tag = 'internal scratch']
  %s0 = inlined_call_operand.vmem [shape: f32[2,256,4], index: 0, kind: input, shape index: {}]
  %s1 = inlined_call_operand.vmem [shape: f32[2,256,4], index: 1, kind: input, shape index: {}, may-alias: {1,4}]
  %s2 = inlined_call_operand.vmem [shape: f32[1,4], index: 2, kind: input, shape index: {}]
  %s3 = inlined_call_operand.vmem [shape: f32[1,4], index: 3, kind: input, shape index: {}]
  %s4 = inlined_call_operand.vmem [shape: f32[2,256,4], index: 4, kind: output, shape index: {}, may-alias: {1,4}]
  %s5 = sld [smem:[#allocation0]]
  $region49: #{residual_block.5} parent=0
    _
  %s7 = ssub.s32 1, %s5
  %s8 = scalar_select 0, %s7, %s5
  loop: start=0, step=1, limit=4
  $region2: #{residual_block.5} parent=0 // loop_pre_header
    _
  $region3: #{residual_block.5} parent=0 // loop_header
    %s10 = sphi 0, %s14
    %p11 = scmp.ge.s32.totalorder %s10, 4
    %s20 = sphi 0, %s22
    %s23 = sphi 0, %s20
    %s24 = sphi 0, %s23
    %s40 = sphi 0, %s24
    %s46 = sphi 0, %s48
    %s49 = sphi 0, %s46
    %s50 = sphi 0, %s49
    %s66 = sphi 0, %s50
    %s70 = sphi 0, %s70
    %s72 = sphi 0, %s70
    %s73 = sphi 0, %s72
    %s87 = sphi 0, %s73
    %s91 = sphi 0, %s91
    %s93 = sphi 0, %s91
    %s94 = sphi 0, %s93
    %s108 = sphi 0, %s94
    %s114 = sphi 0, %s116
    %s117 = sphi 0, %s114
    %s118 = sphi 0, %s117
    %s134 = sphi 0, %s118
  $region4: #{residual_block.5} parent=0 // loop_header_branch
    %13 = sbr.rel (%p11) target = $region8
  $region5: #{residual_block.5} parent=0 // loop_body
    %s15 = ssub.s32 %s10, 1
    %s16 = ssub.s32 %s10, 2
    %s17 = sadd.s32 %s10, 1
    %s18 = ssub.s32 %s10, %s17
    %p19 = scmp.eq.s32.totalorder %s18, 0
    %s21 = sadd.s32 %s20, 1
    %s22 = scalar_select %p19, %s20, %s21
    %p25 = pneg %p19
    %p26 = scmp.eq.s32.totalorder %s10, 1
    %p27 = por %p25, %p26
    %p28 = scmp.ne.s32.totalorder %s20, %s23
    %p29 = scmp.eq.s32.totalorder %s10, 0
    %p30 = por %p28, %p29
    %p31 = scmp.ne.s32.totalorder %s20, %s23
    %p32 = scmp.eq.s32.totalorder %s15, 1
    %p33 = por %p31, %p32
    %p34 = scmp.ne.s32.totalorder %s23, %s24
    %p35 = scmp.eq.s32.totalorder %s15, 0
    %p36 = por %p34, %p35
    %p37 = scmp.ne.s32.totalorder %s23, %s24
    %p38 = scmp.eq.s32.totalorder %s16, 1
    %p39 = por %p37, %p38
    %p41 = scmp.ne.s32.totalorder %s24, %s40
    %p42 = scmp.eq.s32.totalorder %s16, 0
    %p43 = por %p41, %p42
    %s44 = ssub.s32 %s10, %s17
    %p45 = scmp.eq.s32.totalorder %s44, 0
    %s47 = sadd.s32 %s46, 1
    %s48 = scalar_select %p45, %s46, %s47
    %p51 = pneg %p45
    %p52 = scmp.eq.s32.totalorder %s10, 1
    %p53 = por %p51, %p52
    %p54 = scmp.ne.s32.totalorder %s46, %s49
    %p55 = scmp.eq.s32.totalorder %s10, 0
    %p56 = por %p54, %p55
    %p57 = scmp.ne.s32.totalorder %s46, %s49
    %p58 = scmp.eq.s32.totalorder %s15, 1
    %p59 = por %p57, %p58
    %p60 = scmp.ne.s32.totalorder %s49, %s50
    %p61 = scmp.eq.s32.totalorder %s15, 0
    %p62 = por %p60, %p61
    %p63 = scmp.ne.s32.totalorder %s49, %s50
    %p64 = scmp.eq.s32.totalorder %s16, 1
    %p65 = por %p63, %p64
    %p67 = scmp.ne.s32.totalorder %s50, %s66
    %p68 = scmp.eq.s32.totalorder %s16, 0
    %p69 = por %p67, %p68
    %s71 = sadd.s32 %s70, 1
    %p74 = scmp.eq.s32.totalorder %s10, 1
    %p75 = scmp.ne.s32.totalorder %s70, %s72
    %p76 = scmp.eq.s32.totalorder %s10, 0
    %p77 = por %p75, %p76
    %p78 = scmp.ne.s32.totalorder %s70, %s72
    %p79 = scmp.eq.s32.totalorder %s15, 1
    %p80 = por %p78, %p79
    %p81 = scmp.ne.s32.totalorder %s72, %s73
    %p82 = scmp.eq.s32.totalorder %s15, 0
    %p83 = por %p81, %p82
    %p84 = scmp.ne.s32.totalorder %s72, %s73
    %p85 = scmp.eq.s32.totalorder %s16, 1
    %p86 = por %p84, %p85
    %p88 = scmp.ne.s32.totalorder %s73, %s87
    %p89 = scmp.eq.s32.totalorder %s16, 0
    %p90 = por %p88, %p89
    %s92 = sadd.s32 %s91, 1
    %p95 = scmp.eq.s32.totalorder %s10, 1
    %p96 = scmp.ne.s32.totalorder %s91, %s93
    %p97 = scmp.eq.s32.totalorder %s10, 0
    %p98 = por %p96, %p97
    %p99 = scmp.ne.s32.totalorder %s91, %s93
    %p100 = scmp.eq.s32.totalorder %s15, 1
    %p101 = por %p99, %p100
    %p102 = scmp.ne.s32.totalorder %s93, %s94
    %p103 = scmp.eq.s32.totalorder %s15, 0
    %p104 = por %p102, %p103
    %p105 = scmp.ne.s32.totalorder %s93, %s94
    %p106 = scmp.eq.s32.totalorder %s16, 1
    %p107 = por %p105, %p106
    %p109 = scmp.ne.s32.totalorder %s94, %s108
    %p110 = scmp.eq.s32.totalorder %s16, 0
    %p111 = por %p109, %p110
    %s112 = ssub.s32 %s10, %s17
    %p113 = scmp.eq.s32.totalorder %s112, 0
    %s115 = sadd.s32 %s114, 1
    %s116 = scalar_select %p113, %s114, %s115
    %p119 = pneg %p113
    %p120 = scmp.eq.s32.totalorder %s10, 1
    %p121 = por %p119, %p120
    %p122 = scmp.ne.s32.totalorder %s114, %s117
    %p123 = scmp.eq.s32.totalorder %s10, 0
    %p124 = por %p122, %p123
    %p125 = scmp.ne.s32.totalorder %s114, %s117
    %p126 = scmp.eq.s32.totalorder %s15, 1
    %p127 = por %p125, %p126
    %p128 = scmp.ne.s32.totalorder %s117, %s118
    %p129 = scmp.eq.s32.totalorder %s15, 0
    %p130 = por %p128, %p129
    %p131 = scmp.ne.s32.totalorder %s117, %s118
    %p132 = scmp.eq.s32.totalorder %s16, 1
    %p133 = por %p131, %p132
    %p135 = scmp.ne.s32.totalorder %s118, %s134
    %p136 = scmp.eq.s32.totalorder %s16, 0
    %p137 = por %p135, %p136
    %p138 = scmp.le.s32.totalorder 1, %s10
    %p139 = scmp.lt.s32.totalorder %s10, 3
    %p140 = pnand %p138, %p139
    %p141 = pneg %p140
    // Predicated region
    $region9: #{residual_block.5} parent=5 // pred_check
      _
    $region10: #{residual_block.5} parent=5 // pred_check_branch
      %143 = sbr.rel (%p140) target = $region12
    $region11: #{residual_block.5} parent=5 // pred_region
      %s144 = ssub.s32 %s10, 1
      // Predicated region
      $region13: #{residual_block.5} parent=11 // pred_check
        %p145 = pneg %p83
      $region14: #{residual_block.5} parent=11 // pred_check_branch
        %147 = sbr.rel (%p145) target = $region16
      $region15: #{residual_block.5} parent=11 // pred_region
        _
      $region16: #{residual_block.5} parent=11 // pred_fallthru
        _
      // Predicated region
      $region17: #{residual_block.5} parent=11 // pred_check
        %p148 = pneg %p104
      $region18: #{residual_block.5} parent=11 // pred_check_branch
        %150 = sbr.rel (%p148) target = $region20
      $region19: #{residual_block.5} parent=11 // pred_region
        _
      $region20: #{residual_block.5} parent=11 // pred_fallthru
        _
    $region12: #{residual_block.5} parent=5 // pred_fallthru
      _
    %p151 = scmp.lt.s32.totalorder %s10, 2
    // Predicated region
    $region21: #{residual_block.5} parent=5 // pred_check
      %p152 = pneg %p151
    $region22: #{residual_block.5} parent=5 // pred_check_branch
      %154 = sbr.rel (%p152) target = $region24
    $region23: #{residual_block.5} parent=5 // pred_region
      // Predicated region
      $region25: #{residual_block.5} parent=23 // pred_check
        %p155 = pneg %p30
      $region26: #{residual_block.5} parent=23 // pred_check_branch
        %157 = sbr.rel (%p155) target = $region28
      $region27: #{residual_block.5} parent=23 // pred_region
        %p158 = scmp.lt.s32.totalorder %s10, 1
        %s159 = scalar_select %p158, %s10, 1
        %s160 = smul.addr %s159, 32
        %s161 = smul.addr %s160, 8
        %s162 = scalar_lea.vmem %s0, %s161
      $region28: #{residual_block.5} parent=23 // pred_fallthru
        _
      // Predicated region
      $region29: #{residual_block.5} parent=23 // pred_check
        %p163 = pneg %p56
      $region30: #{residual_block.5} parent=23 // pred_check_branch
        %165 = sbr.rel (%p163) target = $region32
      $region31: #{residual_block.5} parent=23 // pred_region
        %p166 = scmp.lt.s32.totalorder %s10, 1
        %s167 = scalar_select %p166, %s10, 1
        %s168 = smul.addr %s167, 32
        %s169 = smul.addr %s168, 8
        %s170 = scalar_lea.vmem %s1, %s169
      $region32: #{residual_block.5} parent=23 // pred_fallthru
        _
    $region24: #{residual_block.5} parent=5 // pred_fallthru
      _
    %p171 = scmp.le.s32.totalorder 1, %s10
    %p172 = scmp.lt.s32.totalorder %s10, 3
    %p173 = pnand %p171, %p172
    %p174 = pneg %p173
    // Predicated region
    $region33: #{residual_block.5} parent=5 // pred_check
      _
    $region34: #{residual_block.5} parent=5 // pred_check_branch
      %176 = sbr.rel (%p173) target = $region36
    $region35: #{residual_block.5} parent=5 // pred_region
      %s177 = ssub.s32 %s10, 1
      %p178 = scmp.lt.s32.totalorder %s15, 1
      %s179 = scalar_select %p178, %s15, 1
      %s180 = smul.addr %s179, 32
      %s181 = smul.addr %s180, 8
      %s182 = scalar_lea.vmem %s0, %s181
      %p183 = pneg %p36
      %p184 = pneg %p33
      %p185 = scmp.lt.s32.totalorder %s15, 1
      %s186 = scalar_select %p185, %s15, 1
      %s187 = smul.addr %s186, 32
      %s188 = smul.addr %s187, 8
      %s189 = scalar_lea.vmem %s1, %s188
      %p190 = pneg %p62
      %p191 = pneg %p59
      %p192 = pneg %p83
      %p193 = pneg %p80
      %p194 = pneg %p104
      %p195 = pneg %p101
      %p196 = pneg %p130
      %p197 = pneg %p127
      %p198 = scmp.lt.s32.totalorder %s15, 1
      %s199 = scalar_select %p198, %s15, 1
      %s200 = smul.addr %s199, 32
      %s201 = smul.addr %s200, 8
      %s202 = scalar_lea.vmem %s4, %s201
      %p203 = scmp.lt.s32.totalorder %s15, 1
      %s204 = scalar_select %p203, %s15, 1
      %s205 = smul.addr %s204, 32
      %s206 = smul.addr %s205, 8
      %s207 = scalar_lea.vmem %s0, %s206
      %p208 = scmp.lt.s32.totalorder %s15, 1
      %s209 = scalar_select %p208, %s15, 1
      %s210 = smul.addr %s209, 32
      %s211 = smul.addr %s210, 8
      %s212 = scalar_lea.vmem %s1, %s211
      %p213 = scmp.lt.s32.totalorder %s15, 1
      %s214 = scalar_select %p213, %s15, 1
      %s215 = smul.addr %s214, 32
      %s216 = smul.addr %s215, 8
      %s217 = scalar_lea.vmem %s4, %s216
      %v218 = vld [vmem:[%s207] sm:$0xff]
      %v219 = vld [vmem:[%s207 + $0x8] sm:$0xff]
      %v220 = vld [vmem:[%s207 + $0x10] sm:$0xff]
      %v221 = vld [vmem:[%s207 + $0x18] sm:$0xff]
      %v222 = vld [vmem:[%s207 + $0x20] sm:$0xff]
      %v223 = vld [vmem:[%s207 + $0x28] sm:$0xff]
      %v224 = vld [vmem:[%s207 + $0x30] sm:$0xff]
      %v225 = vld [vmem:[%s207 + $0x38] sm:$0xff]
      %v226 = vld [vmem:[%s207 + $0x40] sm:$0xff]
      %v227 = vld [vmem:[%s207 + $0x48] sm:$0xff]
      %v228 = vld [vmem:[%s207 + $0x50] sm:$0xff]
      %v229 = vld [vmem:[%s207 + $0x58] sm:$0xff]
      %v230 = vld [vmem:[%s207 + $0x60] sm:$0xff]
      %v231 = vld [vmem:[%s207 + $0x68] sm:$0xff]
      %v232 = vld [vmem:[%s207 + $0x70] sm:$0xff]
      %v233 = vld [vmem:[%s207 + $0x78] sm:$0xff]
      %v234 = vld [vmem:[%s207 + $0x80] sm:$0xff]
      %v235 = vld [vmem:[%s207 + $0x88] sm:$0xff]
      %v236 = vld [vmem:[%s207 + $0x90] sm:$0xff]
      %v237 = vld [vmem:[%s207 + $0x98] sm:$0xff]
      %v238 = vld [vmem:[%s207 + $0xa0] sm:$0xff]
      %v239 = vld [vmem:[%s207 + $0xa8] sm:$0xff]
      %v240 = vld [vmem:[%s207 + $0xb0] sm:$0xff]
      %v241 = vld [vmem:[%s207 + $0xb8] sm:$0xff]
      %v242 = vld [vmem:[%s207 + $0xc0] sm:$0xff]
      %v243 = vld [vmem:[%s207 + $0xc8] sm:$0xff]
      %v244 = vld [vmem:[%s207 + $0xd0] sm:$0xff]
      %v245 = vld [vmem:[%s207 + $0xd8] sm:$0xff]
      %v246 = vld [vmem:[%s207 + $0xe0] sm:$0xff]
      %v247 = vld [vmem:[%s207 + $0xe8] sm:$0xff]
      %v248 = vld [vmem:[%s207 + $0xf0] sm:$0xff]
      %v249 = vld [vmem:[%s207 + $0xf8] sm:$0xff]
      %v250 = vld [vmem:[%s212] sm:$0xff]
      %v251 = vld [vmem:[%s212 + $0x8] sm:$0xff]
      %v252 = vld [vmem:[%s212 + $0x10] sm:$0xff]
      %v253 = vld [vmem:[%s212 + $0x18] sm:$0xff]
      %v254 = vld [vmem:[%s212 + $0x20] sm:$0xff]
      %v255 = vld [vmem:[%s212 + $0x28] sm:$0xff]
      %v256 = vld [vmem:[%s212 + $0x30] sm:$0xff]
      %v257 = vld [vmem:[%s212 + $0x38] sm:$0xff]
      %v258 = vld [vmem:[%s212 + $0x40] sm:$0xff]
      %v259 = vld [vmem:[%s212 + $0x48] sm:$0xff]
      %v260 = vld [vmem:[%s212 + $0x50] sm:$0xff]
      %v261 = vld [vmem:[%s212 + $0x58] sm:$0xff]
      %v262 = vld [vmem:[%s212 + $0x60] sm:$0xff]
      %v263 = vld [vmem:[%s212 + $0x68] sm:$0xff]
      %v264 = vld [vmem:[%s212 + $0x70] sm:$0xff]
      %v265 = vld [vmem:[%s212 + $0x78] sm:$0xff]
      %v266 = vld [vmem:[%s212 + $0x80] sm:$0xff]
      %v267 = vld [vmem:[%s212 + $0x88] sm:$0xff]
      %v268 = vld [vmem:[%s212 + $0x90] sm:$0xff]
      %v269 = vld [vmem:[%s212 + $0x98] sm:$0xff]
      %v270 = vld [vmem:[%s212 + $0xa0] sm:$0xff]
      %v271 = vld [vmem:[%s212 + $0xa8] sm:$0xff]
      %v272 = vld [vmem:[%s212 + $0xb0] sm:$0xff]
      %v273 = vld [vmem:[%s212 + $0xb8] sm:$0xff]
      %v274 = vld [vmem:[%s212 + $0xc0] sm:$0xff]
      %v275 = vld [vmem:[%s212 + $0xc8] sm:$0xff]
      %v276 = vld [vmem:[%s212 + $0xd0] sm:$0xff]
      %v277 = vld [vmem:[%s212 + $0xd8] sm:$0xff]
      %v278 = vld [vmem:[%s212 + $0xe0] sm:$0xff]
      %v279 = vld [vmem:[%s212 + $0xe8] sm:$0xff]
      %v280 = vld [vmem:[%s212 + $0xf0] sm:$0xff]
      %v281 = vld [vmem:[%s212 + $0xf8] sm:$0xff]
      %v282 = vld [vmem:[%s2] sm:$0x1]
      %v284 = vlaneseq
      %v285 = vshrl.u32 %v284, 7
      %v286 = vsub.s32 0, %v285
      %v287 = vrot.slane %v282, %v286
      %v289 = vmul.f32 %v250, %v287
      %v290 = vmul.f32 %v251, %v287
      %v291 = vmul.f32 %v252, %v287
      %v292 = vmul.f32 %v253, %v287
      %v293 = vmul.f32 %v254, %v287
      %v294 = vmul.f32 %v255, %v287
      %v295 = vmul.f32 %v256, %v287
      %v296 = vmul.f32 %v257, %v287
      %v297 = vmul.f32 %v258, %v287
      %v298 = vmul.f32 %v259, %v287
      %v299 = vmul.f32 %v260, %v287
      %v300 = vmul.f32 %v261, %v287
      %v301 = vmul.f32 %v262, %v287
      %v302 = vmul.f32 %v263, %v287
      %v303 = vmul.f32 %v264, %v287
      %v304 = vmul.f32 %v265, %v287
      %v305 = vmul.f32 %v266, %v287
      %v306 = vmul.f32 %v267, %v287
      %v307 = vmul.f32 %v268, %v287
      %v308 = vmul.f32 %v269, %v287
      %v309 = vmul.f32 %v270, %v287
      %v310 = vmul.f32 %v271, %v287
      %v311 = vmul.f32 %v272, %v287
      %v312 = vmul.f32 %v273, %v287
      %v313 = vmul.f32 %v274, %v287
      %v314 = vmul.f32 %v275, %v287
      %v315 = vmul.f32 %v276, %v287
      %v316 = vmul.f32 %v277, %v287
      %v317 = vmul.f32 %v278, %v287
      %v318 = vmul.f32 %v279, %v287
      %v319 = vmul.f32 %v280, %v287
      %v320 = vmul.f32 %v281, %v287
      %v321 = vadd.f32 %v218, %v289
      %v322 = vadd.f32 %v219, %v290
      %v323 = vadd.f32 %v220, %v291
      %v324 = vadd.f32 %v221, %v292
      %v325 = vadd.f32 %v222, %v293
      %v326 = vadd.f32 %v223, %v294
      %v327 = vadd.f32 %v224, %v295
      %v328 = vadd.f32 %v225, %v296
      %v329 = vadd.f32 %v226, %v297
      %v330 = vadd.f32 %v227, %v298
      %v331 = vadd.f32 %v228, %v299
      %v332 = vadd.f32 %v229, %v300
      %v333 = vadd.f32 %v230, %v301
      %v334 = vadd.f32 %v231, %v302
      %v335 = vadd.f32 %v232, %v303
      %v336 = vadd.f32 %v233, %v304
      %v337 = vadd.f32 %v234, %v305
      %v338 = vadd.f32 %v235, %v306
      %v339 = vadd.f32 %v236, %v307
      %v340 = vadd.f32 %v237, %v308
      %v341 = vadd.f32 %v238, %v309
      %v342 = vadd.f32 %v239, %v310
      %v343 = vadd.f32 %v240, %v311
      %v344 = vadd.f32 %v241, %v312
      %v345 = vadd.f32 %v242, %v313
      %v346 = vadd.f32 %v243, %v314
      %v347 = vadd.f32 %v244, %v315
      %v348 = vadd.f32 %v245, %v316
      %v349 = vadd.f32 %v246, %v317
      %v350 = vadd.f32 %v247, %v318
      %v351 = vadd.f32 %v248, %v319
      %v352 = vadd.f32 %v249, %v320
      %v353 = vld [vmem:[%s3] sm:$0x1]
      %v355 = vlaneseq
      %v356 = vshrl.u32 %v355, 7
      %v357 = vsub.s32 0, %v356
      %v358 = vrot.slane %v353, %v357
      %v360 = vadd.f32 %v321, %v358
      %v361 = vadd.f32 %v322, %v358
      %v362 = vadd.f32 %v323, %v358
      %v363 = vadd.f32 %v324, %v358
      %v364 = vadd.f32 %v325, %v358
      %v365 = vadd.f32 %v326, %v358
      %v366 = vadd.f32 %v327, %v358
      %v367 = vadd.f32 %v328, %v358
      %v368 = vadd.f32 %v329, %v358
      %v369 = vadd.f32 %v330, %v358
      %v370 = vadd.f32 %v331, %v358
      %v371 = vadd.f32 %v332, %v358
      %v372 = vadd.f32 %v333, %v358
      %v373 = vadd.f32 %v334, %v358
      %v374 = vadd.f32 %v335, %v358
      %v375 = vadd.f32 %v336, %v358
      %v376 = vadd.f32 %v337, %v358
      %v377 = vadd.f32 %v338, %v358
      %v378 = vadd.f32 %v339, %v358
      %v379 = vadd.f32 %v340, %v358
      %v380 = vadd.f32 %v341, %v358
      %v381 = vadd.f32 %v342, %v358
      %v382 = vadd.f32 %v343, %v358
      %v383 = vadd.f32 %v344, %v358
      %v384 = vadd.f32 %v345, %v358
      %v385 = vadd.f32 %v346, %v358
      %v386 = vadd.f32 %v347, %v358
      %v387 = vadd.f32 %v348, %v358
      %v388 = vadd.f32 %v349, %v358
      %v389 = vadd.f32 %v350, %v358
      %v390 = vadd.f32 %v351, %v358
      %v391 = vadd.f32 %v352, %v358
      %vm392 = vcmask 31744
      %393 = vst.msk [vmem:[%s217] sm:$0xff] %vm392, %v360
      %394 = vst.msk [vmem:[%s217 + $0x8] sm:$0xff] %vm392, %v361
      %395 = vst.msk [vmem:[%s217 + $0x10] sm:$0xff] %vm392, %v362
      %396 = vst.msk [vmem:[%s217 + $0x18] sm:$0xff] %vm392, %v363
      %397 = vst.msk [vmem:[%s217 + $0x20] sm:$0xff] %vm392, %v364
      %398 = vst.msk [vmem:[%s217 + $0x28] sm:$0xff] %vm392, %v365
      %399 = vst.msk [vmem:[%s217 + $0x30] sm:$0xff] %vm392, %v366
      %400 = vst.msk [vmem:[%s217 + $0x38] sm:$0xff] %vm392, %v367
      %401 = vst.msk [vmem:[%s217 + $0x40] sm:$0xff] %vm392, %v368
      %402 = vst.msk [vmem:[%s217 + $0x48] sm:$0xff] %vm392, %v369
      %403 = vst.msk [vmem:[%s217 + $0x50] sm:$0xff] %vm392, %v370
      %404 = vst.msk [vmem:[%s217 + $0x58] sm:$0xff] %vm392, %v371
      %405 = vst.msk [vmem:[%s217 + $0x60] sm:$0xff] %vm392, %v372
      %406 = vst.msk [vmem:[%s217 + $0x68] sm:$0xff] %vm392, %v373
      %407 = vst.msk [vmem:[%s217 + $0x70] sm:$0xff] %vm392, %v374
      %408 = vst.msk [vmem:[%s217 + $0x78] sm:$0xff] %vm392, %v375
      %409 = vst.msk [vmem:[%s217 + $0x80] sm:$0xff] %vm392, %v376
      %410 = vst.msk [vmem:[%s217 + $0x88] sm:$0xff] %vm392, %v377
      %411 = vst.msk [vmem:[%s217 + $0x90] sm:$0xff] %vm392, %v378
      %412 = vst.msk [vmem:[%s217 + $0x98] sm:$0xff] %vm392, %v379
      %413 = vst.msk [vmem:[%s217 + $0xa0] sm:$0xff] %vm392, %v380
      %414 = vst.msk [vmem:[%s217 + $0xa8] sm:$0xff] %vm392, %v381
      %415 = vst.msk [vmem:[%s217 + $0xb0] sm:$0xff] %vm392, %v382
      %416 = vst.msk [vmem:[%s217 + $0xb8] sm:$0xff] %vm392, %v383
      %417 = vst.msk [vmem:[%s217 + $0xc0] sm:$0xff] %vm392, %v384
      %418 = vst.msk [vmem:[%s217 + $0xc8] sm:$0xff] %vm392, %v385
      %419 = vst.msk [vmem:[%s217 + $0xd0] sm:$0xff] %vm392, %v386
      %420 = vst.msk [vmem:[%s217 + $0xd8] sm:$0xff] %vm392, %v387
      %421 = vst.msk [vmem:[%s217 + $0xe0] sm:$0xff] %vm392, %v388
      %422 = vst.msk [vmem:[%s217 + $0xe8] sm:$0xff] %vm392, %v389
      %423 = vst.msk [vmem:[%s217 + $0xf0] sm:$0xff] %vm392, %v390
      %424 = vst.msk [vmem:[%s217 + $0xf8] sm:$0xff] %vm392, %v391
      %p425 = scmp.lt.s32.totalorder %s15, 1
      %s426 = scalar_select %p425, %s15, 1
      %s427 = smul.addr %s426, 32
      %s428 = smul.addr %s427, 8
      %s429 = scalar_lea.vmem %s4, %s428
      // Predicated region
      $region37: #{residual_block.5} parent=35 // pred_check
        %p430 = pneg %p127
      $region38: #{residual_block.5} parent=35 // pred_check_branch
        %432 = sbr.rel (%p430) target = $region40
      $region39: #{residual_block.5} parent=35 // pred_region
        _
      $region40: #{residual_block.5} parent=35 // pred_fallthru
        _
    $region36: #{residual_block.5} parent=5 // pred_fallthru
      _
    %p433 = scmp.le.s32.totalorder 2, %s10
    // Predicated region
    $region41: #{residual_block.5} parent=5 // pred_check
      %p434 = pneg %p433
    $region42: #{residual_block.5} parent=5 // pred_check_branch
      %436 = sbr.rel (%p434) target = $region44
    $region43: #{residual_block.5} parent=5 // pred_region
      %s437 = ssub.s32 %s10, 2
      // Predicated region
      $region45: #{residual_block.5} parent=43 // pred_check
        %p438 = pneg %p133
      $region46: #{residual_block.5} parent=43 // pred_check_branch
        %440 = sbr.rel (%p438) target = $region48
      $region47: #{residual_block.5} parent=43 // pred_region
        %p441 = scmp.lt.s32.totalorder %s16, 1
        %s442 = scalar_select %p441, %s16, 1
        %s443 = smul.addr %s442, 32
        %s444 = smul.addr %s443, 8
        %s445 = scalar_lea.vmem %s4, %s444
      $region48: #{residual_block.5} parent=43 // pred_fallthru
        _
    $region44: #{residual_block.5} parent=5 // pred_fallthru
      _
  $region6: #{residual_block.5} parent=0 // loop_footer
    %s14 = sadd.s32 1, %s10
  $region7: #{residual_block.5} parent=0 // loop_footer_branch
    %9 = sbr.rel target = $region3
  $region8: #{residual_block.5} parent=0 // loop_exit
    _

// kernel: residual_block.3
$region0: #{residual_block.3}
  #allocation0 [shape = 'u32[]', space=smem, size = 0x4, offset = 0x4, fixed_abs, tag = 'smem constant byte address 0x4 - core index']
  #allocation1 [shape = 'u32[144,128]{1,0:T(1,128)}', space=vmem, size = 0x12000, scoped, tag = 'internal scratch']
  %s0 = inlined_call_operand.vmem [shape: f32[2,290,4], index: 0, kind: input, shape index: {}]
  %s1 = inlined_call_operand.vmem [shape: f32[36,4], index: 1, kind: input, shape index: {}]
  %s2 = inlined_call_operand.vmem [shape: f32[256,1], index: 2, kind: input, shape index: {}]
  %s3 = inlined_call_operand.vmem [shape: f32[256,1], index: 3, kind: input, shape index: {}]
  %s4 = inlined_call_operand.vmem [shape: f32[2,290,4], index: 4, kind: output, shape index: {0}]
  %s5 = inlined_call_operand.vmem [shape: f32[2,1,4], index: 5, kind: output, shape index: {1}]
  %s6 = inlined_call_operand.vmem [shape: f32[2,1,4], index: 6, kind: output, shape index: {2}]
  %7 = xla_tuple %s4, %s5, %s6
  %s8 = sld [smem:[#allocation0]]
  $region65: #{residual_block.3} parent=0
    _
  %s10 = ssub.s32 1, %s8
  %s11 = scalar_select 0, %s10, %s8
  loop: start=0, step=1, limit=4
  $region2: #{residual_block.3} parent=0 // loop_pre_header
    _
  $region3: #{residual_block.3} parent=0 // loop_header
    %s13 = sphi 0, %s17
    %p14 = scmp.ge.s32.totalorder %s13, 4
    %s23 = sphi 0, %s25
    %s26 = sphi 0, %s23
    %s27 = sphi 0, %s26
    %s43 = sphi 0, %s27
    %s47 = sphi 0, %s47
    %s49 = sphi 0, %s47
    %s50 = sphi 0, %s49
    %s64 = sphi 0, %s50
    %s68 = sphi 0, %s68
    %s70 = sphi 0, %s68
    %s71 = sphi 0, %s70
    %s85 = sphi 0, %s71
    %s89 = sphi 0, %s89
    %s91 = sphi 0, %s89
    %s92 = sphi 0, %s91
    %s106 = sphi 0, %s92
    %s112 = sphi 0, %s114
    %s115 = sphi 0, %s112
    %s116 = sphi 0, %s115
    %s132 = sphi 0, %s116
    %s138 = sphi 0, %s140
    %s141 = sphi 0, %s138
    %s142 = sphi 0, %s141
    %s158 = sphi 0, %s142
    %s164 = sphi 0, %s166
    %s167 = sphi 0, %s164
    %s168 = sphi 0, %s167
    %s184 = sphi 0, %s168
  $region4: #{residual_block.3} parent=0 // loop_header_branch
    %16 = sbr.rel (%p14) target = $region8
  $region5: #{residual_block.3} parent=0 // loop_body
    %s18 = ssub.s32 %s13, 1
    %s19 = ssub.s32 %s13, 2
    %s20 = sadd.s32 %s13, 1
    %s21 = ssub.s32 %s13, %s20
    %p22 = scmp.eq.s32.totalorder %s21, 0
    %s24 = sadd.s32 %s23, 1
    %s25 = scalar_select %p22, %s23, %s24
    %p28 = pneg %p22
    %p29 = scmp.eq.s32.totalorder %s13, 1
    %p30 = por %p28, %p29
    %p31 = scmp.ne.s32.totalorder %s23, %s26
    %p32 = scmp.eq.s32.totalorder %s13, 0
    %p33 = por %p31, %p32
    %p34 = scmp.ne.s32.totalorder %s23, %s26
    %p35 = scmp.eq.s32.totalorder %s18, 1
    %p36 = por %p34, %p35
    %p37 = scmp.ne.s32.totalorder %s26, %s27
    %p38 = scmp.eq.s32.totalorder %s18, 0
    %p39 = por %p37, %p38
    %p40 = scmp.ne.s32.totalorder %s26, %s27
    %p41 = scmp.eq.s32.totalorder %s19, 1
    %p42 = por %p40, %p41
    %p44 = scmp.ne.s32.totalorder %s27, %s43
    %p45 = scmp.eq.s32.totalorder %s19, 0
    %p46 = por %p44, %p45
    %s48 = sadd.s32 %s47, 1
    %p51 = scmp.eq.s32.totalorder %s13, 1
    %p52 = scmp.ne.s32.totalorder %s47, %s49
    %p53 = scmp.eq.s32.totalorder %s13, 0
    %p54 = por %p52, %p53
    %p55 = scmp.ne.s32.totalorder %s47, %s49
    %p56 = scmp.eq.s32.totalorder %s18, 1
    %p57 = por %p55, %p56
    %p58 = scmp.ne.s32.totalorder %s49, %s50
    %p59 = scmp.eq.s32.totalorder %s18, 0
    %p60 = por %p58, %p59
    %p61 = scmp.ne.s32.totalorder %s49, %s50
    %p62 = scmp.eq.s32.totalorder %s19, 1
    %p63 = por %p61, %p62
    %p65 = scmp.ne.s32.totalorder %s50, %s64
    %p66 = scmp.eq.s32.totalorder %s19, 0
    %p67 = por %p65, %p66
    %s69 = sadd.s32 %s68, 1
    %p72 = scmp.eq.s32.totalorder %s13, 1
    %p73 = scmp.ne.s32.totalorder %s68, %s70
    %p74 = scmp.eq.s32.totalorder %s13, 0
    %p75 = por %p73, %p74
    %p76 = scmp.ne.s32.totalorder %s68, %s70
    %p77 = scmp.eq.s32.totalorder %s18, 1
    %p78 = por %p76, %p77
    %p79 = scmp.ne.s32.totalorder %s70, %s71
    %p80 = scmp.eq.s32.totalorder %s18, 0
    %p81 = por %p79, %p80
    %p82 = scmp.ne.s32.totalorder %s70, %s71
    %p83 = scmp.eq.s32.totalorder %s19, 1
    %p84 = por %p82, %p83
    %p86 = scmp.ne.s32.totalorder %s71, %s85
    %p87 = scmp.eq.s32.totalorder %s19, 0
    %p88 = por %p86, %p87
    %s90 = sadd.s32 %s89, 1
    %p93 = scmp.eq.s32.totalorder %s13, 1
    %p94 = scmp.ne.s32.totalorder %s89, %s91
    %p95 = scmp.eq.s32.totalorder %s13, 0
    %p96 = por %p94, %p95
    %p97 = scmp.ne.s32.totalorder %s89, %s91
    %p98 = scmp.eq.s32.totalorder %s18, 1
    %p99 = por %p97, %p98
    %p100 = scmp.ne.s32.totalorder %s91, %s92
    %p101 = scmp.eq.s32.totalorder %s18, 0
    %p102 = por %p100, %p101
    %p103 = scmp.ne.s32.totalorder %s91, %s92
    %p104 = scmp.eq.s32.totalorder %s19, 1
    %p105 = por %p103, %p104
    %p107 = scmp.ne.s32.totalorder %s92, %s106
    %p108 = scmp.eq.s32.totalorder %s19, 0
    %p109 = por %p107, %p108
    %s110 = ssub.s32 %s13, %s20
    %p111 = scmp.eq.s32.totalorder %s110, 0
    %s113 = sadd.s32 %s112, 1
    %s114 = scalar_select %p111, %s112, %s113
    %p117 = pneg %p111
    %p118 = scmp.eq.s32.totalorder %s13, 1
    %p119 = por %p117, %p118
    %p120 = scmp.ne.s32.totalorder %s112, %s115
    %p121 = scmp.eq.s32.totalorder %s13, 0
    %p122 = por %p120, %p121
    %p123 = scmp.ne.s32.totalorder %s112, %s115
    %p124 = scmp.eq.s32.totalorder %s18, 1
    %p125 = por %p123, %p124
    %p126 = scmp.ne.s32.totalorder %s115, %s116
    %p127 = scmp.eq.s32.totalorder %s18, 0
    %p128 = por %p126, %p127
    %p129 = scmp.ne.s32.totalorder %s115, %s116
    %p130 = scmp.eq.s32.totalorder %s19, 1
    %p131 = por %p129, %p130
    %p133 = scmp.ne.s32.totalorder %s116, %s132
    %p134 = scmp.eq.s32.totalorder %s19, 0
    %p135 = por %p133, %p134
    %s136 = ssub.s32 %s13, %s20
    %p137 = scmp.eq.s32.totalorder %s136, 0
    %s139 = sadd.s32 %s138, 1
    %s140 = scalar_select %p137, %s138, %s139
    %p143 = pneg %p137
    %p144 = scmp.eq.s32.totalorder %s13, 1
    %p145 = por %p143, %p144
    %p146 = scmp.ne.s32.totalorder %s138, %s141
    %p147 = scmp.eq.s32.totalorder %s13, 0
    %p148 = por %p146, %p147
    %p149 = scmp.ne.s32.totalorder %s138, %s141
    %p150 = scmp.eq.s32.totalorder %s18, 1
    %p151 = por %p149, %p150
    %p152 = scmp.ne.s32.totalorder %s141, %s142
    %p153 = scmp.eq.s32.totalorder %s18, 0
    %p154 = por %p152, %p153
    %p155 = scmp.ne.s32.totalorder %s141, %s142
    %p156 = scmp.eq.s32.totalorder %s19, 1
    %p157 = por %p155, %p156
    %p159 = scmp.ne.s32.totalorder %s142, %s158
    %p160 = scmp.eq.s32.totalorder %s19, 0
    %p161 = por %p159, %p160
    %s162 = ssub.s32 %s13, %s20
    %p163 = scmp.eq.s32.totalorder %s162, 0
    %s165 = sadd.s32 %s164, 1
    %s166 = scalar_select %p163, %s164, %s165
    %p169 = pneg %p163
    %p170 = scmp.eq.s32.totalorder %s13, 1
    %p171 = por %p169, %p170
    %p172 = scmp.ne.s32.totalorder %s164, %s167
    %p173 = scmp.eq.s32.totalorder %s13, 0
    %p174 = por %p172, %p173
    %p175 = scmp.ne.s32.totalorder %s164, %s167
    %p176 = scmp.eq.s32.totalorder %s18, 1
    %p177 = por %p175, %p176
    %p178 = scmp.ne.s32.totalorder %s167, %s168
    %p179 = scmp.eq.s32.totalorder %s18, 0
    %p180 = por %p178, %p179
    %p181 = scmp.ne.s32.totalorder %s167, %s168
    %p182 = scmp.eq.s32.totalorder %s19, 1
    %p183 = por %p181, %p182
    %p185 = scmp.ne.s32.totalorder %s168, %s184
    %p186 = scmp.eq.s32.totalorder %s19, 0
    %p187 = por %p185, %p186
    %p188 = scmp.le.s32.totalorder 1, %s13
    %p189 = scmp.lt.s32.totalorder %s13, 3
    %p190 = pnand %p188, %p189
    %p191 = pneg %p190
    // Predicated region
    $region9: #{residual_block.3} parent=5 // pred_check
      _
    $region10: #{residual_block.3} parent=5 // pred_check_branch
      %193 = sbr.rel (%p190) target = $region12
    $region11: #{residual_block.3} parent=5 // pred_region
      %s194 = ssub.s32 %s13, 1
      // Predicated region
      $region13: #{residual_block.3} parent=11 // pred_check
        %p195 = pneg %p60
      $region14: #{residual_block.3} parent=11 // pred_check_branch
        %197 = sbr.rel (%p195) target = $region16
      $region15: #{residual_block.3} parent=11 // pred_region
        _
      $region16: #{residual_block.3} parent=11 // pred_fallthru
        _
      // Predicated region
      $region17: #{residual_block.3} parent=11 // pred_check
        %p198 = pneg %p81
      $region18: #{residual_block.3} parent=11 // pred_check_branch
        %200 = sbr.rel (%p198) target = $region20
      $region19: #{residual_block.3} parent=11 // pred_region
        _
      $region20: #{residual_block.3} parent=11 // pred_fallthru
        _
      // Predicated region
      $region21: #{residual_block.3} parent=11 // pred_check
        %p201 = pneg %p102
      $region22: #{residual_block.3} parent=11 // pred_check_branch
        %203 = sbr.rel (%p201) target = $region24
      $region23: #{residual_block.3} parent=11 // pred_region
        _
      $region24: #{residual_block.3} parent=11 // pred_fallthru
        _
    $region12: #{residual_block.3} parent=5 // pred_fallthru
      _
    %p204 = scmp.lt.s32.totalorder %s13, 2
    // Predicated region
    $region25: #{residual_block.3} parent=5 // pred_check
      %p205 = pneg %p204
    $region26: #{residual_block.3} parent=5 // pred_check_branch
      %207 = sbr.rel (%p205) target = $region28
    $region27: #{residual_block.3} parent=5 // pred_region
      // Predicated region
      $region29: #{residual_block.3} parent=27 // pred_check
        %p208 = pneg %p33
      $region30: #{residual_block.3} parent=27 // pred_check_branch
        %210 = sbr.rel (%p208) target = $region32
      $region31: #{residual_block.3} parent=27 // pred_region
        %p211 = scmp.lt.s32.totalorder %s13, 1
        %s212 = scalar_select %p211, %s13, 1
        %s213 = smul.addr %s212, 37
        %s214 = smul.addr %s213, 8
        %s215 = scalar_lea.vmem %s0, %s214
      $region32: #{residual_block.3} parent=27 // pred_fallthru
        _
    $region28: #{residual_block.3} parent=5 // pred_fallthru
      _
    %p216 = scmp.le.s32.totalorder 1, %s13
    %p217 = scmp.lt.s32.totalorder %s13, 3
    %p218 = pnand %p216, %p217
    %p219 = pneg %p218
    // Predicated region
    $region33: #{residual_block.3} parent=5 // pred_check
      _
    $region34: #{residual_block.3} parent=5 // pred_check_branch
      %221 = sbr.rel (%p218) target = $region36
    $region35: #{residual_block.3} parent=5 // pred_region
      %s222 = ssub.s32 %s13, 1
      %p223 = scmp.lt.s32.totalorder %s18, 1
      %s224 = scalar_select %p223, %s18, 1
      %s225 = smul.addr %s224, 37
      %s226 = smul.addr %s225, 8
      %s227 = scalar_lea.vmem %s0, %s226
      %p228 = pneg %p39
      %p229 = pneg %p36
      %p230 = pneg %p60
      %p231 = pneg %p57
      %p232 = pneg %p81
      %p233 = pneg %p78
      %p234 = pneg %p102
      %p235 = pneg %p99
      %p236 = pneg %p128
      %p237 = pneg %p125
      %p238 = scmp.lt.s32.totalorder %s18, 1
      %s239 = scalar_select %p238, %s18, 1
      %s240 = smul.addr %s239, 37
      %s241 = smul.addr %s240, 8
      %s242 = scalar_lea.vmem %s4, %s241
      %p243 = pneg %p154
      %p244 = pneg %p151
      %p245 = scmp.lt.s32.totalorder %s18, 1
      %s246 = scalar_select %p245, %s18, 1
      %s247 = scalar_lea.vmem %s5, %s246
      %p248 = pneg %p180
      %p249 = pneg %p177
      %p250 = scmp.lt.s32.totalorder %s18, 1
      %s251 = scalar_select %p250, %s18, 1
      %s252 = scalar_lea.vmem %s6, %s251
      %p253 = scmp.lt.s32.totalorder %s18, 1
      %s254 = scalar_select %p253, %s18, 1
      %s255 = smul.addr %s254, 37
      %s256 = smul.addr %s255, 8
      %s257 = scalar_lea.vmem %s0, %s256
      %p258 = scmp.lt.s32.totalorder %s18, 1
      %s259 = scalar_select %p258, %s18, 1
      %s260 = smul.addr %s259, 37
      %s261 = smul.addr %s260, 8
      %s262 = scalar_lea.vmem %s4, %s261
      %p263 = scmp.lt.s32.totalorder %s18, 1
      %s264 = scalar_select %p263, %s18, 1
      %s265 = scalar_lea.vmem %s5, %s264
      %p266 = scmp.lt.s32.totalorder %s18, 1
      %s267 = scalar_select %p266, %s18, 1
      %s268 = scalar_lea.vmem %s6, %s267
      %v269 = vld [vmem:[%s257] sm:$0xff]
      %v270 = vld [vmem:[%s257 + $0x8] sm:$0xff]
      %v271 = vld [vmem:[%s257 + $0x10] sm:$0xff]
      %v272 = vld [vmem:[%s257 + $0x18] sm:$0xff]
      %v273 = vld [vmem:[%s257 + $0x20] sm:$0xff]
      %v274 = vld [vmem:[%s257 + $0x28] sm:$0xff]
      %v275 = vld [vmem:[%s257 + $0x30] sm:$0xff]
      %v276 = vld [vmem:[%s257 + $0x38] sm:$0xff]
      %v277 = vld [vmem:[%s257 + $0x40] sm:$0xff]
      %v278 = vld [vmem:[%s257 + $0x48] sm:$0xff]
      %v279 = vld [vmem:[%s257 + $0x50] sm:$0xff]
      %v280 = vld [vmem:[%s257 + $0x58] sm:$0xff]
      %v281 = vld [vmem:[%s257 + $0x60] sm:$0xff]
      %v282 = vld [vmem:[%s257 + $0x68] sm:$0xff]
      %v283 = vld [vmem:[%s257 + $0x70] sm:$0xff]
      %v284 = vld [vmem:[%s257 + $0x78] sm:$0xff]
      %v285 = vld [vmem:[%s257 + $0x80] sm:$0xff]
      %v286 = vld [vmem:[%s257 + $0x88] sm:$0xff]
      %v287 = vld [vmem:[%s257 + $0x90] sm:$0xff]
      %v288 = vld [vmem:[%s257 + $0x98] sm:$0xff]
      %v289 = vld [vmem:[%s257 + $0xa0] sm:$0xff]
      %v290 = vld [vmem:[%s257 + $0xa8] sm:$0xff]
      %v291 = vld [vmem:[%s257 + $0xb0] sm:$0xff]
      %v292 = vld [vmem:[%s257 + $0xb8] sm:$0xff]
      %v293 = vld [vmem:[%s257 + $0xc0] sm:$0xff]
      %v294 = vld [vmem:[%s257 + $0xc8] sm:$0xff]
      %v295 = vld [vmem:[%s257 + $0xd0] sm:$0xff]
      %v296 = vld [vmem:[%s257 + $0xd8] sm:$0xff]
      %v297 = vld [vmem:[%s257 + $0xe0] sm:$0xff]
      %v298 = vld [vmem:[%s257 + $0xe8] sm:$0xff]
      %v299 = vld [vmem:[%s257 + $0xf0] sm:$0xff]
      %v300 = vld [vmem:[%s257 + $0xf8] sm:$0xff]
      %v301 = vld [vmem:[%s257 + $0x100] sm:$0xff]
      %v302 = vld [vmem:[%s257 + $0x108] sm:$0xff]
      %v303 = vld [vmem:[%s257 + $0x110] sm:$0xff]
      %v304 = vld [vmem:[%s257 + $0x118] sm:$0xff]
      %v305 = vld [vmem:[%s257 + $0x120] sm:$0x3]
      %v306 = vld [vmem:[%s1] sm:$0xff]
      %v307 = vld [vmem:[%s1 + $0x8] sm:$0xff]
      %v308 = vld [vmem:[%s1 + $0x10] sm:$0xff]
      %v309 = vld [vmem:[%s1 + $0x18] sm:$0xff]
      %v310 = vld [vmem:[%s1 + $0x20] sm:$0xf]
      %v311 = vld [vmem:[%s2] sm:$0xff]
      %v312 = vld [vmem:[%s2 + $0x8] sm:$0xff]
      %v313 = vld [vmem:[%s2 + $0x10] sm:$0xff]
      %v314 = vld [vmem:[%s2 + $0x18] sm:$0xff]
      %v315 = vld [vmem:[%s2 + $0x20] sm:$0xff]
      %v316 = vld [vmem:[%s2 + $0x28] sm:$0xff]
      %v317 = vld [vmem:[%s2 + $0x30] sm:$0xff]
      %v318 = vld [vmem:[%s2 + $0x38] sm:$0xff]
      %v319 = vld [vmem:[%s2 + $0x40] sm:$0xff]
      %v320 = vld [vmem:[%s2 + $0x48] sm:$0xff]
      %v321 = vld [vmem:[%s2 + $0x50] sm:$0xff]
      %v322 = vld [vmem:[%s2 + $0x58] sm:$0xff]
      %v323 = vld [vmem:[%s2 + $0x60] sm:$0xff]
      %v324 = vld [vmem:[%s2 + $0x68] sm:$0xff]
      %v325 = vld [vmem:[%s2 + $0x70] sm:$0xff]
      %v326 = vld [vmem:[%s2 + $0x78] sm:$0xff]
      %v327 = vld [vmem:[%s2 + $0x80] sm:$0xff]
      %v328 = vld [vmem:[%s2 + $0x88] sm:$0xff]
      %v329 = vld [vmem:[%s2 + $0x90] sm:$0xff]
      %v330 = vld [vmem:[%s2 + $0x98] sm:$0xff]
      %v331 = vld [vmem:[%s2 + $0xa0] sm:$0xff]
      %v332 = vld [vmem:[%s2 + $0xa8] sm:$0xff]
      %v333 = vld [vmem:[%s2 + $0xb0] sm:$0xff]
      %v334 = vld [vmem:[%s2 + $0xb8] sm:$0xff]
      %v335 = vld [vmem:[%s2 + $0xc0] sm:$0xff]
      %v336 = vld [vmem:[%s2 + $0xc8] sm:$0xff]
      %v337 = vld [vmem:[%s2 + $0xd0] sm:$0xff]
      %v338 = vld [vmem:[%s2 + $0xd8] sm:$0xff]
      %v339 = vld [vmem:[%s2 + $0xe0] sm:$0xff]
      %v340 = vld [vmem:[%s2 + $0xe8] sm:$0xff]
      %v341 = vld [vmem:[%s2 + $0xf0] sm:$0xff]
      %v342 = vld [vmem:[%s2 + $0xf8] sm:$0xff]
      %v343 = vld [vmem:[%s3] sm:$0xff]
      %v344 = vld [vmem:[%s3 + $0x8] sm:$0xff]
      %v345 = vld [vmem:[%s3 + $0x10] sm:$0xff]
      %v346 = vld [vmem:[%s3 + $0x18] sm:$0xff]
      %v347 = vld [vmem:[%s3 + $0x20] sm:$0xff]
      %v348 = vld [vmem:[%s3 + $0x28] sm:$0xff]
      %v349 = vld [vmem:[%s3 + $0x30] sm:$0xff]
      %v350 = vld [vmem:[%s3 + $0x38] sm:$0xff]
      %v351 = vld [vmem:[%s3 + $0x40] sm:$0xff]
      %v352 = vld [vmem:[%s3 + $0x48] sm:$0xff]
      %v353 = vld [vmem:[%s3 + $0x50] sm:$0xff]
      %v354 = vld [vmem:[%s3 + $0x58] sm:$0xff]
      %v355 = vld [vmem:[%s3 + $0x60] sm:$0xff]
      %v356 = vld [vmem:[%s3 + $0x68] sm:$0xff]
      %v357 = vld [vmem:[%s3 + $0x70] sm:$0xff]
      %v358 = vld [vmem:[%s3 + $0x78] sm:$0xff]
      %v359 = vld [vmem:[%s3 + $0x80] sm:$0xff]
      %v360 = vld [vmem:[%s3 + $0x88] sm:$0xff]
      %v361 = vld [vmem:[%s3 + $0x90] sm:$0xff]
      %v362 = vld [vmem:[%s3 + $0x98] sm:$0xff]
      %v363 = vld [vmem:[%s3 + $0xa0] sm:$0xff]
      %v364 = vld [vmem:[%s3 + $0xa8] sm:$0xff]
      %v365 = vld [vmem:[%s3 + $0xb0] sm:$0xff]
      %v366 = vld [vmem:[%s3 + $0xb8] sm:$0xff]
      %v367 = vld [vmem:[%s3 + $0xc0] sm:$0xff]
      %v368 = vld [vmem:[%s3 + $0xc8] sm:$0xff]
      %v369 = vld [vmem:[%s3 + $0xd0] sm:$0xff]
      %v370 = vld [vmem:[%s3 + $0xd8] sm:$0xff]
      %v371 = vld [vmem:[%s3 + $0xe0] sm:$0xff]
      %v372 = vld [vmem:[%s3 + $0xe8] sm:$0xff]
      %v373 = vld [vmem:[%s3 + $0xf0] sm:$0xff]
      %v374 = vld [vmem:[%s3 + $0xf8] sm:$0xff]
      %376 = vset.pattern.permute.xlu0 0
      %377 = vperm.xlu0 %376, %v311
      %v378 = vpop.permute.xlu0 %377
      %381 = vset.pattern.permute.xlu0 0
      %382 = vperm.xlu0 %381, %v312
      %v383 = vpop.permute.xlu0 %382
      %386 = vset.pattern.permute.xlu0 0
      %387 = vperm.xlu0 %386, %v313
      %v388 = vpop.permute.xlu0 %387
      %391 = vset.pattern.permute.xlu0 0
      %392 = vperm.xlu0 %391, %v314
      %v393 = vpop.permute.xlu0 %392
      %396 = vset.pattern.permute.xlu0 0
      %397 = vperm.xlu0 %396, %v315
      %v398 = vpop.permute.xlu0 %397
      %401 = vset.pattern.permute.xlu0 0
      %402 = vperm.xlu0 %401, %v316
      %v403 = vpop.permute.xlu0 %402
      %406 = vset.pattern.permute.xlu0 0
      %407 = vperm.xlu0 %406, %v317
      %v408 = vpop.permute.xlu0 %407
      %411 = vset.pattern.permute.xlu0 0
      %412 = vperm.xlu0 %411, %v318
      %v413 = vpop.permute.xlu0 %412
      %416 = vset.pattern.permute.xlu0 0
      %417 = vperm.xlu0 %416, %v319
      %v418 = vpop.permute.xlu0 %417
      %421 = vset.pattern.permute.xlu0 0
      %422 = vperm.xlu0 %421, %v320
      %v423 = vpop.permute.xlu0 %422
      %426 = vset.pattern.permute.xlu0 0
      %427 = vperm.xlu0 %426, %v321
      %v428 = vpop.permute.xlu0 %427
      %431 = vset.pattern.permute.xlu0 0
      %432 = vperm.xlu0 %431, %v322
      %v433 = vpop.permute.xlu0 %432
      %436 = vset.pattern.permute.xlu0 0
      %437 = vperm.xlu0 %436, %v323
      %v438 = vpop.permute.xlu0 %437
      %441 = vset.pattern.permute.xlu0 0
      %442 = vperm.xlu0 %441, %v324
      %v443 = vpop.permute.xlu0 %442
      %446 = vset.pattern.permute.xlu0 0
      %447 = vperm.xlu0 %446, %v325
      %v448 = vpop.permute.xlu0 %447
      %451 = vset.pattern.permute.xlu0 0
      %452 = vperm.xlu0 %451, %v326
      %v453 = vpop.permute.xlu0 %452
      %456 = vset.pattern.permute.xlu0 0
      %457 = vperm.xlu0 %456, %v327
      %v458 = vpop.permute.xlu0 %457
      %461 = vset.pattern.permute.xlu0 0
      %462 = vperm.xlu0 %461, %v328
      %v463 = vpop.permute.xlu0 %462
      %466 = vset.pattern.permute.xlu0 0
      %467 = vperm.xlu0 %466, %v329
      %v468 = vpop.permute.xlu0 %467
      %471 = vset.pattern.permute.xlu0 0
      %472 = vperm.xlu0 %471, %v330
      %v473 = vpop.permute.xlu0 %472
      %476 = vset.pattern.permute.xlu0 0
      %477 = vperm.xlu0 %476, %v331
      %v478 = vpop.permute.xlu0 %477
      %481 = vset.pattern.permute.xlu0 0
      %482 = vperm.xlu0 %481, %v332
      %v483 = vpop.permute.xlu0 %482
      %486 = vset.pattern.permute.xlu0 0
      %487 = vperm.xlu0 %486, %v333
      %v488 = vpop.permute.xlu0 %487
      %491 = vset.pattern.permute.xlu0 0
      %492 = vperm.xlu0 %491, %v334
      %v493 = vpop.permute.xlu0 %492
      %496 = vset.pattern.permute.xlu0 0
      %497 = vperm.xlu0 %496, %v335
      %v498 = vpop.permute.xlu0 %497
      %501 = vset.pattern.permute.xlu0 0
      %502 = vperm.xlu0 %501, %v336
      %v503 = vpop.permute.xlu0 %502
      %506 = vset.pattern.permute.xlu0 0
      %507 = vperm.xlu0 %506, %v337
      %v508 = vpop.permute.xlu0 %507
      %511 = vset.pattern.permute.xlu0 0
      %512 = vperm.xlu0 %511, %v338
      %v513 = vpop.permute.xlu0 %512
      %516 = vset.pattern.permute.xlu0 0
      %517 = vperm.xlu0 %516, %v339
      %v518 = vpop.permute.xlu0 %517
      %521 = vset.pattern.permute.xlu0 0
      %522 = vperm.xlu0 %521, %v340
      %v523 = vpop.permute.xlu0 %522
      %526 = vset.pattern.permute.xlu0 0
      %527 = vperm.xlu0 %526, %v341
      %v528 = vpop.permute.xlu0 %527
      %531 = vset.pattern.permute.xlu0 0
      %532 = vperm.xlu0 %531, %v342
      %v533 = vpop.permute.xlu0 %532
      %v535 = vmul.f32 %v269, %v378
      %v536 = vmul.f32 %v270, %v383
      %v537 = vmul.f32 %v271, %v388
      %v538 = vmul.f32 %v272, %v393
      %v539 = vmul.f32 %v273, %v398
      %v540 = vmul.f32 %v274, %v403
      %v541 = vmul.f32 %v275, %v408
      %v542 = vmul.f32 %v276, %v413
      %v543 = vmul.f32 %v277, %v418
      %v544 = vmul.f32 %v278, %v423
      %v545 = vmul.f32 %v279, %v428
      %v546 = vmul.f32 %v280, %v433
      %v547 = vmul.f32 %v281, %v438
      %v548 = vmul.f32 %v282, %v443
      %v549 = vmul.f32 %v283, %v448
      %v550 = vmul.f32 %v284, %v453
      %v551 = vmul.f32 %v285, %v458
      %v552 = vmul.f32 %v286, %v463
      %v553 = vmul.f32 %v287, %v468
      %v554 = vmul.f32 %v288, %v473
      %v555 = vmul.f32 %v289, %v478
      %v556 = vmul.f32 %v290, %v483
      %v557 = vmul.f32 %v291, %v488
      %v558 = vmul.f32 %v292, %v493
      %v559 = vmul.f32 %v293, %v498
      %v560 = vmul.f32 %v294, %v503
      %v561 = vmul.f32 %v295, %v508
      %v562 = vmul.f32 %v296, %v513
      %v563 = vmul.f32 %v297, %v518
      %v564 = vmul.f32 %v298, %v523
      %v565 = vmul.f32 %v299, %v528
      %v566 = vmul.f32 %v300, %v533
      %vm600 = vcmask 1046528
      %v601 = vrot.slane %v269, 1
      %v602 = vrot.slane %v270, 1
      %v603 = vsel %vm600, %v601, %v602
      %v604 = vrot.slane %v271, 1
      %v605 = vsel %vm600, %v602, %v604
      %v606 = vrot.slane %v272, 1
      %v607 = vsel %vm600, %v604, %v606
      %v608 = vrot.slane %v273, 1
      %v609 = vsel %vm600, %v606, %v608
      %v610 = vrot.slane %v274, 1
      %v611 = vsel %vm600, %v608, %v610
      %v612 = vrot.slane %v275, 1
      %v613 = vsel %vm600, %v610, %v612
      %v614 = vrot.slane %v276, 1
      %v615 = vsel %vm600, %v612, %v614
      %v616 = vrot.slane %v277, 1
      %v617 = vsel %vm600, %v614, %v616
      %v618 = vrot.slane %v278, 1
      %v619 = vsel %vm600, %v616, %v618
      %v620 = vrot.slane %v279, 1
      %v621 = vsel %vm600, %v618, %v620
      %v622 = vrot.slane %v280, 1
      %v623 = vsel %vm600, %v620, %v622
      %v624 = vrot.slane %v281, 1
      %v625 = vsel %vm600, %v622, %v624
      %v626 = vrot.slane %v282, 1
      %v627 = vsel %vm600, %v624, %v626
      %v628 = vrot.slane %v283, 1
      %v629 = vsel %vm600, %v626, %v628
      %v630 = vrot.slane %v284, 1
      %v631 = vsel %vm600, %v628, %v630
      %v632 = vrot.slane %v285, 1
      %v633 = vsel %vm600, %v630, %v632
      %v634 = vrot.slane %v286, 1
      %v635 = vsel %vm600, %v632, %v634
      %v636 = vrot.slane %v287, 1
      %v637 = vsel %vm600, %v634, %v636
      %v638 = vrot.slane %v288, 1
      %v639 = vsel %vm600, %v636, %v638
      %v640 = vrot.slane %v289, 1
      %v641 = vsel %vm600, %v638, %v640
      %v642 = vrot.slane %v290, 1
      %v643 = vsel %vm600, %v640, %v642
      %v644 = vrot.slane %v291, 1
      %v645 = vsel %vm600, %v642, %v644
      %v646 = vrot.slane %v292, 1
      %v647 = vsel %vm600, %v644, %v646
      %v648 = vrot.slane %v293, 1
      %v649 = vsel %vm600, %v646, %v648
      %v650 = vrot.slane %v294, 1
      %v651 = vsel %vm600, %v648, %v650
      %v652 = vrot.slane %v295, 1
      %v653 = vsel %vm600, %v650, %v652
      %v654 = vrot.slane %v296, 1
      %v655 = vsel %vm600, %v652, %v654
      %v656 = vrot.slane %v297, 1
      %v657 = vsel %vm600, %v654, %v656
      %v658 = vrot.slane %v298, 1
      %v659 = vsel %vm600, %v656, %v658
      %v660 = vrot.slane %v299, 1
      %v661 = vsel %vm600, %v658, %v660
      %v662 = vrot.slane %v300, 1
      %v663 = vsel %vm600, %v660, %v662
      %v664 = vrot.slane %v301, 1
      %v665 = vsel %vm600, %v662, %v664
      %v667 = vrot.slane %v306, 4
      %vm668 = vcmask 31744
      %v669 = vsel %vm668, %v603, 0
      %v671 = vsel %vm668, %v605, 0
      %v673 = vsel %vm668, %v607, 0
      %v675 = vsel %vm668, %v609, 0
      %v677 = vsel %vm668, %v611, 0
      %v679 = vsel %vm668, %v613, 0
      %v681 = vsel %vm668, %v615, 0
      %v683 = vsel %vm668, %v617, 0
      %v685 = vsel %vm668, %v619, 0
      %v687 = vsel %vm668, %v621, 0
      %v689 = vsel %vm668, %v623, 0
      %v691 = vsel %vm668, %v625, 0
      %v693 = vsel %vm668, %v627, 0
      %v695 = vsel %vm668, %v629, 0
      %v697 = vsel %vm668, %v631, 0
      %v699 = vsel %vm668, %v633, 0
      %v701 = vsel %vm668, %v635, 0
      %v703 = vsel %vm668, %v637, 0
      %v705 = vsel %vm668, %v639, 0
      %v707 = vsel %vm668, %v641, 0
      %v709 = vsel %vm668, %v643, 0
      %v711 = vsel %vm668, %v645, 0
      %v713 = vsel %vm668, %v647, 0
      %v715 = vsel %vm668, %v649, 0
      %v717 = vsel %vm668, %v651, 0
      %v719 = vsel %vm668, %v653, 0
      %v721 = vsel %vm668, %v655, 0
      %v723 = vsel %vm668, %v657, 0
      %v725 = vsel %vm668, %v659, 0
      %v727 = vsel %vm668, %v661, 0
      %v729 = vsel %vm668, %v663, 0
      %v731 = vsel %vm668, %v665, 0
      %vm733 = vcmask 1043456
      %v734 = vsel %vm733, %v667, 0
      %736 = vmatprep.subr.mxu0 0.0
      %737 = vmatpush1.msra.mxu0 %v734
      %738 = vmatprep.subr.mxu0 0.0
      %739 = vmatpush1.msra.mxu0 0.0
      %740 = vmatprep.subr.mxu0 0.0
      %741 = vmatpush1.msra.mxu0 0.0
      %742 = vmatprep.subr.mxu0 0.0
      %743 = vmatpush1.msra.mxu0 0.0
      %744 = vmatprep.subr.mxu0 0.0
      %745 = vmatpush1.msra.mxu0 0.0
      %746 = vmatprep.subr.mxu0 0.0
      %747 = vmatpush1.msra.mxu0 0.0
      %748 = vmatprep.subr.mxu0 0.0
      %749 = vmatpush1.msra.mxu0 0.0
      %750 = vmatprep.subr.mxu0 0.0
      %751 = vmatpush1.msra.mxu0 0.0
      %752 = vmatprep.subr.mxu0 0.0
      %753 = vmatpush1.msra.mxu0 0.0
      %754 = vmatprep.subr.mxu0 0.0
      %755 = vmatpush1.msra.mxu0 0.0
      %756 = vmatprep.subr.mxu0 0.0
      %757 = vmatpush1.msra.mxu0 0.0
      %758 = vmatprep.subr.mxu0 0.0
      %759 = vmatpush1.msra.mxu0 0.0
      %760 = vmatprep.subr.mxu0 0.0
      %761 = vmatpush1.msra.mxu0 0.0
      %762 = vmatprep.subr.mxu0 0.0
      %763 = vmatpush1.msra.mxu0 0.0
      %764 = vmatprep.subr.mxu0 0.0
      %765 = vmatpush1.msra.mxu0 0.0
      %766 = vmatprep.subr.mxu0 0.0
      %767 = vmatpush1.msra.mxu0 0.0
      %768 = vmatprep.subr.mxu0 0.0
      %769 = vmatpush1.msra.mxu0 0.0
      %770 = vmatprep.subr.mxu0 0.0
      %771 = vmatpush1.msra.mxu0 0.0
      %772 = vmatprep.subr.mxu0 0.0
      %773 = vmatpush1.msra.mxu0 0.0
      %774 = vmatprep.subr.mxu0 0.0
      %775 = vmatpush1.msra.mxu0 0.0
      %776 = vmatprep.subr.mxu0 0.0
      %777 = vmatpush1.msra.mxu0 0.0
      %778 = vmatprep.subr.mxu0 0.0
      %779 = vmatpush1.msra.mxu0 0.0
      %780 = vmatprep.subr.mxu0 0.0
      %781 = vmatpush1.msra.mxu0 0.0
      %782 = vmatprep.subr.mxu0 0.0
      %783 = vmatpush1.msra.mxu0 0.0
      %784 = vmatprep.subr.mxu0 0.0
      %785 = vmatpush1.msra.mxu0 0.0
      %786 = vmatprep.subr.mxu0 0.0
      %787 = vmatpush1.msra.mxu0 0.0
      %788 = vmatprep.subr.mxu0 0.0
      %789 = vmatpush1.msra.mxu0 0.0
      %790 = vmatprep.subr.mxu0 0.0
      %791 = vmatpush1.msra.mxu0 0.0
      %792 = vmatprep.subr.mxu0 0.0
      %793 = vmatpush1.msra.mxu0 0.0
      %794 = vmatprep.subr.mxu0 0.0
      %795 = vmatpush1.msra.mxu0 0.0
      %796 = vmatprep.subr.mxu0 0.0
      %797 = vmatpush1.msra.mxu0 0.0
      %798 = vmatprep.subr.mxu0 0.0
      %799 = vmatpush1.msra.mxu0 0.0
      %800 = vmatprep.mubr.f32.mxu0 0.0
      %801 = vmatmul.mubr.f32.gmra.mrb[0].mxu0 %v669
      %v802 = vpop.f32.mrb[0].mxu0
      %v803 = vadd.f32 0.0, %v802
      %v804 = vpop.f32.mrb[0].mxu0
      %805 = vmatprep.mubr.f32.mxu0 0.0
      %806 = vmatmul.mubr.f32.gmra.mrb[0].mxu0 %v671
      %v807 = vpop.f32.mrb[0].mxu0
      %v808 = vadd.f32 0.0, %v807
      %v809 = vpop.f32.mrb[0].mxu0
      %810 = vmatprep.mubr.f32.mxu0 0.0
      %811 = vmatmul.mubr.f32.gmra.mrb[0].mxu0 %v673
      %v812 = vpop.f32.mrb[0].mxu0
      %v813 = vadd.f32 0.0, %v812
      %v814 = vpop.f32.mrb[0].mxu0
      %815 = vmatprep.mubr.f32.mxu0 0.0
      %816 = vmatmul.mubr.f32.gmra.mrb[0].mxu0 %v675
      %v817 = vpop.f32.mrb[0].mxu0
      %v818 = vadd.f32 0.0, %v817
      %v819 = vpop.f32.mrb[0].mxu0
      %820 = vmatprep.mubr.f32.mxu0 0.0
      %821 = vmatmul.mubr.f32.gmra.mrb[0].mxu0 %v677
      %v822 = vpop.f32.mrb[0].mxu0
      %v823 = vadd.f32 0.0, %v822
      %v824 = vpop.f32.mrb[0].mxu0
      %825 = vmatprep.mubr.f32.mxu0 0.0
      %826 = vmatmul.mubr.f32.gmra.mrb[0].mxu0 %v679
      %v827 = vpop.f32.mrb[0].mxu0
      %v828 = vadd.f32 0.0, %v827
      %v829 = vpop.f32.mrb[0].mxu0
      %830 = vmatprep.mubr.f32.mxu0 0.0
      %831 = vmatmul.mubr.f32.gmra.mrb[0].mxu0 %v681
      %v832 = vpop.f32.mrb[0].mxu0
      %v833 = vadd.f32 0.0, %v832
      %v834 = vpop.f32.mrb[0].mxu0
      %835 = vmatprep.mubr.f32.mxu0 0.0
      %836 = vmatmul.mubr.f32.gmra.mrb[0].mxu0 %v683
      %v837 = vpop.f32.mrb[0].mxu0
      %v838 = vadd.f32 0.0, %v837
      %v839 = vpop.f32.mrb[0].mxu0
      %840 = vmatprep.mubr.f32.mxu0 0.0
      %841 = vmatmul.mubr.f32.gmra.mrb[0].mxu0 %v685
      %v842 = vpop.f32.mrb[0].mxu0
      %v843 = vadd.f32 0.0, %v842
      %v844 = vpop.f32.mrb[0].mxu0
      %845 = vmatprep.mubr.f32.mxu0 0.0
      %846 = vmatmul.mubr.f32.gmra.mrb[0].mxu0 %v687
      %v847 = vpop.f32.mrb[0].mxu0
      %v848 = vadd.f32 0.0, %v847
      %v849 = vpop.f32.mrb[0].mxu0
      %850 = vmatprep.mubr.f32.mxu0 0.0
      %851 = vmatmul.mubr.f32.gmra.mrb[0].mxu0 %v689
      %v852 = vpop.f32.mrb[0].mxu0
      %v853 = vadd.f32 0.0, %v852
      %v854 = vpop.f32.mrb[0].mxu0
      %855 = vmatprep.mubr.f32.mxu0 0.0
      %856 = vmatmul.mubr.f32.gmra.mrb[0].mxu0 %v691
      %v857 = vpop.f32.mrb[0].mxu0
      %v858 = vadd.f32 0.0, %v857
      %v859 = vpop.f32.mrb[0].mxu0
      %860 = vmatprep.mubr.f32.mxu0 0.0
      %861 = vmatmul.mubr.f32.gmra.mrb[0].mxu0 %v693
      %v862 = vpop.f32.mrb[0].mxu0
      %v863 = vadd.f32 0.0, %v862
      %v864 = vpop.f32.mrb[0].mxu0
      %865 = vmatprep.mubr.f32.mxu0 0.0
      %866 = vmatmul.mubr.f32.gmra.mrb[0].mxu0 %v695
      %v867 = vpop.f32.mrb[0].mxu0
      %v868 = vadd.f32 0.0, %v867
      %v869 = vpop.f32.mrb[0].mxu0
      %870 = vmatprep.mubr.f32.mxu0 0.0
      %871 = vmatmul.mubr.f32.gmra.mrb[0].mxu0 %v697
      %v872 = vpop.f32.mrb[0].mxu0
      %v873 = vadd.f32 0.0, %v872
      %v874 = vpop.f32.mrb[0].mxu0
      %875 = vmatprep.mubr.f32.mxu0 0.0
      %876 = vmatmul.mubr.f32.gmra.mrb[0].mxu0 %v699
      %v877 = vpop.f32.mrb[0].mxu0
      %v878 = vadd.f32 0.0, %v877
      %v879 = vpop.f32.mrb[0].mxu0
      %880 = vmatprep.mubr.f32.mxu0 0.0
      %881 = vmatmul.mubr.f32.gmra.mrb[0].mxu0 %v701
      %v882 = vpop.f32.mrb[0].mxu0
      %v883 = vadd.f32 0.0, %v882
      %v884 = vpop.f32.mrb[0].mxu0
      %885 = vmatprep.mubr.f32.mxu0 0.0
      %886 = vmatmul.mubr.f32.gmra.mrb[0].mxu0 %v703
      %v887 = vpop.f32.mrb[0].mxu0
      %v888 = vadd.f32 0.0, %v887
      %v889 = vpop.f32.mrb[0].mxu0
      %890 = vmatprep.mubr.f32.mxu0 0.0
      %891 = vmatmul.mubr.f32.gmra.mrb[0].mxu0 %v705
      %v892 = vpop.f32.mrb[0].mxu0
      %v893 = vadd.f32 0.0, %v892
      %v894 = vpop.f32.mrb[0].mxu0
      %895 = vmatprep.mubr.f32.mxu0 0.0
      %896 = vmatmul.mubr.f32.gmra.mrb[0].mxu0 %v707
      %v897 = vpop.f32.mrb[0].mxu0
      %v898 = vadd.f32 0.0, %v897
      %v899 = vpop.f32.mrb[0].mxu0
      %900 = vmatprep.mubr.f32.mxu0 0.0
      %901 = vmatmul.mubr.f32.gmra.mrb[0].mxu0 %v709
      %v902 = vpop.f32.mrb[0].mxu0
      %v903 = vadd.f32 0.0, %v902
      %v904 = vpop.f32.mrb[0].mxu0
      %905 = vmatprep.mubr.f32.mxu0 0.0
      %906 = vmatmul.mubr.f32.gmra.mrb[0].mxu0 %v711
      %v907 = vpop.f32.mrb[0].mxu0
      %v908 = vadd.f32 0.0, %v907
      %v909 = vpop.f32.mrb[0].mxu0
      %910 = vmatprep.mubr.f32.mxu0 0.0
      %911 = vmatmul.mubr.f32.gmra.mrb[0].mxu0 %v713
      %v912 = vpop.f32.mrb[0].mxu0
      %v913 = vadd.f32 0.0, %v912
      %v914 = vpop.f32.mrb[0].mxu0
      %915 = vmatprep.mubr.f32.mxu0 0.0
      %916 = vmatmul.mubr.f32.gmra.mrb[0].mxu0 %v715
      %v917 = vpop.f32.mrb[0].mxu0
      %v918 = vadd.f32 0.0, %v917
      %v919 = vpop.f32.mrb[0].mxu0
      %920 = vmatprep.mubr.f32.mxu0 0.0
      %921 = vmatmul.mubr.f32.gmra.mrb[0].mxu0 %v717
      %v922 = vpop.f32.mrb[0].mxu0
      %v923 = vadd.f32 0.0, %v922
      %v924 = vpop.f32.mrb[0].mxu0
      %925 = vmatprep.mubr.f32.mxu0 0.0
      %926 = vmatmul.mubr.f32.gmra.mrb[0].mxu0 %v719
      %v927 = vpop.f32.mrb[0].mxu0
      %v928 = vadd.f32 0.0, %v927
      %v929 = vpop.f32.mrb[0].mxu0
      %930 = vmatprep.mubr.f32.mxu0 0.0
      %931 = vmatmul.mubr.f32.gmra.mrb[0].mxu0 %v721
      %v932 = vpop.f32.mrb[0].mxu0
      %v933 = vadd.f32 0.0, %v932
      %v934 = vpop.f32.mrb[0].mxu0
      %935 = vmatprep.mubr.f32.mxu0 0.0
      %936 = vmatmul.mubr.f32.gmra.mrb[0].mxu0 %v723
      %v937 = vpop.f32.mrb[0].mxu0
      %v938 = vadd.f32 0.0, %v937
      %v939 = vpop.f32.mrb[0].mxu0
      %940 = vmatprep.mubr.f32.mxu0 0.0
      %941 = vmatmul.mubr.f32.gmra.mrb[0].mxu0 %v725
      %v942 = vpop.f32.mrb[0].mxu0
      %v943 = vadd.f32 0.0, %v942
      %v944 = vpop.f32.mrb[0].mxu0
      %945 = vmatprep.mubr.f32.mxu0 0.0
      %946 = vmatmul.mubr.f32.gmra.mrb[0].mxu0 %v727
      %v947 = vpop.f32.mrb[0].mxu0
      %v948 = vadd.f32 0.0, %v947
      %v949 = vpop.f32.mrb[0].mxu0
      %950 = vmatprep.mubr.f32.mxu0 0.0
      %951 = vmatmul.mubr.f32.gmra.mrb[0].mxu0 %v729
      %v952 = vpop.f32.mrb[0].mxu0
      %v953 = vadd.f32 0.0, %v952
      %v954 = vpop.f32.mrb[0].mxu0
      %955 = vmatprep.mubr.f32.mxu0 0.0
      %956 = vmatmul.mubr.f32.gmra.mrb[0].mxu0 %v731
      %v957 = vpop.f32.mrb[0].mxu0
      %v958 = vadd.f32 0.0, %v957
      %v959 = vpop.f32.mrb[0].mxu0
      %960 = vdwg.mxu0
      %v962 = vsel %vm668, %v535, 0
      %v965 = vsel %vm668, %v536, 0
      %v968 = vsel %vm668, %v537, 0
      %v971 = vsel %vm668, %v538, 0
      %v974 = vsel %vm668, %v539, 0
      %v977 = vsel %vm668, %v540, 0
      %v980 = vsel %vm668, %v541, 0
      %v983 = vsel %vm668, %v542, 0
      %v986 = vsel %vm668, %v543, 0
      %v989 = vsel %vm668, %v544, 0
      %v992 = vsel %vm668, %v545, 0
      %v995 = vsel %vm668, %v546, 0
      %v998 = vsel %vm668, %v547, 0
      %v1001 = vsel %vm668, %v548, 0
      %v1004 = vsel %vm668, %v549, 0
      %v1007 = vsel %vm668, %v550, 0
      %v1010 = vsel %vm668, %v551, 0
      %v1013 = vsel %vm668, %v552, 0
      %v1016 = vsel %vm668, %v553, 0
      %v1019 = vsel %vm668, %v554, 0
      %v1022 = vsel %vm668, %v555, 0
      %v1025 = vsel %vm668, %v556, 0
      %v1028 = vsel %vm668, %v557, 0
      %v1031 = vsel %vm668, %v558, 0
      %v1034 = vsel %vm668, %v559, 0
      %v1037 = vsel %vm668, %v560, 0
      %v1040 = vsel %vm668, %v561, 0
      %v1043 = vsel %vm668, %v562, 0
      %v1046 = vsel %vm668, %v563, 0
      %v1049 = vsel %vm668, %v564, 0
      %v1052 = vsel %vm668, %v565, 0
      %v1055 = vsel %vm668, %v566, 0
      %v1057 = vsel %vm733, %v306, 0
      %1059 = vmatprep.subr.mxu0 0.0
      %1060 = vmatpush1.msra.mxu0 %v1057
      %1061 = vmatprep.subr.mxu0 0.0
      %1062 = vmatpush1.msra.mxu0 0.0
      %1063 = vmatprep.subr.mxu0 0.0
      %1064 = vmatpush1.msra.mxu0 0.0
      %1065 = vmatprep.subr.mxu0 0.0
      %1066 = vmatpush1.msra.mxu0 0.0
      %1067 = vmatprep.subr.mxu0 0.0
      %1068 = vmatpush1.msra.mxu0 0.0
      %1069 = vmatprep.subr.mxu0 0.0
      %1070 = vmatpush1.msra.mxu0 0.0
      %1071 = vmatprep.subr.mxu0 0.0
      %1072 = vmatpush1.msra.mxu0 0.0
      %1073 = vmatprep.subr.mxu0 0.0
      %1074 = vmatpush1.msra.mxu0 0.0
      %1075 = vmatprep.subr.mxu0 0.0
      %1076 = vmatpush1.msra.mxu0 0.0
      %1077 = vmatprep.subr.mxu0 0.0
      %1078 = vmatpush1.msra.mxu0 0.0
      %1079 = vmatprep.subr.mxu0 0.0
      %1080 = vmatpush1.msra.mxu0 0.0
      %1081 = vmatprep.subr.mxu0 0.0
      %1082 = vmatpush1.msra.mxu0 0.0
      %1083 = vmatprep.subr.mxu0 0.0
      %1084 = vmatpush1.msra.mxu0 0.0
      %1085 = vmatprep.subr.mxu0 0.0
      %1086 = vmatpush1.msra.mxu0 0.0
      %1087 = vmatprep.subr.mxu0 0.0
      %1088 = vmatpush1.msra.mxu0 0.0
      %1089 = vmatprep.subr.mxu0 0.0
      %1090 = vmatpush1.msra.mxu0 0.0
      %1091 = vmatprep.subr.mxu0 0.0
      %1092 = vmatpush1.msra.mxu0 0.0
      %1093 = vmatprep.subr.mxu0 0.0
      %1094 = vmatpush1.msra.mxu0 0.0
      %1095 = vmatprep.subr.mxu0 0.0
      %1096 = vmatpush1.msra.mxu0 0.0
      %1097 = vmatprep.subr.mxu0 0.0
      %1098 = vmatpush1.msra.mxu0 0.0
      %1099 = vmatprep.subr.mxu0 0.0
      %1100 = vmatpush1.msra.mxu0 0.0
      %1101 = vmatprep.subr.mxu0 0.0
      %1102 = vmatpush1.msra.mxu0 0.0
      %1103 = vmatprep.subr.mxu0 0.0
      %1104 = vmatpush1.msra.mxu0 0.0
      %1105 = vmatprep.subr.mxu0 0.0
      %1106 = vmatpush1.msra.mxu0 0.0
      %1107 = vmatprep.subr.mxu0 0.0
      %1108 = vmatpush1.msra.mxu0 0.0
      %1109 = vmatprep.subr.mxu0 0.0
      %1110 = vmatpush1.msra.mxu0 0.0
      %1111 = vmatprep.subr.mxu0 0.0
      %1112 = vmatpush1.msra.mxu0 0.0
      %1113 = vmatprep.subr.mxu0 0.0
      %1114 = vmatpush1.msra.mxu0 0.0
      %1115 = vmatprep.subr.mxu0 0.0
      %1116 = vmatpush1.msra.mxu0 0.0
      %1117 = vmatprep.subr.mxu0 0.0
      %1118 = vmatpush1.msra.mxu0 0.0
      %1119 = vmatprep.subr.mxu0 0.0
      %1120 = vmatpush1.msra.mxu0 0.0
      %1121 = vmatprep.subr.mxu0 0.0
      %1122 = vmatpush1.msra.mxu0 0.0
      %1123 = vmatprep.mubr.f32.mxu0 0.0
      %1124 = vmatmul.mubr.f32.gmra.mrb[0].mxu0 %v962
      %v1125 = vpop.f32.mrb[0].mxu0
      %v1126 = vadd.f32 %v803, %v1125
      %v1127 = vpop.f32.mrb[0].mxu0
      %1128 = vmatprep.mubr.f32.mxu0 0.0
      %1129 = vmatmul.mubr.f32.gmra.mrb[0].mxu0 %v965
      %v1130 = vpop.f32.mrb[0].mxu0
      %v1131 = vadd.f32 %v808, %v1130
      %v1132 = vpop.f32.mrb[0].mxu0
      %1133 = vmatprep.mubr.f32.mxu0 0.0
      %1134 = vmatmul.mubr.f32.gmra.mrb[0].mxu0 %v968
      %v1135 = vpop.f32.mrb[0].mxu0
      %v1136 = vadd.f32 %v813, %v1135
      %v1137 = vpop.f32.mrb[0].mxu0
      %1138 = vmatprep.mubr.f32.mxu0 0.0
      %1139 = vmatmul.mubr.f32.gmra.mrb[0].mxu0 %v971
      %v1140 = vpop.f32.mrb[0].mxu0
      %v1141 = vadd.f32 %v818, %v1140
      %v1142 = vpop.f32.mrb[0].mxu0
      %1143 = vmatprep.mubr.f32.mxu0 0.0
      %1144 = vmatmul.mubr.f32.gmra.mrb[0].mxu0 %v974
      %v1145 = vpop.f32.mrb[0].mxu0
      %v1146 = vadd.f32 %v823, %v1145
      %v1147 = vpop.f32.mrb[0].mxu0
      %1148 = vmatprep.mubr.f32.mxu0 0.0
      %1149 = vmatmul.mubr.f32.gmra.mrb[0].mxu0 %v977
      %v1150 = vpop.f32.mrb[0].mxu0
      %v1151 = vadd.f32 %v828, %v1150
      %v1152 = vpop.f32.mrb[0].mxu0
      %1153 = vmatprep.mubr.f32.mxu0 0.0
      %1154 = vmatmul.mubr.f32.gmra.mrb[0].mxu0 %v980
      %v1155 = vpop.f32.mrb[0].mxu0
      %v1156 = vadd.f32 %v833, %v1155
      %v1157 = vpop.f32.mrb[0].mxu0
      %1158 = vmatprep.mubr.f32.mxu0 0.0
      %1159 = vmatmul.mubr.f32.gmra.mrb[0].mxu0 %v983
      %v1160 = vpop.f32.mrb[0].mxu0
      %v1161 = vadd.f32 %v838, %v1160
      %v1162 = vpop.f32.mrb[0].mxu0
      %1163 = vmatprep.mubr.f32.mxu0 0.0
      %1164 = vmatmul.mubr.f32.gmra.mrb[0].mxu0 %v986
      %v1165 = vpop.f32.mrb[0].mxu0
      %v1166 = vadd.f32 %v843, %v1165
      %v1167 = vpop.f32.mrb[0].mxu0
      %1168 = vmatprep.mubr.f32.mxu0 0.0
      %1169 = vmatmul.mubr.f32.gmra.mrb[0].mxu0 %v989
      %v1170 = vpop.f32.mrb[0].mxu0
      %v1171 = vadd.f32 %v848, %v1170
      %v1172 = vpop.f32.mrb[0].mxu0
      %1173 = vmatprep.mubr.f32.mxu0 0.0
      %1174 = vmatmul.mubr.f32.gmra.mrb[0].mxu0 %v992
      %v1175 = vpop.f32.mrb[0].mxu0
      %v1176 = vadd.f32 %v853, %v1175
      %v1177 = vpop.f32.mrb[0].mxu0
      %1178 = vmatprep.mubr.f32.mxu0 0.0
      %1179 = vmatmul.mubr.f32.gmra.mrb[0].mxu0 %v995
      %v1180 = vpop.f32.mrb[0].mxu0
      %v1181 = vadd.f32 %v858, %v1180
      %v1182 = vpop.f32.mrb[0].mxu0
      %1183 = vmatprep.mubr.f32.mxu0 0.0
      %1184 = vmatmul.mubr.f32.gmra.mrb[0].mxu0 %v998
      %v1185 = vpop.f32.mrb[0].mxu0
      %v1186 = vadd.f32 %v863, %v1185
      %v1187 = vpop.f32.mrb[0].mxu0
      %1188 = vmatprep.mubr.f32.mxu0 0.0
      %1189 = vmatmul.mubr.f32.gmra.mrb[0].mxu0 %v1001
      %v1190 = vpop.f32.mrb[0].mxu0
      %v1191 = vadd.f32 %v868, %v1190
      %v1192 = vpop.f32.mrb[0].mxu0
      %1193 = vmatprep.mubr.f32.mxu0 0.0
      %1194 = vmatmul.mubr.f32.gmra.mrb[0].mxu0 %v1004
      %v1195 = vpop.f32.mrb[0].mxu0
      %v1196 = vadd.f32 %v873, %v1195
      %v1197 = vpop.f32.mrb[0].mxu0
      %1198 = vmatprep.mubr.f32.mxu0 0.0
      %1199 = vmatmul.mubr.f32.gmra.mrb[0].mxu0 %v1007
      %v1200 = vpop.f32.mrb[0].mxu0
      %v1201 = vadd.f32 %v878, %v1200
      %v1202 = vpop.f32.mrb[0].mxu0
      %1203 = vmatprep.mubr.f32.mxu0 0.0
      %1204 = vmatmul.mubr.f32.gmra.mrb[0].mxu0 %v1010
      %v1205 = vpop.f32.mrb[0].mxu0
      %v1206 = vadd.f32 %v883, %v1205
      %v1207 = vpop.f32.mrb[0].mxu0
      %1208 = vmatprep.mubr.f32.mxu0 0.0
      %1209 = vmatmul.mubr.f32.gmra.mrb[0].mxu0 %v1013
      %v1210 = vpop.f32.mrb[0].mxu0
      %v1211 = vadd.f32 %v888, %v1210
      %v1212 = vpop.f32.mrb[0].mxu0
      %1213 = vmatprep.mubr.f32.mxu0 0.0
      %1214 = vmatmul.mubr.f32.gmra.mrb[0].mxu0 %v1016
      %v1215 = vpop.f32.mrb[0].mxu0
      %v1216 = vadd.f32 %v893, %v1215
      %v1217 = vpop.f32.mrb[0].mxu0
      %1218 = vmatprep.mubr.f32.mxu0 0.0
      %1219 = vmatmul.mubr.f32.gmra.mrb[0].mxu0 %v1019
      %v1220 = vpop.f32.mrb[0].mxu0
      %v1221 = vadd.f32 %v898, %v1220
      %v1222 = vpop.f32.mrb[0].mxu0
      %1223 = vmatprep.mubr.f32.mxu0 0.0
      %1224 = vmatmul.mubr.f32.gmra.mrb[0].mxu0 %v1022
      %v1225 = vpop.f32.mrb[0].mxu0
      %v1226 = vadd.f32 %v903, %v1225
      %v1227 = vpop.f32.mrb[0].mxu0
      %1228 = vmatprep.mubr.f32.mxu0 0.0
      %1229 = vmatmul.mubr.f32.gmra.mrb[0].mxu0 %v1025
      %v1230 = vpop.f32.mrb[0].mxu0
      %v1231 = vadd.f32 %v908, %v1230
      %v1232 = vpop.f32.mrb[0].mxu0
      %1233 = vmatprep.mubr.f32.mxu0 0.0
      %1234 = vmatmul.mubr.f32.gmra.mrb[0].mxu0 %v1028
      %v1235 = vpop.f32.mrb[0].mxu0
      %v1236 = vadd.f32 %v913, %v1235
      %v1237 = vpop.f32.mrb[0].mxu0
      %1238 = vmatprep.mubr.f32.mxu0 0.0
      %1239 = vmatmul.mubr.f32.gmra.mrb[0].mxu0 %v1031
      %v1240 = vpop.f32.mrb[0].mxu0
      %v1241 = vadd.f32 %v918, %v1240
      %v1242 = vpop.f32.mrb[0].mxu0
      %1243 = vmatprep.mubr.f32.mxu0 0.0
      %1244 = vmatmul.mubr.f32.gmra.mrb[0].mxu0 %v1034
      %v1245 = vpop.f32.mrb[0].mxu0
      %v1246 = vadd.f32 %v923, %v1245
      %v1247 = vpop.f32.mrb[0].mxu0
      %1248 = vmatprep.mubr.f32.mxu0 0.0
      %1249 = vmatmul.mubr.f32.gmra.mrb[0].mxu0 %v1037
      %v1250 = vpop.f32.mrb[0].mxu0
      %v1251 = vadd.f32 %v928, %v1250
      %v1252 = vpop.f32.mrb[0].mxu0
      %1253 = vmatprep.mubr.f32.mxu0 0.0
      %1254 = vmatmul.mubr.f32.gmra.mrb[0].mxu0 %v1040
      %v1255 = vpop.f32.mrb[0].mxu0
      %v1256 = vadd.f32 %v933, %v1255
      %v1257 = vpop.f32.mrb[0].mxu0
      %1258 = vmatprep.mubr.f32.mxu0 0.0
      %1259 = vmatmul.mubr.f32.gmra.mrb[0].mxu0 %v1043
      %v1260 = vpop.f32.mrb[0].mxu0
      %v1261 = vadd.f32 %v938, %v1260
      %v1262 = vpop.f32.mrb[0].mxu0
      %1263 = vmatprep.mubr.f32.mxu0 0.0
      %1264 = vmatmul.mubr.f32.gmra.mrb[0].mxu0 %v1046
      %v1265 = vpop.f32.mrb[0].mxu0
      %v1266 = vadd.f32 %v943, %v1265
      %v1267 = vpop.f32.mrb[0].mxu0
      %1268 = vmatprep.mubr.f32.mxu0 0.0
      %1269 = vmatmul.mubr.f32.gmra.mrb[0].mxu0 %v1049
      %v1270 = vpop.f32.mrb[0].mxu0
      %v1271 = vadd.f32 %v948, %v1270
      %v1272 = vpop.f32.mrb[0].mxu0
      %1273 = vmatprep.mubr.f32.mxu0 0.0
      %1274 = vmatmul.mubr.f32.gmra.mrb[0].mxu0 %v1052
      %v1275 = vpop.f32.mrb[0].mxu0
      %v1276 = vadd.f32 %v953, %v1275
      %v1277 = vpop.f32.mrb[0].mxu0
      %1278 = vmatprep.mubr.f32.mxu0 0.0
      %1279 = vmatmul.mubr.f32.gmra.mrb[0].mxu0 %v1055
      %v1280 = vpop.f32.mrb[0].mxu0
      %v1281 = vadd.f32 %v958, %v1280
      %v1282 = vpop.f32.mrb[0].mxu0
      %1283 = vdwg.mxu0
      %1285 = vset.pattern.permute.xlu0 0
      %1286 = vperm.xlu0 %1285, %v343
      %v1287 = vpop.permute.xlu0 %1286
      %1289 = vset.pattern.permute.xlu0 0
      %1290 = vperm.xlu0 %1289, %v344
      %v1291 = vpop.permute.xlu0 %1290
      %1293 = vset.pattern.permute.xlu0 0
      %1294 = vperm.xlu0 %1293, %v345
      %v1295 = vpop.permute.xlu0 %1294
      %1297 = vset.pattern.permute.xlu0 0
      %1298 = vperm.xlu0 %1297, %v346
      %v1299 = vpop.permute.xlu0 %1298
      %1301 = vset.pattern.permute.xlu0 0
      %1302 = vperm.xlu0 %1301, %v347
      %v1303 = vpop.permute.xlu0 %1302
      %1305 = vset.pattern.permute.xlu0 0
      %1306 = vperm.xlu0 %1305, %v348
      %v1307 = vpop.permute.xlu0 %1306
      %1309 = vset.pattern.permute.xlu0 0
      %1310 = vperm.xlu0 %1309, %v349
      %v1311 = vpop.permute.xlu0 %1310
      %1313 = vset.pattern.permute.xlu0 0
      %1314 = vperm.xlu0 %1313, %v350
      %v1315 = vpop.permute.xlu0 %1314
      %1317 = vset.pattern.permute.xlu0 0
      %1318 = vperm.xlu0 %1317, %v351
      %v1319 = vpop.permute.xlu0 %1318
      %1321 = vset.pattern.permute.xlu0 0
      %1322 = vperm.xlu0 %1321, %v352
      %v1323 = vpop.permute.xlu0 %1322
      %1325 = vset.pattern.permute.xlu0 0
      %1326 = vperm.xlu0 %1325, %v353
      %v1327 = vpop.permute.xlu0 %1326
      %1329 = vset.pattern.permute.xlu0 0
      %1330 = vperm.xlu0 %1329, %v354
      %v1331 = vpop.permute.xlu0 %1330
      %1333 = vset.pattern.permute.xlu0 0
      %1334 = vperm.xlu0 %1333, %v355
      %v1335 = vpop.permute.xlu0 %1334
      %1337 = vset.pattern.permute.xlu0 0
      %1338 = vperm.xlu0 %1337, %v356
      %v1339 = vpop.permute.xlu0 %1338
      %1341 = vset.pattern.permute.xlu0 0
      %1342 = vperm.xlu0 %1341, %v357
      %v1343 = vpop.permute.xlu0 %1342
      %1345 = vset.pattern.permute.xlu0 0
      %1346 = vperm.xlu0 %1345, %v358
      %v1347 = vpop.permute.xlu0 %1346
      %1349 = vset.pattern.permute.xlu0 0
      %1350 = vperm.xlu0 %1349, %v359
      %v1351 = vpop.permute.xlu0 %1350
      %1353 = vset.pattern.permute.xlu0 0
      %1354 = vperm.xlu0 %1353, %v360
      %v1355 = vpop.permute.xlu0 %1354
      %1357 = vset.pattern.permute.xlu0 0
      %1358 = vperm.xlu0 %1357, %v361
      %v1359 = vpop.permute.xlu0 %1358
      %1361 = vset.pattern.permute.xlu0 0
      %1362 = vperm.xlu0 %1361, %v362
      %v1363 = vpop.permute.xlu0 %1362
      %1365 = vset.pattern.permute.xlu0 0
      %1366 = vperm.xlu0 %1365, %v363
      %v1367 = vpop.permute.xlu0 %1366
      %1369 = vset.pattern.permute.xlu0 0
      %1370 = vperm.xlu0 %1369, %v364
      %v1371 = vpop.permute.xlu0 %1370
      %1373 = vset.pattern.permute.xlu0 0
      %1374 = vperm.xlu0 %1373, %v365
      %v1375 = vpop.permute.xlu0 %1374
      %1377 = vset.pattern.permute.xlu0 0
      %1378 = vperm.xlu0 %1377, %v366
      %v1379 = vpop.permute.xlu0 %1378
      %1381 = vset.pattern.permute.xlu0 0
      %1382 = vperm.xlu0 %1381, %v367
      %v1383 = vpop.permute.xlu0 %1382
      %1385 = vset.pattern.permute.xlu0 0
      %1386 = vperm.xlu0 %1385, %v368
      %v1387 = vpop.permute.xlu0 %1386
      %1389 = vset.pattern.permute.xlu0 0
      %1390 = vperm.xlu0 %1389, %v369
      %v1391 = vpop.permute.xlu0 %1390
      %1393 = vset.pattern.permute.xlu0 0
      %1394 = vperm.xlu0 %1393, %v370
      %v1395 = vpop.permute.xlu0 %1394
      %1397 = vset.pattern.permute.xlu0 0
      %1398 = vperm.xlu0 %1397, %v371
      %v1399 = vpop.permute.xlu0 %1398
      %1401 = vset.pattern.permute.xlu0 0
      %1402 = vperm.xlu0 %1401, %v372
      %v1403 = vpop.permute.xlu0 %1402
      %1405 = vset.pattern.permute.xlu0 0
      %1406 = vperm.xlu0 %1405, %v373
      %v1407 = vpop.permute.xlu0 %1406
      %1409 = vset.pattern.permute.xlu0 0
      %1410 = vperm.xlu0 %1409, %v374
      %v1411 = vpop.permute.xlu0 %1410
      %vm1412 = vcmask 1041408
      %v1413 = vrot.slane %v1287, 6
      %v1414 = vrot.slane %v1291, 6
      %v1415 = vsel %vm1412, %v1413, %v1414
      %v1416 = vrot.slane %v1295, 6
      %v1417 = vsel %vm1412, %v1414, %v1416
      %v1418 = vrot.slane %v1299, 6
      %v1419 = vsel %vm1412, %v1416, %v1418
      %v1420 = vrot.slane %v1303, 6
      %v1421 = vsel %vm1412, %v1418, %v1420
      %v1422 = vrot.slane %v1307, 6
      %v1423 = vsel %vm1412, %v1420, %v1422
      %v1424 = vrot.slane %v1311, 6
      %v1425 = vsel %vm1412, %v1422, %v1424
      %v1426 = vrot.slane %v1315, 6
      %v1427 = vsel %vm1412, %v1424, %v1426
      %v1428 = vrot.slane %v1319, 6
      %v1429 = vsel %vm1412, %v1426, %v1428
      %v1430 = vrot.slane %v1323, 6
      %v1431 = vsel %vm1412, %v1428, %v1430
      %v1432 = vrot.slane %v1327, 6
      %v1433 = vsel %vm1412, %v1430, %v1432
      %v1434 = vrot.slane %v1331, 6
      %v1435 = vsel %vm1412, %v1432, %v1434
      %v1436 = vrot.slane %v1335, 6
      %v1437 = vsel %vm1412, %v1434, %v1436
      %v1438 = vrot.slane %v1339, 6
      %v1439 = vsel %vm1412, %v1436, %v1438
      %v1440 = vrot.slane %v1343, 6
      %v1441 = vsel %vm1412, %v1438, %v1440
      %v1442 = vrot.slane %v1347, 6
      %v1443 = vsel %vm1412, %v1440, %v1442
      %v1444 = vrot.slane %v1351, 6
      %v1445 = vsel %vm1412, %v1442, %v1444
      %v1446 = vrot.slane %v1355, 6
      %v1447 = vsel %vm1412, %v1444, %v1446
      %v1448 = vrot.slane %v1359, 6
      %v1449 = vsel %vm1412, %v1446, %v1448
      %v1450 = vrot.slane %v1363, 6
      %v1451 = vsel %vm1412, %v1448, %v1450
      %v1452 = vrot.slane %v1367, 6
      %v1453 = vsel %vm1412, %v1450, %v1452
      %v1454 = vrot.slane %v1371, 6
      %v1455 = vsel %vm1412, %v1452, %v1454
      %v1456 = vrot.slane %v1375, 6
      %v1457 = vsel %vm1412, %v1454, %v1456
      %v1458 = vrot.slane %v1379, 6
      %v1459 = vsel %vm1412, %v1456, %v1458
      %v1460 = vrot.slane %v1383, 6
      %v1461 = vsel %vm1412, %v1458, %v1460
      %v1462 = vrot.slane %v1387, 6
      %v1463 = vsel %vm1412, %v1460, %v1462
      %v1464 = vrot.slane %v1391, 6
      %v1465 = vsel %vm1412, %v1462, %v1464
      %v1466 = vrot.slane %v1395, 6
      %v1467 = vsel %vm1412, %v1464, %v1466
      %v1468 = vrot.slane %v1399, 6
      %v1469 = vsel %vm1412, %v1466, %v1468
      %v1470 = vrot.slane %v1403, 6
      %v1471 = vsel %vm1412, %v1468, %v1470
      %v1472 = vrot.slane %v1407, 6
      %v1473 = vsel %vm1412, %v1470, %v1472
      %v1474 = vrot.slane %v1411, 6
      %v1475 = vsel %vm1412, %v1472, %v1474
      %v1509 = vmul.f32 %v269, %v1413
      %v1510 = vmul.f32 %v270, %v1415
      %v1511 = vmul.f32 %v271, %v1417
      %v1512 = vmul.f32 %v272, %v1419
      %v1513 = vmul.f32 %v273, %v1421
      %v1514 = vmul.f32 %v274, %v1423
      %v1515 = vmul.f32 %v275, %v1425
      %v1516 = vmul.f32 %v276, %v1427
      %v1517 = vmul.f32 %v277, %v1429
      %v1518 = vmul.f32 %v278, %v1431
      %v1519 = vmul.f32 %v279, %v1433
      %v1520 = vmul.f32 %v280, %v1435
      %v1521 = vmul.f32 %v281, %v1437
      %v1522 = vmul.f32 %v282, %v1439
      %v1523 = vmul.f32 %v283, %v1441
      %v1524 = vmul.f32 %v284, %v1443
      %v1525 = vmul.f32 %v285, %v1445
      %v1526 = vmul.f32 %v286, %v1447
      %v1527 = vmul.f32 %v287, %v1449
      %v1528 = vmul.f32 %v288, %v1451
      %v1529 = vmul.f32 %v289, %v1453
      %v1530 = vmul.f32 %v290, %v1455
      %v1531 = vmul.f32 %v291, %v1457
      %v1532 = vmul.f32 %v292, %v1459
      %v1533 = vmul.f32 %v293, %v1461
      %v1534 = vmul.f32 %v294, %v1463
      %v1535 = vmul.f32 %v295, %v1465
      %v1536 = vmul.f32 %v296, %v1467
      %v1537 = vmul.f32 %v297, %v1469
      %v1538 = vmul.f32 %v298, %v1471
      %v1539 = vmul.f32 %v299, %v1473
      %v1540 = vmul.f32 %v300, %v1475
      %v1541 = vmul.f32 %v301, %v1474
      %vm1575 = vcmask 1045504
      %v1576 = vrot.slane %v1509, 2
      %v1577 = vrot.slane %v1510, 2
      %v1578 = vsel %vm1575, %v1576, %v1577
      %v1579 = vrot.slane %v1511, 2
      %v1580 = vsel %vm1575, %v1577, %v1579
      %v1581 = vrot.slane %v1512, 2
      %v1582 = vsel %vm1575, %v1579, %v1581
      %v1583 = vrot.slane %v1513, 2
      %v1584 = vsel %vm1575, %v1581, %v1583
      %v1585 = vrot.slane %v1514, 2
      %v1586 = vsel %vm1575, %v1583, %v1585
      %v1587 = vrot.slane %v1515, 2
      %v1588 = vsel %vm1575, %v1585, %v1587
      %v1589 = vrot.slane %v1516, 2
      %v1590 = vsel %vm1575, %v1587, %v1589
      %v1591 = vrot.slane %v1517, 2
      %v1592 = vsel %vm1575, %v1589, %v1591
      %v1593 = vrot.slane %v1518, 2
      %v1594 = vsel %vm1575, %v1591, %v1593
      %v1595 = vrot.slane %v1519, 2
      %v1596 = vsel %vm1575, %v1593, %v1595
      %v1597 = vrot.slane %v1520, 2
      %v1598 = vsel %vm1575, %v1595, %v1597
      %v1599 = vrot.slane %v1521, 2
      %v1600 = vsel %vm1575, %v1597, %v1599
      %v1601 = vrot.slane %v1522, 2
      %v1602 = vsel %vm1575, %v1599, %v1601
      %v1603 = vrot.slane %v1523, 2
      %v1604 = vsel %vm1575, %v1601, %v1603
      %v1605 = vrot.slane %v1524, 2
      %v1606 = vsel %vm1575, %v1603, %v1605
      %v1607 = vrot.slane %v1525, 2
      %v1608 = vsel %vm1575, %v1605, %v1607
      %v1609 = vrot.slane %v1526, 2
      %v1610 = vsel %vm1575, %v1607, %v1609
      %v1611 = vrot.slane %v1527, 2
      %v1612 = vsel %vm1575, %v1609, %v1611
      %v1613 = vrot.slane %v1528, 2
      %v1614 = vsel %vm1575, %v1611, %v1613
      %v1615 = vrot.slane %v1529, 2
      %v1616 = vsel %vm1575, %v1613, %v1615
      %v1617 = vrot.slane %v1530, 2
      %v1618 = vsel %vm1575, %v1615, %v1617
      %v1619 = vrot.slane %v1531, 2
      %v1620 = vsel %vm1575, %v1617, %v1619
      %v1621 = vrot.slane %v1532, 2
      %v1622 = vsel %vm1575, %v1619, %v1621
      %v1623 = vrot.slane %v1533, 2
      %v1624 = vsel %vm1575, %v1621, %v1623
      %v1625 = vrot.slane %v1534, 2
      %v1626 = vsel %vm1575, %v1623, %v1625
      %v1627 = vrot.slane %v1535, 2
      %v1628 = vsel %vm1575, %v1625, %v1627
      %v1629 = vrot.slane %v1536, 2
      %v1630 = vsel %vm1575, %v1627, %v1629
      %v1631 = vrot.slane %v1537, 2
      %v1632 = vsel %vm1575, %v1629, %v1631
      %v1633 = vrot.slane %v1538, 2
      %v1634 = vsel %vm1575, %v1631, %v1633
      %v1635 = vrot.slane %v1539, 2
      %v1636 = vsel %vm1575, %v1633, %v1635
      %v1637 = vrot.slane %v1540, 2
      %v1638 = vsel %vm1575, %v1635, %v1637
      %v1639 = vrot.slane %v1541, 2
      %v1640 = vsel %vm1575, %v1637, %v1639
      %v1641 = vsel %vm668, %v1578, 0
      %v1643 = vsel %vm668, %v1580, 0
      %v1645 = vsel %vm668, %v1582, 0
      %v1647 = vsel %vm668, %v1584, 0
      %v1649 = vsel %vm668, %v1586, 0
      %v1651 = vsel %vm668, %v1588, 0
      %v1653 = vsel %vm668, %v1590, 0
      %v1655 = vsel %vm668, %v1592, 0
      %v1657 = vsel %vm668, %v1594, 0
      %v1659 = vsel %vm668, %v1596, 0
      %v1661 = vsel %vm668, %v1598, 0
      %v1663 = vsel %vm668, %v1600, 0
      %v1665 = vsel %vm668, %v1602, 0
      %v1667 = vsel %vm668, %v1604, 0
      %v1669 = vsel %vm668, %v1606, 0
      %v1671 = vsel %vm668, %v1608, 0
      %v1673 = vsel %vm668, %v1610, 0
      %v1675 = vsel %vm668, %v1612, 0
      %v1677 = vsel %vm668, %v1614, 0
      %v1679 = vsel %vm668, %v1616, 0
      %v1681 = vsel %vm668, %v1618, 0
      %v1683 = vsel %vm668, %v1620, 0
      %v1685 = vsel %vm668, %v1622, 0
      %v1687 = vsel %vm668, %v1624, 0
      %v1689 = vsel %vm668, %v1626, 0
      %v1691 = vsel %vm668, %v1628, 0
      %v1693 = vsel %vm668, %v1630, 0
      %v1695 = vsel %vm668, %v1632, 0
      %v1697 = vsel %vm668, %v1634, 0
      %v1699 = vsel %vm668, %v1636, 0
      %v1701 = vsel %vm668, %v1638, 0
      %v1703 = vsel %vm668, %v1640, 0
      %v1706 = vsel %vm733, %v307, 0
      %1708 = vmatprep.subr.mxu0 0.0
      %1709 = vmatpush1.msra.mxu0 %v1706
      %1710 = vmatprep.subr.mxu0 0.0
      %1711 = vmatpush1.msra.mxu0 0.0
      %1712 = vmatprep.subr.mxu0 0.0
      %1713 = vmatpush1.msra.mxu0 0.0
      %1714 = vmatprep.subr.mxu0 0.0
      %1715 = vmatpush1.msra.mxu0 0.0
      %1716 = vmatprep.subr.mxu0 0.0
      %1717 = vmatpush1.msra.mxu0 0.0
      %1718 = vmatprep.subr.mxu0 0.0
      %1719 = vmatpush1.msra.mxu0 0.0
      %1720 = vmatprep.subr.mxu0 0.0
      %1721 = vmatpush1.msra.mxu0 0.0
      %1722 = vmatprep.subr.mxu0 0.0
      %1723 = vmatpush1.msra.mxu0 0.0
      %1724 = vmatprep.subr.mxu0 0.0
      %1725 = vmatpush1.msra.mxu0 0.0
      %1726 = vmatprep.subr.mxu0 0.0
      %1727 = vmatpush1.msra.mxu0 0.0
      %1728 = vmatprep.subr.mxu0 0.0
      %1729 = vmatpush1.msra.mxu0 0.0
      %1730 = vmatprep.subr.mxu0 0.0
      %1731 = vmatpush1.msra.mxu0 0.0
      %1732 = vmatprep.subr.mxu0 0.0
      %1733 = vmatpush1.msra.mxu0 0.0
      %1734 = vmatprep.subr.mxu0 0.0
      %1735 = vmatpush1.msra.mxu0 0.0
      %1736 = vmatprep.subr.mxu0 0.0
      %1737 = vmatpush1.msra.mxu0 0.0
      %1738 = vmatprep.subr.mxu0 0.0
      %1739 = vmatpush1.msra.mxu0 0.0
      %1740 = vmatprep.subr.mxu0 0.0
      %1741 = vmatpush1.msra.mxu0 0.0
      %1742 = vmatprep.subr.mxu0 0.0
      %1743 = vmatpush1.msra.mxu0 0.0
      %1744 = vmatprep.subr.mxu0 0.0
      %1745 = vmatpush1.msra.mxu0 0.0
      %1746 = vmatprep.subr.mxu0 0.0
      %1747 = vmatpush1.msra.mxu0 0.0
      %1748 = vmatprep.subr.mxu0 0.0
      %1749 = vmatpush1.msra.mxu0 0.0
      %1750 = vmatprep.subr.mxu0 0.0
      %1751 = vmatpush1.msra.mxu0 0.0
      %1752 = vmatprep.subr.mxu0 0.0
      %1753 = vmatpush1.msra.mxu0 0.0
      %1754 = vmatprep.subr.mxu0 0.0
      %1755 = vmatpush1.msra.mxu0 0.0
      %1756 = vmatprep.subr.mxu0 0.0
      %1757 = vmatpush1.msra.mxu0 0.0
      %1758 = vmatprep.subr.mxu0 0.0
      %1759 = vmatpush1.msra.mxu0 0.0
      %1760 = vmatprep.subr.mxu0 0.0
      %1761 = vmatpush1.msra.mxu0 0.0
      %1762 = vmatprep.subr.mxu0 0.0
      %1763 = vmatpush1.msra.mxu0 0.0
      %1764 = vmatprep.subr.mxu0 0.0
      %1765 = vmatpush1.msra.mxu0 0.0
      %1766 = vmatprep.subr.mxu0 0.0
      %1767 = vmatpush1.msra.mxu0 0.0
      %1768 = vmatprep.subr.mxu0 0.0
      %1769 = vmatpush1.msra.mxu0 0.0
      %1770 = vmatprep.subr.mxu0 0.0
      %1771 = vmatpush1.msra.mxu0 0.0
      %1772 = vmatprep.mubr.f32.mxu0 0.0
      %1773 = vmatmul.mubr.f32.gmra.mrb[0].mxu0 %v1641
      %v1774 = vpop.f32.mrb[0].mxu0
      %v1775 = vadd.f32 0.0, %v1774
      %v1776 = vpop.f32.mrb[0].mxu0
      %1777 = vmatprep.mubr.f32.mxu0 0.0
      %1778 = vmatmul.mubr.f32.gmra.mrb[0].mxu0 %v1643
      %v1779 = vpop.f32.mrb[0].mxu0
      %v1780 = vadd.f32 0.0, %v1779
      %v1781 = vpop.f32.mrb[0].mxu0
      %1782 = vmatprep.mubr.f32.mxu0 0.0
      %1783 = vmatmul.mubr.f32.gmra.mrb[0].mxu0 %v1645
      %v1784 = vpop.f32.mrb[0].mxu0
      %v1785 = vadd.f32 0.0, %v1784
      %v1786 = vpop.f32.mrb[0].mxu0
      %1787 = vmatprep.mubr.f32.mxu0 0.0
      %1788 = vmatmul.mubr.f32.gmra.mrb[0].mxu0 %v1647
      %v1789 = vpop.f32.mrb[0].mxu0
      %v1790 = vadd.f32 0.0, %v1789
      %v1791 = vpop.f32.mrb[0].mxu0
      %1792 = vmatprep.mubr.f32.mxu0 0.0
      %1793 = vmatmul.mubr.f32.gmra.mrb[0].mxu0 %v1649
      %v1794 = vpop.f32.mrb[0].mxu0
      %v1795 = vadd.f32 0.0, %v1794
      %v1796 = vpop.f32.mrb[0].mxu0
      %1797 = vmatprep.mubr.f32.mxu0 0.0
      %1798 = vmatmul.mubr.f32.gmra.mrb[0].mxu0 %v1651
      %v1799 = vpop.f32.mrb[0].mxu0
      %v1800 = vadd.f32 0.0, %v1799
      %v1801 = vpop.f32.mrb[0].mxu0
      %1802 = vmatprep.mubr.f32.mxu0 0.0
      %1803 = vmatmul.mubr.f32.gmra.mrb[0].mxu0 %v1653
      %v1804 = vpop.f32.mrb[0].mxu0
      %v1805 = vadd.f32 0.0, %v1804
      %v1806 = vpop.f32.mrb[0].mxu0
      %1807 = vmatprep.mubr.f32.mxu0 0.0
      %1808 = vmatmul.mubr.f32.gmra.mrb[0].mxu0 %v1655
      %v1809 = vpop.f32.mrb[0].mxu0
      %v1810 = vadd.f32 0.0, %v1809
      %v1811 = vpop.f32.mrb[0].mxu0
      %1812 = vmatprep.mubr.f32.mxu0 0.0
      %1813 = vmatmul.mubr.f32.gmra.mrb[0].mxu0 %v1657
      %v1814 = vpop.f32.mrb[0].mxu0
      %v1815 = vadd.f32 0.0, %v1814
      %v1816 = vpop.f32.mrb[0].mxu0
      %1817 = vmatprep.mubr.f32.mxu0 0.0
      %1818 = vmatmul.mubr.f32.gmra.mrb[0].mxu0 %v1659
      %v1819 = vpop.f32.mrb[0].mxu0
      %v1820 = vadd.f32 0.0, %v1819
      %v1821 = vpop.f32.mrb[0].mxu0
      %1822 = vmatprep.mubr.f32.mxu0 0.0
      %1823 = vmatmul.mubr.f32.gmra.mrb[0].mxu0 %v1661
      %v1824 = vpop.f32.mrb[0].mxu0
      %v1825 = vadd.f32 0.0, %v1824
      %v1826 = vpop.f32.mrb[0].mxu0
      %1827 = vmatprep.mubr.f32.mxu0 0.0
      %1828 = vmatmul.mubr.f32.gmra.mrb[0].mxu0 %v1663
      %v1829 = vpop.f32.mrb[0].mxu0
      %v1830 = vadd.f32 0.0, %v1829
      %v1831 = vpop.f32.mrb[0].mxu0
      %1832 = vmatprep.mubr.f32.mxu0 0.0
      %1833 = vmatmul.mubr.f32.gmra.mrb[0].mxu0 %v1665
      %v1834 = vpop.f32.mrb[0].mxu0
      %v1835 = vadd.f32 0.0, %v1834
      %v1836 = vpop.f32.mrb[0].mxu0
      %1837 = vmatprep.mubr.f32.mxu0 0.0
      %1838 = vmatmul.mubr.f32.gmra.mrb[0].mxu0 %v1667
      %v1839 = vpop.f32.mrb[0].mxu0
      %v1840 = vadd.f32 0.0, %v1839
      %v1841 = vpop.f32.mrb[0].mxu0
      %1842 = vmatprep.mubr.f32.mxu0 0.0
      %1843 = vmatmul.mubr.f32.gmra.mrb[0].mxu0 %v1669
      %v1844 = vpop.f32.mrb[0].mxu0
      %v1845 = vadd.f32 0.0, %v1844
      %v1846 = vpop.f32.mrb[0].mxu0
      %1847 = vmatprep.mubr.f32.mxu0 0.0
      %1848 = vmatmul.mubr.f32.gmra.mrb[0].mxu0 %v1671
      %v1849 = vpop.f32.mrb[0].mxu0
      %v1850 = vadd.f32 0.0, %v1849
      %v1851 = vpop.f32.mrb[0].mxu0
      %1852 = vmatprep.mubr.f32.mxu0 0.0
      %1853 = vmatmul.mubr.f32.gmra.mrb[0].mxu0 %v1673
      %v1854 = vpop.f32.mrb[0].mxu0
      %v1855 = vadd.f32 0.0, %v1854
      %v1856 = vpop.f32.mrb[0].mxu0
      %1857 = vmatprep.mubr.f32.mxu0 0.0
      %1858 = vmatmul.mubr.f32.gmra.mrb[0].mxu0 %v1675
      %v1859 = vpop.f32.mrb[0].mxu0
      %v1860 = vadd.f32 0.0, %v1859
      %v1861 = vpop.f32.mrb[0].mxu0
      %1862 = vmatprep.mubr.f32.mxu0 0.0
      %1863 = vmatmul.mubr.f32.gmra.mrb[0].mxu0 %v1677
      %v1864 = vpop.f32.mrb[0].mxu0
      %v1865 = vadd.f32 0.0, %v1864
      %v1866 = vpop.f32.mrb[0].mxu0
      %1867 = vmatprep.mubr.f32.mxu0 0.0
      %1868 = vmatmul.mubr.f32.gmra.mrb[0].mxu0 %v1679
      %v1869 = vpop.f32.mrb[0].mxu0
      %v1870 = vadd.f32 0.0, %v1869
      %v1871 = vpop.f32.mrb[0].mxu0
      %1872 = vmatprep.mubr.f32.mxu0 0.0
      %1873 = vmatmul.mubr.f32.gmra.mrb[0].mxu0 %v1681
      %v1874 = vpop.f32.mrb[0].mxu0
      %v1875 = vadd.f32 0.0, %v1874
      %v1876 = vpop.f32.mrb[0].mxu0
      %1877 = vmatprep.mubr.f32.mxu0 0.0
      %1878 = vmatmul.mubr.f32.gmra.mrb[0].mxu0 %v1683
      %v1879 = vpop.f32.mrb[0].mxu0
      %v1880 = vadd.f32 0.0, %v1879
      %v1881 = vpop.f32.mrb[0].mxu0
      %1882 = vmatprep.mubr.f32.mxu0 0.0
      %1883 = vmatmul.mubr.f32.gmra.mrb[0].mxu0 %v1685
      %v1884 = vpop.f32.mrb[0].mxu0
      %v1885 = vadd.f32 0.0, %v1884
      %v1886 = vpop.f32.mrb[0].mxu0
      %1887 = vmatprep.mubr.f32.mxu0 0.0
      %1888 = vmatmul.mubr.f32.gmra.mrb[0].mxu0 %v1687
      %v1889 = vpop.f32.mrb[0].mxu0
      %v1890 = vadd.f32 0.0, %v1889
      %v1891 = vpop.f32.mrb[0].mxu0
      %1892 = vmatprep.mubr.f32.mxu0 0.0
      %1893 = vmatmul.mubr.f32.gmra.mrb[0].mxu0 %v1689
      %v1894 = vpop.f32.mrb[0].mxu0
      %v1895 = vadd.f32 0.0, %v1894
      %v1896 = vpop.f32.mrb[0].mxu0
      %1897 = vmatprep.mubr.f32.mxu0 0.0
      %1898 = vmatmul.mubr.f32.gmra.mrb[0].mxu0 %v1691
      %v1899 = vpop.f32.mrb[0].mxu0
      %v1900 = vadd.f32 0.0, %v1899
      %v1901 = vpop.f32.mrb[0].mxu0
      %1902 = vmatprep.mubr.f32.mxu0 0.0
      %1903 = vmatmul.mubr.f32.gmra.mrb[0].mxu0 %v1693
      %v1904 = vpop.f32.mrb[0].mxu0
      %v1905 = vadd.f32 0.0, %v1904
      %v1906 = vpop.f32.mrb[0].mxu0
      %1907 = vmatprep.mubr.f32.mxu0 0.0
      %1908 = vmatmul.mubr.f32.gmra.mrb[0].mxu0 %v1695
      %v1909 = vpop.f32.mrb[0].mxu0
      %v1910 = vadd.f32 0.0, %v1909
      %v1911 = vpop.f32.mrb[0].mxu0
      %1912 = vmatprep.mubr.f32.mxu0 0.0
      %1913 = vmatmul.mubr.f32.gmra.mrb[0].mxu0 %v1697
      %v1914 = vpop.f32.mrb[0].mxu0
      %v1915 = vadd.f32 0.0, %v1914
      %v1916 = vpop.f32.mrb[0].mxu0
      %1917 = vmatprep.mubr.f32.mxu0 0.0
      %1918 = vmatmul.mubr.f32.gmra.mrb[0].mxu0 %v1699
      %v1919 = vpop.f32.mrb[0].mxu0
      %v1920 = vadd.f32 0.0, %v1919
      %v1921 = vpop.f32.mrb[0].mxu0
      %1922 = vmatprep.mubr.f32.mxu0 0.0
      %1923 = vmatmul.mubr.f32.gmra.mrb[0].mxu0 %v1701
      %v1924 = vpop.f32.mrb[0].mxu0
      %v1925 = vadd.f32 0.0, %v1924
      %v1926 = vpop.f32.mrb[0].mxu0
      %1927 = vmatprep.mubr.f32.mxu0 0.0
      %1928 = vmatmul.mubr.f32.gmra.mrb[0].mxu0 %v1703
      %v1929 = vpop.f32.mrb[0].mxu0
      %v1930 = vadd.f32 0.0, %v1929
      %v1931 = vpop.f32.mrb[0].mxu0
      %1932 = vdwg.mxu0
      %v1933 = vadd.f32 %v1126, %v1775
      %v1934 = vadd.f32 %v1131, %v1780
      %v1935 = vadd.f32 %v1136, %v1785
      %v1936 = vadd.f32 %v1141, %v1790
      %v1937 = vadd.f32 %v1146, %v1795
      %v1938 = vadd.f32 %v1151, %v1800
      %v1939 = vadd.f32 %v1156, %v1805
      %v1940 = vadd.f32 %v1161, %v1810
      %v1941 = vadd.f32 %v1166, %v1815
      %v1942 = vadd.f32 %v1171, %v1820
      %v1943 = vadd.f32 %v1176, %v1825
      %v1944 = vadd.f32 %v1181, %v1830
      %v1945 = vadd.f32 %v1186, %v1835
      %v1946 = vadd.f32 %v1191, %v1840
      %v1947 = vadd.f32 %v1196, %v1845
      %v1948 = vadd.f32 %v1201, %v1850
      %v1949 = vadd.f32 %v1206, %v1855
      %v1950 = vadd.f32 %v1211, %v1860
      %v1951 = vadd.f32 %v1216, %v1865
      %v1952 = vadd.f32 %v1221, %v1870
      %v1953 = vadd.f32 %v1226, %v1875
      %v1954 = vadd.f32 %v1231, %v1880
      %v1955 = vadd.f32 %v1236, %v1885
      %v1956 = vadd.f32 %v1241, %v1890
      %v1957 = vadd.f32 %v1246, %v1895
      %v1958 = vadd.f32 %v1251, %v1900
      %v1959 = vadd.f32 %v1256, %v1905
      %v1960 = vadd.f32 %v1261, %v1910
      %v1961 = vadd.f32 %v1266, %v1915
      %v1962 = vadd.f32 %v1271, %v1920
      %v1963 = vadd.f32 %v1276, %v1925
      %v1964 = vadd.f32 %v1281, %v1930
      %v1965 = vmul.f32 %v271, %v378
      %v1966 = vmul.f32 %v272, %v383
      %v1967 = vmul.f32 %v273, %v388
      %v1968 = vmul.f32 %v274, %v393
      %v1969 = vmul.f32 %v275, %v398
      %v1970 = vmul.f32 %v276, %v403
      %v1971 = vmul.f32 %v277, %v408
      %v1972 = vmul.f32 %v278, %v413
      %v1973 = vmul.f32 %v279, %v418
      %v1974 = vmul.f32 %v280, %v423
      %v1975 = vmul.f32 %v281, %v428
      %v1976 = vmul.f32 %v282, %v433
      %v1977 = vmul.f32 %v283, %v438
      %v1978 = vmul.f32 %v284, %v443
      %v1979 = vmul.f32 %v285, %v448
      %v1980 = vmul.f32 %v286, %v453
      %v1981 = vmul.f32 %v287, %v458
      %v1982 = vmul.f32 %v288, %v463
      %v1983 = vmul.f32 %v289, %v468
      %v1984 = vmul.f32 %v290, %v473
      %v1985 = vmul.f32 %v291, %v478
      %v1986 = vmul.f32 %v292, %v483
      %v1987 = vmul.f32 %v293, %v488
      %v1988 = vmul.f32 %v294, %v493
      %v1989 = vmul.f32 %v295, %v498
      %v1990 = vmul.f32 %v296, %v503
      %v1991 = vmul.f32 %v297, %v508
      %v1992 = vmul.f32 %v298, %v513
      %v1993 = vmul.f32 %v299, %v518
      %v1994 = vmul.f32 %v300, %v523
      %v1995 = vmul.f32 %v301, %v528
      %v1996 = vmul.f32 %v302, %v533
      %v1997 = vrot.slane %v307, 4
      %v1999 = vsel %vm668, %v1965, 0
      %v2002 = vsel %vm668, %v1966, 0
      %v2005 = vsel %vm668, %v1967, 0
      %v2008 = vsel %vm668, %v1968, 0
      %v2011 = vsel %vm668, %v1969, 0
      %v2014 = vsel %vm668, %v1970, 0
      %v2017 = vsel %vm668, %v1971, 0
      %v2020 = vsel %vm668, %v1972, 0
      %v2023 = vsel %vm668, %v1973, 0
      %v2026 = vsel %vm668, %v1974, 0
      %v2029 = vsel %vm668, %v1975, 0
      %v2032 = vsel %vm668, %v1976, 0
      %v2035 = vsel %vm668, %v1977, 0
      %v2038 = vsel %vm668, %v1978, 0
      %v2041 = vsel %vm668, %v1979, 0
      %v2044 = vsel %vm668, %v1980, 0
      %v2047 = vsel %vm668, %v1981, 0
      %v2050 = vsel %vm668, %v1982, 0
      %v2053 = vsel %vm668, %v1983, 0
      %v2056 = vsel %vm668, %v1984, 0
      %v2059 = vsel %vm668, %v1985, 0
      %v2062 = vsel %vm668, %v1986, 0
      %v2065 = vsel %vm668, %v1987, 0
      %v2068 = vsel %vm668, %v1988, 0
      %v2071 = vsel %vm668, %v1989, 0
      %v2074 = vsel %vm668, %v1990, 0
      %v2077 = vsel %vm668, %v1991, 0
      %v2080 = vsel %vm668, %v1992, 0
      %v2083 = vsel %vm668, %v1993, 0
      %v2086 = vsel %vm668, %v1994, 0
      %v2089 = vsel %vm668, %v1995, 0
      %v2092 = vsel %vm668, %v1996, 0
      %v2094 = vsel %vm733, %v1997, 0
      %2096 = vmatprep.subr.mxu0 0.0
      %2097 = vmatpush1.msra.mxu0 %v2094
      %2098 = vmatprep.subr.mxu0 0.0
      %2099 = vmatpush1.msra.mxu0 0.0
      %2100 = vmatprep.subr.mxu0 0.0
      %2101 = vmatpush1.msra.mxu0 0.0
      %2102 = vmatprep.subr.mxu0 0.0
      %2103 = vmatpush1.msra.mxu0 0.0
      %2104 = vmatprep.subr.mxu0 0.0
      %2105 = vmatpush1.msra.mxu0 0.0
      %2106 = vmatprep.subr.mxu0 0.0
      %2107 = vmatpush1.msra.mxu0 0.0
      %2108 = vmatprep.subr.mxu0 0.0
      %2109 = vmatpush1.msra.mxu0 0.0
      %2110 = vmatprep.subr.mxu0 0.0
      %2111 = vmatpush1.msra.mxu0 0.0
      %2112 = vmatprep.subr.mxu0 0.0
      %2113 = vmatpush1.msra.mxu0 0.0
      %2114 = vmatprep.subr.mxu0 0.0
      %2115 = vmatpush1.msra.mxu0 0.0
      %2116 = vmatprep.subr.mxu0 0.0
      %2117 = vmatpush1.msra.mxu0 0.0
      %2118 = vmatprep.subr.mxu0 0.0
      %2119 = vmatpush1.msra.mxu0 0.0
      %2120 = vmatprep.subr.mxu0 0.0
      %2121 = vmatpush1.msra.mxu0 0.0
      %2122 = vmatprep.subr.mxu0 0.0
      %2123 = vmatpush1.msra.mxu0 0.0
      %2124 = vmatprep.subr.mxu0 0.0
      %2125 = vmatpush1.msra.mxu0 0.0
      %2126 = vmatprep.subr.mxu0 0.0
      %2127 = vmatpush1.msra.mxu0 0.0
      %2128 = vmatprep.subr.mxu0 0.0
      %2129 = vmatpush1.msra.mxu0 0.0
      %2130 = vmatprep.subr.mxu0 0.0
      %2131 = vmatpush1.msra.mxu0 0.0
      %2132 = vmatprep.subr.mxu0 0.0
      %2133 = vmatpush1.msra.mxu0 0.0
      %2134 = vmatprep.subr.mxu0 0.0
      %2135 = vmatpush1.msra.mxu0 0.0
      %2136 = vmatprep.subr.mxu0 0.0
      %2137 = vmatpush1.msra.mxu0 0.0
      %2138 = vmatprep.subr.mxu0 0.0
      %2139 = vmatpush1.msra.mxu0 0.0
      %2140 = vmatprep.subr.mxu0 0.0
      %2141 = vmatpush1.msra.mxu0 0.0
      %2142 = vmatprep.subr.mxu0 0.0
      %2143 = vmatpush1.msra.mxu0 0.0
      %2144 = vmatprep.subr.mxu0 0.0
      %2145 = vmatpush1.msra.mxu0 0.0
      %2146 = vmatprep.subr.mxu0 0.0
      %2147 = vmatpush1.msra.mxu0 0.0
      %2148 = vmatprep.subr.mxu0 0.0
      %2149 = vmatpush1.msra.mxu0 0.0
      %2150 = vmatprep.subr.mxu0 0.0
      %2151 = vmatpush1.msra.mxu0 0.0
      %2152 = vmatprep.subr.mxu0 0.0
      %2153 = vmatpush1.msra.mxu0 0.0
      %2154 = vmatprep.subr.mxu0 0.0
      %2155 = vmatpush1.msra.mxu0 0.0
      %2156 = vmatprep.subr.mxu0 0.0
      %2157 = vmatpush1.msra.mxu0 0.0
      %2158 = vmatprep.subr.mxu0 0.0
      %2159 = vmatpush1.msra.mxu0 0.0
      %2160 = vmatprep.mubr.f32.mxu0 0.0
      %2161 = vmatmul.mubr.f32.gmra.mrb[0].mxu0 %v1999
      %v2162 = vpop.f32.mrb[0].mxu0
      %v2163 = vadd.f32 0.0, %v2162
      %v2164 = vpop.f32.mrb[0].mxu0
      %2165 = vmatprep.mubr.f32.mxu0 0.0
      %2166 = vmatmul.mubr.f32.gmra.mrb[0].mxu0 %v2002
      %v2167 = vpop.f32.mrb[0].mxu0
      %v2168 = vadd.f32 0.0, %v2167
      %v2169 = vpop.f32.mrb[0].mxu0
      %2170 = vmatprep.mubr.f32.mxu0 0.0
      %2171 = vmatmul.mubr.f32.gmra.mrb[0].mxu0 %v2005
      %v2172 = vpop.f32.mrb[0].mxu0
      %v2173 = vadd.f32 0.0, %v2172
      %v2174 = vpop.f32.mrb[0].mxu0
      %2175 = vmatprep.mubr.f32.mxu0 0.0
      %2176 = vmatmul.mubr.f32.gmra.mrb[0].mxu0 %v2008
      %v2177 = vpop.f32.mrb[0].mxu0
      %v2178 = vadd.f32 0.0, %v2177
      %v2179 = vpop.f32.mrb[0].mxu0
      %2180 = vmatprep.mubr.f32.mxu0 0.0
      %2181 = vmatmul.mubr.f32.gmra.mrb[0].mxu0 %v2011
      %v2182 = vpop.f32.mrb[0].mxu0
      %v2183 = vadd.f32 0.0, %v2182
      %v2184 = vpop.f32.mrb[0].mxu0
      %2185 = vmatprep.mubr.f32.mxu0 0.0
      %2186 = vmatmul.mubr.f32.gmra.mrb[0].mxu0 %v2014
      %v2187 = vpop.f32.mrb[0].mxu0
      %v2188 = vadd.f32 0.0, %v2187
      %v2189 = vpop.f32.mrb[0].mxu0
      %2190 = vmatprep.mubr.f32.mxu0 0.0
      %2191 = vmatmul.mubr.f32.gmra.mrb[0].mxu0 %v2017
      %v2192 = vpop.f32.mrb[0].mxu0
      %v2193 = vadd.f32 0.0, %v2192
      %v2194 = vpop.f32.mrb[0].mxu0
      %2195 = vmatprep.mubr.f32.mxu0 0.0
      %2196 = vmatmul.mubr.f32.gmra.mrb[0].mxu0 %v2020
      %v2197 = vpop.f32.mrb[0].mxu0
      %v2198 = vadd.f32 0.0, %v2197
      %v2199 = vpop.f32.mrb[0].mxu0
      %2200 = vmatprep.mubr.f32.mxu0 0.0
      %2201 = vmatmul.mubr.f32.gmra.mrb[0].mxu0 %v2023
      %v2202 = vpop.f32.mrb[0].mxu0
      %v2203 = vadd.f32 0.0, %v2202
      %v2204 = vpop.f32.mrb[0].mxu0
      %2205 = vmatprep.mubr.f32.mxu0 0.0
      %2206 = vmatmul.mubr.f32.gmra.mrb[0].mxu0 %v2026
      %v2207 = vpop.f32.mrb[0].mxu0
      %v2208 = vadd.f32 0.0, %v2207
      %v2209 = vpop.f32.mrb[0].mxu0
      %2210 = vmatprep.mubr.f32.mxu0 0.0
      %2211 = vmatmul.mubr.f32.gmra.mrb[0].mxu0 %v2029
      %v2212 = vpop.f32.mrb[0].mxu0
      %v2213 = vadd.f32 0.0, %v2212
      %v2214 = vpop.f32.mrb[0].mxu0
      %2215 = vmatprep.mubr.f32.mxu0 0.0
      %2216 = vmatmul.mubr.f32.gmra.mrb[0].mxu0 %v2032
      %v2217 = vpop.f32.mrb[0].mxu0
      %v2218 = vadd.f32 0.0, %v2217
      %v2219 = vpop.f32.mrb[0].mxu0
      %2220 = vmatprep.mubr.f32.mxu0 0.0
      %2221 = vmatmul.mubr.f32.gmra.mrb[0].mxu0 %v2035
      %v2222 = vpop.f32.mrb[0].mxu0
      %v2223 = vadd.f32 0.0, %v2222
      %v2224 = vpop.f32.mrb[0].mxu0
      %2225 = vmatprep.mubr.f32.mxu0 0.0
      %2226 = vmatmul.mubr.f32.gmra.mrb[0].mxu0 %v2038
      %v2227 = vpop.f32.mrb[0].mxu0
      %v2228 = vadd.f32 0.0, %v2227
      %v2229 = vpop.f32.mrb[0].mxu0
      %2230 = vmatprep.mubr.f32.mxu0 0.0
      %2231 = vmatmul.mubr.f32.gmra.mrb[0].mxu0 %v2041
      %v2232 = vpop.f32.mrb[0].mxu0
      %v2233 = vadd.f32 0.0, %v2232
      %v2234 = vpop.f32.mrb[0].mxu0
      %2235 = vmatprep.mubr.f32.mxu0 0.0
      %2236 = vmatmul.mubr.f32.gmra.mrb[0].mxu0 %v2044
      %v2237 = vpop.f32.mrb[0].mxu0
      %v2238 = vadd.f32 0.0, %v2237
      %v2239 = vpop.f32.mrb[0].mxu0
      %2240 = vmatprep.mubr.f32.mxu0 0.0
      %2241 = vmatmul.mubr.f32.gmra.mrb[0].mxu0 %v2047
      %v2242 = vpop.f32.mrb[0].mxu0
      %v2243 = vadd.f32 0.0, %v2242
      %v2244 = vpop.f32.mrb[0].mxu0
      %2245 = vmatprep.mubr.f32.mxu0 0.0
      %2246 = vmatmul.mubr.f32.gmra.mrb[0].mxu0 %v2050
      %v2247 = vpop.f32.mrb[0].mxu0
      %v2248 = vadd.f32 0.0, %v2247
      %v2249 = vpop.f32.mrb[0].mxu0
      %2250 = vmatprep.mubr.f32.mxu0 0.0
      %2251 = vmatmul.mubr.f32.gmra.mrb[0].mxu0 %v2053
      %v2252 = vpop.f32.mrb[0].mxu0
      %v2253 = vadd.f32 0.0, %v2252
      %v2254 = vpop.f32.mrb[0].mxu0
      %2255 = vmatprep.mubr.f32.mxu0 0.0
      %2256 = vmatmul.mubr.f32.gmra.mrb[0].mxu0 %v2056
      %v2257 = vpop.f32.mrb[0].mxu0
      %v2258 = vadd.f32 0.0, %v2257
      %v2259 = vpop.f32.mrb[0].mxu0
      %2260 = vmatprep.mubr.f32.mxu0 0.0
      %2261 = vmatmul.mubr.f32.gmra.mrb[0].mxu0 %v2059
      %v2262 = vpop.f32.mrb[0].mxu0
      %v2263 = vadd.f32 0.0, %v2262
      %v2264 = vpop.f32.mrb[0].mxu0
      %2265 = vmatprep.mubr.f32.mxu0 0.0
      %2266 = vmatmul.mubr.f32.gmra.mrb[0].mxu0 %v2062
      %v2267 = vpop.f32.mrb[0].mxu0
      %v2268 = vadd.f32 0.0, %v2267
      %v2269 = vpop.f32.mrb[0].mxu0
      %2270 = vmatprep.mubr.f32.mxu0 0.0
      %2271 = vmatmul.mubr.f32.gmra.mrb[0].mxu0 %v2065
      %v2272 = vpop.f32.mrb[0].mxu0
      %v2273 = vadd.f32 0.0, %v2272
      %v2274 = vpop.f32.mrb[0].mxu0
      %2275 = vmatprep.mubr.f32.mxu0 0.0
      %2276 = vmatmul.mubr.f32.gmra.mrb[0].mxu0 %v2068
      %v2277 = vpop.f32.mrb[0].mxu0
      %v2278 = vadd.f32 0.0, %v2277
      %v2279 = vpop.f32.mrb[0].mxu0
      %2280 = vmatprep.mubr.f32.mxu0 0.0
      %2281 = vmatmul.mubr.f32.gmra.mrb[0].mxu0 %v2071
      %v2282 = vpop.f32.mrb[0].mxu0
      %v2283 = vadd.f32 0.0, %v2282
      %v2284 = vpop.f32.mrb[0].mxu0
      %2285 = vmatprep.mubr.f32.mxu0 0.0
      %2286 = vmatmul.mubr.f32.gmra.mrb[0].mxu0 %v2074
      %v2287 = vpop.f32.mrb[0].mxu0
      %v2288 = vadd.f32 0.0, %v2287
      %v2289 = vpop.f32.mrb[0].mxu0
      %2290 = vmatprep.mubr.f32.mxu0 0.0
      %2291 = vmatmul.mubr.f32.gmra.mrb[0].mxu0 %v2077
      %v2292 = vpop.f32.mrb[0].mxu0
      %v2293 = vadd.f32 0.0, %v2292
      %v2294 = vpop.f32.mrb[0].mxu0
      %2295 = vmatprep.mubr.f32.mxu0 0.0
      %2296 = vmatmul.mubr.f32.gmra.mrb[0].mxu0 %v2080
      %v2297 = vpop.f32.mrb[0].mxu0
      %v2298 = vadd.f32 0.0, %v2297
      %v2299 = vpop.f32.mrb[0].mxu0
      %2300 = vmatprep.mubr.f32.mxu0 0.0
      %2301 = vmatmul.mubr.f32.gmra.mrb[0].mxu0 %v2083
      %v2302 = vpop.f32.mrb[0].mxu0
      %v2303 = vadd.f32 0.0, %v2302
      %v2304 = vpop.f32.mrb[0].mxu0
      %2305 = vmatprep.mubr.f32.mxu0 0.0
      %2306 = vmatmul.mubr.f32.gmra.mrb[0].mxu0 %v2086
      %v2307 = vpop.f32.mrb[0].mxu0
      %v2308 = vadd.f32 0.0, %v2307
      %v2309 = vpop.f32.mrb[0].mxu0
      %2310 = vmatprep.mubr.f32.mxu0 0.0
      %2311 = vmatmul.mubr.f32.gmra.mrb[0].mxu0 %v2089
      %v2312 = vpop.f32.mrb[0].mxu0
      %v2313 = vadd.f32 0.0, %v2312
      %v2314 = vpop.f32.mrb[0].mxu0
      %2315 = vmatprep.mubr.f32.mxu0 0.0
      %2316 = vmatmul.mubr.f32.gmra.mrb[0].mxu0 %v2092
      %v2317 = vpop.f32.mrb[0].mxu0
      %v2318 = vadd.f32 0.0, %v2317
      %v2319 = vpop.f32.mrb[0].mxu0
      %2320 = vdwg.mxu0
      %v2321 = vadd.f32 %v1933, %v2163
      %v2322 = vadd.f32 %v1934, %v2168
      %v2323 = vadd.f32 %v1935, %v2173
      %v2324 = vadd.f32 %v1936, %v2178
      %v2325 = vadd.f32 %v1937, %v2183
      %v2326 = vadd.f32 %v1938, %v2188
      %v2327 = vadd.f32 %v1939, %v2193
      %v2328 = vadd.f32 %v1940, %v2198
      %v2329 = vadd.f32 %v1941, %v2203
      %v2330 = vadd.f32 %v1942, %v2208
      %v2331 = vadd.f32 %v1943, %v2213
      %v2332 = vadd.f32 %v1944, %v2218
      %v2333 = vadd.f32 %v1945, %v2223
      %v2334 = vadd.f32 %v1946, %v2228
      %v2335 = vadd.f32 %v1947, %v2233
      %v2336 = vadd.f32 %v1948, %v2238
      %v2337 = vadd.f32 %v1949, %v2243
      %v2338 = vadd.f32 %v1950, %v2248
      %v2339 = vadd.f32 %v1951, %v2253
      %v2340 = vadd.f32 %v1952, %v2258
      %v2341 = vadd.f32 %v1953, %v2263
      %v2342 = vadd.f32 %v1954, %v2268
      %v2343 = vadd.f32 %v1955, %v2273
      %v2344 = vadd.f32 %v1956, %v2278
      %v2345 = vadd.f32 %v1957, %v2283
      %v2346 = vadd.f32 %v1958, %v2288
      %v2347 = vadd.f32 %v1959, %v2293
      %v2348 = vadd.f32 %v1960, %v2298
      %v2349 = vadd.f32 %v1961, %v2303
      %v2350 = vadd.f32 %v1962, %v2308
      %v2351 = vadd.f32 %v1963, %v2313
      %v2352 = vadd.f32 %v1964, %v2318
      %v2355 = vrot.slane %v302, 1
      %v2356 = vsel %vm600, %v664, %v2355
      %v2357 = vrot.slane %v303, 1
      %v2358 = vsel %vm600, %v2355, %v2357
      %v2359 = vsel %vm668, %v2356, 0
      %v2361 = vsel %vm668, %v2358, 0
      %v2364 = vsel %vm733, %v308, 0
      %2366 = vmatprep.subr.mxu0 0.0
      %2367 = vmatpush1.msra.mxu0 %v2364
      %2368 = vmatprep.subr.mxu0 0.0
      %2369 = vmatpush1.msra.mxu0 0.0
      %2370 = vmatprep.subr.mxu0 0.0
      %2371 = vmatpush1.msra.mxu0 0.0
      %2372 = vmatprep.subr.mxu0 0.0
      %2373 = vmatpush1.msra.mxu0 0.0
      %2374 = vmatprep.subr.mxu0 0.0
      %2375 = vmatpush1.msra.mxu0 0.0
      %2376 = vmatprep.subr.mxu0 0.0
      %2377 = vmatpush1.msra.mxu0 0.0
      %2378 = vmatprep.subr.mxu0 0.0
      %2379 = vmatpush1.msra.mxu0 0.0
      %2380 = vmatprep.subr.mxu0 0.0
      %2381 = vmatpush1.msra.mxu0 0.0
      %2382 = vmatprep.subr.mxu0 0.0
      %2383 = vmatpush1.msra.mxu0 0.0
      %2384 = vmatprep.subr.mxu0 0.0
      %2385 = vmatpush1.msra.mxu0 0.0
      %2386 = vmatprep.subr.mxu0 0.0
      %2387 = vmatpush1.msra.mxu0 0.0
      %2388 = vmatprep.subr.mxu0 0.0
      %2389 = vmatpush1.msra.mxu0 0.0
      %2390 = vmatprep.subr.mxu0 0.0
      %2391 = vmatpush1.msra.mxu0 0.0
      %2392 = vmatprep.subr.mxu0 0.0
      %2393 = vmatpush1.msra.mxu0 0.0
      %2394 = vmatprep.subr.mxu0 0.0
      %2395 = vmatpush1.msra.mxu0 0.0
      %2396 = vmatprep.subr.mxu0 0.0
      %2397 = vmatpush1.msra.mxu0 0.0
      %2398 = vmatprep.subr.mxu0 0.0
      %2399 = vmatpush1.msra.mxu0 0.0
      %2400 = vmatprep.subr.mxu0 0.0
      %2401 = vmatpush1.msra.mxu0 0.0
      %2402 = vmatprep.subr.mxu0 0.0
      %2403 = vmatpush1.msra.mxu0 0.0
      %2404 = vmatprep.subr.mxu0 0.0
      %2405 = vmatpush1.msra.mxu0 0.0
      %2406 = vmatprep.subr.mxu0 0.0
      %2407 = vmatpush1.msra.mxu0 0.0
      %2408 = vmatprep.subr.mxu0 0.0
      %2409 = vmatpush1.msra.mxu0 0.0
      %2410 = vmatprep.subr.mxu0 0.0
      %2411 = vmatpush1.msra.mxu0 0.0
      %2412 = vmatprep.subr.mxu0 0.0
      %2413 = vmatpush1.msra.mxu0 0.0
      %2414 = vmatprep.subr.mxu0 0.0
      %2415 = vmatpush1.msra.mxu0 0.0
      %2416 = vmatprep.subr.mxu0 0.0
      %2417 = vmatpush1.msra.mxu0 0.0
      %2418 = vmatprep.subr.mxu0 0.0
      %2419 = vmatpush1.msra.mxu0 0.0
      %2420 = vmatprep.subr.mxu0 0.0
      %2421 = vmatpush1.msra.mxu0 0.0
      %2422 = vmatprep.subr.mxu0 0.0
      %2423 = vmatpush1.msra.mxu0 0.0
      %2424 = vmatprep.subr.mxu0 0.0
      %2425 = vmatpush1.msra.mxu0 0.0
      %2426 = vmatprep.subr.mxu0 0.0
      %2427 = vmatpush1.msra.mxu0 0.0
      %2428 = vmatprep.subr.mxu0 0.0
      %2429 = vmatpush1.msra.mxu0 0.0
      %2430 = vmatprep.mubr.f32.mxu0 0.0
      %2431 = vmatmul.mubr.f32.gmra.mrb[0].mxu0 %v673
      %v2432 = vpop.f32.mrb[0].mxu0
      %v2433 = vadd.f32 0.0, %v2432
      %v2434 = vpop.f32.mrb[0].mxu0
      %2435 = vmatprep.mubr.f32.mxu0 0.0
      %2436 = vmatmul.mubr.f32.gmra.mrb[0].mxu0 %v675
      %v2437 = vpop.f32.mrb[0].mxu0
      %v2438 = vadd.f32 0.0, %v2437
      %v2439 = vpop.f32.mrb[0].mxu0
      %2440 = vmatprep.mubr.f32.mxu0 0.0
      %2441 = vmatmul.mubr.f32.gmra.mrb[0].mxu0 %v677
      %v2442 = vpop.f32.mrb[0].mxu0
      %v2443 = vadd.f32 0.0, %v2442
      %v2444 = vpop.f32.mrb[0].mxu0
      %2445 = vmatprep.mubr.f32.mxu0 0.0
      %2446 = vmatmul.mubr.f32.gmra.mrb[0].mxu0 %v679
      %v2447 = vpop.f32.mrb[0].mxu0
      %v2448 = vadd.f32 0.0, %v2447
      %v2449 = vpop.f32.mrb[0].mxu0
      %2450 = vmatprep.mubr.f32.mxu0 0.0
      %2451 = vmatmul.mubr.f32.gmra.mrb[0].mxu0 %v681
      %v2452 = vpop.f32.mrb[0].mxu0
      %v2453 = vadd.f32 0.0, %v2452
      %v2454 = vpop.f32.mrb[0].mxu0
      %2455 = vmatprep.mubr.f32.mxu0 0.0
      %2456 = vmatmul.mubr.f32.gmra.mrb[0].mxu0 %v683
      %v2457 = vpop.f32.mrb[0].mxu0
      %v2458 = vadd.f32 0.0, %v2457
      %v2459 = vpop.f32.mrb[0].mxu0
      %2460 = vmatprep.mubr.f32.mxu0 0.0
      %2461 = vmatmul.mubr.f32.gmra.mrb[0].mxu0 %v685
      %v2462 = vpop.f32.mrb[0].mxu0
      %v2463 = vadd.f32 0.0, %v2462
      %v2464 = vpop.f32.mrb[0].mxu0
      %2465 = vmatprep.mubr.f32.mxu0 0.0
      %2466 = vmatmul.mubr.f32.gmra.mrb[0].mxu0 %v687
      %v2467 = vpop.f32.mrb[0].mxu0
      %v2468 = vadd.f32 0.0, %v2467
      %v2469 = vpop.f32.mrb[0].mxu0
      %2470 = vmatprep.mubr.f32.mxu0 0.0
      %2471 = vmatmul.mubr.f32.gmra.mrb[0].mxu0 %v689
      %v2472 = vpop.f32.mrb[0].mxu0
      %v2473 = vadd.f32 0.0, %v2472
      %v2474 = vpop.f32.mrb[0].mxu0
      %2475 = vmatprep.mubr.f32.mxu0 0.0
      %2476 = vmatmul.mubr.f32.gmra.mrb[0].mxu0 %v691
      %v2477 = vpop.f32.mrb[0].mxu0
      %v2478 = vadd.f32 0.0, %v2477
      %v2479 = vpop.f32.mrb[0].mxu0
      %2480 = vmatprep.mubr.f32.mxu0 0.0
      %2481 = vmatmul.mubr.f32.gmra.mrb[0].mxu0 %v693
      %v2482 = vpop.f32.mrb[0].mxu0
      %v2483 = vadd.f32 0.0, %v2482
      %v2484 = vpop.f32.mrb[0].mxu0
      %2485 = vmatprep.mubr.f32.mxu0 0.0
      %2486 = vmatmul.mubr.f32.gmra.mrb[0].mxu0 %v695
      %v2487 = vpop.f32.mrb[0].mxu0
      %v2488 = vadd.f32 0.0, %v2487
      %v2489 = vpop.f32.mrb[0].mxu0
      %2490 = vmatprep.mubr.f32.mxu0 0.0
      %2491 = vmatmul.mubr.f32.gmra.mrb[0].mxu0 %v697
      %v2492 = vpop.f32.mrb[0].mxu0
      %v2493 = vadd.f32 0.0, %v2492
      %v2494 = vpop.f32.mrb[0].mxu0
      %2495 = vmatprep.mubr.f32.mxu0 0.0
      %2496 = vmatmul.mubr.f32.gmra.mrb[0].mxu0 %v699
      %v2497 = vpop.f32.mrb[0].mxu0
      %v2498 = vadd.f32 0.0, %v2497
      %v2499 = vpop.f32.mrb[0].mxu0
      %2500 = vmatprep.mubr.f32.mxu0 0.0
      %2501 = vmatmul.mubr.f32.gmra.mrb[0].mxu0 %v701
      %v2502 = vpop.f32.mrb[0].mxu0
      %v2503 = vadd.f32 0.0, %v2502
      %v2504 = vpop.f32.mrb[0].mxu0
      %2505 = vmatprep.mubr.f32.mxu0 0.0
      %2506 = vmatmul.mubr.f32.gmra.mrb[0].mxu0 %v703
      %v2507 = vpop.f32.mrb[0].mxu0
      %v2508 = vadd.f32 0.0, %v2507
      %v2509 = vpop.f32.mrb[0].mxu0
      %2510 = vmatprep.mubr.f32.mxu0 0.0
      %2511 = vmatmul.mubr.f32.gmra.mrb[0].mxu0 %v705
      %v2512 = vpop.f32.mrb[0].mxu0
      %v2513 = vadd.f32 0.0, %v2512
      %v2514 = vpop.f32.mrb[0].mxu0
      %2515 = vmatprep.mubr.f32.mxu0 0.0
      %2516 = vmatmul.mubr.f32.gmra.mrb[0].mxu0 %v707
      %v2517 = vpop.f32.mrb[0].mxu0
      %v2518 = vadd.f32 0.0, %v2517
      %v2519 = vpop.f32.mrb[0].mxu0
      %2520 = vmatprep.mubr.f32.mxu0 0.0
      %2521 = vmatmul.mubr.f32.gmra.mrb[0].mxu0 %v709
      %v2522 = vpop.f32.mrb[0].mxu0
      %v2523 = vadd.f32 0.0, %v2522
      %v2524 = vpop.f32.mrb[0].mxu0
      %2525 = vmatprep.mubr.f32.mxu0 0.0
      %2526 = vmatmul.mubr.f32.gmra.mrb[0].mxu0 %v711
      %v2527 = vpop.f32.mrb[0].mxu0
      %v2528 = vadd.f32 0.0, %v2527
      %v2529 = vpop.f32.mrb[0].mxu0
      %2530 = vmatprep.mubr.f32.mxu0 0.0
      %2531 = vmatmul.mubr.f32.gmra.mrb[0].mxu0 %v713
      %v2532 = vpop.f32.mrb[0].mxu0
      %v2533 = vadd.f32 0.0, %v2532
      %v2534 = vpop.f32.mrb[0].mxu0
      %2535 = vmatprep.mubr.f32.mxu0 0.0
      %2536 = vmatmul.mubr.f32.gmra.mrb[0].mxu0 %v715
      %v2537 = vpop.f32.mrb[0].mxu0
      %v2538 = vadd.f32 0.0, %v2537
      %v2539 = vpop.f32.mrb[0].mxu0
      %2540 = vmatprep.mubr.f32.mxu0 0.0
      %2541 = vmatmul.mubr.f32.gmra.mrb[0].mxu0 %v717
      %v2542 = vpop.f32.mrb[0].mxu0
      %v2543 = vadd.f32 0.0, %v2542
      %v2544 = vpop.f32.mrb[0].mxu0
      %2545 = vmatprep.mubr.f32.mxu0 0.0
      %2546 = vmatmul.mubr.f32.gmra.mrb[0].mxu0 %v719
      %v2547 = vpop.f32.mrb[0].mxu0
      %v2548 = vadd.f32 0.0, %v2547
      %v2549 = vpop.f32.mrb[0].mxu0
      %2550 = vmatprep.mubr.f32.mxu0 0.0
      %2551 = vmatmul.mubr.f32.gmra.mrb[0].mxu0 %v721
      %v2552 = vpop.f32.mrb[0].mxu0
      %v2553 = vadd.f32 0.0, %v2552
      %v2554 = vpop.f32.mrb[0].mxu0
      %2555 = vmatprep.mubr.f32.mxu0 0.0
      %2556 = vmatmul.mubr.f32.gmra.mrb[0].mxu0 %v723
      %v2557 = vpop.f32.mrb[0].mxu0
      %v2558 = vadd.f32 0.0, %v2557
      %v2559 = vpop.f32.mrb[0].mxu0
      %2560 = vmatprep.mubr.f32.mxu0 0.0
      %2561 = vmatmul.mubr.f32.gmra.mrb[0].mxu0 %v725
      %v2562 = vpop.f32.mrb[0].mxu0
      %v2563 = vadd.f32 0.0, %v2562
      %v2564 = vpop.f32.mrb[0].mxu0
      %2565 = vmatprep.mubr.f32.mxu0 0.0
      %2566 = vmatmul.mubr.f32.gmra.mrb[0].mxu0 %v727
      %v2567 = vpop.f32.mrb[0].mxu0
      %v2568 = vadd.f32 0.0, %v2567
      %v2569 = vpop.f32.mrb[0].mxu0
      %2570 = vmatprep.mubr.f32.mxu0 0.0
      %2571 = vmatmul.mubr.f32.gmra.mrb[0].mxu0 %v729
      %v2572 = vpop.f32.mrb[0].mxu0
      %v2573 = vadd.f32 0.0, %v2572
      %v2574 = vpop.f32.mrb[0].mxu0
      %2575 = vmatprep.mubr.f32.mxu0 0.0
      %2576 = vmatmul.mubr.f32.gmra.mrb[0].mxu0 %v731
      %v2577 = vpop.f32.mrb[0].mxu0
      %v2578 = vadd.f32 0.0, %v2577
      %v2579 = vpop.f32.mrb[0].mxu0
      %2580 = vmatprep.mubr.f32.mxu0 0.0
      %2581 = vmatmul.mubr.f32.gmra.mrb[0].mxu0 %v2359
      %v2582 = vpop.f32.mrb[0].mxu0
      %v2583 = vadd.f32 0.0, %v2582
      %v2584 = vpop.f32.mrb[0].mxu0
      %2585 = vmatprep.mubr.f32.mxu0 0.0
      %2586 = vmatmul.mubr.f32.gmra.mrb[0].mxu0 %v2361
      %v2587 = vpop.f32.mrb[0].mxu0
      %v2588 = vadd.f32 0.0, %v2587
      %v2589 = vpop.f32.mrb[0].mxu0
      %2590 = vdwg.mxu0
      %v2591 = vadd.f32 %v2321, %v2433
      %v2592 = vadd.f32 %v2322, %v2438
      %v2593 = vadd.f32 %v2323, %v2443
      %v2594 = vadd.f32 %v2324, %v2448
      %v2595 = vadd.f32 %v2325, %v2453
      %v2596 = vadd.f32 %v2326, %v2458
      %v2597 = vadd.f32 %v2327, %v2463
      %v2598 = vadd.f32 %v2328, %v2468
      %v2599 = vadd.f32 %v2329, %v2473
      %v2600 = vadd.f32 %v2330, %v2478
      %v2601 = vadd.f32 %v2331, %v2483
      %v2602 = vadd.f32 %v2332, %v2488
      %v2603 = vadd.f32 %v2333, %v2493
      %v2604 = vadd.f32 %v2334, %v2498
      %v2605 = vadd.f32 %v2335, %v2503
      %v2606 = vadd.f32 %v2336, %v2508
      %v2607 = vadd.f32 %v2337, %v2513
      %v2608 = vadd.f32 %v2338, %v2518
      %v2609 = vadd.f32 %v2339, %v2523
      %v2610 = vadd.f32 %v2340, %v2528
      %v2611 = vadd.f32 %v2341, %v2533
      %v2612 = vadd.f32 %v2342, %v2538
      %v2613 = vadd.f32 %v2343, %v2543
      %v2614 = vadd.f32 %v2344, %v2548
      %v2615 = vadd.f32 %v2345, %v2553
      %v2616 = vadd.f32 %v2346, %v2558
      %v2617 = vadd.f32 %v2347, %v2563
      %v2618 = vadd.f32 %v2348, %v2568
      %v2619 = vadd.f32 %v2349, %v2573
      %v2620 = vadd.f32 %v2350, %v2578
      %v2621 = vadd.f32 %v2351, %v2583
      %v2622 = vadd.f32 %v2352, %v2588
      %v2623 = vmul.f32 %v271, %v1413
      %v2624 = vmul.f32 %v272, %v1415
      %v2625 = vmul.f32 %v273, %v1417
      %v2626 = vmul.f32 %v274, %v1419
      %v2627 = vmul.f32 %v275, %v1421
      %v2628 = vmul.f32 %v276, %v1423
      %v2629 = vmul.f32 %v277, %v1425
      %v2630 = vmul.f32 %v278, %v1427
      %v2631 = vmul.f32 %v279, %v1429
      %v2632 = vmul.f32 %v280, %v1431
      %v2633 = vmul.f32 %v281, %v1433
      %v2634 = vmul.f32 %v282, %v1435
      %v2635 = vmul.f32 %v283, %v1437
      %v2636 = vmul.f32 %v284, %v1439
      %v2637 = vmul.f32 %v285, %v1441
      %v2638 = vmul.f32 %v286, %v1443
      %v2639 = vmul.f32 %v287, %v1445
      %v2640 = vmul.f32 %v288, %v1447
      %v2641 = vmul.f32 %v289, %v1449
      %v2642 = vmul.f32 %v290, %v1451
      %v2643 = vmul.f32 %v291, %v1453
      %v2644 = vmul.f32 %v292, %v1455
      %v2645 = vmul.f32 %v293, %v1457
      %v2646 = vmul.f32 %v294, %v1459
      %v2647 = vmul.f32 %v295, %v1461
      %v2648 = vmul.f32 %v296, %v1463
      %v2649 = vmul.f32 %v297, %v1465
      %v2650 = vmul.f32 %v298, %v1467
      %v2651 = vmul.f32 %v299, %v1469
      %v2652 = vmul.f32 %v300, %v1471
      %v2653 = vmul.f32 %v301, %v1473
      %v2654 = vmul.f32 %v302, %v1475
      %v2655 = vmul.f32 %v303, %v1474
      %v2689 = vrot.slane %v2623, 2
      %v2690 = vrot.slane %v2624, 2
      %v2691 = vsel %vm1575, %v2689, %v2690
      %v2692 = vrot.slane %v2625, 2
      %v2693 = vsel %vm1575, %v2690, %v2692
      %v2694 = vrot.slane %v2626, 2
      %v2695 = vsel %vm1575, %v2692, %v2694
      %v2696 = vrot.slane %v2627, 2
      %v2697 = vsel %vm1575, %v2694, %v2696
      %v2698 = vrot.slane %v2628, 2
      %v2699 = vsel %vm1575, %v2696, %v2698
      %v2700 = vrot.slane %v2629, 2
      %v2701 = vsel %vm1575, %v2698, %v2700
      %v2702 = vrot.slane %v2630, 2
      %v2703 = vsel %vm1575, %v2700, %v2702
      %v2704 = vrot.slane %v2631, 2
      %v2705 = vsel %vm1575, %v2702, %v2704
      %v2706 = vrot.slane %v2632, 2
      %v2707 = vsel %vm1575, %v2704, %v2706
      %v2708 = vrot.slane %v2633, 2
      %v2709 = vsel %vm1575, %v2706, %v2708
      %v2710 = vrot.slane %v2634, 2
      %v2711 = vsel %vm1575, %v2708, %v2710
      %v2712 = vrot.slane %v2635, 2
      %v2713 = vsel %vm1575, %v2710, %v2712
      %v2714 = vrot.slane %v2636, 2
      %v2715 = vsel %vm1575, %v2712, %v2714
      %v2716 = vrot.slane %v2637, 2
      %v2717 = vsel %vm1575, %v2714, %v2716
      %v2718 = vrot.slane %v2638, 2
      %v2719 = vsel %vm1575, %v2716, %v2718
      %v2720 = vrot.slane %v2639, 2
      %v2721 = vsel %vm1575, %v2718, %v2720
      %v2722 = vrot.slane %v2640, 2
      %v2723 = vsel %vm1575, %v2720, %v2722
      %v2724 = vrot.slane %v2641, 2
      %v2725 = vsel %vm1575, %v2722, %v2724
      %v2726 = vrot.slane %v2642, 2
      %v2727 = vsel %vm1575, %v2724, %v2726
      %v2728 = vrot.slane %v2643, 2
      %v2729 = vsel %vm1575, %v2726, %v2728
      %v2730 = vrot.slane %v2644, 2
      %v2731 = vsel %vm1575, %v2728, %v2730
      %v2732 = vrot.slane %v2645, 2
      %v2733 = vsel %vm1575, %v2730, %v2732
      %v2734 = vrot.slane %v2646, 2
      %v2735 = vsel %vm1575, %v2732, %v2734
      %v2736 = vrot.slane %v2647, 2
      %v2737 = vsel %vm1575, %v2734, %v2736
      %v2738 = vrot.slane %v2648, 2
      %v2739 = vsel %vm1575, %v2736, %v2738
      %v2740 = vrot.slane %v2649, 2
      %v2741 = vsel %vm1575, %v2738, %v2740
      %v2742 = vrot.slane %v2650, 2
      %v2743 = vsel %vm1575, %v2740, %v2742
      %v2744 = vrot.slane %v2651, 2
      %v2745 = vsel %vm1575, %v2742, %v2744
      %v2746 = vrot.slane %v2652, 2
      %v2747 = vsel %vm1575, %v2744, %v2746
      %v2748 = vrot.slane %v2653, 2
      %v2749 = vsel %vm1575, %v2746, %v2748
      %v2750 = vrot.slane %v2654, 2
      %v2751 = vsel %vm1575, %v2748, %v2750
      %v2752 = vrot.slane %v2655, 2
      %v2753 = vsel %vm1575, %v2750, %v2752
      %v2754 = vrot.slane %v308, 4
      %v2755 = vsel %vm668, %v2691, 0
      %v2757 = vsel %vm668, %v2693, 0
      %v2759 = vsel %vm668, %v2695, 0
      %v2761 = vsel %vm668, %v2697, 0
      %v2763 = vsel %vm668, %v2699, 0
      %v2765 = vsel %vm668, %v2701, 0
      %v2767 = vsel %vm668, %v2703, 0
      %v2769 = vsel %vm668, %v2705, 0
      %v2771 = vsel %vm668, %v2707, 0
      %v2773 = vsel %vm668, %v2709, 0
      %v2775 = vsel %vm668, %v2711, 0
      %v2777 = vsel %vm668, %v2713, 0
      %v2779 = vsel %vm668, %v2715, 0
      %v2781 = vsel %vm668, %v2717, 0
      %v2783 = vsel %vm668, %v2719, 0
      %v2785 = vsel %vm668, %v2721, 0
      %v2787 = vsel %vm668, %v2723, 0
      %v2789 = vsel %vm668, %v2725, 0
      %v2791 = vsel %vm668, %v2727, 0
      %v2793 = vsel %vm668, %v2729, 0
      %v2795 = vsel %vm668, %v2731, 0
      %v2797 = vsel %vm668, %v2733, 0
      %v2799 = vsel %vm668, %v2735, 0
      %v2801 = vsel %vm668, %v2737, 0
      %v2803 = vsel %vm668, %v2739, 0
      %v2805 = vsel %vm668, %v2741, 0
      %v2807 = vsel %vm668, %v2743, 0
      %v2809 = vsel %vm668, %v2745, 0
      %v2811 = vsel %vm668, %v2747, 0
      %v2813 = vsel %vm668, %v2749, 0
      %v2815 = vsel %vm668, %v2751, 0
      %v2817 = vsel %vm668, %v2753, 0
      %v2819 = vsel %vm733, %v2754, 0
      %2821 = vmatprep.subr.mxu0 0.0
      %2822 = vmatpush1.msra.mxu0 %v2819
      %2823 = vmatprep.subr.mxu0 0.0
      %2824 = vmatpush1.msra.mxu0 0.0
      %2825 = vmatprep.subr.mxu0 0.0
      %2826 = vmatpush1.msra.mxu0 0.0
      %2827 = vmatprep.subr.mxu0 0.0
      %2828 = vmatpush1.msra.mxu0 0.0
      %2829 = vmatprep.subr.mxu0 0.0
      %2830 = vmatpush1.msra.mxu0 0.0
      %2831 = vmatprep.subr.mxu0 0.0
      %2832 = vmatpush1.msra.mxu0 0.0
      %2833 = vmatprep.subr.mxu0 0.0
      %2834 = vmatpush1.msra.mxu0 0.0
      %2835 = vmatprep.subr.mxu0 0.0
      %2836 = vmatpush1.msra.mxu0 0.0
      %2837 = vmatprep.subr.mxu0 0.0
      %2838 = vmatpush1.msra.mxu0 0.0
      %2839 = vmatprep.subr.mxu0 0.0
      %2840 = vmatpush1.msra.mxu0 0.0
      %2841 = vmatprep.subr.mxu0 0.0
      %2842 = vmatpush1.msra.mxu0 0.0
      %2843 = vmatprep.subr.mxu0 0.0
      %2844 = vmatpush1.msra.mxu0 0.0
      %2845 = vmatprep.subr.mxu0 0.0
      %2846 = vmatpush1.msra.mxu0 0.0
      %2847 = vmatprep.subr.mxu0 0.0
      %2848 = vmatpush1.msra.mxu0 0.0
      %2849 = vmatprep.subr.mxu0 0.0
      %2850 = vmatpush1.msra.mxu0 0.0
      %2851 = vmatprep.subr.mxu0 0.0
      %2852 = vmatpush1.msra.mxu0 0.0
      %2853 = vmatprep.subr.mxu0 0.0
      %2854 = vmatpush1.msra.mxu0 0.0
      %2855 = vmatprep.subr.mxu0 0.0
      %2856 = vmatpush1.msra.mxu0 0.0
      %2857 = vmatprep.subr.mxu0 0.0
      %2858 = vmatpush1.msra.mxu0 0.0
      %2859 = vmatprep.subr.mxu0 0.0
      %2860 = vmatpush1.msra.mxu0 0.0
      %2861 = vmatprep.subr.mxu0 0.0
      %2862 = vmatpush1.msra.mxu0 0.0
      %2863 = vmatprep.subr.mxu0 0.0
      %2864 = vmatpush1.msra.mxu0 0.0
      %2865 = vmatprep.subr.mxu0 0.0
      %2866 = vmatpush1.msra.mxu0 0.0
      %2867 = vmatprep.subr.mxu0 0.0
      %2868 = vmatpush1.msra.mxu0 0.0
      %2869 = vmatprep.subr.mxu0 0.0
      %2870 = vmatpush1.msra.mxu0 0.0
      %2871 = vmatprep.subr.mxu0 0.0
      %2872 = vmatpush1.msra.mxu0 0.0
      %2873 = vmatprep.subr.mxu0 0.0
      %2874 = vmatpush1.msra.mxu0 0.0
      %2875 = vmatprep.subr.mxu0 0.0
      %2876 = vmatpush1.msra.mxu0 0.0
      %2877 = vmatprep.subr.mxu0 0.0
      %2878 = vmatpush1.msra.mxu0 0.0
      %2879 = vmatprep.subr.mxu0 0.0
      %2880 = vmatpush1.msra.mxu0 0.0
      %2881 = vmatprep.subr.mxu0 0.0
      %2882 = vmatpush1.msra.mxu0 0.0
      %2883 = vmatprep.subr.mxu0 0.0
      %2884 = vmatpush1.msra.mxu0 0.0
      %2885 = vmatprep.mubr.f32.mxu0 0.0
      %2886 = vmatmul.mubr.f32.gmra.mrb[0].mxu0 %v2755
      %v2887 = vpop.f32.mrb[0].mxu0
      %v2888 = vadd.f32 0.0, %v2887
      %v2889 = vpop.f32.mrb[0].mxu0
      %2890 = vmatprep.mubr.f32.mxu0 0.0
      %2891 = vmatmul.mubr.f32.gmra.mrb[0].mxu0 %v2757
      %v2892 = vpop.f32.mrb[0].mxu0
      %v2893 = vadd.f32 0.0, %v2892
      %v2894 = vpop.f32.mrb[0].mxu0
      %2895 = vmatprep.mubr.f32.mxu0 0.0
      %2896 = vmatmul.mubr.f32.gmra.mrb[0].mxu0 %v2759
      %v2897 = vpop.f32.mrb[0].mxu0
      %v2898 = vadd.f32 0.0, %v2897
      %v2899 = vpop.f32.mrb[0].mxu0
      %2900 = vmatprep.mubr.f32.mxu0 0.0
      %2901 = vmatmul.mubr.f32.gmra.mrb[0].mxu0 %v2761
      %v2902 = vpop.f32.mrb[0].mxu0
      %v2903 = vadd.f32 0.0, %v2902
      %v2904 = vpop.f32.mrb[0].mxu0
      %2905 = vmatprep.mubr.f32.mxu0 0.0
      %2906 = vmatmul.mubr.f32.gmra.mrb[0].mxu0 %v2763
      %v2907 = vpop.f32.mrb[0].mxu0
      %v2908 = vadd.f32 0.0, %v2907
      %v2909 = vpop.f32.mrb[0].mxu0
      %2910 = vmatprep.mubr.f32.mxu0 0.0
      %2911 = vmatmul.mubr.f32.gmra.mrb[0].mxu0 %v2765
      %v2912 = vpop.f32.mrb[0].mxu0
      %v2913 = vadd.f32 0.0, %v2912
      %v2914 = vpop.f32.mrb[0].mxu0
      %2915 = vmatprep.mubr.f32.mxu0 0.0
      %2916 = vmatmul.mubr.f32.gmra.mrb[0].mxu0 %v2767
      %v2917 = vpop.f32.mrb[0].mxu0
      %v2918 = vadd.f32 0.0, %v2917
      %v2919 = vpop.f32.mrb[0].mxu0
      %2920 = vmatprep.mubr.f32.mxu0 0.0
      %2921 = vmatmul.mubr.f32.gmra.mrb[0].mxu0 %v2769
      %v2922 = vpop.f32.mrb[0].mxu0
      %v2923 = vadd.f32 0.0, %v2922
      %v2924 = vpop.f32.mrb[0].mxu0
      %2925 = vmatprep.mubr.f32.mxu0 0.0
      %2926 = vmatmul.mubr.f32.gmra.mrb[0].mxu0 %v2771
      %v2927 = vpop.f32.mrb[0].mxu0
      %v2928 = vadd.f32 0.0, %v2927
      %v2929 = vpop.f32.mrb[0].mxu0
      %2930 = vmatprep.mubr.f32.mxu0 0.0
      %2931 = vmatmul.mubr.f32.gmra.mrb[0].mxu0 %v2773
      %v2932 = vpop.f32.mrb[0].mxu0
      %v2933 = vadd.f32 0.0, %v2932
      %v2934 = vpop.f32.mrb[0].mxu0
      %2935 = vmatprep.mubr.f32.mxu0 0.0
      %2936 = vmatmul.mubr.f32.gmra.mrb[0].mxu0 %v2775
      %v2937 = vpop.f32.mrb[0].mxu0
      %v2938 = vadd.f32 0.0, %v2937
      %v2939 = vpop.f32.mrb[0].mxu0
      %2940 = vmatprep.mubr.f32.mxu0 0.0
      %2941 = vmatmul.mubr.f32.gmra.mrb[0].mxu0 %v2777
      %v2942 = vpop.f32.mrb[0].mxu0
      %v2943 = vadd.f32 0.0, %v2942
      %v2944 = vpop.f32.mrb[0].mxu0
      %2945 = vmatprep.mubr.f32.mxu0 0.0
      %2946 = vmatmul.mubr.f32.gmra.mrb[0].mxu0 %v2779
      %v2947 = vpop.f32.mrb[0].mxu0
      %v2948 = vadd.f32 0.0, %v2947
      %v2949 = vpop.f32.mrb[0].mxu0
      %2950 = vmatprep.mubr.f32.mxu0 0.0
      %2951 = vmatmul.mubr.f32.gmra.mrb[0].mxu0 %v2781
      %v2952 = vpop.f32.mrb[0].mxu0
      %v2953 = vadd.f32 0.0, %v2952
      %v2954 = vpop.f32.mrb[0].mxu0
      %2955 = vmatprep.mubr.f32.mxu0 0.0
      %2956 = vmatmul.mubr.f32.gmra.mrb[0].mxu0 %v2783
      %v2957 = vpop.f32.mrb[0].mxu0
      %v2958 = vadd.f32 0.0, %v2957
      %v2959 = vpop.f32.mrb[0].mxu0
      %2960 = vmatprep.mubr.f32.mxu0 0.0
      %2961 = vmatmul.mubr.f32.gmra.mrb[0].mxu0 %v2785
      %v2962 = vpop.f32.mrb[0].mxu0
      %v2963 = vadd.f32 0.0, %v2962
      %v2964 = vpop.f32.mrb[0].mxu0
      %2965 = vmatprep.mubr.f32.mxu0 0.0
      %2966 = vmatmul.mubr.f32.gmra.mrb[0].mxu0 %v2787
      %v2967 = vpop.f32.mrb[0].mxu0
      %v2968 = vadd.f32 0.0, %v2967
      %v2969 = vpop.f32.mrb[0].mxu0
      %2970 = vmatprep.mubr.f32.mxu0 0.0
      %2971 = vmatmul.mubr.f32.gmra.mrb[0].mxu0 %v2789
      %v2972 = vpop.f32.mrb[0].mxu0
      %v2973 = vadd.f32 0.0, %v2972
      %v2974 = vpop.f32.mrb[0].mxu0
      %2975 = vmatprep.mubr.f32.mxu0 0.0
      %2976 = vmatmul.mubr.f32.gmra.mrb[0].mxu0 %v2791
      %v2977 = vpop.f32.mrb[0].mxu0
      %v2978 = vadd.f32 0.0, %v2977
      %v2979 = vpop.f32.mrb[0].mxu0
      %2980 = vmatprep.mubr.f32.mxu0 0.0
      %2981 = vmatmul.mubr.f32.gmra.mrb[0].mxu0 %v2793
      %v2982 = vpop.f32.mrb[0].mxu0
      %v2983 = vadd.f32 0.0, %v2982
      %v2984 = vpop.f32.mrb[0].mxu0
      %2985 = vmatprep.mubr.f32.mxu0 0.0
      %2986 = vmatmul.mubr.f32.gmra.mrb[0].mxu0 %v2795
      %v2987 = vpop.f32.mrb[0].mxu0
      %v2988 = vadd.f32 0.0, %v2987
      %v2989 = vpop.f32.mrb[0].mxu0
      %2990 = vmatprep.mubr.f32.mxu0 0.0
      %2991 = vmatmul.mubr.f32.gmra.mrb[0].mxu0 %v2797
      %v2992 = vpop.f32.mrb[0].mxu0
      %v2993 = vadd.f32 0.0, %v2992
      %v2994 = vpop.f32.mrb[0].mxu0
      %2995 = vmatprep.mubr.f32.mxu0 0.0
      %2996 = vmatmul.mubr.f32.gmra.mrb[0].mxu0 %v2799
      %v2997 = vpop.f32.mrb[0].mxu0
      %v2998 = vadd.f32 0.0, %v2997
      %v2999 = vpop.f32.mrb[0].mxu0
      %3000 = vmatprep.mubr.f32.mxu0 0.0
      %3001 = vmatmul.mubr.f32.gmra.mrb[0].mxu0 %v2801
      %v3002 = vpop.f32.mrb[0].mxu0
      %v3003 = vadd.f32 0.0, %v3002
      %v3004 = vpop.f32.mrb[0].mxu0
      %3005 = vmatprep.mubr.f32.mxu0 0.0
      %3006 = vmatmul.mubr.f32.gmra.mrb[0].mxu0 %v2803
      %v3007 = vpop.f32.mrb[0].mxu0
      %v3008 = vadd.f32 0.0, %v3007
      %v3009 = vpop.f32.mrb[0].mxu0
      %3010 = vmatprep.mubr.f32.mxu0 0.0
      %3011 = vmatmul.mubr.f32.gmra.mrb[0].mxu0 %v2805
      %v3012 = vpop.f32.mrb[0].mxu0
      %v3013 = vadd.f32 0.0, %v3012
      %v3014 = vpop.f32.mrb[0].mxu0
      %3015 = vmatprep.mubr.f32.mxu0 0.0
      %3016 = vmatmul.mubr.f32.gmra.mrb[0].mxu0 %v2807
      %v3017 = vpop.f32.mrb[0].mxu0
      %v3018 = vadd.f32 0.0, %v3017
      %v3019 = vpop.f32.mrb[0].mxu0
      %3020 = vmatprep.mubr.f32.mxu0 0.0
      %3021 = vmatmul.mubr.f32.gmra.mrb[0].mxu0 %v2809
      %v3022 = vpop.f32.mrb[0].mxu0
      %v3023 = vadd.f32 0.0, %v3022
      %v3024 = vpop.f32.mrb[0].mxu0
      %3025 = vmatprep.mubr.f32.mxu0 0.0
      %3026 = vmatmul.mubr.f32.gmra.mrb[0].mxu0 %v2811
      %v3027 = vpop.f32.mrb[0].mxu0
      %v3028 = vadd.f32 0.0, %v3027
      %v3029 = vpop.f32.mrb[0].mxu0
      %3030 = vmatprep.mubr.f32.mxu0 0.0
      %3031 = vmatmul.mubr.f32.gmra.mrb[0].mxu0 %v2813
      %v3032 = vpop.f32.mrb[0].mxu0
      %v3033 = vadd.f32 0.0, %v3032
      %v3034 = vpop.f32.mrb[0].mxu0
      %3035 = vmatprep.mubr.f32.mxu0 0.0
      %3036 = vmatmul.mubr.f32.gmra.mrb[0].mxu0 %v2815
      %v3037 = vpop.f32.mrb[0].mxu0
      %v3038 = vadd.f32 0.0, %v3037
      %v3039 = vpop.f32.mrb[0].mxu0
      %3040 = vmatprep.mubr.f32.mxu0 0.0
      %3041 = vmatmul.mubr.f32.gmra.mrb[0].mxu0 %v2817
      %v3042 = vpop.f32.mrb[0].mxu0
      %v3043 = vadd.f32 0.0, %v3042
      %v3044 = vpop.f32.mrb[0].mxu0
      %3045 = vdwg.mxu0
      %v3046 = vadd.f32 %v2591, %v2888
      %v3047 = vadd.f32 %v2592, %v2893
      %v3048 = vadd.f32 %v2593, %v2898
      %v3049 = vadd.f32 %v2594, %v2903
      %v3050 = vadd.f32 %v2595, %v2908
      %v3051 = vadd.f32 %v2596, %v2913
      %v3052 = vadd.f32 %v2597, %v2918
      %v3053 = vadd.f32 %v2598, %v2923
      %v3054 = vadd.f32 %v2599, %v2928
      %v3055 = vadd.f32 %v2600, %v2933
      %v3056 = vadd.f32 %v2601, %v2938
      %v3057 = vadd.f32 %v2602, %v2943
      %v3058 = vadd.f32 %v2603, %v2948
      %v3059 = vadd.f32 %v2604, %v2953
      %v3060 = vadd.f32 %v2605, %v2958
      %v3061 = vadd.f32 %v2606, %v2963
      %v3062 = vadd.f32 %v2607, %v2968
      %v3063 = vadd.f32 %v2608, %v2973
      %v3064 = vadd.f32 %v2609, %v2978
      %v3065 = vadd.f32 %v2610, %v2983
      %v3066 = vadd.f32 %v2611, %v2988
      %v3067 = vadd.f32 %v2612, %v2993
      %v3068 = vadd.f32 %v2613, %v2998
      %v3069 = vadd.f32 %v2614, %v3003
      %v3070 = vadd.f32 %v2615, %v3008
      %v3071 = vadd.f32 %v2616, %v3013
      %v3072 = vadd.f32 %v2617, %v3018
      %v3073 = vadd.f32 %v2618, %v3023
      %v3074 = vadd.f32 %v2619, %v3028
      %v3075 = vadd.f32 %v2620, %v3033
      %v3076 = vadd.f32 %v2621, %v3038
      %v3077 = vadd.f32 %v2622, %v3043
      %v3078 = vmul.f32 %v273, %v378
      %v3079 = vmul.f32 %v274, %v383
      %v3080 = vmul.f32 %v275, %v388
      %v3081 = vmul.f32 %v276, %v393
      %v3082 = vmul.f32 %v277, %v398
      %v3083 = vmul.f32 %v278, %v403
      %v3084 = vmul.f32 %v279, %v408
      %v3085 = vmul.f32 %v280, %v413
      %v3086 = vmul.f32 %v281, %v418
      %v3087 = vmul.f32 %v282, %v423
      %v3088 = vmul.f32 %v283, %v428
      %v3089 = vmul.f32 %v284, %v433
      %v3090 = vmul.f32 %v285, %v438
      %v3091 = vmul.f32 %v286, %v443
      %v3092 = vmul.f32 %v287, %v448
      %v3093 = vmul.f32 %v288, %v453
      %v3094 = vmul.f32 %v289, %v458
      %v3095 = vmul.f32 %v290, %v463
      %v3096 = vmul.f32 %v291, %v468
      %v3097 = vmul.f32 %v292, %v473
      %v3098 = vmul.f32 %v293, %v478
      %v3099 = vmul.f32 %v294, %v483
      %v3100 = vmul.f32 %v295, %v488
      %v3101 = vmul.f32 %v296, %v493
      %v3102 = vmul.f32 %v297, %v498
      %v3103 = vmul.f32 %v298, %v503
      %v3104 = vmul.f32 %v299, %v508
      %v3105 = vmul.f32 %v300, %v513
      %v3106 = vmul.f32 %v301, %v518
      %v3107 = vmul.f32 %v302, %v523
      %v3108 = vmul.f32 %v303, %v528
      %v3109 = vmul.f32 %v304, %v533
      %v3111 = vsel %vm668, %v3078, 0
      %v3114 = vsel %vm668, %v3079, 0
      %v3117 = vsel %vm668, %v3080, 0
      %v3120 = vsel %vm668, %v3081, 0
      %v3123 = vsel %vm668, %v3082, 0
      %v3126 = vsel %vm668, %v3083, 0
      %v3129 = vsel %vm668, %v3084, 0
      %v3132 = vsel %vm668, %v3085, 0
      %v3135 = vsel %vm668, %v3086, 0
      %v3138 = vsel %vm668, %v3087, 0
      %v3141 = vsel %vm668, %v3088, 0
      %v3144 = vsel %vm668, %v3089, 0
      %v3147 = vsel %vm668, %v3090, 0
      %v3150 = vsel %vm668, %v3091, 0
      %v3153 = vsel %vm668, %v3092, 0
      %v3156 = vsel %vm668, %v3093, 0
      %v3159 = vsel %vm668, %v3094, 0
      %v3162 = vsel %vm668, %v3095, 0
      %v3165 = vsel %vm668, %v3096, 0
      %v3168 = vsel %vm668, %v3097, 0
      %v3171 = vsel %vm668, %v3098, 0
      %v3174 = vsel %vm668, %v3099, 0
      %v3177 = vsel %vm668, %v3100, 0
      %v3180 = vsel %vm668, %v3101, 0
      %v3183 = vsel %vm668, %v3102, 0
      %v3186 = vsel %vm668, %v3103, 0
      %v3189 = vsel %vm668, %v3104, 0
      %v3192 = vsel %vm668, %v3105, 0
      %v3195 = vsel %vm668, %v3106, 0
      %v3198 = vsel %vm668, %v3107, 0
      %v3201 = vsel %vm668, %v3108, 0
      %v3204 = vsel %vm668, %v3109, 0
      %v3207 = vsel %vm733, %v309, 0
      %3209 = vmatprep.subr.mxu0 0.0
      %3210 = vmatpush1.msra.mxu0 %v3207
      %3211 = vmatprep.subr.mxu0 0.0
      %3212 = vmatpush1.msra.mxu0 0.0
      %3213 = vmatprep.subr.mxu0 0.0
      %3214 = vmatpush1.msra.mxu0 0.0
      %3215 = vmatprep.subr.mxu0 0.0
      %3216 = vmatpush1.msra.mxu0 0.0
      %3217 = vmatprep.subr.mxu0 0.0
      %3218 = vmatpush1.msra.mxu0 0.0
      %3219 = vmatprep.subr.mxu0 0.0
      %3220 = vmatpush1.msra.mxu0 0.0
      %3221 = vmatprep.subr.mxu0 0.0
      %3222 = vmatpush1.msra.mxu0 0.0
      %3223 = vmatprep.subr.mxu0 0.0
      %3224 = vmatpush1.msra.mxu0 0.0
      %3225 = vmatprep.subr.mxu0 0.0
      %3226 = vmatpush1.msra.mxu0 0.0
      %3227 = vmatprep.subr.mxu0 0.0
      %3228 = vmatpush1.msra.mxu0 0.0
      %3229 = vmatprep.subr.mxu0 0.0
      %3230 = vmatpush1.msra.mxu0 0.0
      %3231 = vmatprep.subr.mxu0 0.0
      %3232 = vmatpush1.msra.mxu0 0.0
      %3233 = vmatprep.subr.mxu0 0.0
      %3234 = vmatpush1.msra.mxu0 0.0
      %3235 = vmatprep.subr.mxu0 0.0
      %3236 = vmatpush1.msra.mxu0 0.0
      %3237 = vmatprep.subr.mxu0 0.0
      %3238 = vmatpush1.msra.mxu0 0.0
      %3239 = vmatprep.subr.mxu0 0.0
      %3240 = vmatpush1.msra.mxu0 0.0
      %3241 = vmatprep.subr.mxu0 0.0
      %3242 = vmatpush1.msra.mxu0 0.0
      %3243 = vmatprep.subr.mxu0 0.0
      %3244 = vmatpush1.msra.mxu0 0.0
      %3245 = vmatprep.subr.mxu0 0.0
      %3246 = vmatpush1.msra.mxu0 0.0
      %3247 = vmatprep.subr.mxu0 0.0
      %3248 = vmatpush1.msra.mxu0 0.0
      %3249 = vmatprep.subr.mxu0 0.0
      %3250 = vmatpush1.msra.mxu0 0.0
      %3251 = vmatprep.subr.mxu0 0.0
      %3252 = vmatpush1.msra.mxu0 0.0
      %3253 = vmatprep.subr.mxu0 0.0
      %3254 = vmatpush1.msra.mxu0 0.0
      %3255 = vmatprep.subr.mxu0 0.0
      %3256 = vmatpush1.msra.mxu0 0.0
      %3257 = vmatprep.subr.mxu0 0.0
      %3258 = vmatpush1.msra.mxu0 0.0
      %3259 = vmatprep.subr.mxu0 0.0
      %3260 = vmatpush1.msra.mxu0 0.0
      %3261 = vmatprep.subr.mxu0 0.0
      %3262 = vmatpush1.msra.mxu0 0.0
      %3263 = vmatprep.subr.mxu0 0.0
      %3264 = vmatpush1.msra.mxu0 0.0
      %3265 = vmatprep.subr.mxu0 0.0
      %3266 = vmatpush1.msra.mxu0 0.0
      %3267 = vmatprep.subr.mxu0 0.0
      %3268 = vmatpush1.msra.mxu0 0.0
      %3269 = vmatprep.subr.mxu0 0.0
      %3270 = vmatpush1.msra.mxu0 0.0
      %3271 = vmatprep.subr.mxu0 0.0
      %3272 = vmatpush1.msra.mxu0 0.0
      %3273 = vmatprep.mubr.f32.mxu0 0.0
      %3274 = vmatmul.mubr.f32.gmra.mrb[0].mxu0 %v3111
      %v3275 = vpop.f32.mrb[0].mxu0
      %v3276 = vadd.f32 0.0, %v3275
      %v3277 = vpop.f32.mrb[0].mxu0
      %3278 = vmatprep.mubr.f32.mxu0 0.0
      %3279 = vmatmul.mubr.f32.gmra.mrb[0].mxu0 %v3114
      %v3280 = vpop.f32.mrb[0].mxu0
      %v3281 = vadd.f32 0.0, %v3280
      %v3282 = vpop.f32.mrb[0].mxu0
      %3283 = vmatprep.mubr.f32.mxu0 0.0
      %3284 = vmatmul.mubr.f32.gmra.mrb[0].mxu0 %v3117
      %v3285 = vpop.f32.mrb[0].mxu0
      %v3286 = vadd.f32 0.0, %v3285
      %v3287 = vpop.f32.mrb[0].mxu0
      %3288 = vmatprep.mubr.f32.mxu0 0.0
      %3289 = vmatmul.mubr.f32.gmra.mrb[0].mxu0 %v3120
      %v3290 = vpop.f32.mrb[0].mxu0
      %v3291 = vadd.f32 0.0, %v3290
      %v3292 = vpop.f32.mrb[0].mxu0
      %3293 = vmatprep.mubr.f32.mxu0 0.0
      %3294 = vmatmul.mubr.f32.gmra.mrb[0].mxu0 %v3123
      %v3295 = vpop.f32.mrb[0].mxu0
      %v3296 = vadd.f32 0.0, %v3295
      %v3297 = vpop.f32.mrb[0].mxu0
      %3298 = vmatprep.mubr.f32.mxu0 0.0
      %3299 = vmatmul.mubr.f32.gmra.mrb[0].mxu0 %v3126
      %v3300 = vpop.f32.mrb[0].mxu0
      %v3301 = vadd.f32 0.0, %v3300
      %v3302 = vpop.f32.mrb[0].mxu0
      %3303 = vmatprep.mubr.f32.mxu0 0.0
      %3304 = vmatmul.mubr.f32.gmra.mrb[0].mxu0 %v3129
      %v3305 = vpop.f32.mrb[0].mxu0
      %v3306 = vadd.f32 0.0, %v3305
      %v3307 = vpop.f32.mrb[0].mxu0
      %3308 = vmatprep.mubr.f32.mxu0 0.0
      %3309 = vmatmul.mubr.f32.gmra.mrb[0].mxu0 %v3132
      %v3310 = vpop.f32.mrb[0].mxu0
      %v3311 = vadd.f32 0.0, %v3310
      %v3312 = vpop.f32.mrb[0].mxu0
      %3313 = vmatprep.mubr.f32.mxu0 0.0
      %3314 = vmatmul.mubr.f32.gmra.mrb[0].mxu0 %v3135
      %v3315 = vpop.f32.mrb[0].mxu0
      %v3316 = vadd.f32 0.0, %v3315
      %v3317 = vpop.f32.mrb[0].mxu0
      %3318 = vmatprep.mubr.f32.mxu0 0.0
      %3319 = vmatmul.mubr.f32.gmra.mrb[0].mxu0 %v3138
      %v3320 = vpop.f32.mrb[0].mxu0
      %v3321 = vadd.f32 0.0, %v3320
      %v3322 = vpop.f32.mrb[0].mxu0
      %3323 = vmatprep.mubr.f32.mxu0 0.0
      %3324 = vmatmul.mubr.f32.gmra.mrb[0].mxu0 %v3141
      %v3325 = vpop.f32.mrb[0].mxu0
      %v3326 = vadd.f32 0.0, %v3325
      %v3327 = vpop.f32.mrb[0].mxu0
      %3328 = vmatprep.mubr.f32.mxu0 0.0
      %3329 = vmatmul.mubr.f32.gmra.mrb[0].mxu0 %v3144
      %v3330 = vpop.f32.mrb[0].mxu0
      %v3331 = vadd.f32 0.0, %v3330
      %v3332 = vpop.f32.mrb[0].mxu0
      %3333 = vmatprep.mubr.f32.mxu0 0.0
      %3334 = vmatmul.mubr.f32.gmra.mrb[0].mxu0 %v3147
      %v3335 = vpop.f32.mrb[0].mxu0
      %v3336 = vadd.f32 0.0, %v3335
      %v3337 = vpop.f32.mrb[0].mxu0
      %3338 = vmatprep.mubr.f32.mxu0 0.0
      %3339 = vmatmul.mubr.f32.gmra.mrb[0].mxu0 %v3150
      %v3340 = vpop.f32.mrb[0].mxu0
      %v3341 = vadd.f32 0.0, %v3340
      %v3342 = vpop.f32.mrb[0].mxu0
      %3343 = vmatprep.mubr.f32.mxu0 0.0
      %3344 = vmatmul.mubr.f32.gmra.mrb[0].mxu0 %v3153
      %v3345 = vpop.f32.mrb[0].mxu0
      %v3346 = vadd.f32 0.0, %v3345
      %v3347 = vpop.f32.mrb[0].mxu0
      %3348 = vmatprep.mubr.f32.mxu0 0.0
      %3349 = vmatmul.mubr.f32.gmra.mrb[0].mxu0 %v3156
      %v3350 = vpop.f32.mrb[0].mxu0
      %v3351 = vadd.f32 0.0, %v3350
      %v3352 = vpop.f32.mrb[0].mxu0
      %3353 = vmatprep.mubr.f32.mxu0 0.0
      %3354 = vmatmul.mubr.f32.gmra.mrb[0].mxu0 %v3159
      %v3355 = vpop.f32.mrb[0].mxu0
      %v3356 = vadd.f32 0.0, %v3355
      %v3357 = vpop.f32.mrb[0].mxu0
      %3358 = vmatprep.mubr.f32.mxu0 0.0
      %3359 = vmatmul.mubr.f32.gmra.mrb[0].mxu0 %v3162
      %v3360 = vpop.f32.mrb[0].mxu0
      %v3361 = vadd.f32 0.0, %v3360
      %v3362 = vpop.f32.mrb[0].mxu0
      %3363 = vmatprep.mubr.f32.mxu0 0.0
      %3364 = vmatmul.mubr.f32.gmra.mrb[0].mxu0 %v3165
      %v3365 = vpop.f32.mrb[0].mxu0
      %v3366 = vadd.f32 0.0, %v3365
      %v3367 = vpop.f32.mrb[0].mxu0
      %3368 = vmatprep.mubr.f32.mxu0 0.0
      %3369 = vmatmul.mubr.f32.gmra.mrb[0].mxu0 %v3168
      %v3370 = vpop.f32.mrb[0].mxu0
      %v3371 = vadd.f32 0.0, %v3370
      %v3372 = vpop.f32.mrb[0].mxu0
      %3373 = vmatprep.mubr.f32.mxu0 0.0
      %3374 = vmatmul.mubr.f32.gmra.mrb[0].mxu0 %v3171
      %v3375 = vpop.f32.mrb[0].mxu0
      %v3376 = vadd.f32 0.0, %v3375
      %v3377 = vpop.f32.mrb[0].mxu0
      %3378 = vmatprep.mubr.f32.mxu0 0.0
      %3379 = vmatmul.mubr.f32.gmra.mrb[0].mxu0 %v3174
      %v3380 = vpop.f32.mrb[0].mxu0
      %v3381 = vadd.f32 0.0, %v3380
      %v3382 = vpop.f32.mrb[0].mxu0
      %3383 = vmatprep.mubr.f32.mxu0 0.0
      %3384 = vmatmul.mubr.f32.gmra.mrb[0].mxu0 %v3177
      %v3385 = vpop.f32.mrb[0].mxu0
      %v3386 = vadd.f32 0.0, %v3385
      %v3387 = vpop.f32.mrb[0].mxu0
      %3388 = vmatprep.mubr.f32.mxu0 0.0
      %3389 = vmatmul.mubr.f32.gmra.mrb[0].mxu0 %v3180
      %v3390 = vpop.f32.mrb[0].mxu0
      %v3391 = vadd.f32 0.0, %v3390
      %v3392 = vpop.f32.mrb[0].mxu0
      %3393 = vmatprep.mubr.f32.mxu0 0.0
      %3394 = vmatmul.mubr.f32.gmra.mrb[0].mxu0 %v3183
      %v3395 = vpop.f32.mrb[0].mxu0
      %v3396 = vadd.f32 0.0, %v3395
      %v3397 = vpop.f32.mrb[0].mxu0
      %3398 = vmatprep.mubr.f32.mxu0 0.0
      %3399 = vmatmul.mubr.f32.gmra.mrb[0].mxu0 %v3186
      %v3400 = vpop.f32.mrb[0].mxu0
      %v3401 = vadd.f32 0.0, %v3400
      %v3402 = vpop.f32.mrb[0].mxu0
      %3403 = vmatprep.mubr.f32.mxu0 0.0
      %3404 = vmatmul.mubr.f32.gmra.mrb[0].mxu0 %v3189
      %v3405 = vpop.f32.mrb[0].mxu0
      %v3406 = vadd.f32 0.0, %v3405
      %v3407 = vpop.f32.mrb[0].mxu0
      %3408 = vmatprep.mubr.f32.mxu0 0.0
      %3409 = vmatmul.mubr.f32.gmra.mrb[0].mxu0 %v3192
      %v3410 = vpop.f32.mrb[0].mxu0
      %v3411 = vadd.f32 0.0, %v3410
      %v3412 = vpop.f32.mrb[0].mxu0
      %3413 = vmatprep.mubr.f32.mxu0 0.0
      %3414 = vmatmul.mubr.f32.gmra.mrb[0].mxu0 %v3195
      %v3415 = vpop.f32.mrb[0].mxu0
      %v3416 = vadd.f32 0.0, %v3415
      %v3417 = vpop.f32.mrb[0].mxu0
      %3418 = vmatprep.mubr.f32.mxu0 0.0
      %3419 = vmatmul.mubr.f32.gmra.mrb[0].mxu0 %v3198
      %v3420 = vpop.f32.mrb[0].mxu0
      %v3421 = vadd.f32 0.0, %v3420
      %v3422 = vpop.f32.mrb[0].mxu0
      %3423 = vmatprep.mubr.f32.mxu0 0.0
      %3424 = vmatmul.mubr.f32.gmra.mrb[0].mxu0 %v3201
      %v3425 = vpop.f32.mrb[0].mxu0
      %v3426 = vadd.f32 0.0, %v3425
      %v3427 = vpop.f32.mrb[0].mxu0
      %3428 = vmatprep.mubr.f32.mxu0 0.0
      %3429 = vmatmul.mubr.f32.gmra.mrb[0].mxu0 %v3204
      %v3430 = vpop.f32.mrb[0].mxu0
      %v3431 = vadd.f32 0.0, %v3430
      %v3432 = vpop.f32.mrb[0].mxu0
      %3433 = vdwg.mxu0
      %v3434 = vadd.f32 %v3046, %v3276
      %v3435 = vadd.f32 %v3047, %v3281
      %v3436 = vadd.f32 %v3048, %v3286
      %v3437 = vadd.f32 %v3049, %v3291
      %v3438 = vadd.f32 %v3050, %v3296
      %v3439 = vadd.f32 %v3051, %v3301
      %v3440 = vadd.f32 %v3052, %v3306
      %v3441 = vadd.f32 %v3053, %v3311
      %v3442 = vadd.f32 %v3054, %v3316
      %v3443 = vadd.f32 %v3055, %v3321
      %v3444 = vadd.f32 %v3056, %v3326
      %v3445 = vadd.f32 %v3057, %v3331
      %v3446 = vadd.f32 %v3058, %v3336
      %v3447 = vadd.f32 %v3059, %v3341
      %v3448 = vadd.f32 %v3060, %v3346
      %v3449 = vadd.f32 %v3061, %v3351
      %v3450 = vadd.f32 %v3062, %v3356
      %v3451 = vadd.f32 %v3063, %v3361
      %v3452 = vadd.f32 %v3064, %v3366
      %v3453 = vadd.f32 %v3065, %v3371
      %v3454 = vadd.f32 %v3066, %v3376
      %v3455 = vadd.f32 %v3067, %v3381
      %v3456 = vadd.f32 %v3068, %v3386
      %v3457 = vadd.f32 %v3069, %v3391
      %v3458 = vadd.f32 %v3070, %v3396
      %v3459 = vadd.f32 %v3071, %v3401
      %v3460 = vadd.f32 %v3072, %v3406
      %v3461 = vadd.f32 %v3073, %v3411
      %v3462 = vadd.f32 %v3074, %v3416
      %v3463 = vadd.f32 %v3075, %v3421
      %v3464 = vadd.f32 %v3076, %v3426
      %v3465 = vadd.f32 %v3077, %v3431
      %v3468 = vrot.slane %v304, 1
      %v3469 = vsel %vm600, %v2357, %v3468
      %v3470 = vrot.slane %v305, 1
      %v3471 = vsel %vm600, %v3468, %v3470
      %v3472 = vrot.slane %v309, 4
      %v3473 = vsel %vm668, %v3469, 0
      %v3475 = vsel %vm668, %v3471, 0
      %v3477 = vsel %vm733, %v3472, 0
      %3479 = vmatprep.subr.mxu0 0.0
      %3480 = vmatpush1.msra.mxu0 %v3477
      %3481 = vmatprep.subr.mxu0 0.0
      %3482 = vmatpush1.msra.mxu0 0.0
      %3483 = vmatprep.subr.mxu0 0.0
      %3484 = vmatpush1.msra.mxu0 0.0
      %3485 = vmatprep.subr.mxu0 0.0
      %3486 = vmatpush1.msra.mxu0 0.0
      %3487 = vmatprep.subr.mxu0 0.0
      %3488 = vmatpush1.msra.mxu0 0.0
      %3489 = vmatprep.subr.mxu0 0.0
      %3490 = vmatpush1.msra.mxu0 0.0
      %3491 = vmatprep.subr.mxu0 0.0
      %3492 = vmatpush1.msra.mxu0 0.0
      %3493 = vmatprep.subr.mxu0 0.0
      %3494 = vmatpush1.msra.mxu0 0.0
      %3495 = vmatprep.subr.mxu0 0.0
      %3496 = vmatpush1.msra.mxu0 0.0
      %3497 = vmatprep.subr.mxu0 0.0
      %3498 = vmatpush1.msra.mxu0 0.0
      %3499 = vmatprep.subr.mxu0 0.0
      %3500 = vmatpush1.msra.mxu0 0.0
      %3501 = vmatprep.subr.mxu0 0.0
      %3502 = vmatpush1.msra.mxu0 0.0
      %3503 = vmatprep.subr.mxu0 0.0
      %3504 = vmatpush1.msra.mxu0 0.0
      %3505 = vmatprep.subr.mxu0 0.0
      %3506 = vmatpush1.msra.mxu0 0.0
      %3507 = vmatprep.subr.mxu0 0.0
      %3508 = vmatpush1.msra.mxu0 0.0
      %3509 = vmatprep.subr.mxu0 0.0
      %3510 = vmatpush1.msra.mxu0 0.0
      %3511 = vmatprep.subr.mxu0 0.0
      %3512 = vmatpush1.msra.mxu0 0.0
      %3513 = vmatprep.subr.mxu0 0.0
      %3514 = vmatpush1.msra.mxu0 0.0
      %3515 = vmatprep.subr.mxu0 0.0
      %3516 = vmatpush1.msra.mxu0 0.0
      %3517 = vmatprep.subr.mxu0 0.0
      %3518 = vmatpush1.msra.mxu0 0.0
      %3519 = vmatprep.subr.mxu0 0.0
      %3520 = vmatpush1.msra.mxu0 0.0
      %3521 = vmatprep.subr.mxu0 0.0
      %3522 = vmatpush1.msra.mxu0 0.0
      %3523 = vmatprep.subr.mxu0 0.0
      %3524 = vmatpush1.msra.mxu0 0.0
      %3525 = vmatprep.subr.mxu0 0.0
      %3526 = vmatpush1.msra.mxu0 0.0
      %3527 = vmatprep.subr.mxu0 0.0
      %3528 = vmatpush1.msra.mxu0 0.0
      %3529 = vmatprep.subr.mxu0 0.0
      %3530 = vmatpush1.msra.mxu0 0.0
      %3531 = vmatprep.subr.mxu0 0.0
      %3532 = vmatpush1.msra.mxu0 0.0
      %3533 = vmatprep.subr.mxu0 0.0
      %3534 = vmatpush1.msra.mxu0 0.0
      %3535 = vmatprep.subr.mxu0 0.0
      %3536 = vmatpush1.msra.mxu0 0.0
      %3537 = vmatprep.subr.mxu0 0.0
      %3538 = vmatpush1.msra.mxu0 0.0
      %3539 = vmatprep.subr.mxu0 0.0
      %3540 = vmatpush1.msra.mxu0 0.0
      %3541 = vmatprep.subr.mxu0 0.0
      %3542 = vmatpush1.msra.mxu0 0.0
      %3543 = vmatprep.mubr.f32.mxu0 0.0
      %3544 = vmatmul.mubr.f32.gmra.mrb[0].mxu0 %v677
      %v3545 = vpop.f32.mrb[0].mxu0
      %v3546 = vadd.f32 0.0, %v3545
      %v3547 = vpop.f32.mrb[0].mxu0
      %3548 = vmatprep.mubr.f32.mxu0 0.0
      %3549 = vmatmul.mubr.f32.gmra.mrb[0].mxu0 %v679
      %v3550 = vpop.f32.mrb[0].mxu0
      %v3551 = vadd.f32 0.0, %v3550
      %v3552 = vpop.f32.mrb[0].mxu0
      %3553 = vmatprep.mubr.f32.mxu0 0.0
      %3554 = vmatmul.mubr.f32.gmra.mrb[0].mxu0 %v681
      %v3555 = vpop.f32.mrb[0].mxu0
      %v3556 = vadd.f32 0.0, %v3555
      %v3557 = vpop.f32.mrb[0].mxu0
      %3558 = vmatprep.mubr.f32.mxu0 0.0
      %3559 = vmatmul.mubr.f32.gmra.mrb[0].mxu0 %v683
      %v3560 = vpop.f32.mrb[0].mxu0
      %v3561 = vadd.f32 0.0, %v3560
      %v3562 = vpop.f32.mrb[0].mxu0
      %3563 = vmatprep.mubr.f32.mxu0 0.0
      %3564 = vmatmul.mubr.f32.gmra.mrb[0].mxu0 %v685
      %v3565 = vpop.f32.mrb[0].mxu0
      %v3566 = vadd.f32 0.0, %v3565
      %v3567 = vpop.f32.mrb[0].mxu0
      %3568 = vmatprep.mubr.f32.mxu0 0.0
      %3569 = vmatmul.mubr.f32.gmra.mrb[0].mxu0 %v687
      %v3570 = vpop.f32.mrb[0].mxu0
      %v3571 = vadd.f32 0.0, %v3570
      %v3572 = vpop.f32.mrb[0].mxu0
      %3573 = vmatprep.mubr.f32.mxu0 0.0
      %3574 = vmatmul.mubr.f32.gmra.mrb[0].mxu0 %v689
      %v3575 = vpop.f32.mrb[0].mxu0
      %v3576 = vadd.f32 0.0, %v3575
      %v3577 = vpop.f32.mrb[0].mxu0
      %3578 = vmatprep.mubr.f32.mxu0 0.0
      %3579 = vmatmul.mubr.f32.gmra.mrb[0].mxu0 %v691
      %v3580 = vpop.f32.mrb[0].mxu0
      %v3581 = vadd.f32 0.0, %v3580
      %v3582 = vpop.f32.mrb[0].mxu0
      %3583 = vmatprep.mubr.f32.mxu0 0.0
      %3584 = vmatmul.mubr.f32.gmra.mrb[0].mxu0 %v693
      %v3585 = vpop.f32.mrb[0].mxu0
      %v3586 = vadd.f32 0.0, %v3585
      %v3587 = vpop.f32.mrb[0].mxu0
      %3588 = vmatprep.mubr.f32.mxu0 0.0
      %3589 = vmatmul.mubr.f32.gmra.mrb[0].mxu0 %v695
      %v3590 = vpop.f32.mrb[0].mxu0
      %v3591 = vadd.f32 0.0, %v3590
      %v3592 = vpop.f32.mrb[0].mxu0
      %3593 = vmatprep.mubr.f32.mxu0 0.0
      %3594 = vmatmul.mubr.f32.gmra.mrb[0].mxu0 %v697
      %v3595 = vpop.f32.mrb[0].mxu0
      %v3596 = vadd.f32 0.0, %v3595
      %v3597 = vpop.f32.mrb[0].mxu0
      %3598 = vmatprep.mubr.f32.mxu0 0.0
      %3599 = vmatmul.mubr.f32.gmra.mrb[0].mxu0 %v699
      %v3600 = vpop.f32.mrb[0].mxu0
      %v3601 = vadd.f32 0.0, %v3600
      %v3602 = vpop.f32.mrb[0].mxu0
      %3603 = vmatprep.mubr.f32.mxu0 0.0
      %3604 = vmatmul.mubr.f32.gmra.mrb[0].mxu0 %v701
      %v3605 = vpop.f32.mrb[0].mxu0
      %v3606 = vadd.f32 0.0, %v3605
      %v3607 = vpop.f32.mrb[0].mxu0
      %3608 = vmatprep.mubr.f32.mxu0 0.0
      %3609 = vmatmul.mubr.f32.gmra.mrb[0].mxu0 %v703
      %v3610 = vpop.f32.mrb[0].mxu0
      %v3611 = vadd.f32 0.0, %v3610
      %v3612 = vpop.f32.mrb[0].mxu0
      %3613 = vmatprep.mubr.f32.mxu0 0.0
      %3614 = vmatmul.mubr.f32.gmra.mrb[0].mxu0 %v705
      %v3615 = vpop.f32.mrb[0].mxu0
      %v3616 = vadd.f32 0.0, %v3615
      %v3617 = vpop.f32.mrb[0].mxu0
      %3618 = vmatprep.mubr.f32.mxu0 0.0
      %3619 = vmatmul.mubr.f32.gmra.mrb[0].mxu0 %v707
      %v3620 = vpop.f32.mrb[0].mxu0
      %v3621 = vadd.f32 0.0, %v3620
      %v3622 = vpop.f32.mrb[0].mxu0
      %3623 = vmatprep.mubr.f32.mxu0 0.0
      %3624 = vmatmul.mubr.f32.gmra.mrb[0].mxu0 %v709
      %v3625 = vpop.f32.mrb[0].mxu0
      %v3626 = vadd.f32 0.0, %v3625
      %v3627 = vpop.f32.mrb[0].mxu0
      %3628 = vmatprep.mubr.f32.mxu0 0.0
      %3629 = vmatmul.mubr.f32.gmra.mrb[0].mxu0 %v711
      %v3630 = vpop.f32.mrb[0].mxu0
      %v3631 = vadd.f32 0.0, %v3630
      %v3632 = vpop.f32.mrb[0].mxu0
      %3633 = vmatprep.mubr.f32.mxu0 0.0
      %3634 = vmatmul.mubr.f32.gmra.mrb[0].mxu0 %v713
      %v3635 = vpop.f32.mrb[0].mxu0
      %v3636 = vadd.f32 0.0, %v3635
      %v3637 = vpop.f32.mrb[0].mxu0
      %3638 = vmatprep.mubr.f32.mxu0 0.0
      %3639 = vmatmul.mubr.f32.gmra.mrb[0].mxu0 %v715
      %v3640 = vpop.f32.mrb[0].mxu0
      %v3641 = vadd.f32 0.0, %v3640
      %v3642 = vpop.f32.mrb[0].mxu0
      %3643 = vmatprep.mubr.f32.mxu0 0.0
      %3644 = vmatmul.mubr.f32.gmra.mrb[0].mxu0 %v717
      %v3645 = vpop.f32.mrb[0].mxu0
      %v3646 = vadd.f32 0.0, %v3645
      %v3647 = vpop.f32.mrb[0].mxu0
      %3648 = vmatprep.mubr.f32.mxu0 0.0
      %3649 = vmatmul.mubr.f32.gmra.mrb[0].mxu0 %v719
      %v3650 = vpop.f32.mrb[0].mxu0
      %v3651 = vadd.f32 0.0, %v3650
      %v3652 = vpop.f32.mrb[0].mxu0
      %3653 = vmatprep.mubr.f32.mxu0 0.0
      %3654 = vmatmul.mubr.f32.gmra.mrb[0].mxu0 %v721
      %v3655 = vpop.f32.mrb[0].mxu0
      %v3656 = vadd.f32 0.0, %v3655
      %v3657 = vpop.f32.mrb[0].mxu0
      %3658 = vmatprep.mubr.f32.mxu0 0.0
      %3659 = vmatmul.mubr.f32.gmra.mrb[0].mxu0 %v723
      %v3660 = vpop.f32.mrb[0].mxu0
      %v3661 = vadd.f32 0.0, %v3660
      %v3662 = vpop.f32.mrb[0].mxu0
      %3663 = vmatprep.mubr.f32.mxu0 0.0
      %3664 = vmatmul.mubr.f32.gmra.mrb[0].mxu0 %v725
      %v3665 = vpop.f32.mrb[0].mxu0
      %v3666 = vadd.f32 0.0, %v3665
      %v3667 = vpop.f32.mrb[0].mxu0
      %3668 = vmatprep.mubr.f32.mxu0 0.0
      %3669 = vmatmul.mubr.f32.gmra.mrb[0].mxu0 %v727
      %v3670 = vpop.f32.mrb[0].mxu0
      %v3671 = vadd.f32 0.0, %v3670
      %v3672 = vpop.f32.mrb[0].mxu0
      %3673 = vmatprep.mubr.f32.mxu0 0.0
      %3674 = vmatmul.mubr.f32.gmra.mrb[0].mxu0 %v729
      %v3675 = vpop.f32.mrb[0].mxu0
      %v3676 = vadd.f32 0.0, %v3675
      %v3677 = vpop.f32.mrb[0].mxu0
      %3678 = vmatprep.mubr.f32.mxu0 0.0
      %3679 = vmatmul.mubr.f32.gmra.mrb[0].mxu0 %v731
      %v3680 = vpop.f32.mrb[0].mxu0
      %v3681 = vadd.f32 0.0, %v3680
      %v3682 = vpop.f32.mrb[0].mxu0
      %3683 = vmatprep.mubr.f32.mxu0 0.0
      %3684 = vmatmul.mubr.f32.gmra.mrb[0].mxu0 %v2359
      %v3685 = vpop.f32.mrb[0].mxu0
      %v3686 = vadd.f32 0.0, %v3685
      %v3687 = vpop.f32.mrb[0].mxu0
      %3688 = vmatprep.mubr.f32.mxu0 0.0
      %3689 = vmatmul.mubr.f32.gmra.mrb[0].mxu0 %v2361
      %v3690 = vpop.f32.mrb[0].mxu0
      %v3691 = vadd.f32 0.0, %v3690
      %v3692 = vpop.f32.mrb[0].mxu0
      %3693 = vmatprep.mubr.f32.mxu0 0.0
      %3694 = vmatmul.mubr.f32.gmra.mrb[0].mxu0 %v3473
      %v3695 = vpop.f32.mrb[0].mxu0
      %v3696 = vadd.f32 0.0, %v3695
      %v3697 = vpop.f32.mrb[0].mxu0
      %3698 = vmatprep.mubr.f32.mxu0 0.0
      %3699 = vmatmul.mubr.f32.gmra.mrb[0].mxu0 %v3475
      %v3700 = vpop.f32.mrb[0].mxu0
      %v3701 = vadd.f32 0.0, %v3700
      %v3702 = vpop.f32.mrb[0].mxu0
      %3703 = vdwg.mxu0
      %v3704 = vadd.f32 %v3434, %v3546
      %v3705 = vadd.f32 %v3435, %v3551
      %v3706 = vadd.f32 %v3436, %v3556
      %v3707 = vadd.f32 %v3437, %v3561
      %v3708 = vadd.f32 %v3438, %v3566
      %v3709 = vadd.f32 %v3439, %v3571
      %v3710 = vadd.f32 %v3440, %v3576
      %v3711 = vadd.f32 %v3441, %v3581
      %v3712 = vadd.f32 %v3442, %v3586
      %v3713 = vadd.f32 %v3443, %v3591
      %v3714 = vadd.f32 %v3444, %v3596
      %v3715 = vadd.f32 %v3445, %v3601
      %v3716 = vadd.f32 %v3446, %v3606
      %v3717 = vadd.f32 %v3447, %v3611
      %v3718 = vadd.f32 %v3448, %v3616
      %v3719 = vadd.f32 %v3449, %v3621
      %v3720 = vadd.f32 %v3450, %v3626
      %v3721 = vadd.f32 %v3451, %v3631
      %v3722 = vadd.f32 %v3452, %v3636
      %v3723 = vadd.f32 %v3453, %v3641
      %v3724 = vadd.f32 %v3454, %v3646
      %v3725 = vadd.f32 %v3455, %v3651
      %v3726 = vadd.f32 %v3456, %v3656
      %v3727 = vadd.f32 %v3457, %v3661
      %v3728 = vadd.f32 %v3458, %v3666
      %v3729 = vadd.f32 %v3459, %v3671
      %v3730 = vadd.f32 %v3460, %v3676
      %v3731 = vadd.f32 %v3461, %v3681
      %v3732 = vadd.f32 %v3462, %v3686
      %v3733 = vadd.f32 %v3463, %v3691
      %v3734 = vadd.f32 %v3464, %v3696
      %v3735 = vadd.f32 %v3465, %v3701
      %v3736 = vmul.f32 %v273, %v1413
      %v3737 = vmul.f32 %v274, %v1415
      %v3738 = vmul.f32 %v275, %v1417
      %v3739 = vmul.f32 %v276, %v1419
      %v3740 = vmul.f32 %v277, %v1421
      %v3741 = vmul.f32 %v278, %v1423
      %v3742 = vmul.f32 %v279, %v1425
      %v3743 = vmul.f32 %v280, %v1427
      %v3744 = vmul.f32 %v281, %v1429
      %v3745 = vmul.f32 %v282, %v1431
      %v3746 = vmul.f32 %v283, %v1433
      %v3747 = vmul.f32 %v284, %v1435
      %v3748 = vmul.f32 %v285, %v1437
      %v3749 = vmul.f32 %v286, %v1439
      %v3750 = vmul.f32 %v287, %v1441
      %v3751 = vmul.f32 %v288, %v1443
      %v3752 = vmul.f32 %v289, %v1445
      %v3753 = vmul.f32 %v290, %v1447
      %v3754 = vmul.f32 %v291, %v1449
      %v3755 = vmul.f32 %v292, %v1451
      %v3756 = vmul.f32 %v293, %v1453
      %v3757 = vmul.f32 %v294, %v1455
      %v3758 = vmul.f32 %v295, %v1457
      %v3759 = vmul.f32 %v296, %v1459
      %v3760 = vmul.f32 %v297, %v1461
      %v3761 = vmul.f32 %v298, %v1463
      %v3762 = vmul.f32 %v299, %v1465
      %v3763 = vmul.f32 %v300, %v1467
      %v3764 = vmul.f32 %v301, %v1469
      %v3765 = vmul.f32 %v302, %v1471
      %v3766 = vmul.f32 %v303, %v1473
      %v3767 = vmul.f32 %v304, %v1475
      %v3768 = vmul.f32 %v305, %v1474
      %v3802 = vrot.slane %v3736, 2
      %v3803 = vrot.slane %v3737, 2
      %v3804 = vsel %vm1575, %v3802, %v3803
      %v3805 = vrot.slane %v3738, 2
      %v3806 = vsel %vm1575, %v3803, %v3805
      %v3807 = vrot.slane %v3739, 2
      %v3808 = vsel %vm1575, %v3805, %v3807
      %v3809 = vrot.slane %v3740, 2
      %v3810 = vsel %vm1575, %v3807, %v3809
      %v3811 = vrot.slane %v3741, 2
      %v3812 = vsel %vm1575, %v3809, %v3811
      %v3813 = vrot.slane %v3742, 2
      %v3814 = vsel %vm1575, %v3811, %v3813
      %v3815 = vrot.slane %v3743, 2
      %v3816 = vsel %vm1575, %v3813, %v3815
      %v3817 = vrot.slane %v3744, 2
      %v3818 = vsel %vm1575, %v3815, %v3817
      %v3819 = vrot.slane %v3745, 2
      %v3820 = vsel %vm1575, %v3817, %v3819
      %v3821 = vrot.slane %v3746, 2
      %v3822 = vsel %vm1575, %v3819, %v3821
      %v3823 = vrot.slane %v3747, 2
      %v3824 = vsel %vm1575, %v3821, %v3823
      %v3825 = vrot.slane %v3748, 2
      %v3826 = vsel %vm1575, %v3823, %v3825
      %v3827 = vrot.slane %v3749, 2
      %v3828 = vsel %vm1575, %v3825, %v3827
      %v3829 = vrot.slane %v3750, 2
      %v3830 = vsel %vm1575, %v3827, %v3829
      %v3831 = vrot.slane %v3751, 2
      %v3832 = vsel %vm1575, %v3829, %v3831
      %v3833 = vrot.slane %v3752, 2
      %v3834 = vsel %vm1575, %v3831, %v3833
      %v3835 = vrot.slane %v3753, 2
      %v3836 = vsel %vm1575, %v3833, %v3835
      %v3837 = vrot.slane %v3754, 2
      %v3838 = vsel %vm1575, %v3835, %v3837
      %v3839 = vrot.slane %v3755, 2
      %v3840 = vsel %vm1575, %v3837, %v3839
      %v3841 = vrot.slane %v3756, 2
      %v3842 = vsel %vm1575, %v3839, %v3841
      %v3843 = vrot.slane %v3757, 2
      %v3844 = vsel %vm1575, %v3841, %v3843
      %v3845 = vrot.slane %v3758, 2
      %v3846 = vsel %vm1575, %v3843, %v3845
      %v3847 = vrot.slane %v3759, 2
      %v3848 = vsel %vm1575, %v3845, %v3847
      %v3849 = vrot.slane %v3760, 2
      %v3850 = vsel %vm1575, %v3847, %v3849
      %v3851 = vrot.slane %v3761, 2
      %v3852 = vsel %vm1575, %v3849, %v3851
      %v3853 = vrot.slane %v3762, 2
      %v3854 = vsel %vm1575, %v3851, %v3853
      %v3855 = vrot.slane %v3763, 2
      %v3856 = vsel %vm1575, %v3853, %v3855
      %v3857 = vrot.slane %v3764, 2
      %v3858 = vsel %vm1575, %v3855, %v3857
      %v3859 = vrot.slane %v3765, 2
      %v3860 = vsel %vm1575, %v3857, %v3859
      %v3861 = vrot.slane %v3766, 2
      %v3862 = vsel %vm1575, %v3859, %v3861
      %v3863 = vrot.slane %v3767, 2
      %v3864 = vsel %vm1575, %v3861, %v3863
      %v3865 = vrot.slane %v3768, 2
      %v3866 = vsel %vm1575, %v3863, %v3865
      %v3867 = vsel %vm668, %v3804, 0
      %v3869 = vsel %vm668, %v3806, 0
      %v3871 = vsel %vm668, %v3808, 0
      %v3873 = vsel %vm668, %v3810, 0
      %v3875 = vsel %vm668, %v3812, 0
      %v3877 = vsel %vm668, %v3814, 0
      %v3879 = vsel %vm668, %v3816, 0
      %v3881 = vsel %vm668, %v3818, 0
      %v3883 = vsel %vm668, %v3820, 0
      %v3885 = vsel %vm668, %v3822, 0
      %v3887 = vsel %vm668, %v3824, 0
      %v3889 = vsel %vm668, %v3826, 0
      %v3891 = vsel %vm668, %v3828, 0
      %v3893 = vsel %vm668, %v3830, 0
      %v3895 = vsel %vm668, %v3832, 0
      %v3897 = vsel %vm668, %v3834, 0
      %v3899 = vsel %vm668, %v3836, 0
      %v3901 = vsel %vm668, %v3838, 0
      %v3903 = vsel %vm668, %v3840, 0
      %v3905 = vsel %vm668, %v3842, 0
      %v3907 = vsel %vm668, %v3844, 0
      %v3909 = vsel %vm668, %v3846, 0
      %v3911 = vsel %vm668, %v3848, 0
      %v3913 = vsel %vm668, %v3850, 0
      %v3915 = vsel %vm668, %v3852, 0
      %v3917 = vsel %vm668, %v3854, 0
      %v3919 = vsel %vm668, %v3856, 0
      %v3921 = vsel %vm668, %v3858, 0
      %v3923 = vsel %vm668, %v3860, 0
      %v3925 = vsel %vm668, %v3862, 0
      %v3927 = vsel %vm668, %v3864, 0
      %v3929 = vsel %vm668, %v3866, 0
      %v3932 = vsel %vm733, %v310, 0
      %3934 = vmatprep.subr.mxu0 0.0
      %3935 = vmatpush1.msra.mxu0 %v3932
      %3936 = vmatprep.subr.mxu0 0.0
      %3937 = vmatpush1.msra.mxu0 0.0
      %3938 = vmatprep.subr.mxu0 0.0
      %3939 = vmatpush1.msra.mxu0 0.0
      %3940 = vmatprep.subr.mxu0 0.0
      %3941 = vmatpush1.msra.mxu0 0.0
      %3942 = vmatprep.subr.mxu0 0.0
      %3943 = vmatpush1.msra.mxu0 0.0
      %3944 = vmatprep.subr.mxu0 0.0
      %3945 = vmatpush1.msra.mxu0 0.0
      %3946 = vmatprep.subr.mxu0 0.0
      %3947 = vmatpush1.msra.mxu0 0.0
      %3948 = vmatprep.subr.mxu0 0.0
      %3949 = vmatpush1.msra.mxu0 0.0
      %3950 = vmatprep.subr.mxu0 0.0
      %3951 = vmatpush1.msra.mxu0 0.0
      %3952 = vmatprep.subr.mxu0 0.0
      %3953 = vmatpush1.msra.mxu0 0.0
      %3954 = vmatprep.subr.mxu0 0.0
      %3955 = vmatpush1.msra.mxu0 0.0
      %3956 = vmatprep.subr.mxu0 0.0
      %3957 = vmatpush1.msra.mxu0 0.0
      %3958 = vmatprep.subr.mxu0 0.0
      %3959 = vmatpush1.msra.mxu0 0.0
      %3960 = vmatprep.subr.mxu0 0.0
      %3961 = vmatpush1.msra.mxu0 0.0
      %3962 = vmatprep.subr.mxu0 0.0
      %3963 = vmatpush1.msra.mxu0 0.0
      %3964 = vmatprep.subr.mxu0 0.0
      %3965 = vmatpush1.msra.mxu0 0.0
      %3966 = vmatprep.subr.mxu0 0.0
      %3967 = vmatpush1.msra.mxu0 0.0
      %3968 = vmatprep.subr.mxu0 0.0
      %3969 = vmatpush1.msra.mxu0 0.0
      %3970 = vmatprep.subr.mxu0 0.0
      %3971 = vmatpush1.msra.mxu0 0.0
      %3972 = vmatprep.subr.mxu0 0.0
      %3973 = vmatpush1.msra.mxu0 0.0
      %3974 = vmatprep.subr.mxu0 0.0
      %3975 = vmatpush1.msra.mxu0 0.0
      %3976 = vmatprep.subr.mxu0 0.0
      %3977 = vmatpush1.msra.mxu0 0.0
      %3978 = vmatprep.subr.mxu0 0.0
      %3979 = vmatpush1.msra.mxu0 0.0
      %3980 = vmatprep.subr.mxu0 0.0
      %3981 = vmatpush1.msra.mxu0 0.0
      %3982 = vmatprep.subr.mxu0 0.0
      %3983 = vmatpush1.msra.mxu0 0.0
      %3984 = vmatprep.subr.mxu0 0.0
      %3985 = vmatpush1.msra.mxu0 0.0
      %3986 = vmatprep.subr.mxu0 0.0
      %3987 = vmatpush1.msra.mxu0 0.0
      %3988 = vmatprep.subr.mxu0 0.0
      %3989 = vmatpush1.msra.mxu0 0.0
      %3990 = vmatprep.subr.mxu0 0.0
      %3991 = vmatpush1.msra.mxu0 0.0
      %3992 = vmatprep.subr.mxu0 0.0
      %3993 = vmatpush1.msra.mxu0 0.0
      %3994 = vmatprep.subr.mxu0 0.0
      %3995 = vmatpush1.msra.mxu0 0.0
      %3996 = vmatprep.subr.mxu0 0.0
      %3997 = vmatpush1.msra.mxu0 0.0
      %3998 = vmatprep.mubr.f32.mxu0 0.0
      %3999 = vmatmul.mubr.f32.gmra.mrb[0].mxu0 %v3867
      %v4000 = vpop.f32.mrb[0].mxu0
      %v4001 = vadd.f32 0.0, %v4000
      %v4002 = vpop.f32.mrb[0].mxu0
      %4003 = vmatprep.mubr.f32.mxu0 0.0
      %4004 = vmatmul.mubr.f32.gmra.mrb[0].mxu0 %v3869
      %v4005 = vpop.f32.mrb[0].mxu0
      %v4006 = vadd.f32 0.0, %v4005
      %v4007 = vpop.f32.mrb[0].mxu0
      %4008 = vmatprep.mubr.f32.mxu0 0.0
      %4009 = vmatmul.mubr.f32.gmra.mrb[0].mxu0 %v3871
      %v4010 = vpop.f32.mrb[0].mxu0
      %v4011 = vadd.f32 0.0, %v4010
      %v4012 = vpop.f32.mrb[0].mxu0
      %4013 = vmatprep.mubr.f32.mxu0 0.0
      %4014 = vmatmul.mubr.f32.gmra.mrb[0].mxu0 %v3873
      %v4015 = vpop.f32.mrb[0].mxu0
      %v4016 = vadd.f32 0.0, %v4015
      %v4017 = vpop.f32.mrb[0].mxu0
      %4018 = vmatprep.mubr.f32.mxu0 0.0
      %4019 = vmatmul.mubr.f32.gmra.mrb[0].mxu0 %v3875
      %v4020 = vpop.f32.mrb[0].mxu0
      %v4021 = vadd.f32 0.0, %v4020
      %v4022 = vpop.f32.mrb[0].mxu0
      %4023 = vmatprep.mubr.f32.mxu0 0.0
      %4024 = vmatmul.mubr.f32.gmra.mrb[0].mxu0 %v3877
      %v4025 = vpop.f32.mrb[0].mxu0
      %v4026 = vadd.f32 0.0, %v4025
      %v4027 = vpop.f32.mrb[0].mxu0
      %4028 = vmatprep.mubr.f32.mxu0 0.0
      %4029 = vmatmul.mubr.f32.gmra.mrb[0].mxu0 %v3879
      %v4030 = vpop.f32.mrb[0].mxu0
      %v4031 = vadd.f32 0.0, %v4030
      %v4032 = vpop.f32.mrb[0].mxu0
      %4033 = vmatprep.mubr.f32.mxu0 0.0
      %4034 = vmatmul.mubr.f32.gmra.mrb[0].mxu0 %v3881
      %v4035 = vpop.f32.mrb[0].mxu0
      %v4036 = vadd.f32 0.0, %v4035
      %v4037 = vpop.f32.mrb[0].mxu0
      %4038 = vmatprep.mubr.f32.mxu0 0.0
      %4039 = vmatmul.mubr.f32.gmra.mrb[0].mxu0 %v3883
      %v4040 = vpop.f32.mrb[0].mxu0
      %v4041 = vadd.f32 0.0, %v4040
      %v4042 = vpop.f32.mrb[0].mxu0
      %4043 = vmatprep.mubr.f32.mxu0 0.0
      %4044 = vmatmul.mubr.f32.gmra.mrb[0].mxu0 %v3885
      %v4045 = vpop.f32.mrb[0].mxu0
      %v4046 = vadd.f32 0.0, %v4045
      %v4047 = vpop.f32.mrb[0].mxu0
      %4048 = vmatprep.mubr.f32.mxu0 0.0
      %4049 = vmatmul.mubr.f32.gmra.mrb[0].mxu0 %v3887
      %v4050 = vpop.f32.mrb[0].mxu0
      %v4051 = vadd.f32 0.0, %v4050
      %v4052 = vpop.f32.mrb[0].mxu0
      %4053 = vmatprep.mubr.f32.mxu0 0.0
      %4054 = vmatmul.mubr.f32.gmra.mrb[0].mxu0 %v3889
      %v4055 = vpop.f32.mrb[0].mxu0
      %v4056 = vadd.f32 0.0, %v4055
      %v4057 = vpop.f32.mrb[0].mxu0
      %4058 = vmatprep.mubr.f32.mxu0 0.0
      %4059 = vmatmul.mubr.f32.gmra.mrb[0].mxu0 %v3891
      %v4060 = vpop.f32.mrb[0].mxu0
      %v4061 = vadd.f32 0.0, %v4060
      %v4062 = vpop.f32.mrb[0].mxu0
      %4063 = vmatprep.mubr.f32.mxu0 0.0
      %4064 = vmatmul.mubr.f32.gmra.mrb[0].mxu0 %v3893
      %v4065 = vpop.f32.mrb[0].mxu0
      %v4066 = vadd.f32 0.0, %v4065
      %v4067 = vpop.f32.mrb[0].mxu0
      %4068 = vmatprep.mubr.f32.mxu0 0.0
      %4069 = vmatmul.mubr.f32.gmra.mrb[0].mxu0 %v3895
      %v4070 = vpop.f32.mrb[0].mxu0
      %v4071 = vadd.f32 0.0, %v4070
      %v4072 = vpop.f32.mrb[0].mxu0
      %4073 = vmatprep.mubr.f32.mxu0 0.0
      %4074 = vmatmul.mubr.f32.gmra.mrb[0].mxu0 %v3897
      %v4075 = vpop.f32.mrb[0].mxu0
      %v4076 = vadd.f32 0.0, %v4075
      %v4077 = vpop.f32.mrb[0].mxu0
      %4078 = vmatprep.mubr.f32.mxu0 0.0
      %4079 = vmatmul.mubr.f32.gmra.mrb[0].mxu0 %v3899
      %v4080 = vpop.f32.mrb[0].mxu0
      %v4081 = vadd.f32 0.0, %v4080
      %v4082 = vpop.f32.mrb[0].mxu0
      %4083 = vmatprep.mubr.f32.mxu0 0.0
      %4084 = vmatmul.mubr.f32.gmra.mrb[0].mxu0 %v3901
      %v4085 = vpop.f32.mrb[0].mxu0
      %v4086 = vadd.f32 0.0, %v4085
      %v4087 = vpop.f32.mrb[0].mxu0
      %4088 = vmatprep.mubr.f32.mxu0 0.0
      %4089 = vmatmul.mubr.f32.gmra.mrb[0].mxu0 %v3903
      %v4090 = vpop.f32.mrb[0].mxu0
      %v4091 = vadd.f32 0.0, %v4090
      %v4092 = vpop.f32.mrb[0].mxu0
      %4093 = vmatprep.mubr.f32.mxu0 0.0
      %4094 = vmatmul.mubr.f32.gmra.mrb[0].mxu0 %v3905
      %v4095 = vpop.f32.mrb[0].mxu0
      %v4096 = vadd.f32 0.0, %v4095
      %v4097 = vpop.f32.mrb[0].mxu0
      %4098 = vmatprep.mubr.f32.mxu0 0.0
      %4099 = vmatmul.mubr.f32.gmra.mrb[0].mxu0 %v3907
      %v4100 = vpop.f32.mrb[0].mxu0
      %v4101 = vadd.f32 0.0, %v4100
      %v4102 = vpop.f32.mrb[0].mxu0
      %4103 = vmatprep.mubr.f32.mxu0 0.0
      %4104 = vmatmul.mubr.f32.gmra.mrb[0].mxu0 %v3909
      %v4105 = vpop.f32.mrb[0].mxu0
      %v4106 = vadd.f32 0.0, %v4105
      %v4107 = vpop.f32.mrb[0].mxu0
      %4108 = vmatprep.mubr.f32.mxu0 0.0
      %4109 = vmatmul.mubr.f32.gmra.mrb[0].mxu0 %v3911
      %v4110 = vpop.f32.mrb[0].mxu0
      %v4111 = vadd.f32 0.0, %v4110
      %v4112 = vpop.f32.mrb[0].mxu0
      %4113 = vmatprep.mubr.f32.mxu0 0.0
      %4114 = vmatmul.mubr.f32.gmra.mrb[0].mxu0 %v3913
      %v4115 = vpop.f32.mrb[0].mxu0
      %v4116 = vadd.f32 0.0, %v4115
      %v4117 = vpop.f32.mrb[0].mxu0
      %4118 = vmatprep.mubr.f32.mxu0 0.0
      %4119 = vmatmul.mubr.f32.gmra.mrb[0].mxu0 %v3915
      %v4120 = vpop.f32.mrb[0].mxu0
      %v4121 = vadd.f32 0.0, %v4120
      %v4122 = vpop.f32.mrb[0].mxu0
      %4123 = vmatprep.mubr.f32.mxu0 0.0
      %4124 = vmatmul.mubr.f32.gmra.mrb[0].mxu0 %v3917
      %v4125 = vpop.f32.mrb[0].mxu0
      %v4126 = vadd.f32 0.0, %v4125
      %v4127 = vpop.f32.mrb[0].mxu0
      %4128 = vmatprep.mubr.f32.mxu0 0.0
      %4129 = vmatmul.mubr.f32.gmra.mrb[0].mxu0 %v3919
      %v4130 = vpop.f32.mrb[0].mxu0
      %v4131 = vadd.f32 0.0, %v4130
      %v4132 = vpop.f32.mrb[0].mxu0
      %4133 = vmatprep.mubr.f32.mxu0 0.0
      %4134 = vmatmul.mubr.f32.gmra.mrb[0].mxu0 %v3921
      %v4135 = vpop.f32.mrb[0].mxu0
      %v4136 = vadd.f32 0.0, %v4135
      %v4137 = vpop.f32.mrb[0].mxu0
      %4138 = vmatprep.mubr.f32.mxu0 0.0
      %4139 = vmatmul.mubr.f32.gmra.mrb[0].mxu0 %v3923
      %v4140 = vpop.f32.mrb[0].mxu0
      %v4141 = vadd.f32 0.0, %v4140
      %v4142 = vpop.f32.mrb[0].mxu0
      %4143 = vmatprep.mubr.f32.mxu0 0.0
      %4144 = vmatmul.mubr.f32.gmra.mrb[0].mxu0 %v3925
      %v4145 = vpop.f32.mrb[0].mxu0
      %v4146 = vadd.f32 0.0, %v4145
      %v4147 = vpop.f32.mrb[0].mxu0
      %4148 = vmatprep.mubr.f32.mxu0 0.0
      %4149 = vmatmul.mubr.f32.gmra.mrb[0].mxu0 %v3927
      %v4150 = vpop.f32.mrb[0].mxu0
      %v4151 = vadd.f32 0.0, %v4150
      %v4152 = vpop.f32.mrb[0].mxu0
      %4153 = vmatprep.mubr.f32.mxu0 0.0
      %4154 = vmatmul.mubr.f32.gmra.mrb[0].mxu0 %v3929
      %v4155 = vpop.f32.mrb[0].mxu0
      %v4156 = vadd.f32 0.0, %v4155
      %v4157 = vpop.f32.mrb[0].mxu0
      %4158 = vdwg.mxu0
      %v4159 = vadd.f32 %v3704, %v4001
      %v4160 = vadd.f32 %v3705, %v4006
      %v4161 = vadd.f32 %v3706, %v4011
      %v4162 = vadd.f32 %v3707, %v4016
      %v4163 = vadd.f32 %v3708, %v4021
      %v4164 = vadd.f32 %v3709, %v4026
      %v4165 = vadd.f32 %v3710, %v4031
      %v4166 = vadd.f32 %v3711, %v4036
      %v4167 = vadd.f32 %v3712, %v4041
      %v4168 = vadd.f32 %v3713, %v4046
      %v4169 = vadd.f32 %v3714, %v4051
      %v4170 = vadd.f32 %v3715, %v4056
      %v4171 = vadd.f32 %v3716, %v4061
      %v4172 = vadd.f32 %v3717, %v4066
      %v4173 = vadd.f32 %v3718, %v4071
      %v4174 = vadd.f32 %v3719, %v4076
      %v4175 = vadd.f32 %v3720, %v4081
      %v4176 = vadd.f32 %v3721, %v4086
      %v4177 = vadd.f32 %v3722, %v4091
      %v4178 = vadd.f32 %v3723, %v4096
      %v4179 = vadd.f32 %v3724, %v4101
      %v4180 = vadd.f32 %v3725, %v4106
      %v4181 = vadd.f32 %v3726, %v4111
      %v4182 = vadd.f32 %v3727, %v4116
      %v4183 = vadd.f32 %v3728, %v4121
      %v4184 = vadd.f32 %v3729, %v4126
      %v4185 = vadd.f32 %v3730, %v4131
      %v4186 = vadd.f32 %v3731, %v4136
      %v4187 = vadd.f32 %v3732, %v4141
      %v4188 = vadd.f32 %v3733, %v4146
      %v4189 = vadd.f32 %v3734, %v4151
      %v4190 = vadd.f32 %v3735, %v4156
      %4191 = vst.msk [vmem:[%s262] sm:$0xff] %vm668, 0.0
      %4192 = vst.msk [vmem:[%s262 + $0x8] sm:$0xff] %vm668, 0.0
      %vm4193 = vcmask 24576
      %4194 = vst.msk [vmem:[%s262 + $0x10] sm:$0x1] %vm4193, 0.0
      %4195 = vst.msk [vmem:[%s262 + $0x11] sm:$0xff] %vm668, %v4159
      %4196 = vst.msk [vmem:[%s262 + $0x19] sm:$0xff] %vm668, %v4160
      %4197 = vst.msk [vmem:[%s262 + $0x21] sm:$0xff] %vm668, %v4161
      %4198 = vst.msk [vmem:[%s262 + $0x29] sm:$0xff] %vm668, %v4162
      %4199 = vst.msk [vmem:[%s262 + $0x31] sm:$0xff] %vm668, %v4163
      %4200 = vst.msk [vmem:[%s262 + $0x39] sm:$0xff] %vm668, %v4164
      %4201 = vst.msk [vmem:[%s262 + $0x41] sm:$0xff] %vm668, %v4165
      %4202 = vst.msk [vmem:[%s262 + $0x49] sm:$0xff] %vm668, %v4166
      %4203 = vst.msk [vmem:[%s262 + $0x51] sm:$0xff] %vm668, %v4167
      %4204 = vst.msk [vmem:[%s262 + $0x59] sm:$0xff] %vm668, %v4168
      %4205 = vst.msk [vmem:[%s262 + $0x61] sm:$0xff] %vm668, %v4169
      %4206 = vst.msk [vmem:[%s262 + $0x69] sm:$0xff] %vm668, %v4170
      %4207 = vst.msk [vmem:[%s262 + $0x71] sm:$0xff] %vm668, %v4171
      %4208 = vst.msk [vmem:[%s262 + $0x79] sm:$0xff] %vm668, %v4172
      %4209 = vst.msk [vmem:[%s262 + $0x81] sm:$0xff] %vm668, %v4173
      %4210 = vst.msk [vmem:[%s262 + $0x89] sm:$0xff] %vm668, %v4174
      %4211 = vst.msk [vmem:[%s262 + $0x91] sm:$0xff] %vm668, %v4175
      %4212 = vst.msk [vmem:[%s262 + $0x99] sm:$0xff] %vm668, %v4176
      %4213 = vst.msk [vmem:[%s262 + $0xa1] sm:$0xff] %vm668, %v4177
      %4214 = vst.msk [vmem:[%s262 + $0xa9] sm:$0xff] %vm668, %v4178
      %4215 = vst.msk [vmem:[%s262 + $0xb1] sm:$0xff] %vm668, %v4179
      %4216 = vst.msk [vmem:[%s262 + $0xb9] sm:$0xff] %vm668, %v4180
      %4217 = vst.msk [vmem:[%s262 + $0xc1] sm:$0xff] %vm668, %v4181
      %4218 = vst.msk [vmem:[%s262 + $0xc9] sm:$0xff] %vm668, %v4182
      %4219 = vst.msk [vmem:[%s262 + $0xd1] sm:$0xff] %vm668, %v4183
      %4220 = vst.msk [vmem:[%s262 + $0xd9] sm:$0xff] %vm668, %v4184
      %4221 = vst.msk [vmem:[%s262 + $0xe1] sm:$0xff] %vm668, %v4185
      %4222 = vst.msk [vmem:[%s262 + $0xe9] sm:$0xff] %vm668, %v4186
      %4223 = vst.msk [vmem:[%s262 + $0xf1] sm:$0xff] %vm668, %v4187
      %4224 = vst.msk [vmem:[%s262 + $0xf9] sm:$0xff] %vm668, %v4188
      %4225 = vst.msk [vmem:[%s262 + $0x101] sm:$0xff] %vm668, %v4189
      %4226 = vst.msk [vmem:[%s262 + $0x109] sm:$0xff] %vm668, %v4190
      %4227 = vst.msk [vmem:[%s262 + $0x111] sm:$0xff] %vm668, 0.0
      %4228 = vst.msk [vmem:[%s262 + $0x119] sm:$0xff] %vm668, 0.0
      %4229 = vst.msk [vmem:[%s262 + $0x121] sm:$0x1] %vm4193, 0.0
      %v4230 = vsel %vm668, %v4159, 0.0
      %v4231 = vsel %vm668, %v4160, 0.0
      %v4232 = vadd.f32 %v4230, %v4231
      %v4233 = vsel %vm668, %v4161, 0.0
      %v4234 = vadd.f32 %v4232, %v4233
      %v4235 = vsel %vm668, %v4162, 0.0
      %v4236 = vadd.f32 %v4234, %v4235
      %v4237 = vsel %vm668, %v4163, 0.0
      %v4238 = vadd.f32 %v4236, %v4237
      %v4239 = vsel %vm668, %v4164, 0.0
      %v4240 = vadd.f32 %v4238, %v4239
      %v4241 = vsel %vm668, %v4165, 0.0
      %v4242 = vadd.f32 %v4240, %v4241
      %v4243 = vsel %vm668, %v4166, 0.0
      %v4244 = vadd.f32 %v4242, %v4243
      %v4245 = vsel %vm668, %v4167, 0.0
      %v4246 = vadd.f32 %v4244, %v4245
      %v4247 = vsel %vm668, %v4168, 0.0
      %v4248 = vadd.f32 %v4246, %v4247
      %v4249 = vsel %vm668, %v4169, 0.0
      %v4250 = vadd.f32 %v4248, %v4249
      %v4251 = vsel %vm668, %v4170, 0.0
      %v4252 = vadd.f32 %v4250, %v4251
      %v4253 = vsel %vm668, %v4171, 0.0
      %v4254 = vadd.f32 %v4252, %v4253
      %v4255 = vsel %vm668, %v4172, 0.0
      %v4256 = vadd.f32 %v4254, %v4255
      %v4257 = vsel %vm668, %v4173, 0.0
      %v4258 = vadd.f32 %v4256, %v4257
      %v4259 = vsel %vm668, %v4174, 0.0
      %v4260 = vadd.f32 %v4258, %v4259
      %v4261 = vsel %vm668, %v4175, 0.0
      %v4262 = vadd.f32 %v4260, %v4261
      %v4263 = vsel %vm668, %v4176, 0.0
      %v4264 = vadd.f32 %v4262, %v4263
      %v4265 = vsel %vm668, %v4177, 0.0
      %v4266 = vadd.f32 %v4264, %v4265
      %v4267 = vsel %vm668, %v4178, 0.0
      %v4268 = vadd.f32 %v4266, %v4267
      %v4269 = vsel %vm668, %v4179, 0.0
      %v4270 = vadd.f32 %v4268, %v4269
      %v4271 = vsel %vm668, %v4180, 0.0
      %v4272 = vadd.f32 %v4270, %v4271
      %v4273 = vsel %vm668, %v4181, 0.0
      %v4274 = vadd.f32 %v4272, %v4273
      %v4275 = vsel %vm668, %v4182, 0.0
      %v4276 = vadd.f32 %v4274, %v4275
      %v4277 = vsel %vm668, %v4183, 0.0
      %v4278 = vadd.f32 %v4276, %v4277
      %v4279 = vsel %vm668, %v4184, 0.0
      %v4280 = vadd.f32 %v4278, %v4279
      %v4281 = vsel %vm668, %v4185, 0.0
      %v4282 = vadd.f32 %v4280, %v4281
      %v4283 = vsel %vm668, %v4186, 0.0
      %v4284 = vadd.f32 %v4282, %v4283
      %v4285 = vsel %vm668, %v4187, 0.0
      %v4286 = vadd.f32 %v4284, %v4285
      %v4287 = vsel %vm668, %v4188, 0.0
      %v4288 = vadd.f32 %v4286, %v4287
      %v4289 = vsel %vm668, %v4189, 0.0
      %v4290 = vadd.f32 %v4288, %v4289
      %v4291 = vsel %vm668, %v4190, 0.0
      %v4292 = vadd.f32 %v4290, %v4291
      %v4293 = vrot.slane %v4292, 4
      %v4294 = vadd.f32 %v4292, %v4293
      %v4295 = vrot.slane %v4294, 2
      %v4296 = vadd.f32 %v4294, %v4295
      %v4297 = vrot.slane %v4296, 1
      %v4298 = vadd.f32 %v4296, %v4297
      %4299 = vst.msk [vmem:[%s265] sm:$0x1] %vm4193, %v4298
      %v4300 = vmul.f32 %v4159, %v4159
      %v4301 = vmul.f32 %v4160, %v4160
      %v4302 = vmul.f32 %v4161, %v4161
      %v4303 = vmul.f32 %v4162, %v4162
      %v4304 = vmul.f32 %v4163, %v4163
      %v4305 = vmul.f32 %v4164, %v4164
      %v4306 = vmul.f32 %v4165, %v4165
      %v4307 = vmul.f32 %v4166, %v4166
      %v4308 = vmul.f32 %v4167, %v4167
      %v4309 = vmul.f32 %v4168, %v4168
      %v4310 = vmul.f32 %v4169, %v4169
      %v4311 = vmul.f32 %v4170, %v4170
      %v4312 = vmul.f32 %v4171, %v4171
      %v4313 = vmul.f32 %v4172, %v4172
      %v4314 = vmul.f32 %v4173, %v4173
      %v4315 = vmul.f32 %v4174, %v4174
      %v4316 = vmul.f32 %v4175, %v4175
      %v4317 = vmul.f32 %v4176, %v4176
      %v4318 = vmul.f32 %v4177, %v4177
      %v4319 = vmul.f32 %v4178, %v4178
      %v4320 = vmul.f32 %v4179, %v4179
      %v4321 = vmul.f32 %v4180, %v4180
      %v4322 = vmul.f32 %v4181, %v4181
      %v4323 = vmul.f32 %v4182, %v4182
      %v4324 = vmul.f32 %v4183, %v4183
      %v4325 = vmul.f32 %v4184, %v4184
      %v4326 = vmul.f32 %v4185, %v4185
      %v4327 = vmul.f32 %v4186, %v4186
      %v4328 = vmul.f32 %v4187, %v4187
      %v4329 = vmul.f32 %v4188, %v4188
      %v4330 = vmul.f32 %v4189, %v4189
      %v4331 = vmul.f32 %v4190, %v4190
      %v4332 = vsel %vm668, %v4300, 0.0
      %v4333 = vsel %vm668, %v4301, 0.0
      %v4334 = vadd.f32 %v4332, %v4333
      %v4335 = vsel %vm668, %v4302, 0.0
      %v4336 = vadd.f32 %v4334, %v4335
      %v4337 = vsel %vm668, %v4303, 0.0
      %v4338 = vadd.f32 %v4336, %v4337
      %v4339 = vsel %vm668, %v4304, 0.0
      %v4340 = vadd.f32 %v4338, %v4339
      %v4341 = vsel %vm668, %v4305, 0.0
      %v4342 = vadd.f32 %v4340, %v4341
      %v4343 = vsel %vm668, %v4306, 0.0
      %v4344 = vadd.f32 %v4342, %v4343
      %v4345 = vsel %vm668, %v4307, 0.0
      %v4346 = vadd.f32 %v4344, %v4345
      %v4347 = vsel %vm668, %v4308, 0.0
      %v4348 = vadd.f32 %v4346, %v4347
      %v4349 = vsel %vm668, %v4309, 0.0
      %v4350 = vadd.f32 %v4348, %v4349
      %v4351 = vsel %vm668, %v4310, 0.0
      %v4352 = vadd.f32 %v4350, %v4351
      %v4353 = vsel %vm668, %v4311, 0.0
      %v4354 = vadd.f32 %v4352, %v4353
      %v4355 = vsel %vm668, %v4312, 0.0
      %v4356 = vadd.f32 %v4354, %v4355
      %v4357 = vsel %vm668, %v4313, 0.0
      %v4358 = vadd.f32 %v4356, %v4357
      %v4359 = vsel %vm668, %v4314, 0.0
      %v4360 = vadd.f32 %v4358, %v4359
      %v4361 = vsel %vm668, %v4315, 0.0
      %v4362 = vadd.f32 %v4360, %v4361
      %v4363 = vsel %vm668, %v4316, 0.0
      %v4364 = vadd.f32 %v4362, %v4363
      %v4365 = vsel %vm668, %v4317, 0.0
      %v4366 = vadd.f32 %v4364, %v4365
      %v4367 = vsel %vm668, %v4318, 0.0
      %v4368 = vadd.f32 %v4366, %v4367
      %v4369 = vsel %vm668, %v4319, 0.0
      %v4370 = vadd.f32 %v4368, %v4369
      %v4371 = vsel %vm668, %v4320, 0.0
      %v4372 = vadd.f32 %v4370, %v4371
      %v4373 = vsel %vm668, %v4321, 0.0
      %v4374 = vadd.f32 %v4372, %v4373
      %v4375 = vsel %vm668, %v4322, 0.0
      %v4376 = vadd.f32 %v4374, %v4375
      %v4377 = vsel %vm668, %v4323, 0.0
      %v4378 = vadd.f32 %v4376, %v4377
      %v4379 = vsel %vm668, %v4324, 0.0
      %v4380 = vadd.f32 %v4378, %v4379
      %v4381 = vsel %vm668, %v4325, 0.0
      %v4382 = vadd.f32 %v4380, %v4381
      %v4383 = vsel %vm668, %v4326, 0.0
      %v4384 = vadd.f32 %v4382, %v4383
      %v4385 = vsel %vm668, %v4327, 0.0
      %v4386 = vadd.f32 %v4384, %v4385
      %v4387 = vsel %vm668, %v4328, 0.0
      %v4388 = vadd.f32 %v4386, %v4387
      %v4389 = vsel %vm668, %v4329, 0.0
      %v4390 = vadd.f32 %v4388, %v4389
      %v4391 = vsel %vm668, %v4330, 0.0
      %v4392 = vadd.f32 %v4390, %v4391
      %v4393 = vsel %vm668, %v4331, 0.0
      %v4394 = vadd.f32 %v4392, %v4393
      %v4395 = vrot.slane %v4394, 4
      %v4396 = vadd.f32 %v4394, %v4395
      %v4397 = vrot.slane %v4396, 2
      %v4398 = vadd.f32 %v4396, %v4397
      %v4399 = vrot.slane %v4398, 1
      %v4400 = vadd.f32 %v4398, %v4399
      %4401 = vst.msk [vmem:[%s268] sm:$0x1] %vm4193, %v4400
      %p4402 = scmp.lt.s32.totalorder %s18, 1
      %s4403 = scalar_select %p4402, %s18, 1
      %s4404 = smul.addr %s4403, 37
      %s4405 = smul.addr %s4404, 8
      %s4406 = scalar_lea.vmem %s4, %s4405
      %p4407 = scmp.lt.s32.totalorder %s18, 1
      %s4408 = scalar_select %p4407, %s18, 1
      %s4409 = scalar_lea.vmem %s5, %s4408
      %p4410 = scmp.lt.s32.totalorder %s18, 1
      %s4411 = scalar_select %p4410, %s18, 1
      %s4412 = scalar_lea.vmem %s6, %s4411
      // Predicated region
      $region37: #{residual_block.3} parent=35 // pred_check
        %p4413 = pneg %p125
      $region38: #{residual_block.3} parent=35 // pred_check_branch
        %4415 = sbr.rel (%p4413) target = $region40
      $region39: #{residual_block.3} parent=35 // pred_region
        _
      $region40: #{residual_block.3} parent=35 // pred_fallthru
        _
      // Predicated region
      $region41: #{residual_block.3} parent=35 // pred_check
        %p4416 = pneg %p151
      $region42: #{residual_block.3} parent=35 // pred_check_branch
        %4418 = sbr.rel (%p4416) target = $region44
      $region43: #{residual_block.3} parent=35 // pred_region
        _
      $region44: #{residual_block.3} parent=35 // pred_fallthru
        _
      // Predicated region
      $region45: #{residual_block.3} parent=35 // pred_check
        %p4419 = pneg %p177
      $region46: #{residual_block.3} parent=35 // pred_check_branch
        %4421 = sbr.rel (%p4419) target = $region48
      $region47: #{residual_block.3} parent=35 // pred_region
        _
      $region48: #{residual_block.3} parent=35 // pred_fallthru
        _
    $region36: #{residual_block.3} parent=5 // pred_fallthru
      _
    %p4422 = scmp.le.s32.totalorder 2, %s13
    // Predicated region
    $region49: #{residual_block.3} parent=5 // pred_check
      %p4423 = pneg %p4422
    $region50: #{residual_block.3} parent=5 // pred_check_branch
      %4425 = sbr.rel (%p4423) target = $region52
    $region51: #{residual_block.3} parent=5 // pred_region
      %s4426 = ssub.s32 %s13, 2
      // Predicated region
      $region53: #{residual_block.3} parent=51 // pred_check
        %p4427 = pneg %p131
      $region54: #{residual_block.3} parent=51 // pred_check_branch
        %4429 = sbr.rel (%p4427) target = $region56
      $region55: #{residual_block.3} parent=51 // pred_region
        %p4430 = scmp.lt.s32.totalorder %s19, 1
        %s4431 = scalar_select %p4430, %s19, 1
        %s4432 = smul.addr %s4431, 37
        %s4433 = smul.addr %s4432, 8
        %s4434 = scalar_lea.vmem %s4, %s4433
      $region56: #{residual_block.3} parent=51 // pred_fallthru
        _
      // Predicated region
      $region57: #{residual_block.3} parent=51 // pred_check
        %p4435 = pneg %p157
      $region58: #{residual_block.3} parent=51 // pred_check_branch
        %4437 = sbr.rel (%p4435) target = $region60
      $region59: #{residual_block.3} parent=51 // pred_region
        %p4438 = scmp.lt.s32.totalorder %s19, 1
        %s4439 = scalar_select %p4438, %s19, 1
        %s4440 = scalar_lea.vmem %s5, %s4439
      $region60: #{residual_block.3} parent=51 // pred_fallthru
        _
      // Predicated region
      $region61: #{residual_block.3} parent=51 // pred_check
        %p4441 = pneg %p183
      $region62: #{residual_block.3} parent=51 // pred_check_branch
        %4443 = sbr.rel (%p4441) target = $region64
      $region63: #{residual_block.3} parent=51 // pred_region
        %p4444 = scmp.lt.s32.totalorder %s19, 1
        %s4445 = scalar_select %p4444, %s19, 1
        %s4446 = scalar_lea.vmem %s6, %s4445
      $region64: #{residual_block.3} parent=51 // pred_fallthru
        _
    $region52: #{residual_block.3} parent=5 // pred_fallthru
      _
  $region6: #{residual_block.3} parent=0 // loop_footer
    %s17 = sadd.s32 1, %s13
  $region7: #{residual_block.3} parent=0 // loop_footer_branch
    %12 = sbr.rel target = $region3
  $region8: #{residual_block.3} parent=0 // loop_exit
    _

// kernel: residual_block.4
$region0: #{residual_block.4}
  #allocation0 [shape = 'u32[]', space=smem, size = 0x4, offset = 0x4, fixed_abs, tag = 'smem constant byte address 0x4 - core index']
  #allocation1 [shape = 'u32[144,128]{1,0:T(1,128)}', space=vmem, size = 0x12000, scoped, tag = 'internal scratch']
  %s0 = inlined_call_operand.vmem [shape: f32[2,290,4], index: 0, kind: input, shape index: {}]
  %s1 = inlined_call_operand.vmem [shape: f32[1,4], index: 1, kind: input, shape index: {}]
  %s2 = inlined_call_operand.vmem [shape: f32[1,4], index: 2, kind: input, shape index: {}]
  %s3 = inlined_call_operand.vmem [shape: f32[290,1], index: 3, kind: input, shape index: {}]
  %s4 = inlined_call_operand.vmem [shape: f32[36,4], index: 4, kind: input, shape index: {}]
  %s5 = inlined_call_operand.vmem [shape: f32[256,1], index: 5, kind: input, shape index: {}]
  %s6 = inlined_call_operand.vmem [shape: f32[256,1], index: 6, kind: input, shape index: {}]
  %s7 = inlined_call_operand.vmem [shape: f32[2,256,4], index: 7, kind: output, shape index: {0}]
  %s8 = inlined_call_operand.vmem [shape: f32[2,1,4], index: 8, kind: output, shape index: {1}]
  %s9 = inlined_call_operand.vmem [shape: f32[2,1,4], index: 9, kind: output, shape index: {2}]
  %10 = xla_tuple %s7, %s8, %s9
  %s11 = sld [smem:[#allocation0]]
  $region77: #{residual_block.4} parent=0
    _
  %s13 = ssub.s32 1, %s11
  %s14 = scalar_select 0, %s13, %s11
  loop: start=0, step=1, limit=4
  $region2: #{residual_block.4} parent=0 // loop_pre_header
    _
  $region3: #{residual_block.4} parent=0 // loop_header
    %s16 = sphi 0, %s20
    %p17 = scmp.ge.s32.totalorder %s16, 4
    %s26 = sphi 0, %s28
    %s29 = sphi 0, %s26
    %s30 = sphi 0, %s29
    %s46 = sphi 0, %s30
    %s50 = sphi 0, %s50
    %s52 = sphi 0, %s50
    %s53 = sphi 0, %s52
    %s67 = sphi 0, %s53
    %s71 = sphi 0, %s71
    %s73 = sphi 0, %s71
    %s74 = sphi 0, %s73
    %s88 = sphi 0, %s74
    %s92 = sphi 0, %s92
    %s94 = sphi 0, %s92
    %s95 = sphi 0, %s94
    %s109 = sphi 0, %s95
    %s113 = sphi 0, %s113
    %s115 = sphi 0, %s113
    %s116 = sphi 0, %s115
    %s130 = sphi 0, %s116
    %s134 = sphi 0, %s134
    %s136 = sphi 0, %s134
    %s137 = sphi 0, %s136
    %s151 = sphi 0, %s137
    %s155 = sphi 0, %s155
    %s157 = sphi 0, %s155
    %s158 = sphi 0, %s157
    %s172 = sphi 0, %s158
    %s178 = sphi 0, %s180
    %s181 = sphi 0, %s178
    %s182 = sphi 0, %s181
    %s198 = sphi 0, %s182
    %s204 = sphi 0, %s206
    %s207 = sphi 0, %s204
    %s208 = sphi 0, %s207
    %s224 = sphi 0, %s208
    %s230 = sphi 0, %s232
    %s233 = sphi 0, %s230
    %s234 = sphi 0, %s233
    %s250 = sphi 0, %s234
  $region4: #{residual_block.4} parent=0 // loop_header_branch
    %19 = sbr.rel (%p17) target = $region8
  $region5: #{residual_block.4} parent=0 // loop_body
    %s21 = ssub.s32 %s16, 1
    %s22 = ssub.s32 %s16, 2
    %s23 = sadd.s32 %s16, 1
    %s24 = ssub.s32 %s16, %s23
    %p25 = scmp.eq.s32.totalorder %s24, 0
    %s27 = sadd.s32 %s26, 1
    %s28 = scalar_select %p25, %s26, %s27
    %p31 = pneg %p25
    %p32 = scmp.eq.s32.totalorder %s16, 1
    %p33 = por %p31, %p32
    %p34 = scmp.ne.s32.totalorder %s26, %s29
    %p35 = scmp.eq.s32.totalorder %s16, 0
    %p36 = por %p34, %p35
    %p37 = scmp.ne.s32.totalorder %s26, %s29
    %p38 = scmp.eq.s32.totalorder %s21, 1
    %p39 = por %p37, %p38
    %p40 = scmp.ne.s32.totalorder %s29, %s30
    %p41 = scmp.eq.s32.totalorder %s21, 0
    %p42 = por %p40, %p41
    %p43 = scmp.ne.s32.totalorder %s29, %s30
    %p44 = scmp.eq.s32.totalorder %s22, 1
    %p45 = por %p43, %p44
    %p47 = scmp.ne.s32.totalorder %s30, %s46
    %p48 = scmp.eq.s32.totalorder %s22, 0
    %p49 = por %p47, %p48
    %s51 = sadd.s32 %s50, 1
    %p54 = scmp.eq.s32.totalorder %s16, 1
    %p55 = scmp.ne.s32.totalorder %s50, %s52
    %p56 = scmp.eq.s32.totalorder %s16, 0
    %p57 = por %p55, %p56
    %p58 = scmp.ne.s32.totalorder %s50, %s52
    %p59 = scmp.eq.s32.totalorder %s21, 1
    %p60 = por %p58, %p59
    %p61 = scmp.ne.s32.totalorder %s52, %s53
    %p62 = scmp.eq.s32.totalorder %s21, 0
    %p63 = por %p61, %p62
    %p64 = scmp.ne.s32.totalorder %s52, %s53
    %p65 = scmp.eq.s32.totalorder %s22, 1
    %p66 = por %p64, %p65
    %p68 = scmp.ne.s32.totalorder %s53, %s67
    %p69 = scmp.eq.s32.totalorder %s22, 0
    %p70 = por %p68, %p69
    %s72 = sadd.s32 %s71, 1
    %p75 = scmp.eq.s32.totalorder %s16, 1
    %p76 = scmp.ne.s32.totalorder %s71, %s73
    %p77 = scmp.eq.s32.totalorder %s16, 0
    %p78 = por %p76, %p77
    %p79 = scmp.ne.s32.totalorder %s71, %s73
    %p80 = scmp.eq.s32.totalorder %s21, 1
    %p81 = por %p79, %p80
    %p82 = scmp.ne.s32.totalorder %s73, %s74
    %p83 = scmp.eq.s32.totalorder %s21, 0
    %p84 = por %p82, %p83
    %p85 = scmp.ne.s32.totalorder %s73, %s74
    %p86 = scmp.eq.s32.totalorder %s22, 1
    %p87 = por %p85, %p86
    %p89 = scmp.ne.s32.totalorder %s74, %s88
    %p90 = scmp.eq.s32.totalorder %s22, 0
    %p91 = por %p89, %p90
    %s93 = sadd.s32 %s92, 1
    %p96 = scmp.eq.s32.totalorder %s16, 1
    %p97 = scmp.ne.s32.totalorder %s92, %s94
    %p98 = scmp.eq.s32.totalorder %s16, 0
    %p99 = por %p97, %p98
    %p100 = scmp.ne.s32.totalorder %s92, %s94
    %p101 = scmp.eq.s32.totalorder %s21, 1
    %p102 = por %p100, %p101
    %p103 = scmp.ne.s32.totalorder %s94, %s95
    %p104 = scmp.eq.s32.totalorder %s21, 0
    %p105 = por %p103, %p104
    %p106 = scmp.ne.s32.totalorder %s94, %s95
    %p107 = scmp.eq.s32.totalorder %s22, 1
    %p108 = por %p106, %p107
    %p110 = scmp.ne.s32.totalorder %s95, %s109
    %p111 = scmp.eq.s32.totalorder %s22, 0
    %p112 = por %p110, %p111
    %s114 = sadd.s32 %s113, 1
    %p117 = scmp.eq.s32.totalorder %s16, 1
    %p118 = scmp.ne.s32.totalorder %s113, %s115
    %p119 = scmp.eq.s32.totalorder %s16, 0
    %p120 = por %p118, %p119
    %p121 = scmp.ne.s32.totalorder %s113, %s115
    %p122 = scmp.eq.s32.totalorder %s21, 1
    %p123 = por %p121, %p122
    %p124 = scmp.ne.s32.totalorder %s115, %s116
    %p125 = scmp.eq.s32.totalorder %s21, 0
    %p126 = por %p124, %p125
    %p127 = scmp.ne.s32.totalorder %s115, %s116
    %p128 = scmp.eq.s32.totalorder %s22, 1
    %p129 = por %p127, %p128
    %p131 = scmp.ne.s32.totalorder %s116, %s130
    %p132 = scmp.eq.s32.totalorder %s22, 0
    %p133 = por %p131, %p132
    %s135 = sadd.s32 %s134, 1
    %p138 = scmp.eq.s32.totalorder %s16, 1
    %p139 = scmp.ne.s32.totalorder %s134, %s136
    %p140 = scmp.eq.s32.totalorder %s16, 0
    %p141 = por %p139, %p140
    %p142 = scmp.ne.s32.totalorder %s134, %s136
    %p143 = scmp.eq.s32.totalorder %s21, 1
    %p144 = por %p142, %p143
    %p145 = scmp.ne.s32.totalorder %s136, %s137
    %p146 = scmp.eq.s32.totalorder %s21, 0
    %p147 = por %p145, %p146
    %p148 = scmp.ne.s32.totalorder %s136, %s137
    %p149 = scmp.eq.s32.totalorder %s22, 1
    %p150 = por %p148, %p149
    %p152 = scmp.ne.s32.totalorder %s137, %s151
    %p153 = scmp.eq.s32.totalorder %s22, 0
    %p154 = por %p152, %p153
    %s156 = sadd.s32 %s155, 1
    %p159 = scmp.eq.s32.totalorder %s16, 1
    %p160 = scmp.ne.s32.totalorder %s155, %s157
    %p161 = scmp.eq.s32.totalorder %s16, 0
    %p162 = por %p160, %p161
    %p163 = scmp.ne.s32.totalorder %s155, %s157
    %p164 = scmp.eq.s32.totalorder %s21, 1
    %p165 = por %p163, %p164
    %p166 = scmp.ne.s32.totalorder %s157, %s158
    %p167 = scmp.eq.s32.totalorder %s21, 0
    %p168 = por %p166, %p167
    %p169 = scmp.ne.s32.totalorder %s157, %s158
    %p170 = scmp.eq.s32.totalorder %s22, 1
    %p171 = por %p169, %p170
    %p173 = scmp.ne.s32.totalorder %s158, %s172
    %p174 = scmp.eq.s32.totalorder %s22, 0
    %p175 = por %p173, %p174
    %s176 = ssub.s32 %s16, %s23
    %p177 = scmp.eq.s32.totalorder %s176, 0
    %s179 = sadd.s32 %s178, 1
    %s180 = scalar_select %p177, %s178, %s179
    %p183 = pneg %p177
    %p184 = scmp.eq.s32.totalorder %s16, 1
    %p185 = por %p183, %p184
    %p186 = scmp.ne.s32.totalorder %s178, %s181
    %p187 = scmp.eq.s32.totalorder %s16, 0
    %p188 = por %p186, %p187
    %p189 = scmp.ne.s32.totalorder %s178, %s181
    %p190 = scmp.eq.s32.totalorder %s21, 1
    %p191 = por %p189, %p190
    %p192 = scmp.ne.s32.totalorder %s181, %s182
    %p193 = scmp.eq.s32.totalorder %s21, 0
    %p194 = por %p192, %p193
    %p195 = scmp.ne.s32.totalorder %s181, %s182
    %p196 = scmp.eq.s32.totalorder %s22, 1
    %p197 = por %p195, %p196
    %p199 = scmp.ne.s32.totalorder %s182, %s198
    %p200 = scmp.eq.s32.totalorder %s22, 0
    %p201 = por %p199, %p200
    %s202 = ssub.s32 %s16, %s23
    %p203 = scmp.eq.s32.totalorder %s202, 0
    %s205 = sadd.s32 %s204, 1
    %s206 = scalar_select %p203, %s204, %s205
    %p209 = pneg %p203
    %p210 = scmp.eq.s32.totalorder %s16, 1
    %p211 = por %p209, %p210
    %p212 = scmp.ne.s32.totalorder %s204, %s207
    %p213 = scmp.eq.s32.totalorder %s16, 0
    %p214 = por %p212, %p213
    %p215 = scmp.ne.s32.totalorder %s204, %s207
    %p216 = scmp.eq.s32.totalorder %s21, 1
    %p217 = por %p215, %p216
    %p218 = scmp.ne.s32.totalorder %s207, %s208
    %p219 = scmp.eq.s32.totalorder %s21, 0
    %p220 = por %p218, %p219
    %p221 = scmp.ne.s32.totalorder %s207, %s208
    %p222 = scmp.eq.s32.totalorder %s22, 1
    %p223 = por %p221, %p222
    %p225 = scmp.ne.s32.totalorder %s208, %s224
    %p226 = scmp.eq.s32.totalorder %s22, 0
    %p227 = por %p225, %p226
    %s228 = ssub.s32 %s16, %s23
    %p229 = scmp.eq.s32.totalorder %s228, 0
    %s231 = sadd.s32 %s230, 1
    %s232 = scalar_select %p229, %s230, %s231
    %p235 = pneg %p229
    %p236 = scmp.eq.s32.totalorder %s16, 1
    %p237 = por %p235, %p236
    %p238 = scmp.ne.s32.totalorder %s230, %s233
    %p239 = scmp.eq.s32.totalorder %s16, 0
    %p240 = por %p238, %p239
    %p241 = scmp.ne.s32.totalorder %s230, %s233
    %p242 = scmp.eq.s32.totalorder %s21, 1
    %p243 = por %p241, %p242
    %p244 = scmp.ne.s32.totalorder %s233, %s234
    %p245 = scmp.eq.s32.totalorder %s21, 0
    %p246 = por %p244, %p245
    %p247 = scmp.ne.s32.totalorder %s233, %s234
    %p248 = scmp.eq.s32.totalorder %s22, 1
    %p249 = por %p247, %p248
    %p251 = scmp.ne.s32.totalorder %s234, %s250
    %p252 = scmp.eq.s32.totalorder %s22, 0
    %p253 = por %p251, %p252
    %p254 = scmp.le.s32.totalorder 1, %s16
    %p255 = scmp.lt.s32.totalorder %s16, 3
    %p256 = pnand %p254, %p255
    %p257 = pneg %p256
    // Predicated region
    $region9: #{residual_block.4} parent=5 // pred_check
      _
    $region10: #{residual_block.4} parent=5 // pred_check_branch
      %259 = sbr.rel (%p256) target = $region12
    $region11: #{residual_block.4} parent=5 // pred_region
      %s260 = ssub.s32 %s16, 1
      // Predicated region
      $region13: #{residual_block.4} parent=11 // pred_check
        %p261 = pneg %p63
      $region14: #{residual_block.4} parent=11 // pred_check_branch
        %263 = sbr.rel (%p261) target = $region16
      $region15: #{residual_block.4} parent=11 // pred_region
        _
      $region16: #{residual_block.4} parent=11 // pred_fallthru
        _
      // Predicated region
      $region17: #{residual_block.4} parent=11 // pred_check
        %p264 = pneg %p84
      $region18: #{residual_block.4} parent=11 // pred_check_branch
        %266 = sbr.rel (%p264) target = $region20
      $region19: #{residual_block.4} parent=11 // pred_region
        _
      $region20: #{residual_block.4} parent=11 // pred_fallthru
        _
      // Predicated region
      $region21: #{residual_block.4} parent=11 // pred_check
        %p267 = pneg %p105
      $region22: #{residual_block.4} parent=11 // pred_check_branch
        %269 = sbr.rel (%p267) target = $region24
      $region23: #{residual_block.4} parent=11 // pred_region
        _
      $region24: #{residual_block.4} parent=11 // pred_fallthru
        _
      // Predicated region
      $region25: #{residual_block.4} parent=11 // pred_check
        %p270 = pneg %p126
      $region26: #{residual_block.4} parent=11 // pred_check_branch
        %272 = sbr.rel (%p270) target = $region28
      $region27: #{residual_block.4} parent=11 // pred_region
        _
      $region28: #{residual_block.4} parent=11 // pred_fallthru
        _
      // Predicated region
      $region29: #{residual_block.4} parent=11 // pred_check
        %p273 = pneg %p147
      $region30: #{residual_block.4} parent=11 // pred_check_branch
        %275 = sbr.rel (%p273) target = $region32
      $region31: #{residual_block.4} parent=11 // pred_region
        _
      $region32: #{residual_block.4} parent=11 // pred_fallthru
        _
      // Predicated region
      $region33: #{residual_block.4} parent=11 // pred_check
        %p276 = pneg %p168
      $region34: #{residual_block.4} parent=11 // pred_check_branch
        %278 = sbr.rel (%p276) target = $region36
      $region35: #{residual_block.4} parent=11 // pred_region
        _
      $region36: #{residual_block.4} parent=11 // pred_fallthru
        _
    $region12: #{residual_block.4} parent=5 // pred_fallthru
      _
    %p279 = scmp.lt.s32.totalorder %s16, 2
    // Predicated region
    $region37: #{residual_block.4} parent=5 // pred_check
      %p280 = pneg %p279
    $region38: #{residual_block.4} parent=5 // pred_check_branch
      %282 = sbr.rel (%p280) target = $region40
    $region39: #{residual_block.4} parent=5 // pred_region
      // Predicated region
      $region41: #{residual_block.4} parent=39 // pred_check
        %p283 = pneg %p36
      $region42: #{residual_block.4} parent=39 // pred_check_branch
        %285 = sbr.rel (%p283) target = $region44
      $region43: #{residual_block.4} parent=39 // pred_region
        %p286 = scmp.lt.s32.totalorder %s16, 1
        %s287 = scalar_select %p286, %s16, 1
        %s288 = smul.addr %s287, 37
        %s289 = smul.addr %s288, 8
        %s290 = scalar_lea.vmem %s0, %s289
      $region44: #{residual_block.4} parent=39 // pred_fallthru
        _
    $region40: #{residual_block.4} parent=5 // pred_fallthru
      _
    %p291 = scmp.le.s32.totalorder 1, %s16
    %p292 = scmp.lt.s32.totalorder %s16, 3
    %p293 = pnand %p291, %p292
    %p294 = pneg %p293
    // Predicated region
    $region45: #{residual_block.4} parent=5 // pred_check
      _
    $region46: #{residual_block.4} parent=5 // pred_check_branch
      %296 = sbr.rel (%p293) target = $region48
    $region47: #{residual_block.4} parent=5 // pred_region
      %s297 = ssub.s32 %s16, 1
      %p298 = scmp.lt.s32.totalorder %s21, 1
      %s299 = scalar_select %p298, %s21, 1
      %s300 = smul.addr %s299, 37
      %s301 = smul.addr %s300, 8
      %s302 = scalar_lea.vmem %s0, %s301
      %p303 = pneg %p42
      %p304 = pneg %p39
      %p305 = pneg %p63
      %p306 = pneg %p60
      %p307 = pneg %p84
      %p308 = pneg %p81
      %p309 = pneg %p105
      %p310 = pneg %p102
      %p311 = pneg %p126
      %p312 = pneg %p123
      %p313 = pneg %p147
      %p314 = pneg %p144
      %p315 = pneg %p168
      %p316 = pneg %p165
      %p317 = pneg %p194
      %p318 = pneg %p191
      %p319 = scmp.lt.s32.totalorder %s21, 1
      %s320 = scalar_select %p319, %s21, 1
      %s321 = smul.addr %s320, 32
      %s322 = smul.addr %s321, 8
      %s323 = scalar_lea.vmem %s7, %s322
      %p324 = pneg %p220
      %p325 = pneg %p217
      %p326 = scmp.lt.s32.totalorder %s21, 1
      %s327 = scalar_select %p326, %s21, 1
      %s328 = scalar_lea.vmem %s8, %s327
      %p329 = pneg %p246
      %p330 = pneg %p243
      %p331 = scmp.lt.s32.totalorder %s21, 1
      %s332 = scalar_select %p331, %s21, 1
      %s333 = scalar_lea.vmem %s9, %s332
      %p334 = scmp.lt.s32.totalorder %s21, 1
      %s335 = scalar_select %p334, %s21, 1
      %s336 = smul.addr %s335, 37
      %s337 = smul.addr %s336, 8
      %s338 = scalar_lea.vmem %s0, %s337
      %p339 = scmp.lt.s32.totalorder %s21, 1
      %s340 = scalar_select %p339, %s21, 1
      %s341 = smul.addr %s340, 32
      %s342 = smul.addr %s341, 8
      %s343 = scalar_lea.vmem %s7, %s342
      %p344 = scmp.lt.s32.totalorder %s21, 1
      %s345 = scalar_select %p344, %s21, 1
      %s346 = scalar_lea.vmem %s8, %s345
      %p347 = scmp.lt.s32.totalorder %s21, 1
      %s348 = scalar_select %p347, %s21, 1
      %s349 = scalar_lea.vmem %s9, %s348
      %v350 = vld [vmem:[%s338] sm:$0xff]
      %v351 = vld [vmem:[%s338 + $0x8] sm:$0xff]
      %v352 = vld [vmem:[%s338 + $0x10] sm:$0xff]
      %v353 = vld [vmem:[%s338 + $0x18] sm:$0xff]
      %v354 = vld [vmem:[%s338 + $0x20] sm:$0xff]
      %v355 = vld [vmem:[%s338 + $0x28] sm:$0xff]
      %v356 = vld [vmem:[%s338 + $0x30] sm:$0xff]
      %v357 = vld [vmem:[%s338 + $0x38] sm:$0xff]
      %v358 = vld [vmem:[%s338 + $0x40] sm:$0xff]
      %v359 = vld [vmem:[%s338 + $0x48] sm:$0xff]
      %v360 = vld [vmem:[%s338 + $0x50] sm:$0xff]
      %v361 = vld [vmem:[%s338 + $0x58] sm:$0xff]
      %v362 = vld [vmem:[%s338 + $0x60] sm:$0xff]
      %v363 = vld [vmem:[%s338 + $0x68] sm:$0xff]
      %v364 = vld [vmem:[%s338 + $0x70] sm:$0xff]
      %v365 = vld [vmem:[%s338 + $0x78] sm:$0xff]
      %v366 = vld [vmem:[%s338 + $0x80] sm:$0xff]
      %v367 = vld [vmem:[%s338 + $0x88] sm:$0xff]
      %v368 = vld [vmem:[%s338 + $0x90] sm:$0xff]
      %v369 = vld [vmem:[%s338 + $0x98] sm:$0xff]
      %v370 = vld [vmem:[%s338 + $0xa0] sm:$0xff]
      %v371 = vld [vmem:[%s338 + $0xa8] sm:$0xff]
      %v372 = vld [vmem:[%s338 + $0xb0] sm:$0xff]
      %v373 = vld [vmem:[%s338 + $0xb8] sm:$0xff]
      %v374 = vld [vmem:[%s338 + $0xc0] sm:$0xff]
      %v375 = vld [vmem:[%s338 + $0xc8] sm:$0xff]
      %v376 = vld [vmem:[%s338 + $0xd0] sm:$0xff]
      %v377 = vld [vmem:[%s338 + $0xd8] sm:$0xff]
      %v378 = vld [vmem:[%s338 + $0xe0] sm:$0xff]
      %v379 = vld [vmem:[%s338 + $0xe8] sm:$0xff]
      %v380 = vld [vmem:[%s338 + $0xf0] sm:$0xff]
      %v381 = vld [vmem:[%s338 + $0xf8] sm:$0xff]
      %v382 = vld [vmem:[%s338 + $0x100] sm:$0xff]
      %v383 = vld [vmem:[%s338 + $0x108] sm:$0xff]
      %v384 = vld [vmem:[%s338 + $0x110] sm:$0xff]
      %v385 = vld [vmem:[%s338 + $0x118] sm:$0xff]
      %v386 = vld [vmem:[%s338 + $0x120] sm:$0x3]
      %v387 = vld [vmem:[%s1] sm:$0x1]
      %v389 = vlaneseq
      %v390 = vshrl.u32 %v389, 7
      %v391 = vsub.s32 0, %v390
      %v392 = vrot.slane %v387, %v391
      %v394 = vmul.f32 %v350, %v392
      %v395 = vmul.f32 %v351, %v392
      %v396 = vmul.f32 %v352, %v392
      %v397 = vmul.f32 %v353, %v392
      %v398 = vmul.f32 %v354, %v392
      %v399 = vmul.f32 %v355, %v392
      %v400 = vmul.f32 %v356, %v392
      %v401 = vmul.f32 %v357, %v392
      %v402 = vmul.f32 %v358, %v392
      %v403 = vmul.f32 %v359, %v392
      %v404 = vmul.f32 %v360, %v392
      %v405 = vmul.f32 %v361, %v392
      %v406 = vmul.f32 %v362, %v392
      %v407 = vmul.f32 %v363, %v392
      %v408 = vmul.f32 %v364, %v392
      %v409 = vmul.f32 %v365, %v392
      %v410 = vmul.f32 %v366, %v392
      %v411 = vmul.f32 %v367, %v392
      %v412 = vmul.f32 %v368, %v392
      %v413 = vmul.f32 %v369, %v392
      %v414 = vmul.f32 %v370, %v392
      %v415 = vmul.f32 %v371, %v392
      %v416 = vmul.f32 %v372, %v392
      %v417 = vmul.f32 %v373, %v392
      %v418 = vmul.f32 %v374, %v392
      %v419 = vmul.f32 %v375, %v392
      %v420 = vmul.f32 %v376, %v392
      %v421 = vmul.f32 %v377, %v392
      %v422 = vmul.f32 %v378, %v392
      %v423 = vmul.f32 %v379, %v392
      %v424 = vmul.f32 %v380, %v392
      %v425 = vmul.f32 %v381, %v392
      %v426 = vmul.f32 %v382, %v392
      %v427 = vmul.f32 %v383, %v392
      %v428 = vmul.f32 %v384, %v392
      %v429 = vmul.f32 %v385, %v392
      %v430 = vmul.f32 %v386, %v392
      %v431 = vld [vmem:[%s2] sm:$0x1]
      %v433 = vlaneseq
      %v434 = vshrl.u32 %v433, 7
      %v435 = vsub.s32 0, %v434
      %v436 = vrot.slane %v431, %v435
      %v438 = vadd.f32 %v394, %v436
      %v439 = vadd.f32 %v395, %v436
      %v440 = vadd.f32 %v396, %v436
      %v441 = vadd.f32 %v397, %v436
      %v442 = vadd.f32 %v398, %v436
      %v443 = vadd.f32 %v399, %v436
      %v444 = vadd.f32 %v400, %v436
      %v445 = vadd.f32 %v401, %v436
      %v446 = vadd.f32 %v402, %v436
      %v447 = vadd.f32 %v403, %v436
      %v448 = vadd.f32 %v404, %v436
      %v449 = vadd.f32 %v405, %v436
      %v450 = vadd.f32 %v406, %v436
      %v451 = vadd.f32 %v407, %v436
      %v452 = vadd.f32 %v408, %v436
      %v453 = vadd.f32 %v409, %v436
      %v454 = vadd.f32 %v410, %v436
      %v455 = vadd.f32 %v411, %v436
      %v456 = vadd.f32 %v412, %v436
      %v457 = vadd.f32 %v413, %v436
      %v458 = vadd.f32 %v414, %v436
      %v459 = vadd.f32 %v415, %v436
      %v460 = vadd.f32 %v416, %v436
      %v461 = vadd.f32 %v417, %v436
      %v462 = vadd.f32 %v418, %v436
      %v463 = vadd.f32 %v419, %v436
      %v464 = vadd.f32 %v420, %v436
      %v465 = vadd.f32 %v421, %v436
      %v466 = vadd.f32 %v422, %v436
      %v467 = vadd.f32 %v423, %v436
      %v468 = vadd.f32 %v424, %v436
      %v469 = vadd.f32 %v425, %v436
      %v470 = vadd.f32 %v426, %v436
      %v471 = vadd.f32 %v427, %v436
      %v472 = vadd.f32 %v428, %v436
      %v473 = vadd.f32 %v429, %v436
      %v474 = vadd.f32 %v430, %v436
      %v475 = vmax.f32 %v438, 0.0
      %v476 = vmax.f32 %v439, 0.0
      %v477 = vmax.f32 %v440, 0.0
      %v478 = vmax.f32 %v441, 0.0
      %v479 = vmax.f32 %v442, 0.0
      %v480 = vmax.f32 %v443, 0.0
      %v481 = vmax.f32 %v444, 0.0
      %v482 = vmax.f32 %v445, 0.0
      %v483 = vmax.f32 %v446, 0.0
      %v484 = vmax.f32 %v447, 0.0
      %v485 = vmax.f32 %v448, 0.0
      %v486 = vmax.f32 %v449, 0.0
      %v487 = vmax.f32 %v450, 0.0
      %v488 = vmax.f32 %v451, 0.0
      %v489 = vmax.f32 %v452, 0.0
      %v490 = vmax.f32 %v453, 0.0
      %v491 = vmax.f32 %v454, 0.0
      %v492 = vmax.f32 %v455, 0.0
      %v493 = vmax.f32 %v456, 0.0
      %v494 = vmax.f32 %v457, 0.0
      %v495 = vmax.f32 %v458, 0.0
      %v496 = vmax.f32 %v459, 0.0
      %v497 = vmax.f32 %v460, 0.0
      %v498 = vmax.f32 %v461, 0.0
      %v499 = vmax.f32 %v462, 0.0
      %v500 = vmax.f32 %v463, 0.0
      %v501 = vmax.f32 %v464, 0.0
      %v502 = vmax.f32 %v465, 0.0
      %v503 = vmax.f32 %v466, 0.0
      %v504 = vmax.f32 %v467, 0.0
      %v505 = vmax.f32 %v468, 0.0
      %v506 = vmax.f32 %v469, 0.0
      %v507 = vmax.f32 %v470, 0.0
      %v508 = vmax.f32 %v471, 0.0
      %v509 = vmax.f32 %v472, 0.0
      %v510 = vmax.f32 %v473, 0.0
      %v511 = vmax.f32 %v474, 0.0
      %v512 = vld [vmem:[%s3] sm:$0xff]
      %v513 = vld [vmem:[%s3 + $0x8] sm:$0xff]
      %v514 = vld [vmem:[%s3 + $0x10] sm:$0xff]
      %v515 = vld [vmem:[%s3 + $0x18] sm:$0xff]
      %v516 = vld [vmem:[%s3 + $0x20] sm:$0xff]
      %v517 = vld [vmem:[%s3 + $0x28] sm:$0xff]
      %v518 = vld [vmem:[%s3 + $0x30] sm:$0xff]
      %v519 = vld [vmem:[%s3 + $0x38] sm:$0xff]
      %v520 = vld [vmem:[%s3 + $0x40] sm:$0xff]
      %v521 = vld [vmem:[%s3 + $0x48] sm:$0xff]
      %v522 = vld [vmem:[%s3 + $0x50] sm:$0xff]
      %v523 = vld [vmem:[%s3 + $0x58] sm:$0xff]
      %v524 = vld [vmem:[%s3 + $0x60] sm:$0xff]
      %v525 = vld [vmem:[%s3 + $0x68] sm:$0xff]
      %v526 = vld [vmem:[%s3 + $0x70] sm:$0xff]
      %v527 = vld [vmem:[%s3 + $0x78] sm:$0xff]
      %v528 = vld [vmem:[%s3 + $0x80] sm:$0xff]
      %v529 = vld [vmem:[%s3 + $0x88] sm:$0xff]
      %v530 = vld [vmem:[%s3 + $0x90] sm:$0xff]
      %v531 = vld [vmem:[%s3 + $0x98] sm:$0xff]
      %v532 = vld [vmem:[%s3 + $0xa0] sm:$0xff]
      %v533 = vld [vmem:[%s3 + $0xa8] sm:$0xff]
      %v534 = vld [vmem:[%s3 + $0xb0] sm:$0xff]
      %v535 = vld [vmem:[%s3 + $0xb8] sm:$0xff]
      %v536 = vld [vmem:[%s3 + $0xc0] sm:$0xff]
      %v537 = vld [vmem:[%s3 + $0xc8] sm:$0xff]
      %v538 = vld [vmem:[%s3 + $0xd0] sm:$0xff]
      %v539 = vld [vmem:[%s3 + $0xd8] sm:$0xff]
      %v540 = vld [vmem:[%s3 + $0xe0] sm:$0xff]
      %v541 = vld [vmem:[%s3 + $0xe8] sm:$0xff]
      %v542 = vld [vmem:[%s3 + $0xf0] sm:$0xff]
      %v543 = vld [vmem:[%s3 + $0xf8] sm:$0xff]
      %v544 = vld [vmem:[%s3 + $0x100] sm:$0xff]
      %v545 = vld [vmem:[%s3 + $0x108] sm:$0xff]
      %v546 = vld [vmem:[%s3 + $0x110] sm:$0xff]
      %v547 = vld [vmem:[%s3 + $0x118] sm:$0xff]
      %v548 = vld [vmem:[%s3 + $0x120] sm:$0x3]
      %550 = vset.pattern.permute.xlu0 0
      %551 = vperm.xlu0 %550, %v512
      %v552 = vpop.permute.xlu0 %551
      %555 = vset.pattern.permute.xlu0 0
      %556 = vperm.xlu0 %555, %v513
      %v557 = vpop.permute.xlu0 %556
      %560 = vset.pattern.permute.xlu0 0
      %561 = vperm.xlu0 %560, %v514
      %v562 = vpop.permute.xlu0 %561
      %565 = vset.pattern.permute.xlu0 0
      %566 = vperm.xlu0 %565, %v515
      %v567 = vpop.permute.xlu0 %566
      %570 = vset.pattern.permute.xlu0 0
      %571 = vperm.xlu0 %570, %v516
      %v572 = vpop.permute.xlu0 %571
      %575 = vset.pattern.permute.xlu0 0
      %576 = vperm.xlu0 %575, %v517
      %v577 = vpop.permute.xlu0 %576
      %580 = vset.pattern.permute.xlu0 0
      %581 = vperm.xlu0 %580, %v518
      %v582 = vpop.permute.xlu0 %581
      %585 = vset.pattern.permute.xlu0 0
      %586 = vperm.xlu0 %585, %v519
      %v587 = vpop.permute.xlu0 %586
      %590 = vset.pattern.permute.xlu0 0
      %591 = vperm.xlu0 %590, %v520
      %v592 = vpop.permute.xlu0 %591
      %595 = vset.pattern.permute.xlu0 0
      %596 = vperm.xlu0 %595, %v521
      %v597 = vpop.permute.xlu0 %596
      %600 = vset.pattern.permute.xlu0 0
      %601 = vperm.xlu0 %600, %v522
      %v602 = vpop.permute.xlu0 %601
      %605 = vset.pattern.permute.xlu0 0
      %606 = vperm.xlu0 %605, %v523
      %v607 = vpop.permute.xlu0 %606
      %610 = vset.pattern.permute.xlu0 0
      %611 = vperm.xlu0 %610, %v524
      %v612 = vpop.permute.xlu0 %611
      %615 = vset.pattern.permute.xlu0 0
      %616 = vperm.xlu0 %615, %v525
      %v617 = vpop.permute.xlu0 %616
      %620 = vset.pattern.permute.xlu0 0
      %621 = vperm.xlu0 %620, %v526
      %v622 = vpop.permute.xlu0 %621
      %625 = vset.pattern.permute.xlu0 0
      %626 = vperm.xlu0 %625, %v527
      %v627 = vpop.permute.xlu0 %626
      %630 = vset.pattern.permute.xlu0 0
      %631 = vperm.xlu0 %630, %v528
      %v632 = vpop.permute.xlu0 %631
      %635 = vset.pattern.permute.xlu0 0
      %636 = vperm.xlu0 %635, %v529
      %v637 = vpop.permute.xlu0 %636
      %640 = vset.pattern.permute.xlu0 0
      %641 = vperm.xlu0 %640, %v530
      %v642 = vpop.permute.xlu0 %641
      %645 = vset.pattern.permute.xlu0 0
      %646 = vperm.xlu0 %645, %v531
      %v647 = vpop.permute.xlu0 %646
      %650 = vset.pattern.permute.xlu0 0
      %651 = vperm.xlu0 %650, %v532
      %v652 = vpop.permute.xlu0 %651
      %655 = vset.pattern.permute.xlu0 0
      %656 = vperm.xlu0 %655, %v533
      %v657 = vpop.permute.xlu0 %656
      %660 = vset.pattern.permute.xlu0 0
      %661 = vperm.xlu0 %660, %v534
      %v662 = vpop.permute.xlu0 %661
      %665 = vset.pattern.permute.xlu0 0
      %666 = vperm.xlu0 %665, %v535
      %v667 = vpop.permute.xlu0 %666
      %670 = vset.pattern.permute.xlu0 0
      %671 = vperm.xlu0 %670, %v536
      %v672 = vpop.permute.xlu0 %671
      %675 = vset.pattern.permute.xlu0 0
      %676 = vperm.xlu0 %675, %v537
      %v677 = vpop.permute.xlu0 %676
      %680 = vset.pattern.permute.xlu0 0
      %681 = vperm.xlu0 %680, %v538
      %v682 = vpop.permute.xlu0 %681
      %685 = vset.pattern.permute.xlu0 0
      %686 = vperm.xlu0 %685, %v539
      %v687 = vpop.permute.xlu0 %686
      %690 = vset.pattern.permute.xlu0 0
      %691 = vperm.xlu0 %690, %v540
      %v692 = vpop.permute.xlu0 %691
      %695 = vset.pattern.permute.xlu0 0
      %696 = vperm.xlu0 %695, %v541
      %v697 = vpop.permute.xlu0 %696
      %700 = vset.pattern.permute.xlu0 0
      %701 = vperm.xlu0 %700, %v542
      %v702 = vpop.permute.xlu0 %701
      %705 = vset.pattern.permute.xlu0 0
      %706 = vperm.xlu0 %705, %v543
      %v707 = vpop.permute.xlu0 %706
      %710 = vset.pattern.permute.xlu0 0
      %711 = vperm.xlu0 %710, %v544
      %v712 = vpop.permute.xlu0 %711
      %715 = vset.pattern.permute.xlu0 0
      %716 = vperm.xlu0 %715, %v545
      %v717 = vpop.permute.xlu0 %716
      %720 = vset.pattern.permute.xlu0 0
      %721 = vperm.xlu0 %720, %v546
      %v722 = vpop.permute.xlu0 %721
      %725 = vset.pattern.permute.xlu0 0
      %726 = vperm.xlu0 %725, %v547
      %v727 = vpop.permute.xlu0 %726
      %730 = vset.pattern.permute.xlu0 0
      %731 = vperm.xlu0 %730, %v548
      %v732 = vpop.permute.xlu0 %731
      %v734 = vmul.f32 %v475, %v552
      %v735 = vmul.f32 %v476, %v557
      %v736 = vmul.f32 %v477, %v562
      %v737 = vmul.f32 %v478, %v567
      %v738 = vmul.f32 %v479, %v572
      %v739 = vmul.f32 %v480, %v577
      %v740 = vmul.f32 %v481, %v582
      %v741 = vmul.f32 %v482, %v587
      %v742 = vmul.f32 %v483, %v592
      %v743 = vmul.f32 %v484, %v597
      %v744 = vmul.f32 %v485, %v602
      %v745 = vmul.f32 %v486, %v607
      %v746 = vmul.f32 %v487, %v612
      %v747 = vmul.f32 %v488, %v617
      %v748 = vmul.f32 %v489, %v622
      %v749 = vmul.f32 %v490, %v627
      %v750 = vmul.f32 %v491, %v632
      %v751 = vmul.f32 %v492, %v637
      %v752 = vmul.f32 %v493, %v642
      %v753 = vmul.f32 %v494, %v647
      %v754 = vmul.f32 %v495, %v652
      %v755 = vmul.f32 %v496, %v657
      %v756 = vmul.f32 %v497, %v662
      %v757 = vmul.f32 %v498, %v667
      %v758 = vmul.f32 %v499, %v672
      %v759 = vmul.f32 %v500, %v677
      %v760 = vmul.f32 %v501, %v682
      %v761 = vmul.f32 %v502, %v687
      %v762 = vmul.f32 %v503, %v692
      %v763 = vmul.f32 %v504, %v697
      %v764 = vmul.f32 %v505, %v702
      %v765 = vmul.f32 %v506, %v707
      %v766 = vmul.f32 %v507, %v712
      %v767 = vmul.f32 %v508, %v717
      %v768 = vmul.f32 %v509, %v722
      %v769 = vmul.f32 %v510, %v727
      %v770 = vmul.f32 %v511, %v732
      %v771 = vld [vmem:[%s4] sm:$0xff]
      %v772 = vld [vmem:[%s4 + $0x8] sm:$0xff]
      %v773 = vld [vmem:[%s4 + $0x10] sm:$0xff]
      %v774 = vld [vmem:[%s4 + $0x18] sm:$0xff]
      %v775 = vld [vmem:[%s4 + $0x20] sm:$0xf]
      %v776 = vld [vmem:[%s5] sm:$0xff]
      %v777 = vld [vmem:[%s5 + $0x8] sm:$0xff]
      %v778 = vld [vmem:[%s5 + $0x10] sm:$0xff]
      %v779 = vld [vmem:[%s5 + $0x18] sm:$0xff]
      %v780 = vld [vmem:[%s5 + $0x20] sm:$0xff]
      %v781 = vld [vmem:[%s5 + $0x28] sm:$0xff]
      %v782 = vld [vmem:[%s5 + $0x30] sm:$0xff]
      %v783 = vld [vmem:[%s5 + $0x38] sm:$0xff]
      %v784 = vld [vmem:[%s5 + $0x40] sm:$0xff]
      %v785 = vld [vmem:[%s5 + $0x48] sm:$0xff]
      %v786 = vld [vmem:[%s5 + $0x50] sm:$0xff]
      %v787 = vld [vmem:[%s5 + $0x58] sm:$0xff]
      %v788 = vld [vmem:[%s5 + $0x60] sm:$0xff]
      %v789 = vld [vmem:[%s5 + $0x68] sm:$0xff]
      %v790 = vld [vmem:[%s5 + $0x70] sm:$0xff]
      %v791 = vld [vmem:[%s5 + $0x78] sm:$0xff]
      %v792 = vld [vmem:[%s5 + $0x80] sm:$0xff]
      %v793 = vld [vmem:[%s5 + $0x88] sm:$0xff]
      %v794 = vld [vmem:[%s5 + $0x90] sm:$0xff]
      %v795 = vld [vmem:[%s5 + $0x98] sm:$0xff]
      %v796 = vld [vmem:[%s5 + $0xa0] sm:$0xff]
      %v797 = vld [vmem:[%s5 + $0xa8] sm:$0xff]
      %v798 = vld [vmem:[%s5 + $0xb0] sm:$0xff]
      %v799 = vld [vmem:[%s5 + $0xb8] sm:$0xff]
      %v800 = vld [vmem:[%s5 + $0xc0] sm:$0xff]
      %v801 = vld [vmem:[%s5 + $0xc8] sm:$0xff]
      %v802 = vld [vmem:[%s5 + $0xd0] sm:$0xff]
      %v803 = vld [vmem:[%s5 + $0xd8] sm:$0xff]
      %v804 = vld [vmem:[%s5 + $0xe0] sm:$0xff]
      %v805 = vld [vmem:[%s5 + $0xe8] sm:$0xff]
      %v806 = vld [vmem:[%s5 + $0xf0] sm:$0xff]
      %v807 = vld [vmem:[%s5 + $0xf8] sm:$0xff]
      %v808 = vld [vmem:[%s6] sm:$0xff]
      %v809 = vld [vmem:[%s6 + $0x8] sm:$0xff]
      %v810 = vld [vmem:[%s6 + $0x10] sm:$0xff]
      %v811 = vld [vmem:[%s6 + $0x18] sm:$0xff]
      %v812 = vld [vmem:[%s6 + $0x20] sm:$0xff]
      %v813 = vld [vmem:[%s6 + $0x28] sm:$0xff]
      %v814 = vld [vmem:[%s6 + $0x30] sm:$0xff]
      %v815 = vld [vmem:[%s6 + $0x38] sm:$0xff]
      %v816 = vld [vmem:[%s6 + $0x40] sm:$0xff]
      %v817 = vld [vmem:[%s6 + $0x48] sm:$0xff]
      %v818 = vld [vmem:[%s6 + $0x50] sm:$0xff]
      %v819 = vld [vmem:[%s6 + $0x58] sm:$0xff]
      %v820 = vld [vmem:[%s6 + $0x60] sm:$0xff]
      %v821 = vld [vmem:[%s6 + $0x68] sm:$0xff]
      %v822 = vld [vmem:[%s6 + $0x70] sm:$0xff]
      %v823 = vld [vmem:[%s6 + $0x78] sm:$0xff]
      %v824 = vld [vmem:[%s6 + $0x80] sm:$0xff]
      %v825 = vld [vmem:[%s6 + $0x88] sm:$0xff]
      %v826 = vld [vmem:[%s6 + $0x90] sm:$0xff]
      %v827 = vld [vmem:[%s6 + $0x98] sm:$0xff]
      %v828 = vld [vmem:[%s6 + $0xa0] sm:$0xff]
      %v829 = vld [vmem:[%s6 + $0xa8] sm:$0xff]
      %v830 = vld [vmem:[%s6 + $0xb0] sm:$0xff]
      %v831 = vld [vmem:[%s6 + $0xb8] sm:$0xff]
      %v832 = vld [vmem:[%s6 + $0xc0] sm:$0xff]
      %v833 = vld [vmem:[%s6 + $0xc8] sm:$0xff]
      %v834 = vld [vmem:[%s6 + $0xd0] sm:$0xff]
      %v835 = vld [vmem:[%s6 + $0xd8] sm:$0xff]
      %v836 = vld [vmem:[%s6 + $0xe0] sm:$0xff]
      %v837 = vld [vmem:[%s6 + $0xe8] sm:$0xff]
      %v838 = vld [vmem:[%s6 + $0xf0] sm:$0xff]
      %v839 = vld [vmem:[%s6 + $0xf8] sm:$0xff]
      %841 = vset.pattern.permute.xlu0 0
      %842 = vperm.xlu0 %841, %v776
      %v843 = vpop.permute.xlu0 %842
      %846 = vset.pattern.permute.xlu0 0
      %847 = vperm.xlu0 %846, %v777
      %v848 = vpop.permute.xlu0 %847
      %851 = vset.pattern.permute.xlu0 0
      %852 = vperm.xlu0 %851, %v778
      %v853 = vpop.permute.xlu0 %852
      %856 = vset.pattern.permute.xlu0 0
      %857 = vperm.xlu0 %856, %v779
      %v858 = vpop.permute.xlu0 %857
      %861 = vset.pattern.permute.xlu0 0
      %862 = vperm.xlu0 %861, %v780
      %v863 = vpop.permute.xlu0 %862
      %866 = vset.pattern.permute.xlu0 0
      %867 = vperm.xlu0 %866, %v781
      %v868 = vpop.permute.xlu0 %867
      %871 = vset.pattern.permute.xlu0 0
      %872 = vperm.xlu0 %871, %v782
      %v873 = vpop.permute.xlu0 %872
      %876 = vset.pattern.permute.xlu0 0
      %877 = vperm.xlu0 %876, %v783
      %v878 = vpop.permute.xlu0 %877
      %881 = vset.pattern.permute.xlu0 0
      %882 = vperm.xlu0 %881, %v784
      %v883 = vpop.permute.xlu0 %882
      %886 = vset.pattern.permute.xlu0 0
      %887 = vperm.xlu0 %886, %v785
      %v888 = vpop.permute.xlu0 %887
      %891 = vset.pattern.permute.xlu0 0
      %892 = vperm.xlu0 %891, %v786
      %v893 = vpop.permute.xlu0 %892
      %896 = vset.pattern.permute.xlu0 0
      %897 = vperm.xlu0 %896, %v787
      %v898 = vpop.permute.xlu0 %897
      %901 = vset.pattern.permute.xlu0 0
      %902 = vperm.xlu0 %901, %v788
      %v903 = vpop.permute.xlu0 %902
      %906 = vset.pattern.permute.xlu0 0
      %907 = vperm.xlu0 %906, %v789
      %v908 = vpop.permute.xlu0 %907
      %911 = vset.pattern.permute.xlu0 0
      %912 = vperm.xlu0 %911, %v790
      %v913 = vpop.permute.xlu0 %912
      %916 = vset.pattern.permute.xlu0 0
      %917 = vperm.xlu0 %916, %v791
      %v918 = vpop.permute.xlu0 %917
      %921 = vset.pattern.permute.xlu0 0
      %922 = vperm.xlu0 %921, %v792
      %v923 = vpop.permute.xlu0 %922
      %926 = vset.pattern.permute.xlu0 0
      %927 = vperm.xlu0 %926, %v793
      %v928 = vpop.permute.xlu0 %927
      %931 = vset.pattern.permute.xlu0 0
      %932 = vperm.xlu0 %931, %v794
      %v933 = vpop.permute.xlu0 %932
      %936 = vset.pattern.permute.xlu0 0
      %937 = vperm.xlu0 %936, %v795
      %v938 = vpop.permute.xlu0 %937
      %941 = vset.pattern.permute.xlu0 0
      %942 = vperm.xlu0 %941, %v796
      %v943 = vpop.permute.xlu0 %942
      %946 = vset.pattern.permute.xlu0 0
      %947 = vperm.xlu0 %946, %v797
      %v948 = vpop.permute.xlu0 %947
      %951 = vset.pattern.permute.xlu0 0
      %952 = vperm.xlu0 %951, %v798
      %v953 = vpop.permute.xlu0 %952
      %956 = vset.pattern.permute.xlu0 0
      %957 = vperm.xlu0 %956, %v799
      %v958 = vpop.permute.xlu0 %957
      %961 = vset.pattern.permute.xlu0 0
      %962 = vperm.xlu0 %961, %v800
      %v963 = vpop.permute.xlu0 %962
      %966 = vset.pattern.permute.xlu0 0
      %967 = vperm.xlu0 %966, %v801
      %v968 = vpop.permute.xlu0 %967
      %971 = vset.pattern.permute.xlu0 0
      %972 = vperm.xlu0 %971, %v802
      %v973 = vpop.permute.xlu0 %972
      %976 = vset.pattern.permute.xlu0 0
      %977 = vperm.xlu0 %976, %v803
      %v978 = vpop.permute.xlu0 %977
      %981 = vset.pattern.permute.xlu0 0
      %982 = vperm.xlu0 %981, %v804
      %v983 = vpop.permute.xlu0 %982
      %986 = vset.pattern.permute.xlu0 0
      %987 = vperm.xlu0 %986, %v805
      %v988 = vpop.permute.xlu0 %987
      %991 = vset.pattern.permute.xlu0 0
      %992 = vperm.xlu0 %991, %v806
      %v993 = vpop.permute.xlu0 %992
      %996 = vset.pattern.permute.xlu0 0
      %997 = vperm.xlu0 %996, %v807
      %v998 = vpop.permute.xlu0 %997
      %v1000 = vmul.f32 %v734, %v843
      %v1001 = vmul.f32 %v735, %v848
      %v1002 = vmul.f32 %v736, %v853
      %v1003 = vmul.f32 %v737, %v858
      %v1004 = vmul.f32 %v738, %v863
      %v1005 = vmul.f32 %v739, %v868
      %v1006 = vmul.f32 %v740, %v873
      %v1007 = vmul.f32 %v741, %v878
      %v1008 = vmul.f32 %v742, %v883
      %v1009 = vmul.f32 %v743, %v888
      %v1010 = vmul.f32 %v744, %v893
      %v1011 = vmul.f32 %v745, %v898
      %v1012 = vmul.f32 %v746, %v903
      %v1013 = vmul.f32 %v747, %v908
      %v1014 = vmul.f32 %v748, %v913
      %v1015 = vmul.f32 %v749, %v918
      %v1016 = vmul.f32 %v750, %v923
      %v1017 = vmul.f32 %v751, %v928
      %v1018 = vmul.f32 %v752, %v933
      %v1019 = vmul.f32 %v753, %v938
      %v1020 = vmul.f32 %v754, %v943
      %v1021 = vmul.f32 %v755, %v948
      %v1022 = vmul.f32 %v756, %v953
      %v1023 = vmul.f32 %v757, %v958
      %v1024 = vmul.f32 %v758, %v963
      %v1025 = vmul.f32 %v759, %v968
      %v1026 = vmul.f32 %v760, %v973
      %v1027 = vmul.f32 %v761, %v978
      %v1028 = vmul.f32 %v762, %v983
      %v1029 = vmul.f32 %v763, %v988
      %v1030 = vmul.f32 %v764, %v993
      %v1031 = vmul.f32 %v765, %v998
      %vm1065 = vcmask 1046528
      %v1066 = vrot.slane %v734, 1
      %v1067 = vrot.slane %v735, 1
      %v1068 = vsel %vm1065, %v1066, %v1067
      %v1069 = vrot.slane %v736, 1
      %v1070 = vsel %vm1065, %v1067, %v1069
      %v1071 = vrot.slane %v737, 1
      %v1072 = vsel %vm1065, %v1069, %v1071
      %v1073 = vrot.slane %v738, 1
      %v1074 = vsel %vm1065, %v1071, %v1073
      %v1075 = vrot.slane %v739, 1
      %v1076 = vsel %vm1065, %v1073, %v1075
      %v1077 = vrot.slane %v740, 1
      %v1078 = vsel %vm1065, %v1075, %v1077
      %v1079 = vrot.slane %v741, 1
      %v1080 = vsel %vm1065, %v1077, %v1079
      %v1081 = vrot.slane %v742, 1
      %v1082 = vsel %vm1065, %v1079, %v1081
      %v1083 = vrot.slane %v743, 1
      %v1084 = vsel %vm1065, %v1081, %v1083
      %v1085 = vrot.slane %v744, 1
      %v1086 = vsel %vm1065, %v1083, %v1085
      %v1087 = vrot.slane %v745, 1
      %v1088 = vsel %vm1065, %v1085, %v1087
      %v1089 = vrot.slane %v746, 1
      %v1090 = vsel %vm1065, %v1087, %v1089
      %v1091 = vrot.slane %v747, 1
      %v1092 = vsel %vm1065, %v1089, %v1091
      %v1093 = vrot.slane %v748, 1
      %v1094 = vsel %vm1065, %v1091, %v1093
      %v1095 = vrot.slane %v749, 1
      %v1096 = vsel %vm1065, %v1093, %v1095
      %v1097 = vrot.slane %v750, 1
      %v1098 = vsel %vm1065, %v1095, %v1097
      %v1099 = vrot.slane %v751, 1
      %v1100 = vsel %vm1065, %v1097, %v1099
      %v1101 = vrot.slane %v752, 1
      %v1102 = vsel %vm1065, %v1099, %v1101
      %v1103 = vrot.slane %v753, 1
      %v1104 = vsel %vm1065, %v1101, %v1103
      %v1105 = vrot.slane %v754, 1
      %v1106 = vsel %vm1065, %v1103, %v1105
      %v1107 = vrot.slane %v755, 1
      %v1108 = vsel %vm1065, %v1105, %v1107
      %v1109 = vrot.slane %v756, 1
      %v1110 = vsel %vm1065, %v1107, %v1109
      %v1111 = vrot.slane %v757, 1
      %v1112 = vsel %vm1065, %v1109, %v1111
      %v1113 = vrot.slane %v758, 1
      %v1114 = vsel %vm1065, %v1111, %v1113
      %v1115 = vrot.slane %v759, 1
      %v1116 = vsel %vm1065, %v1113, %v1115
      %v1117 = vrot.slane %v760, 1
      %v1118 = vsel %vm1065, %v1115, %v1117
      %v1119 = vrot.slane %v761, 1
      %v1120 = vsel %vm1065, %v1117, %v1119
      %v1121 = vrot.slane %v762, 1
      %v1122 = vsel %vm1065, %v1119, %v1121
      %v1123 = vrot.slane %v763, 1
      %v1124 = vsel %vm1065, %v1121, %v1123
      %v1125 = vrot.slane %v764, 1
      %v1126 = vsel %vm1065, %v1123, %v1125
      %v1127 = vrot.slane %v765, 1
      %v1128 = vsel %vm1065, %v1125, %v1127
      %v1129 = vrot.slane %v766, 1
      %v1130 = vsel %vm1065, %v1127, %v1129
      %v1132 = vrot.slane %v771, 4
      %vm1133 = vcmask 31744
      %v1134 = vsel %vm1133, %v1068, 0
      %v1136 = vsel %vm1133, %v1070, 0
      %v1138 = vsel %vm1133, %v1072, 0
      %v1140 = vsel %vm1133, %v1074, 0
      %v1142 = vsel %vm1133, %v1076, 0
      %v1144 = vsel %vm1133, %v1078, 0
      %v1146 = vsel %vm1133, %v1080, 0
      %v1148 = vsel %vm1133, %v1082, 0
      %v1150 = vsel %vm1133, %v1084, 0
      %v1152 = vsel %vm1133, %v1086, 0
      %v1154 = vsel %vm1133, %v1088, 0
      %v1156 = vsel %vm1133, %v1090, 0
      %v1158 = vsel %vm1133, %v1092, 0
      %v1160 = vsel %vm1133, %v1094, 0
      %v1162 = vsel %vm1133, %v1096, 0
      %v1164 = vsel %vm1133, %v1098, 0
      %v1166 = vsel %vm1133, %v1100, 0
      %v1168 = vsel %vm1133, %v1102, 0
      %v1170 = vsel %vm1133, %v1104, 0
      %v1172 = vsel %vm1133, %v1106, 0
      %v1174 = vsel %vm1133, %v1108, 0
      %v1176 = vsel %vm1133, %v1110, 0
      %v1178 = vsel %vm1133, %v1112, 0
      %v1180 = vsel %vm1133, %v1114, 0
      %v1182 = vsel %vm1133, %v1116, 0
      %v1184 = vsel %vm1133, %v1118, 0
      %v1186 = vsel %vm1133, %v1120, 0
      %v1188 = vsel %vm1133, %v1122, 0
      %v1190 = vsel %vm1133, %v1124, 0
      %v1192 = vsel %vm1133, %v1126, 0
      %v1194 = vsel %vm1133, %v1128, 0
      %v1196 = vsel %vm1133, %v1130, 0
      %vm1198 = vcmask 1043456
      %v1199 = vsel %vm1198, %v1132, 0
      %1201 = vmatprep.subr.mxu0 0.0
      %1202 = vmatpush1.msra.mxu0 %v1199
      %1203 = vmatprep.subr.mxu0 0.0
      %1204 = vmatpush1.msra.mxu0 0.0
      %1205 = vmatprep.subr.mxu0 0.0
      %1206 = vmatpush1.msra.mxu0 0.0
      %1207 = vmatprep.subr.mxu0 0.0
      %1208 = vmatpush1.msra.mxu0 0.0
      %1209 = vmatprep.subr.mxu0 0.0
      %1210 = vmatpush1.msra.mxu0 0.0
      %1211 = vmatprep.subr.mxu0 0.0
      %1212 = vmatpush1.msra.mxu0 0.0
      %1213 = vmatprep.subr.mxu0 0.0
      %1214 = vmatpush1.msra.mxu0 0.0
      %1215 = vmatprep.subr.mxu0 0.0
      %1216 = vmatpush1.msra.mxu0 0.0
      %1217 = vmatprep.subr.mxu0 0.0
      %1218 = vmatpush1.msra.mxu0 0.0
      %1219 = vmatprep.subr.mxu0 0.0
      %1220 = vmatpush1.msra.mxu0 0.0
      %1221 = vmatprep.subr.mxu0 0.0
      %1222 = vmatpush1.msra.mxu0 0.0
      %1223 = vmatprep.subr.mxu0 0.0
      %1224 = vmatpush1.msra.mxu0 0.0
      %1225 = vmatprep.subr.mxu0 0.0
      %1226 = vmatpush1.msra.mxu0 0.0
      %1227 = vmatprep.subr.mxu0 0.0
      %1228 = vmatpush1.msra.mxu0 0.0
      %1229 = vmatprep.subr.mxu0 0.0
      %1230 = vmatpush1.msra.mxu0 0.0
      %1231 = vmatprep.subr.mxu0 0.0
      %1232 = vmatpush1.msra.mxu0 0.0
      %1233 = vmatprep.subr.mxu0 0.0
      %1234 = vmatpush1.msra.mxu0 0.0
      %1235 = vmatprep.subr.mxu0 0.0
      %1236 = vmatpush1.msra.mxu0 0.0
      %1237 = vmatprep.subr.mxu0 0.0
      %1238 = vmatpush1.msra.mxu0 0.0
      %1239 = vmatprep.subr.mxu0 0.0
      %1240 = vmatpush1.msra.mxu0 0.0
      %1241 = vmatprep.subr.mxu0 0.0
      %1242 = vmatpush1.msra.mxu0 0.0
      %1243 = vmatprep.subr.mxu0 0.0
      %1244 = vmatpush1.msra.mxu0 0.0
      %1245 = vmatprep.subr.mxu0 0.0
      %1246 = vmatpush1.msra.mxu0 0.0
      %1247 = vmatprep.subr.mxu0 0.0
      %1248 = vmatpush1.msra.mxu0 0.0
      %1249 = vmatprep.subr.mxu0 0.0
      %1250 = vmatpush1.msra.mxu0 0.0
      %1251 = vmatprep.subr.mxu0 0.0
      %1252 = vmatpush1.msra.mxu0 0.0
      %1253 = vmatprep.subr.mxu0 0.0
      %1254 = vmatpush1.msra.mxu0 0.0
      %1255 = vmatprep.subr.mxu0 0.0
      %1256 = vmatpush1.msra.mxu0 0.0
      %1257 = vmatprep.subr.mxu0 0.0
      %1258 = vmatpush1.msra.mxu0 0.0
      %1259 = vmatprep.subr.mxu0 0.0
      %1260 = vmatpush1.msra.mxu0 0.0
      %1261 = vmatprep.subr.mxu0 0.0
      %1262 = vmatpush1.msra.mxu0 0.0
      %1263 = vmatprep.subr.mxu0 0.0
      %1264 = vmatpush1.msra.mxu0 0.0
      %1265 = vmatprep.mubr.f32.mxu0 0.0
      %1266 = vmatmul.mubr.f32.gmra.mrb[0].mxu0 %v1134
      %v1267 = vpop.f32.mrb[0].mxu0
      %v1268 = vadd.f32 0.0, %v1267
      %v1269 = vpop.f32.mrb[0].mxu0
      %1270 = vmatprep.mubr.f32.mxu0 0.0
      %1271 = vmatmul.mubr.f32.gmra.mrb[0].mxu0 %v1136
      %v1272 = vpop.f32.mrb[0].mxu0
      %v1273 = vadd.f32 0.0, %v1272
      %v1274 = vpop.f32.mrb[0].mxu0
      %1275 = vmatprep.mubr.f32.mxu0 0.0
      %1276 = vmatmul.mubr.f32.gmra.mrb[0].mxu0 %v1138
      %v1277 = vpop.f32.mrb[0].mxu0
      %v1278 = vadd.f32 0.0, %v1277
      %v1279 = vpop.f32.mrb[0].mxu0
      %1280 = vmatprep.mubr.f32.mxu0 0.0
      %1281 = vmatmul.mubr.f32.gmra.mrb[0].mxu0 %v1140
      %v1282 = vpop.f32.mrb[0].mxu0
      %v1283 = vadd.f32 0.0, %v1282
      %v1284 = vpop.f32.mrb[0].mxu0
      %1285 = vmatprep.mubr.f32.mxu0 0.0
      %1286 = vmatmul.mubr.f32.gmra.mrb[0].mxu0 %v1142
      %v1287 = vpop.f32.mrb[0].mxu0
      %v1288 = vadd.f32 0.0, %v1287
      %v1289 = vpop.f32.mrb[0].mxu0
      %1290 = vmatprep.mubr.f32.mxu0 0.0
      %1291 = vmatmul.mubr.f32.gmra.mrb[0].mxu0 %v1144
      %v1292 = vpop.f32.mrb[0].mxu0
      %v1293 = vadd.f32 0.0, %v1292
      %v1294 = vpop.f32.mrb[0].mxu0
      %1295 = vmatprep.mubr.f32.mxu0 0.0
      %1296 = vmatmul.mubr.f32.gmra.mrb[0].mxu0 %v1146
      %v1297 = vpop.f32.mrb[0].mxu0
      %v1298 = vadd.f32 0.0, %v1297
      %v1299 = vpop.f32.mrb[0].mxu0
      %1300 = vmatprep.mubr.f32.mxu0 0.0
      %1301 = vmatmul.mubr.f32.gmra.mrb[0].mxu0 %v1148
      %v1302 = vpop.f32.mrb[0].mxu0
      %v1303 = vadd.f32 0.0, %v1302
      %v1304 = vpop.f32.mrb[0].mxu0
      %1305 = vmatprep.mubr.f32.mxu0 0.0
      %1306 = vmatmul.mubr.f32.gmra.mrb[0].mxu0 %v1150
      %v1307 = vpop.f32.mrb[0].mxu0
      %v1308 = vadd.f32 0.0, %v1307
      %v1309 = vpop.f32.mrb[0].mxu0
      %1310 = vmatprep.mubr.f32.mxu0 0.0
      %1311 = vmatmul.mubr.f32.gmra.mrb[0].mxu0 %v1152
      %v1312 = vpop.f32.mrb[0].mxu0
      %v1313 = vadd.f32 0.0, %v1312
      %v1314 = vpop.f32.mrb[0].mxu0
      %1315 = vmatprep.mubr.f32.mxu0 0.0
      %1316 = vmatmul.mubr.f32.gmra.mrb[0].mxu0 %v1154
      %v1317 = vpop.f32.mrb[0].mxu0
      %v1318 = vadd.f32 0.0, %v1317
      %v1319 = vpop.f32.mrb[0].mxu0
      %1320 = vmatprep.mubr.f32.mxu0 0.0
      %1321 = vmatmul.mubr.f32.gmra.mrb[0].mxu0 %v1156
      %v1322 = vpop.f32.mrb[0].mxu0
      %v1323 = vadd.f32 0.0, %v1322
      %v1324 = vpop.f32.mrb[0].mxu0
      %1325 = vmatprep.mubr.f32.mxu0 0.0
      %1326 = vmatmul.mubr.f32.gmra.mrb[0].mxu0 %v1158
      %v1327 = vpop.f32.mrb[0].mxu0
      %v1328 = vadd.f32 0.0, %v1327
      %v1329 = vpop.f32.mrb[0].mxu0
      %1330 = vmatprep.mubr.f32.mxu0 0.0
      %1331 = vmatmul.mubr.f32.gmra.mrb[0].mxu0 %v1160
      %v1332 = vpop.f32.mrb[0].mxu0
      %v1333 = vadd.f32 0.0, %v1332
      %v1334 = vpop.f32.mrb[0].mxu0
      %1335 = vmatprep.mubr.f32.mxu0 0.0
      %1336 = vmatmul.mubr.f32.gmra.mrb[0].mxu0 %v1162
      %v1337 = vpop.f32.mrb[0].mxu0
      %v1338 = vadd.f32 0.0, %v1337
      %v1339 = vpop.f32.mrb[0].mxu0
      %1340 = vmatprep.mubr.f32.mxu0 0.0
      %1341 = vmatmul.mubr.f32.gmra.mrb[0].mxu0 %v1164
      %v1342 = vpop.f32.mrb[0].mxu0
      %v1343 = vadd.f32 0.0, %v1342
      %v1344 = vpop.f32.mrb[0].mxu0
      %1345 = vmatprep.mubr.f32.mxu0 0.0
      %1346 = vmatmul.mubr.f32.gmra.mrb[0].mxu0 %v1166
      %v1347 = vpop.f32.mrb[0].mxu0
      %v1348 = vadd.f32 0.0, %v1347
      %v1349 = vpop.f32.mrb[0].mxu0
      %1350 = vmatprep.mubr.f32.mxu0 0.0
      %1351 = vmatmul.mubr.f32.gmra.mrb[0].mxu0 %v1168
      %v1352 = vpop.f32.mrb[0].mxu0
      %v1353 = vadd.f32 0.0, %v1352
      %v1354 = vpop.f32.mrb[0].mxu0
      %1355 = vmatprep.mubr.f32.mxu0 0.0
      %1356 = vmatmul.mubr.f32.gmra.mrb[0].mxu0 %v1170
      %v1357 = vpop.f32.mrb[0].mxu0
      %v1358 = vadd.f32 0.0, %v1357
      %v1359 = vpop.f32.mrb[0].mxu0
      %1360 = vmatprep.mubr.f32.mxu0 0.0
      %1361 = vmatmul.mubr.f32.gmra.mrb[0].mxu0 %v1172
      %v1362 = vpop.f32.mrb[0].mxu0
      %v1363 = vadd.f32 0.0, %v1362
      %v1364 = vpop.f32.mrb[0].mxu0
      %1365 = vmatprep.mubr.f32.mxu0 0.0
      %1366 = vmatmul.mubr.f32.gmra.mrb[0].mxu0 %v1174
      %v1367 = vpop.f32.mrb[0].mxu0
      %v1368 = vadd.f32 0.0, %v1367
      %v1369 = vpop.f32.mrb[0].mxu0
      %1370 = vmatprep.mubr.f32.mxu0 0.0
      %1371 = vmatmul.mubr.f32.gmra.mrb[0].mxu0 %v1176
      %v1372 = vpop.f32.mrb[0].mxu0
      %v1373 = vadd.f32 0.0, %v1372
      %v1374 = vpop.f32.mrb[0].mxu0
      %1375 = vmatprep.mubr.f32.mxu0 0.0
      %1376 = vmatmul.mubr.f32.gmra.mrb[0].mxu0 %v1178
      %v1377 = vpop.f32.mrb[0].mxu0
      %v1378 = vadd.f32 0.0, %v1377
      %v1379 = vpop.f32.mrb[0].mxu0
      %1380 = vmatprep.mubr.f32.mxu0 0.0
      %1381 = vmatmul.mubr.f32.gmra.mrb[0].mxu0 %v1180
      %v1382 = vpop.f32.mrb[0].mxu0
      %v1383 = vadd.f32 0.0, %v1382
      %v1384 = vpop.f32.mrb[0].mxu0
      %1385 = vmatprep.mubr.f32.mxu0 0.0
      %1386 = vmatmul.mubr.f32.gmra.mrb[0].mxu0 %v1182
      %v1387 = vpop.f32.mrb[0].mxu0
      %v1388 = vadd.f32 0.0, %v1387
      %v1389 = vpop.f32.mrb[0].mxu0
      %1390 = vmatprep.mubr.f32.mxu0 0.0
      %1391 = vmatmul.mubr.f32.gmra.mrb[0].mxu0 %v1184
      %v1392 = vpop.f32.mrb[0].mxu0
      %v1393 = vadd.f32 0.0, %v1392
      %v1394 = vpop.f32.mrb[0].mxu0
      %1395 = vmatprep.mubr.f32.mxu0 0.0
      %1396 = vmatmul.mubr.f32.gmra.mrb[0].mxu0 %v1186
      %v1397 = vpop.f32.mrb[0].mxu0
      %v1398 = vadd.f32 0.0, %v1397
      %v1399 = vpop.f32.mrb[0].mxu0
      %1400 = vmatprep.mubr.f32.mxu0 0.0
      %1401 = vmatmul.mubr.f32.gmra.mrb[0].mxu0 %v1188
      %v1402 = vpop.f32.mrb[0].mxu0
      %v1403 = vadd.f32 0.0, %v1402
      %v1404 = vpop.f32.mrb[0].mxu0
      %1405 = vmatprep.mubr.f32.mxu0 0.0
      %1406 = vmatmul.mubr.f32.gmra.mrb[0].mxu0 %v1190
      %v1407 = vpop.f32.mrb[0].mxu0
      %v1408 = vadd.f32 0.0, %v1407
      %v1409 = vpop.f32.mrb[0].mxu0
      %1410 = vmatprep.mubr.f32.mxu0 0.0
      %1411 = vmatmul.mubr.f32.gmra.mrb[0].mxu0 %v1192
      %v1412 = vpop.f32.mrb[0].mxu0
      %v1413 = vadd.f32 0.0, %v1412
      %v1414 = vpop.f32.mrb[0].mxu0
      %1415 = vmatprep.mubr.f32.mxu0 0.0
      %1416 = vmatmul.mubr.f32.gmra.mrb[0].mxu0 %v1194
      %v1417 = vpop.f32.mrb[0].mxu0
      %v1418 = vadd.f32 0.0, %v1417
      %v1419 = vpop.f32.mrb[0].mxu0
      %1420 = vmatprep.mubr.f32.mxu0 0.0
      %1421 = vmatmul.mubr.f32.gmra.mrb[0].mxu0 %v1196
      %v1422 = vpop.f32.mrb[0].mxu0
      %v1423 = vadd.f32 0.0, %v1422
      %v1424 = vpop.f32.mrb[0].mxu0
      %1425 = vdwg.mxu0
      %v1427 = vsel %vm1133, %v1000, 0
      %v1430 = vsel %vm1133, %v1001, 0
      %v1433 = vsel %vm1133, %v1002, 0
      %v1436 = vsel %vm1133, %v1003, 0
      %v1439 = vsel %vm1133, %v1004, 0
      %v1442 = vsel %vm1133, %v1005, 0
      %v1445 = vsel %vm1133, %v1006, 0
      %v1448 = vsel %vm1133, %v1007, 0
      %v1451 = vsel %vm1133, %v1008, 0
      %v1454 = vsel %vm1133, %v1009, 0
      %v1457 = vsel %vm1133, %v1010, 0
      %v1460 = vsel %vm1133, %v1011, 0
      %v1463 = vsel %vm1133, %v1012, 0
      %v1466 = vsel %vm1133, %v1013, 0
      %v1469 = vsel %vm1133, %v1014, 0
      %v1472 = vsel %vm1133, %v1015, 0
      %v1475 = vsel %vm1133, %v1016, 0
      %v1478 = vsel %vm1133, %v1017, 0
      %v1481 = vsel %vm1133, %v1018, 0
      %v1484 = vsel %vm1133, %v1019, 0
      %v1487 = vsel %vm1133, %v1020, 0
      %v1490 = vsel %vm1133, %v1021, 0
      %v1493 = vsel %vm1133, %v1022, 0
      %v1496 = vsel %vm1133, %v1023, 0
      %v1499 = vsel %vm1133, %v1024, 0
      %v1502 = vsel %vm1133, %v1025, 0
      %v1505 = vsel %vm1133, %v1026, 0
      %v1508 = vsel %vm1133, %v1027, 0
      %v1511 = vsel %vm1133, %v1028, 0
      %v1514 = vsel %vm1133, %v1029, 0
      %v1517 = vsel %vm1133, %v1030, 0
      %v1520 = vsel %vm1133, %v1031, 0
      %v1522 = vsel %vm1198, %v771, 0
      %1524 = vmatprep.subr.mxu0 0.0
      %1525 = vmatpush1.msra.mxu0 %v1522
      %1526 = vmatprep.subr.mxu0 0.0
      %1527 = vmatpush1.msra.mxu0 0.0
      %1528 = vmatprep.subr.mxu0 0.0
      %1529 = vmatpush1.msra.mxu0 0.0
      %1530 = vmatprep.subr.mxu0 0.0
      %1531 = vmatpush1.msra.mxu0 0.0
      %1532 = vmatprep.subr.mxu0 0.0
      %1533 = vmatpush1.msra.mxu0 0.0
      %1534 = vmatprep.subr.mxu0 0.0
      %1535 = vmatpush1.msra.mxu0 0.0
      %1536 = vmatprep.subr.mxu0 0.0
      %1537 = vmatpush1.msra.mxu0 0.0
      %1538 = vmatprep.subr.mxu0 0.0
      %1539 = vmatpush1.msra.mxu0 0.0
      %1540 = vmatprep.subr.mxu0 0.0
      %1541 = vmatpush1.msra.mxu0 0.0
      %1542 = vmatprep.subr.mxu0 0.0
      %1543 = vmatpush1.msra.mxu0 0.0
      %1544 = vmatprep.subr.mxu0 0.0
      %1545 = vmatpush1.msra.mxu0 0.0
      %1546 = vmatprep.subr.mxu0 0.0
      %1547 = vmatpush1.msra.mxu0 0.0
      %1548 = vmatprep.subr.mxu0 0.0
      %1549 = vmatpush1.msra.mxu0 0.0
      %1550 = vmatprep.subr.mxu0 0.0
      %1551 = vmatpush1.msra.mxu0 0.0
      %1552 = vmatprep.subr.mxu0 0.0
      %1553 = vmatpush1.msra.mxu0 0.0
      %1554 = vmatprep.subr.mxu0 0.0
      %1555 = vmatpush1.msra.mxu0 0.0
      %1556 = vmatprep.subr.mxu0 0.0
      %1557 = vmatpush1.msra.mxu0 0.0
      %1558 = vmatprep.subr.mxu0 0.0
      %1559 = vmatpush1.msra.mxu0 0.0
      %1560 = vmatprep.subr.mxu0 0.0
      %1561 = vmatpush1.msra.mxu0 0.0
      %1562 = vmatprep.subr.mxu0 0.0
      %1563 = vmatpush1.msra.mxu0 0.0
      %1564 = vmatprep.subr.mxu0 0.0
      %1565 = vmatpush1.msra.mxu0 0.0
      %1566 = vmatprep.subr.mxu0 0.0
      %1567 = vmatpush1.msra.mxu0 0.0
      %1568 = vmatprep.subr.mxu0 0.0
      %1569 = vmatpush1.msra.mxu0 0.0
      %1570 = vmatprep.subr.mxu0 0.0
      %1571 = vmatpush1.msra.mxu0 0.0
      %1572 = vmatprep.subr.mxu0 0.0
      %1573 = vmatpush1.msra.mxu0 0.0
      %1574 = vmatprep.subr.mxu0 0.0
      %1575 = vmatpush1.msra.mxu0 0.0
      %1576 = vmatprep.subr.mxu0 0.0
      %1577 = vmatpush1.msra.mxu0 0.0
      %1578 = vmatprep.subr.mxu0 0.0
      %1579 = vmatpush1.msra.mxu0 0.0
      %1580 = vmatprep.subr.mxu0 0.0
      %1581 = vmatpush1.msra.mxu0 0.0
      %1582 = vmatprep.subr.mxu0 0.0
      %1583 = vmatpush1.msra.mxu0 0.0
      %1584 = vmatprep.subr.mxu0 0.0
      %1585 = vmatpush1.msra.mxu0 0.0
      %1586 = vmatprep.subr.mxu0 0.0
      %1587 = vmatpush1.msra.mxu0 0.0
      %1588 = vmatprep.mubr.f32.mxu0 0.0
      %1589 = vmatmul.mubr.f32.gmra.mrb[0].mxu0 %v1427
      %v1590 = vpop.f32.mrb[0].mxu0
      %v1591 = vadd.f32 %v1268, %v1590
      %v1592 = vpop.f32.mrb[0].mxu0
      %1593 = vmatprep.mubr.f32.mxu0 0.0
      %1594 = vmatmul.mubr.f32.gmra.mrb[0].mxu0 %v1430
      %v1595 = vpop.f32.mrb[0].mxu0
      %v1596 = vadd.f32 %v1273, %v1595
      %v1597 = vpop.f32.mrb[0].mxu0
      %1598 = vmatprep.mubr.f32.mxu0 0.0
      %1599 = vmatmul.mubr.f32.gmra.mrb[0].mxu0 %v1433
      %v1600 = vpop.f32.mrb[0].mxu0
      %v1601 = vadd.f32 %v1278, %v1600
      %v1602 = vpop.f32.mrb[0].mxu0
      %1603 = vmatprep.mubr.f32.mxu0 0.0
      %1604 = vmatmul.mubr.f32.gmra.mrb[0].mxu0 %v1436
      %v1605 = vpop.f32.mrb[0].mxu0
      %v1606 = vadd.f32 %v1283, %v1605
      %v1607 = vpop.f32.mrb[0].mxu0
      %1608 = vmatprep.mubr.f32.mxu0 0.0
      %1609 = vmatmul.mubr.f32.gmra.mrb[0].mxu0 %v1439
      %v1610 = vpop.f32.mrb[0].mxu0
      %v1611 = vadd.f32 %v1288, %v1610
      %v1612 = vpop.f32.mrb[0].mxu0
      %1613 = vmatprep.mubr.f32.mxu0 0.0
      %1614 = vmatmul.mubr.f32.gmra.mrb[0].mxu0 %v1442
      %v1615 = vpop.f32.mrb[0].mxu0
      %v1616 = vadd.f32 %v1293, %v1615
      %v1617 = vpop.f32.mrb[0].mxu0
      %1618 = vmatprep.mubr.f32.mxu0 0.0
      %1619 = vmatmul.mubr.f32.gmra.mrb[0].mxu0 %v1445
      %v1620 = vpop.f32.mrb[0].mxu0
      %v1621 = vadd.f32 %v1298, %v1620
      %v1622 = vpop.f32.mrb[0].mxu0
      %1623 = vmatprep.mubr.f32.mxu0 0.0
      %1624 = vmatmul.mubr.f32.gmra.mrb[0].mxu0 %v1448
      %v1625 = vpop.f32.mrb[0].mxu0
      %v1626 = vadd.f32 %v1303, %v1625
      %v1627 = vpop.f32.mrb[0].mxu0
      %1628 = vmatprep.mubr.f32.mxu0 0.0
      %1629 = vmatmul.mubr.f32.gmra.mrb[0].mxu0 %v1451
      %v1630 = vpop.f32.mrb[0].mxu0
      %v1631 = vadd.f32 %v1308, %v1630
      %v1632 = vpop.f32.mrb[0].mxu0
      %1633 = vmatprep.mubr.f32.mxu0 0.0
      %1634 = vmatmul.mubr.f32.gmra.mrb[0].mxu0 %v1454
      %v1635 = vpop.f32.mrb[0].mxu0
      %v1636 = vadd.f32 %v1313, %v1635
      %v1637 = vpop.f32.mrb[0].mxu0
      %1638 = vmatprep.mubr.f32.mxu0 0.0
      %1639 = vmatmul.mubr.f32.gmra.mrb[0].mxu0 %v1457
      %v1640 = vpop.f32.mrb[0].mxu0
      %v1641 = vadd.f32 %v1318, %v1640
      %v1642 = vpop.f32.mrb[0].mxu0
      %1643 = vmatprep.mubr.f32.mxu0 0.0
      %1644 = vmatmul.mubr.f32.gmra.mrb[0].mxu0 %v1460
      %v1645 = vpop.f32.mrb[0].mxu0
      %v1646 = vadd.f32 %v1323, %v1645
      %v1647 = vpop.f32.mrb[0].mxu0
      %1648 = vmatprep.mubr.f32.mxu0 0.0
      %1649 = vmatmul.mubr.f32.gmra.mrb[0].mxu0 %v1463
      %v1650 = vpop.f32.mrb[0].mxu0
      %v1651 = vadd.f32 %v1328, %v1650
      %v1652 = vpop.f32.mrb[0].mxu0
      %1653 = vmatprep.mubr.f32.mxu0 0.0
      %1654 = vmatmul.mubr.f32.gmra.mrb[0].mxu0 %v1466
      %v1655 = vpop.f32.mrb[0].mxu0
      %v1656 = vadd.f32 %v1333, %v1655
      %v1657 = vpop.f32.mrb[0].mxu0
      %1658 = vmatprep.mubr.f32.mxu0 0.0
      %1659 = vmatmul.mubr.f32.gmra.mrb[0].mxu0 %v1469
      %v1660 = vpop.f32.mrb[0].mxu0
      %v1661 = vadd.f32 %v1338, %v1660
      %v1662 = vpop.f32.mrb[0].mxu0
      %1663 = vmatprep.mubr.f32.mxu0 0.0
      %1664 = vmatmul.mubr.f32.gmra.mrb[0].mxu0 %v1472
      %v1665 = vpop.f32.mrb[0].mxu0
      %v1666 = vadd.f32 %v1343, %v1665
      %v1667 = vpop.f32.mrb[0].mxu0
      %1668 = vmatprep.mubr.f32.mxu0 0.0
      %1669 = vmatmul.mubr.f32.gmra.mrb[0].mxu0 %v1475
      %v1670 = vpop.f32.mrb[0].mxu0
      %v1671 = vadd.f32 %v1348, %v1670
      %v1672 = vpop.f32.mrb[0].mxu0
      %1673 = vmatprep.mubr.f32.mxu0 0.0
      %1674 = vmatmul.mubr.f32.gmra.mrb[0].mxu0 %v1478
      %v1675 = vpop.f32.mrb[0].mxu0
      %v1676 = vadd.f32 %v1353, %v1675
      %v1677 = vpop.f32.mrb[0].mxu0
      %1678 = vmatprep.mubr.f32.mxu0 0.0
      %1679 = vmatmul.mubr.f32.gmra.mrb[0].mxu0 %v1481
      %v1680 = vpop.f32.mrb[0].mxu0
      %v1681 = vadd.f32 %v1358, %v1680
      %v1682 = vpop.f32.mrb[0].mxu0
      %1683 = vmatprep.mubr.f32.mxu0 0.0
      %1684 = vmatmul.mubr.f32.gmra.mrb[0].mxu0 %v1484
      %v1685 = vpop.f32.mrb[0].mxu0
      %v1686 = vadd.f32 %v1363, %v1685
      %v1687 = vpop.f32.mrb[0].mxu0
      %1688 = vmatprep.mubr.f32.mxu0 0.0
      %1689 = vmatmul.mubr.f32.gmra.mrb[0].mxu0 %v1487
      %v1690 = vpop.f32.mrb[0].mxu0
      %v1691 = vadd.f32 %v1368, %v1690
      %v1692 = vpop.f32.mrb[0].mxu0
      %1693 = vmatprep.mubr.f32.mxu0 0.0
      %1694 = vmatmul.mubr.f32.gmra.mrb[0].mxu0 %v1490
      %v1695 = vpop.f32.mrb[0].mxu0
      %v1696 = vadd.f32 %v1373, %v1695
      %v1697 = vpop.f32.mrb[0].mxu0
      %1698 = vmatprep.mubr.f32.mxu0 0.0
      %1699 = vmatmul.mubr.f32.gmra.mrb[0].mxu0 %v1493
      %v1700 = vpop.f32.mrb[0].mxu0
      %v1701 = vadd.f32 %v1378, %v1700
      %v1702 = vpop.f32.mrb[0].mxu0
      %1703 = vmatprep.mubr.f32.mxu0 0.0
      %1704 = vmatmul.mubr.f32.gmra.mrb[0].mxu0 %v1496
      %v1705 = vpop.f32.mrb[0].mxu0
      %v1706 = vadd.f32 %v1383, %v1705
      %v1707 = vpop.f32.mrb[0].mxu0
      %1708 = vmatprep.mubr.f32.mxu0 0.0
      %1709 = vmatmul.mubr.f32.gmra.mrb[0].mxu0 %v1499
      %v1710 = vpop.f32.mrb[0].mxu0
      %v1711 = vadd.f32 %v1388, %v1710
      %v1712 = vpop.f32.mrb[0].mxu0
      %1713 = vmatprep.mubr.f32.mxu0 0.0
      %1714 = vmatmul.mubr.f32.gmra.mrb[0].mxu0 %v1502
      %v1715 = vpop.f32.mrb[0].mxu0
      %v1716 = vadd.f32 %v1393, %v1715
      %v1717 = vpop.f32.mrb[0].mxu0
      %1718 = vmatprep.mubr.f32.mxu0 0.0
      %1719 = vmatmul.mubr.f32.gmra.mrb[0].mxu0 %v1505
      %v1720 = vpop.f32.mrb[0].mxu0
      %v1721 = vadd.f32 %v1398, %v1720
      %v1722 = vpop.f32.mrb[0].mxu0
      %1723 = vmatprep.mubr.f32.mxu0 0.0
      %1724 = vmatmul.mubr.f32.gmra.mrb[0].mxu0 %v1508
      %v1725 = vpop.f32.mrb[0].mxu0
      %v1726 = vadd.f32 %v1403, %v1725
      %v1727 = vpop.f32.mrb[0].mxu0
      %1728 = vmatprep.mubr.f32.mxu0 0.0
      %1729 = vmatmul.mubr.f32.gmra.mrb[0].mxu0 %v1511
      %v1730 = vpop.f32.mrb[0].mxu0
      %v1731 = vadd.f32 %v1408, %v1730
      %v1732 = vpop.f32.mrb[0].mxu0
      %1733 = vmatprep.mubr.f32.mxu0 0.0
      %1734 = vmatmul.mubr.f32.gmra.mrb[0].mxu0 %v1514
      %v1735 = vpop.f32.mrb[0].mxu0
      %v1736 = vadd.f32 %v1413, %v1735
      %v1737 = vpop.f32.mrb[0].mxu0
      %1738 = vmatprep.mubr.f32.mxu0 0.0
      %1739 = vmatmul.mubr.f32.gmra.mrb[0].mxu0 %v1517
      %v1740 = vpop.f32.mrb[0].mxu0
      %v1741 = vadd.f32 %v1418, %v1740
      %v1742 = vpop.f32.mrb[0].mxu0
      %1743 = vmatprep.mubr.f32.mxu0 0.0
      %1744 = vmatmul.mubr.f32.gmra.mrb[0].mxu0 %v1520
      %v1745 = vpop.f32.mrb[0].mxu0
      %v1746 = vadd.f32 %v1423, %v1745
      %v1747 = vpop.f32.mrb[0].mxu0
      %1748 = vdwg.mxu0
      %1750 = vset.pattern.permute.xlu0 0
      %1751 = vperm.xlu0 %1750, %v808
      %v1752 = vpop.permute.xlu0 %1751
      %1754 = vset.pattern.permute.xlu0 0
      %1755 = vperm.xlu0 %1754, %v809
      %v1756 = vpop.permute.xlu0 %1755
      %1758 = vset.pattern.permute.xlu0 0
      %1759 = vperm.xlu0 %1758, %v810
      %v1760 = vpop.permute.xlu0 %1759
      %1762 = vset.pattern.permute.xlu0 0
      %1763 = vperm.xlu0 %1762, %v811
      %v1764 = vpop.permute.xlu0 %1763
      %1766 = vset.pattern.permute.xlu0 0
      %1767 = vperm.xlu0 %1766, %v812
      %v1768 = vpop.permute.xlu0 %1767
      %1770 = vset.pattern.permute.xlu0 0
      %1771 = vperm.xlu0 %1770, %v813
      %v1772 = vpop.permute.xlu0 %1771
      %1774 = vset.pattern.permute.xlu0 0
      %1775 = vperm.xlu0 %1774, %v814
      %v1776 = vpop.permute.xlu0 %1775
      %1778 = vset.pattern.permute.xlu0 0
      %1779 = vperm.xlu0 %1778, %v815
      %v1780 = vpop.permute.xlu0 %1779
      %1782 = vset.pattern.permute.xlu0 0
      %1783 = vperm.xlu0 %1782, %v816
      %v1784 = vpop.permute.xlu0 %1783
      %1786 = vset.pattern.permute.xlu0 0
      %1787 = vperm.xlu0 %1786, %v817
      %v1788 = vpop.permute.xlu0 %1787
      %1790 = vset.pattern.permute.xlu0 0
      %1791 = vperm.xlu0 %1790, %v818
      %v1792 = vpop.permute.xlu0 %1791
      %1794 = vset.pattern.permute.xlu0 0
      %1795 = vperm.xlu0 %1794, %v819
      %v1796 = vpop.permute.xlu0 %1795
      %1798 = vset.pattern.permute.xlu0 0
      %1799 = vperm.xlu0 %1798, %v820
      %v1800 = vpop.permute.xlu0 %1799
      %1802 = vset.pattern.permute.xlu0 0
      %1803 = vperm.xlu0 %1802, %v821
      %v1804 = vpop.permute.xlu0 %1803
      %1806 = vset.pattern.permute.xlu0 0
      %1807 = vperm.xlu0 %1806, %v822
      %v1808 = vpop.permute.xlu0 %1807
      %1810 = vset.pattern.permute.xlu0 0
      %1811 = vperm.xlu0 %1810, %v823
      %v1812 = vpop.permute.xlu0 %1811
      %1814 = vset.pattern.permute.xlu0 0
      %1815 = vperm.xlu0 %1814, %v824
      %v1816 = vpop.permute.xlu0 %1815
      %1818 = vset.pattern.permute.xlu0 0
      %1819 = vperm.xlu0 %1818, %v825
      %v1820 = vpop.permute.xlu0 %1819
      %1822 = vset.pattern.permute.xlu0 0
      %1823 = vperm.xlu0 %1822, %v826
      %v1824 = vpop.permute.xlu0 %1823
      %1826 = vset.pattern.permute.xlu0 0
      %1827 = vperm.xlu0 %1826, %v827
      %v1828 = vpop.permute.xlu0 %1827
      %1830 = vset.pattern.permute.xlu0 0
      %1831 = vperm.xlu0 %1830, %v828
      %v1832 = vpop.permute.xlu0 %1831
      %1834 = vset.pattern.permute.xlu0 0
      %1835 = vperm.xlu0 %1834, %v829
      %v1836 = vpop.permute.xlu0 %1835
      %1838 = vset.pattern.permute.xlu0 0
      %1839 = vperm.xlu0 %1838, %v830
      %v1840 = vpop.permute.xlu0 %1839
      %1842 = vset.pattern.permute.xlu0 0
      %1843 = vperm.xlu0 %1842, %v831
      %v1844 = vpop.permute.xlu0 %1843
      %1846 = vset.pattern.permute.xlu0 0
      %1847 = vperm.xlu0 %1846, %v832
      %v1848 = vpop.permute.xlu0 %1847
      %1850 = vset.pattern.permute.xlu0 0
      %1851 = vperm.xlu0 %1850, %v833
      %v1852 = vpop.permute.xlu0 %1851
      %1854 = vset.pattern.permute.xlu0 0
      %1855 = vperm.xlu0 %1854, %v834
      %v1856 = vpop.permute.xlu0 %1855
      %1858 = vset.pattern.permute.xlu0 0
      %1859 = vperm.xlu0 %1858, %v835
      %v1860 = vpop.permute.xlu0 %1859
      %1862 = vset.pattern.permute.xlu0 0
      %1863 = vperm.xlu0 %1862, %v836
      %v1864 = vpop.permute.xlu0 %1863
      %1866 = vset.pattern.permute.xlu0 0
      %1867 = vperm.xlu0 %1866, %v837
      %v1868 = vpop.permute.xlu0 %1867
      %1870 = vset.pattern.permute.xlu0 0
      %1871 = vperm.xlu0 %1870, %v838
      %v1872 = vpop.permute.xlu0 %1871
      %1874 = vset.pattern.permute.xlu0 0
      %1875 = vperm.xlu0 %1874, %v839
      %v1876 = vpop.permute.xlu0 %1875
      %vm1877 = vcmask 1041408
      %v1878 = vrot.slane %v1752, 6
      %v1879 = vrot.slane %v1756, 6
      %v1880 = vsel %vm1877, %v1878, %v1879
      %v1881 = vrot.slane %v1760, 6
      %v1882 = vsel %vm1877, %v1879, %v1881
      %v1883 = vrot.slane %v1764, 6
      %v1884 = vsel %vm1877, %v1881, %v1883
      %v1885 = vrot.slane %v1768, 6
      %v1886 = vsel %vm1877, %v1883, %v1885
      %v1887 = vrot.slane %v1772, 6
      %v1888 = vsel %vm1877, %v1885, %v1887
      %v1889 = vrot.slane %v1776, 6
      %v1890 = vsel %vm1877, %v1887, %v1889
      %v1891 = vrot.slane %v1780, 6
      %v1892 = vsel %vm1877, %v1889, %v1891
      %v1893 = vrot.slane %v1784, 6
      %v1894 = vsel %vm1877, %v1891, %v1893
      %v1895 = vrot.slane %v1788, 6
      %v1896 = vsel %vm1877, %v1893, %v1895
      %v1897 = vrot.slane %v1792, 6
      %v1898 = vsel %vm1877, %v1895, %v1897
      %v1899 = vrot.slane %v1796, 6
      %v1900 = vsel %vm1877, %v1897, %v1899
      %v1901 = vrot.slane %v1800, 6
      %v1902 = vsel %vm1877, %v1899, %v1901
      %v1903 = vrot.slane %v1804, 6
      %v1904 = vsel %vm1877, %v1901, %v1903
      %v1905 = vrot.slane %v1808, 6
      %v1906 = vsel %vm1877, %v1903, %v1905
      %v1907 = vrot.slane %v1812, 6
      %v1908 = vsel %vm1877, %v1905, %v1907
      %v1909 = vrot.slane %v1816, 6
      %v1910 = vsel %vm1877, %v1907, %v1909
      %v1911 = vrot.slane %v1820, 6
      %v1912 = vsel %vm1877, %v1909, %v1911
      %v1913 = vrot.slane %v1824, 6
      %v1914 = vsel %vm1877, %v1911, %v1913
      %v1915 = vrot.slane %v1828, 6
      %v1916 = vsel %vm1877, %v1913, %v1915
      %v1917 = vrot.slane %v1832, 6
      %v1918 = vsel %vm1877, %v1915, %v1917
      %v1919 = vrot.slane %v1836, 6
      %v1920 = vsel %vm1877, %v1917, %v1919
      %v1921 = vrot.slane %v1840, 6
      %v1922 = vsel %vm1877, %v1919, %v1921
      %v1923 = vrot.slane %v1844, 6
      %v1924 = vsel %vm1877, %v1921, %v1923
      %v1925 = vrot.slane %v1848, 6
      %v1926 = vsel %vm1877, %v1923, %v1925
      %v1927 = vrot.slane %v1852, 6
      %v1928 = vsel %vm1877, %v1925, %v1927
      %v1929 = vrot.slane %v1856, 6
      %v1930 = vsel %vm1877, %v1927, %v1929
      %v1931 = vrot.slane %v1860, 6
      %v1932 = vsel %vm1877, %v1929, %v1931
      %v1933 = vrot.slane %v1864, 6
      %v1934 = vsel %vm1877, %v1931, %v1933
      %v1935 = vrot.slane %v1868, 6
      %v1936 = vsel %vm1877, %v1933, %v1935
      %v1937 = vrot.slane %v1872, 6
      %v1938 = vsel %vm1877, %v1935, %v1937
      %v1939 = vrot.slane %v1876, 6
      %v1940 = vsel %vm1877, %v1937, %v1939
      %v1974 = vmul.f32 %v734, %v1878
      %v1975 = vmul.f32 %v735, %v1880
      %v1976 = vmul.f32 %v736, %v1882
      %v1977 = vmul.f32 %v737, %v1884
      %v1978 = vmul.f32 %v738, %v1886
      %v1979 = vmul.f32 %v739, %v1888
      %v1980 = vmul.f32 %v740, %v1890
      %v1981 = vmul.f32 %v741, %v1892
      %v1982 = vmul.f32 %v742, %v1894
      %v1983 = vmul.f32 %v743, %v1896
      %v1984 = vmul.f32 %v744, %v1898
      %v1985 = vmul.f32 %v745, %v1900
      %v1986 = vmul.f32 %v746, %v1902
      %v1987 = vmul.f32 %v747, %v1904
      %v1988 = vmul.f32 %v748, %v1906
      %v1989 = vmul.f32 %v749, %v1908
      %v1990 = vmul.f32 %v750, %v1910
      %v1991 = vmul.f32 %v751, %v1912
      %v1992 = vmul.f32 %v752, %v1914
      %v1993 = vmul.f32 %v753, %v1916
      %v1994 = vmul.f32 %v754, %v1918
      %v1995 = vmul.f32 %v755, %v1920
      %v1996 = vmul.f32 %v756, %v1922
      %v1997 = vmul.f32 %v757, %v1924
      %v1998 = vmul.f32 %v758, %v1926
      %v1999 = vmul.f32 %v759, %v1928
      %v2000 = vmul.f32 %v760, %v1930
      %v2001 = vmul.f32 %v761, %v1932
      %v2002 = vmul.f32 %v762, %v1934
      %v2003 = vmul.f32 %v763, %v1936
      %v2004 = vmul.f32 %v764, %v1938
      %v2005 = vmul.f32 %v765, %v1940
      %v2006 = vmul.f32 %v766, %v1939
      %vm2040 = vcmask 1045504
      %v2041 = vrot.slane %v1974, 2
      %v2042 = vrot.slane %v1975, 2
      %v2043 = vsel %vm2040, %v2041, %v2042
      %v2044 = vrot.slane %v1976, 2
      %v2045 = vsel %vm2040, %v2042, %v2044
      %v2046 = vrot.slane %v1977, 2
      %v2047 = vsel %vm2040, %v2044, %v2046
      %v2048 = vrot.slane %v1978, 2
      %v2049 = vsel %vm2040, %v2046, %v2048
      %v2050 = vrot.slane %v1979, 2
      %v2051 = vsel %vm2040, %v2048, %v2050
      %v2052 = vrot.slane %v1980, 2
      %v2053 = vsel %vm2040, %v2050, %v2052
      %v2054 = vrot.slane %v1981, 2
      %v2055 = vsel %vm2040, %v2052, %v2054
      %v2056 = vrot.slane %v1982, 2
      %v2057 = vsel %vm2040, %v2054, %v2056
      %v2058 = vrot.slane %v1983, 2
      %v2059 = vsel %vm2040, %v2056, %v2058
      %v2060 = vrot.slane %v1984, 2
      %v2061 = vsel %vm2040, %v2058, %v2060
      %v2062 = vrot.slane %v1985, 2
      %v2063 = vsel %vm2040, %v2060, %v2062
      %v2064 = vrot.slane %v1986, 2
      %v2065 = vsel %vm2040, %v2062, %v2064
      %v2066 = vrot.slane %v1987, 2
      %v2067 = vsel %vm2040, %v2064, %v2066
      %v2068 = vrot.slane %v1988, 2
      %v2069 = vsel %vm2040, %v2066, %v2068
      %v2070 = vrot.slane %v1989, 2
      %v2071 = vsel %vm2040, %v2068, %v2070
      %v2072 = vrot.slane %v1990, 2
      %v2073 = vsel %vm2040, %v2070, %v2072
      %v2074 = vrot.slane %v1991, 2
      %v2075 = vsel %vm2040, %v2072, %v2074
      %v2076 = vrot.slane %v1992, 2
      %v2077 = vsel %vm2040, %v2074, %v2076
      %v2078 = vrot.slane %v1993, 2
      %v2079 = vsel %vm2040, %v2076, %v2078
      %v2080 = vrot.slane %v1994, 2
      %v2081 = vsel %vm2040, %v2078, %v2080
      %v2082 = vrot.slane %v1995, 2
      %v2083 = vsel %vm2040, %v2080, %v2082
      %v2084 = vrot.slane %v1996, 2
      %v2085 = vsel %vm2040, %v2082, %v2084
      %v2086 = vrot.slane %v1997, 2
      %v2087 = vsel %vm2040, %v2084, %v2086
      %v2088 = vrot.slane %v1998, 2
      %v2089 = vsel %vm2040, %v2086, %v2088
      %v2090 = vrot.slane %v1999, 2
      %v2091 = vsel %vm2040, %v2088, %v2090
      %v2092 = vrot.slane %v2000, 2
      %v2093 = vsel %vm2040, %v2090, %v2092
      %v2094 = vrot.slane %v2001, 2
      %v2095 = vsel %vm2040, %v2092, %v2094
      %v2096 = vrot.slane %v2002, 2
      %v2097 = vsel %vm2040, %v2094, %v2096
      %v2098 = vrot.slane %v2003, 2
      %v2099 = vsel %vm2040, %v2096, %v2098
      %v2100 = vrot.slane %v2004, 2
      %v2101 = vsel %vm2040, %v2098, %v2100
      %v2102 = vrot.slane %v2005, 2
      %v2103 = vsel %vm2040, %v2100, %v2102
      %v2104 = vrot.slane %v2006, 2
      %v2105 = vsel %vm2040, %v2102, %v2104
      %v2106 = vsel %vm1133, %v2043, 0
      %v2108 = vsel %vm1133, %v2045, 0
      %v2110 = vsel %vm1133, %v2047, 0
      %v2112 = vsel %vm1133, %v2049, 0
      %v2114 = vsel %vm1133, %v2051, 0
      %v2116 = vsel %vm1133, %v2053, 0
      %v2118 = vsel %vm1133, %v2055, 0
      %v2120 = vsel %vm1133, %v2057, 0
      %v2122 = vsel %vm1133, %v2059, 0
      %v2124 = vsel %vm1133, %v2061, 0
      %v2126 = vsel %vm1133, %v2063, 0
      %v2128 = vsel %vm1133, %v2065, 0
      %v2130 = vsel %vm1133, %v2067, 0
      %v2132 = vsel %vm1133, %v2069, 0
      %v2134 = vsel %vm1133, %v2071, 0
      %v2136 = vsel %vm1133, %v2073, 0
      %v2138 = vsel %vm1133, %v2075, 0
      %v2140 = vsel %vm1133, %v2077, 0
      %v2142 = vsel %vm1133, %v2079, 0
      %v2144 = vsel %vm1133, %v2081, 0
      %v2146 = vsel %vm1133, %v2083, 0
      %v2148 = vsel %vm1133, %v2085, 0
      %v2150 = vsel %vm1133, %v2087, 0
      %v2152 = vsel %vm1133, %v2089, 0
      %v2154 = vsel %vm1133, %v2091, 0
      %v2156 = vsel %vm1133, %v2093, 0
      %v2158 = vsel %vm1133, %v2095, 0
      %v2160 = vsel %vm1133, %v2097, 0
      %v2162 = vsel %vm1133, %v2099, 0
      %v2164 = vsel %vm1133, %v2101, 0
      %v2166 = vsel %vm1133, %v2103, 0
      %v2168 = vsel %vm1133, %v2105, 0
      %v2171 = vsel %vm1198, %v772, 0
      %2173 = vmatprep.subr.mxu0 0.0
      %2174 = vmatpush1.msra.mxu0 %v2171
      %2175 = vmatprep.subr.mxu0 0.0
      %2176 = vmatpush1.msra.mxu0 0.0
      %2177 = vmatprep.subr.mxu0 0.0
      %2178 = vmatpush1.msra.mxu0 0.0
      %2179 = vmatprep.subr.mxu0 0.0
      %2180 = vmatpush1.msra.mxu0 0.0
      %2181 = vmatprep.subr.mxu0 0.0
      %2182 = vmatpush1.msra.mxu0 0.0
      %2183 = vmatprep.subr.mxu0 0.0
      %2184 = vmatpush1.msra.mxu0 0.0
      %2185 = vmatprep.subr.mxu0 0.0
      %2186 = vmatpush1.msra.mxu0 0.0
      %2187 = vmatprep.subr.mxu0 0.0
      %2188 = vmatpush1.msra.mxu0 0.0
      %2189 = vmatprep.subr.mxu0 0.0
      %2190 = vmatpush1.msra.mxu0 0.0
      %2191 = vmatprep.subr.mxu0 0.0
      %2192 = vmatpush1.msra.mxu0 0.0
      %2193 = vmatprep.subr.mxu0 0.0
      %2194 = vmatpush1.msra.mxu0 0.0
      %2195 = vmatprep.subr.mxu0 0.0
      %2196 = vmatpush1.msra.mxu0 0.0
      %2197 = vmatprep.subr.mxu0 0.0
      %2198 = vmatpush1.msra.mxu0 0.0
      %2199 = vmatprep.subr.mxu0 0.0
      %2200 = vmatpush1.msra.mxu0 0.0
      %2201 = vmatprep.subr.mxu0 0.0
      %2202 = vmatpush1.msra.mxu0 0.0
      %2203 = vmatprep.subr.mxu0 0.0
      %2204 = vmatpush1.msra.mxu0 0.0
      %2205 = vmatprep.subr.mxu0 0.0
      %2206 = vmatpush1.msra.mxu0 0.0
      %2207 = vmatprep.subr.mxu0 0.0
      %2208 = vmatpush1.msra.mxu0 0.0
      %2209 = vmatprep.subr.mxu0 0.0
      %2210 = vmatpush1.msra.mxu0 0.0
      %2211 = vmatprep.subr.mxu0 0.0
      %2212 = vmatpush1.msra.mxu0 0.0
      %2213 = vmatprep.subr.mxu0 0.0
      %2214 = vmatpush1.msra.mxu0 0.0
      %2215 = vmatprep.subr.mxu0 0.0
      %2216 = vmatpush1.msra.mxu0 0.0
      %2217 = vmatprep.subr.mxu0 0.0
      %2218 = vmatpush1.msra.mxu0 0.0
      %2219 = vmatprep.subr.mxu0 0.0
      %2220 = vmatpush1.msra.mxu0 0.0
      %2221 = vmatprep.subr.mxu0 0.0
      %2222 = vmatpush1.msra.mxu0 0.0
      %2223 = vmatprep.subr.mxu0 0.0
      %2224 = vmatpush1.msra.mxu0 0.0
      %2225 = vmatprep.subr.mxu0 0.0
      %2226 = vmatpush1.msra.mxu0 0.0
      %2227 = vmatprep.subr.mxu0 0.0
      %2228 = vmatpush1.msra.mxu0 0.0
      %2229 = vmatprep.subr.mxu0 0.0
      %2230 = vmatpush1.msra.mxu0 0.0
      %2231 = vmatprep.subr.mxu0 0.0
      %2232 = vmatpush1.msra.mxu0 0.0
      %2233 = vmatprep.subr.mxu0 0.0
      %2234 = vmatpush1.msra.mxu0 0.0
      %2235 = vmatprep.subr.mxu0 0.0
      %2236 = vmatpush1.msra.mxu0 0.0
      %2237 = vmatprep.mubr.f32.mxu0 0.0
      %2238 = vmatmul.mubr.f32.gmra.mrb[0].mxu0 %v2106
      %v2239 = vpop.f32.mrb[0].mxu0
      %v2240 = vadd.f32 0.0, %v2239
      %v2241 = vpop.f32.mrb[0].mxu0
      %2242 = vmatprep.mubr.f32.mxu0 0.0
      %2243 = vmatmul.mubr.f32.gmra.mrb[0].mxu0 %v2108
      %v2244 = vpop.f32.mrb[0].mxu0
      %v2245 = vadd.f32 0.0, %v2244
      %v2246 = vpop.f32.mrb[0].mxu0
      %2247 = vmatprep.mubr.f32.mxu0 0.0
      %2248 = vmatmul.mubr.f32.gmra.mrb[0].mxu0 %v2110
      %v2249 = vpop.f32.mrb[0].mxu0
      %v2250 = vadd.f32 0.0, %v2249
      %v2251 = vpop.f32.mrb[0].mxu0
      %2252 = vmatprep.mubr.f32.mxu0 0.0
      %2253 = vmatmul.mubr.f32.gmra.mrb[0].mxu0 %v2112
      %v2254 = vpop.f32.mrb[0].mxu0
      %v2255 = vadd.f32 0.0, %v2254
      %v2256 = vpop.f32.mrb[0].mxu0
      %2257 = vmatprep.mubr.f32.mxu0 0.0
      %2258 = vmatmul.mubr.f32.gmra.mrb[0].mxu0 %v2114
      %v2259 = vpop.f32.mrb[0].mxu0
      %v2260 = vadd.f32 0.0, %v2259
      %v2261 = vpop.f32.mrb[0].mxu0
      %2262 = vmatprep.mubr.f32.mxu0 0.0
      %2263 = vmatmul.mubr.f32.gmra.mrb[0].mxu0 %v2116
      %v2264 = vpop.f32.mrb[0].mxu0
      %v2265 = vadd.f32 0.0, %v2264
      %v2266 = vpop.f32.mrb[0].mxu0
      %2267 = vmatprep.mubr.f32.mxu0 0.0
      %2268 = vmatmul.mubr.f32.gmra.mrb[0].mxu0 %v2118
      %v2269 = vpop.f32.mrb[0].mxu0
      %v2270 = vadd.f32 0.0, %v2269
      %v2271 = vpop.f32.mrb[0].mxu0
      %2272 = vmatprep.mubr.f32.mxu0 0.0
      %2273 = vmatmul.mubr.f32.gmra.mrb[0].mxu0 %v2120
      %v2274 = vpop.f32.mrb[0].mxu0
      %v2275 = vadd.f32 0.0, %v2274
      %v2276 = vpop.f32.mrb[0].mxu0
      %2277 = vmatprep.mubr.f32.mxu0 0.0
      %2278 = vmatmul.mubr.f32.gmra.mrb[0].mxu0 %v2122
      %v2279 = vpop.f32.mrb[0].mxu0
      %v2280 = vadd.f32 0.0, %v2279
      %v2281 = vpop.f32.mrb[0].mxu0
      %2282 = vmatprep.mubr.f32.mxu0 0.0
      %2283 = vmatmul.mubr.f32.gmra.mrb[0].mxu0 %v2124
      %v2284 = vpop.f32.mrb[0].mxu0
      %v2285 = vadd.f32 0.0, %v2284
      %v2286 = vpop.f32.mrb[0].mxu0
      %2287 = vmatprep.mubr.f32.mxu0 0.0
      %2288 = vmatmul.mubr.f32.gmra.mrb[0].mxu0 %v2126
      %v2289 = vpop.f32.mrb[0].mxu0
      %v2290 = vadd.f32 0.0, %v2289
      %v2291 = vpop.f32.mrb[0].mxu0
      %2292 = vmatprep.mubr.f32.mxu0 0.0
      %2293 = vmatmul.mubr.f32.gmra.mrb[0].mxu0 %v2128
      %v2294 = vpop.f32.mrb[0].mxu0
      %v2295 = vadd.f32 0.0, %v2294
      %v2296 = vpop.f32.mrb[0].mxu0
      %2297 = vmatprep.mubr.f32.mxu0 0.0
      %2298 = vmatmul.mubr.f32.gmra.mrb[0].mxu0 %v2130
      %v2299 = vpop.f32.mrb[0].mxu0
      %v2300 = vadd.f32 0.0, %v2299
      %v2301 = vpop.f32.mrb[0].mxu0
      %2302 = vmatprep.mubr.f32.mxu0 0.0
      %2303 = vmatmul.mubr.f32.gmra.mrb[0].mxu0 %v2132
      %v2304 = vpop.f32.mrb[0].mxu0
      %v2305 = vadd.f32 0.0, %v2304
      %v2306 = vpop.f32.mrb[0].mxu0
      %2307 = vmatprep.mubr.f32.mxu0 0.0
      %2308 = vmatmul.mubr.f32.gmra.mrb[0].mxu0 %v2134
      %v2309 = vpop.f32.mrb[0].mxu0
      %v2310 = vadd.f32 0.0, %v2309
      %v2311 = vpop.f32.mrb[0].mxu0
      %2312 = vmatprep.mubr.f32.mxu0 0.0
      %2313 = vmatmul.mubr.f32.gmra.mrb[0].mxu0 %v2136
      %v2314 = vpop.f32.mrb[0].mxu0
      %v2315 = vadd.f32 0.0, %v2314
      %v2316 = vpop.f32.mrb[0].mxu0
      %2317 = vmatprep.mubr.f32.mxu0 0.0
      %2318 = vmatmul.mubr.f32.gmra.mrb[0].mxu0 %v2138
      %v2319 = vpop.f32.mrb[0].mxu0
      %v2320 = vadd.f32 0.0, %v2319
      %v2321 = vpop.f32.mrb[0].mxu0
      %2322 = vmatprep.mubr.f32.mxu0 0.0
      %2323 = vmatmul.mubr.f32.gmra.mrb[0].mxu0 %v2140
      %v2324 = vpop.f32.mrb[0].mxu0
      %v2325 = vadd.f32 0.0, %v2324
      %v2326 = vpop.f32.mrb[0].mxu0
      %2327 = vmatprep.mubr.f32.mxu0 0.0
      %2328 = vmatmul.mubr.f32.gmra.mrb[0].mxu0 %v2142
      %v2329 = vpop.f32.mrb[0].mxu0
      %v2330 = vadd.f32 0.0, %v2329
      %v2331 = vpop.f32.mrb[0].mxu0
      %2332 = vmatprep.mubr.f32.mxu0 0.0
      %2333 = vmatmul.mubr.f32.gmra.mrb[0].mxu0 %v2144
      %v2334 = vpop.f32.mrb[0].mxu0
      %v2335 = vadd.f32 0.0, %v2334
      %v2336 = vpop.f32.mrb[0].mxu0
      %2337 = vmatprep.mubr.f32.mxu0 0.0
      %2338 = vmatmul.mubr.f32.gmra.mrb[0].mxu0 %v2146
      %v2339 = vpop.f32.mrb[0].mxu0
      %v2340 = vadd.f32 0.0, %v2339
      %v2341 = vpop.f32.mrb[0].mxu0
      %2342 = vmatprep.mubr.f32.mxu0 0.0
      %2343 = vmatmul.mubr.f32.gmra.mrb[0].mxu0 %v2148
      %v2344 = vpop.f32.mrb[0].mxu0
      %v2345 = vadd.f32 0.0, %v2344
      %v2346 = vpop.f32.mrb[0].mxu0
      %2347 = vmatprep.mubr.f32.mxu0 0.0
      %2348 = vmatmul.mubr.f32.gmra.mrb[0].mxu0 %v2150
      %v2349 = vpop.f32.mrb[0].mxu0
      %v2350 = vadd.f32 0.0, %v2349
      %v2351 = vpop.f32.mrb[0].mxu0
      %2352 = vmatprep.mubr.f32.mxu0 0.0
      %2353 = vmatmul.mubr.f32.gmra.mrb[0].mxu0 %v2152
      %v2354 = vpop.f32.mrb[0].mxu0
      %v2355 = vadd.f32 0.0, %v2354
      %v2356 = vpop.f32.mrb[0].mxu0
      %2357 = vmatprep.mubr.f32.mxu0 0.0
      %2358 = vmatmul.mubr.f32.gmra.mrb[0].mxu0 %v2154
      %v2359 = vpop.f32.mrb[0].mxu0
      %v2360 = vadd.f32 0.0, %v2359
      %v2361 = vpop.f32.mrb[0].mxu0
      %2362 = vmatprep.mubr.f32.mxu0 0.0
      %2363 = vmatmul.mubr.f32.gmra.mrb[0].mxu0 %v2156
      %v2364 = vpop.f32.mrb[0].mxu0
      %v2365 = vadd.f32 0.0, %v2364
      %v2366 = vpop.f32.mrb[0].mxu0
      %2367 = vmatprep.mubr.f32.mxu0 0.0
      %2368 = vmatmul.mubr.f32.gmra.mrb[0].mxu0 %v2158
      %v2369 = vpop.f32.mrb[0].mxu0
      %v2370 = vadd.f32 0.0, %v2369
      %v2371 = vpop.f32.mrb[0].mxu0
      %2372 = vmatprep.mubr.f32.mxu0 0.0
      %2373 = vmatmul.mubr.f32.gmra.mrb[0].mxu0 %v2160
      %v2374 = vpop.f32.mrb[0].mxu0
      %v2375 = vadd.f32 0.0, %v2374
      %v2376 = vpop.f32.mrb[0].mxu0
      %2377 = vmatprep.mubr.f32.mxu0 0.0
      %2378 = vmatmul.mubr.f32.gmra.mrb[0].mxu0 %v2162
      %v2379 = vpop.f32.mrb[0].mxu0
      %v2380 = vadd.f32 0.0, %v2379
      %v2381 = vpop.f32.mrb[0].mxu0
      %2382 = vmatprep.mubr.f32.mxu0 0.0
      %2383 = vmatmul.mubr.f32.gmra.mrb[0].mxu0 %v2164
      %v2384 = vpop.f32.mrb[0].mxu0
      %v2385 = vadd.f32 0.0, %v2384
      %v2386 = vpop.f32.mrb[0].mxu0
      %2387 = vmatprep.mubr.f32.mxu0 0.0
      %2388 = vmatmul.mubr.f32.gmra.mrb[0].mxu0 %v2166
      %v2389 = vpop.f32.mrb[0].mxu0
      %v2390 = vadd.f32 0.0, %v2389
      %v2391 = vpop.f32.mrb[0].mxu0
      %2392 = vmatprep.mubr.f32.mxu0 0.0
      %2393 = vmatmul.mubr.f32.gmra.mrb[0].mxu0 %v2168
      %v2394 = vpop.f32.mrb[0].mxu0
      %v2395 = vadd.f32 0.0, %v2394
      %v2396 = vpop.f32.mrb[0].mxu0
      %2397 = vdwg.mxu0
      %v2398 = vadd.f32 %v1591, %v2240
      %v2399 = vadd.f32 %v1596, %v2245
      %v2400 = vadd.f32 %v1601, %v2250
      %v2401 = vadd.f32 %v1606, %v2255
      %v2402 = vadd.f32 %v1611, %v2260
      %v2403 = vadd.f32 %v1616, %v2265
      %v2404 = vadd.f32 %v1621, %v2270
      %v2405 = vadd.f32 %v1626, %v2275
      %v2406 = vadd.f32 %v1631, %v2280
      %v2407 = vadd.f32 %v1636, %v2285
      %v2408 = vadd.f32 %v1641, %v2290
      %v2409 = vadd.f32 %v1646, %v2295
      %v2410 = vadd.f32 %v1651, %v2300
      %v2411 = vadd.f32 %v1656, %v2305
      %v2412 = vadd.f32 %v1661, %v2310
      %v2413 = vadd.f32 %v1666, %v2315
      %v2414 = vadd.f32 %v1671, %v2320
      %v2415 = vadd.f32 %v1676, %v2325
      %v2416 = vadd.f32 %v1681, %v2330
      %v2417 = vadd.f32 %v1686, %v2335
      %v2418 = vadd.f32 %v1691, %v2340
      %v2419 = vadd.f32 %v1696, %v2345
      %v2420 = vadd.f32 %v1701, %v2350
      %v2421 = vadd.f32 %v1706, %v2355
      %v2422 = vadd.f32 %v1711, %v2360
      %v2423 = vadd.f32 %v1716, %v2365
      %v2424 = vadd.f32 %v1721, %v2370
      %v2425 = vadd.f32 %v1726, %v2375
      %v2426 = vadd.f32 %v1731, %v2380
      %v2427 = vadd.f32 %v1736, %v2385
      %v2428 = vadd.f32 %v1741, %v2390
      %v2429 = vadd.f32 %v1746, %v2395
      %v2430 = vmul.f32 %v736, %v843
      %v2431 = vmul.f32 %v737, %v848
      %v2432 = vmul.f32 %v738, %v853
      %v2433 = vmul.f32 %v739, %v858
      %v2434 = vmul.f32 %v740, %v863
      %v2435 = vmul.f32 %v741, %v868
      %v2436 = vmul.f32 %v742, %v873
      %v2437 = vmul.f32 %v743, %v878
      %v2438 = vmul.f32 %v744, %v883
      %v2439 = vmul.f32 %v745, %v888
      %v2440 = vmul.f32 %v746, %v893
      %v2441 = vmul.f32 %v747, %v898
      %v2442 = vmul.f32 %v748, %v903
      %v2443 = vmul.f32 %v749, %v908
      %v2444 = vmul.f32 %v750, %v913
      %v2445 = vmul.f32 %v751, %v918
      %v2446 = vmul.f32 %v752, %v923
      %v2447 = vmul.f32 %v753, %v928
      %v2448 = vmul.f32 %v754, %v933
      %v2449 = vmul.f32 %v755, %v938
      %v2450 = vmul.f32 %v756, %v943
      %v2451 = vmul.f32 %v757, %v948
      %v2452 = vmul.f32 %v758, %v953
      %v2453 = vmul.f32 %v759, %v958
      %v2454 = vmul.f32 %v760, %v963
      %v2455 = vmul.f32 %v761, %v968
      %v2456 = vmul.f32 %v762, %v973
      %v2457 = vmul.f32 %v763, %v978
      %v2458 = vmul.f32 %v764, %v983
      %v2459 = vmul.f32 %v765, %v988
      %v2460 = vmul.f32 %v766, %v993
      %v2461 = vmul.f32 %v767, %v998
      %v2462 = vrot.slane %v772, 4
      %v2464 = vsel %vm1133, %v2430, 0
      %v2467 = vsel %vm1133, %v2431, 0
      %v2470 = vsel %vm1133, %v2432, 0
      %v2473 = vsel %vm1133, %v2433, 0
      %v2476 = vsel %vm1133, %v2434, 0
      %v2479 = vsel %vm1133, %v2435, 0
      %v2482 = vsel %vm1133, %v2436, 0
      %v2485 = vsel %vm1133, %v2437, 0
      %v2488 = vsel %vm1133, %v2438, 0
      %v2491 = vsel %vm1133, %v2439, 0
      %v2494 = vsel %vm1133, %v2440, 0
      %v2497 = vsel %vm1133, %v2441, 0
      %v2500 = vsel %vm1133, %v2442, 0
      %v2503 = vsel %vm1133, %v2443, 0
      %v2506 = vsel %vm1133, %v2444, 0
      %v2509 = vsel %vm1133, %v2445, 0
      %v2512 = vsel %vm1133, %v2446, 0
      %v2515 = vsel %vm1133, %v2447, 0
      %v2518 = vsel %vm1133, %v2448, 0
      %v2521 = vsel %vm1133, %v2449, 0
      %v2524 = vsel %vm1133, %v2450, 0
      %v2527 = vsel %vm1133, %v2451, 0
      %v2530 = vsel %vm1133, %v2452, 0
      %v2533 = vsel %vm1133, %v2453, 0
      %v2536 = vsel %vm1133, %v2454, 0
      %v2539 = vsel %vm1133, %v2455, 0
      %v2542 = vsel %vm1133, %v2456, 0
      %v2545 = vsel %vm1133, %v2457, 0
      %v2548 = vsel %vm1133, %v2458, 0
      %v2551 = vsel %vm1133, %v2459, 0
      %v2554 = vsel %vm1133, %v2460, 0
      %v2557 = vsel %vm1133, %v2461, 0
      %v2559 = vsel %vm1198, %v2462, 0
      %2561 = vmatprep.subr.mxu0 0.0
      %2562 = vmatpush1.msra.mxu0 %v2559
      %2563 = vmatprep.subr.mxu0 0.0
      %2564 = vmatpush1.msra.mxu0 0.0
      %2565 = vmatprep.subr.mxu0 0.0
      %2566 = vmatpush1.msra.mxu0 0.0
      %2567 = vmatprep.subr.mxu0 0.0
      %2568 = vmatpush1.msra.mxu0 0.0
      %2569 = vmatprep.subr.mxu0 0.0
      %2570 = vmatpush1.msra.mxu0 0.0
      %2571 = vmatprep.subr.mxu0 0.0
      %2572 = vmatpush1.msra.mxu0 0.0
      %2573 = vmatprep.subr.mxu0 0.0
      %2574 = vmatpush1.msra.mxu0 0.0
      %2575 = vmatprep.subr.mxu0 0.0
      %2576 = vmatpush1.msra.mxu0 0.0
      %2577 = vmatprep.subr.mxu0 0.0
      %2578 = vmatpush1.msra.mxu0 0.0
      %2579 = vmatprep.subr.mxu0 0.0
      %2580 = vmatpush1.msra.mxu0 0.0
      %2581 = vmatprep.subr.mxu0 0.0
      %2582 = vmatpush1.msra.mxu0 0.0
      %2583 = vmatprep.subr.mxu0 0.0
      %2584 = vmatpush1.msra.mxu0 0.0
      %2585 = vmatprep.subr.mxu0 0.0
      %2586 = vmatpush1.msra.mxu0 0.0
      %2587 = vmatprep.subr.mxu0 0.0
      %2588 = vmatpush1.msra.mxu0 0.0
      %2589 = vmatprep.subr.mxu0 0.0
      %2590 = vmatpush1.msra.mxu0 0.0
      %2591 = vmatprep.subr.mxu0 0.0
      %2592 = vmatpush1.msra.mxu0 0.0
      %2593 = vmatprep.subr.mxu0 0.0
      %2594 = vmatpush1.msra.mxu0 0.0
      %2595 = vmatprep.subr.mxu0 0.0
      %2596 = vmatpush1.msra.mxu0 0.0
      %2597 = vmatprep.subr.mxu0 0.0
      %2598 = vmatpush1.msra.mxu0 0.0
      %2599 = vmatprep.subr.mxu0 0.0
      %2600 = vmatpush1.msra.mxu0 0.0
      %2601 = vmatprep.subr.mxu0 0.0
      %2602 = vmatpush1.msra.mxu0 0.0
      %2603 = vmatprep.subr.mxu0 0.0
      %2604 = vmatpush1.msra.mxu0 0.0
      %2605 = vmatprep.subr.mxu0 0.0
      %2606 = vmatpush1.msra.mxu0 0.0
      %2607 = vmatprep.subr.mxu0 0.0
      %2608 = vmatpush1.msra.mxu0 0.0
      %2609 = vmatprep.subr.mxu0 0.0
      %2610 = vmatpush1.msra.mxu0 0.0
      %2611 = vmatprep.subr.mxu0 0.0
      %2612 = vmatpush1.msra.mxu0 0.0
      %2613 = vmatprep.subr.mxu0 0.0
      %2614 = vmatpush1.msra.mxu0 0.0
      %2615 = vmatprep.subr.mxu0 0.0
      %2616 = vmatpush1.msra.mxu0 0.0
      %2617 = vmatprep.subr.mxu0 0.0
      %2618 = vmatpush1.msra.mxu0 0.0
      %2619 = vmatprep.subr.mxu0 0.0
      %2620 = vmatpush1.msra.mxu0 0.0
      %2621 = vmatprep.subr.mxu0 0.0
      %2622 = vmatpush1.msra.mxu0 0.0
      %2623 = vmatprep.subr.mxu0 0.0
      %2624 = vmatpush1.msra.mxu0 0.0
      %2625 = vmatprep.mubr.f32.mxu0 0.0
      %2626 = vmatmul.mubr.f32.gmra.mrb[0].mxu0 %v2464
      %v2627 = vpop.f32.mrb[0].mxu0
      %v2628 = vadd.f32 0.0, %v2627
      %v2629 = vpop.f32.mrb[0].mxu0
      %2630 = vmatprep.mubr.f32.mxu0 0.0
      %2631 = vmatmul.mubr.f32.gmra.mrb[0].mxu0 %v2467
      %v2632 = vpop.f32.mrb[0].mxu0
      %v2633 = vadd.f32 0.0, %v2632
      %v2634 = vpop.f32.mrb[0].mxu0
      %2635 = vmatprep.mubr.f32.mxu0 0.0
      %2636 = vmatmul.mubr.f32.gmra.mrb[0].mxu0 %v2470
      %v2637 = vpop.f32.mrb[0].mxu0
      %v2638 = vadd.f32 0.0, %v2637
      %v2639 = vpop.f32.mrb[0].mxu0
      %2640 = vmatprep.mubr.f32.mxu0 0.0
      %2641 = vmatmul.mubr.f32.gmra.mrb[0].mxu0 %v2473
      %v2642 = vpop.f32.mrb[0].mxu0
      %v2643 = vadd.f32 0.0, %v2642
      %v2644 = vpop.f32.mrb[0].mxu0
      %2645 = vmatprep.mubr.f32.mxu0 0.0
      %2646 = vmatmul.mubr.f32.gmra.mrb[0].mxu0 %v2476
      %v2647 = vpop.f32.mrb[0].mxu0
      %v2648 = vadd.f32 0.0, %v2647
      %v2649 = vpop.f32.mrb[0].mxu0
      %2650 = vmatprep.mubr.f32.mxu0 0.0
      %2651 = vmatmul.mubr.f32.gmra.mrb[0].mxu0 %v2479
      %v2652 = vpop.f32.mrb[0].mxu0
      %v2653 = vadd.f32 0.0, %v2652
      %v2654 = vpop.f32.mrb[0].mxu0
      %2655 = vmatprep.mubr.f32.mxu0 0.0
      %2656 = vmatmul.mubr.f32.gmra.mrb[0].mxu0 %v2482
      %v2657 = vpop.f32.mrb[0].mxu0
      %v2658 = vadd.f32 0.0, %v2657
      %v2659 = vpop.f32.mrb[0].mxu0
      %2660 = vmatprep.mubr.f32.mxu0 0.0
      %2661 = vmatmul.mubr.f32.gmra.mrb[0].mxu0 %v2485
      %v2662 = vpop.f32.mrb[0].mxu0
      %v2663 = vadd.f32 0.0, %v2662
      %v2664 = vpop.f32.mrb[0].mxu0
      %2665 = vmatprep.mubr.f32.mxu0 0.0
      %2666 = vmatmul.mubr.f32.gmra.mrb[0].mxu0 %v2488
      %v2667 = vpop.f32.mrb[0].mxu0
      %v2668 = vadd.f32 0.0, %v2667
      %v2669 = vpop.f32.mrb[0].mxu0
      %2670 = vmatprep.mubr.f32.mxu0 0.0
      %2671 = vmatmul.mubr.f32.gmra.mrb[0].mxu0 %v2491
      %v2672 = vpop.f32.mrb[0].mxu0
      %v2673 = vadd.f32 0.0, %v2672
      %v2674 = vpop.f32.mrb[0].mxu0
      %2675 = vmatprep.mubr.f32.mxu0 0.0
      %2676 = vmatmul.mubr.f32.gmra.mrb[0].mxu0 %v2494
      %v2677 = vpop.f32.mrb[0].mxu0
      %v2678 = vadd.f32 0.0, %v2677
      %v2679 = vpop.f32.mrb[0].mxu0
      %2680 = vmatprep.mubr.f32.mxu0 0.0
      %2681 = vmatmul.mubr.f32.gmra.mrb[0].mxu0 %v2497
      %v2682 = vpop.f32.mrb[0].mxu0
      %v2683 = vadd.f32 0.0, %v2682
      %v2684 = vpop.f32.mrb[0].mxu0
      %2685 = vmatprep.mubr.f32.mxu0 0.0
      %2686 = vmatmul.mubr.f32.gmra.mrb[0].mxu0 %v2500
      %v2687 = vpop.f32.mrb[0].mxu0
      %v2688 = vadd.f32 0.0, %v2687
      %v2689 = vpop.f32.mrb[0].mxu0
      %2690 = vmatprep.mubr.f32.mxu0 0.0
      %2691 = vmatmul.mubr.f32.gmra.mrb[0].mxu0 %v2503
      %v2692 = vpop.f32.mrb[0].mxu0
      %v2693 = vadd.f32 0.0, %v2692
      %v2694 = vpop.f32.mrb[0].mxu0
      %2695 = vmatprep.mubr.f32.mxu0 0.0
      %2696 = vmatmul.mubr.f32.gmra.mrb[0].mxu0 %v2506
      %v2697 = vpop.f32.mrb[0].mxu0
      %v2698 = vadd.f32 0.0, %v2697
      %v2699 = vpop.f32.mrb[0].mxu0
      %2700 = vmatprep.mubr.f32.mxu0 0.0
      %2701 = vmatmul.mubr.f32.gmra.mrb[0].mxu0 %v2509
      %v2702 = vpop.f32.mrb[0].mxu0
      %v2703 = vadd.f32 0.0, %v2702
      %v2704 = vpop.f32.mrb[0].mxu0
      %2705 = vmatprep.mubr.f32.mxu0 0.0
      %2706 = vmatmul.mubr.f32.gmra.mrb[0].mxu0 %v2512
      %v2707 = vpop.f32.mrb[0].mxu0
      %v2708 = vadd.f32 0.0, %v2707
      %v2709 = vpop.f32.mrb[0].mxu0
      %2710 = vmatprep.mubr.f32.mxu0 0.0
      %2711 = vmatmul.mubr.f32.gmra.mrb[0].mxu0 %v2515
      %v2712 = vpop.f32.mrb[0].mxu0
      %v2713 = vadd.f32 0.0, %v2712
      %v2714 = vpop.f32.mrb[0].mxu0
      %2715 = vmatprep.mubr.f32.mxu0 0.0
      %2716 = vmatmul.mubr.f32.gmra.mrb[0].mxu0 %v2518
      %v2717 = vpop.f32.mrb[0].mxu0
      %v2718 = vadd.f32 0.0, %v2717
      %v2719 = vpop.f32.mrb[0].mxu0
      %2720 = vmatprep.mubr.f32.mxu0 0.0
      %2721 = vmatmul.mubr.f32.gmra.mrb[0].mxu0 %v2521
      %v2722 = vpop.f32.mrb[0].mxu0
      %v2723 = vadd.f32 0.0, %v2722
      %v2724 = vpop.f32.mrb[0].mxu0
      %2725 = vmatprep.mubr.f32.mxu0 0.0
      %2726 = vmatmul.mubr.f32.gmra.mrb[0].mxu0 %v2524
      %v2727 = vpop.f32.mrb[0].mxu0
      %v2728 = vadd.f32 0.0, %v2727
      %v2729 = vpop.f32.mrb[0].mxu0
      %2730 = vmatprep.mubr.f32.mxu0 0.0
      %2731 = vmatmul.mubr.f32.gmra.mrb[0].mxu0 %v2527
      %v2732 = vpop.f32.mrb[0].mxu0
      %v2733 = vadd.f32 0.0, %v2732
      %v2734 = vpop.f32.mrb[0].mxu0
      %2735 = vmatprep.mubr.f32.mxu0 0.0
      %2736 = vmatmul.mubr.f32.gmra.mrb[0].mxu0 %v2530
      %v2737 = vpop.f32.mrb[0].mxu0
      %v2738 = vadd.f32 0.0, %v2737
      %v2739 = vpop.f32.mrb[0].mxu0
      %2740 = vmatprep.mubr.f32.mxu0 0.0
      %2741 = vmatmul.mubr.f32.gmra.mrb[0].mxu0 %v2533
      %v2742 = vpop.f32.mrb[0].mxu0
      %v2743 = vadd.f32 0.0, %v2742
      %v2744 = vpop.f32.mrb[0].mxu0
      %2745 = vmatprep.mubr.f32.mxu0 0.0
      %2746 = vmatmul.mubr.f32.gmra.mrb[0].mxu0 %v2536
      %v2747 = vpop.f32.mrb[0].mxu0
      %v2748 = vadd.f32 0.0, %v2747
      %v2749 = vpop.f32.mrb[0].mxu0
      %2750 = vmatprep.mubr.f32.mxu0 0.0
      %2751 = vmatmul.mubr.f32.gmra.mrb[0].mxu0 %v2539
      %v2752 = vpop.f32.mrb[0].mxu0
      %v2753 = vadd.f32 0.0, %v2752
      %v2754 = vpop.f32.mrb[0].mxu0
      %2755 = vmatprep.mubr.f32.mxu0 0.0
      %2756 = vmatmul.mubr.f32.gmra.mrb[0].mxu0 %v2542
      %v2757 = vpop.f32.mrb[0].mxu0
      %v2758 = vadd.f32 0.0, %v2757
      %v2759 = vpop.f32.mrb[0].mxu0
      %2760 = vmatprep.mubr.f32.mxu0 0.0
      %2761 = vmatmul.mubr.f32.gmra.mrb[0].mxu0 %v2545
      %v2762 = vpop.f32.mrb[0].mxu0
      %v2763 = vadd.f32 0.0, %v2762
      %v2764 = vpop.f32.mrb[0].mxu0
      %2765 = vmatprep.mubr.f32.mxu0 0.0
      %2766 = vmatmul.mubr.f32.gmra.mrb[0].mxu0 %v2548
      %v2767 = vpop.f32.mrb[0].mxu0
      %v2768 = vadd.f32 0.0, %v2767
      %v2769 = vpop.f32.mrb[0].mxu0
      %2770 = vmatprep.mubr.f32.mxu0 0.0
      %2771 = vmatmul.mubr.f32.gmra.mrb[0].mxu0 %v2551
      %v2772 = vpop.f32.mrb[0].mxu0
      %v2773 = vadd.f32 0.0, %v2772
      %v2774 = vpop.f32.mrb[0].mxu0
      %2775 = vmatprep.mubr.f32.mxu0 0.0
      %2776 = vmatmul.mubr.f32.gmra.mrb[0].mxu0 %v2554
      %v2777 = vpop.f32.mrb[0].mxu0
      %v2778 = vadd.f32 0.0, %v2777
      %v2779 = vpop.f32.mrb[0].mxu0
      %2780 = vmatprep.mubr.f32.mxu0 0.0
      %2781 = vmatmul.mubr.f32.gmra.mrb[0].mxu0 %v2557
      %v2782 = vpop.f32.mrb[0].mxu0
      %v2783 = vadd.f32 0.0, %v2782
      %v2784 = vpop.f32.mrb[0].mxu0
      %2785 = vdwg.mxu0
      %v2786 = vadd.f32 %v2398, %v2628
      %v2787 = vadd.f32 %v2399, %v2633
      %v2788 = vadd.f32 %v2400, %v2638
      %v2789 = vadd.f32 %v2401, %v2643
      %v2790 = vadd.f32 %v2402, %v2648
      %v2791 = vadd.f32 %v2403, %v2653
      %v2792 = vadd.f32 %v2404, %v2658
      %v2793 = vadd.f32 %v2405, %v2663
      %v2794 = vadd.f32 %v2406, %v2668
      %v2795 = vadd.f32 %v2407, %v2673
      %v2796 = vadd.f32 %v2408, %v2678
      %v2797 = vadd.f32 %v2409, %v2683
      %v2798 = vadd.f32 %v2410, %v2688
      %v2799 = vadd.f32 %v2411, %v2693
      %v2800 = vadd.f32 %v2412, %v2698
      %v2801 = vadd.f32 %v2413, %v2703
      %v2802 = vadd.f32 %v2414, %v2708
      %v2803 = vadd.f32 %v2415, %v2713
      %v2804 = vadd.f32 %v2416, %v2718
      %v2805 = vadd.f32 %v2417, %v2723
      %v2806 = vadd.f32 %v2418, %v2728
      %v2807 = vadd.f32 %v2419, %v2733
      %v2808 = vadd.f32 %v2420, %v2738
      %v2809 = vadd.f32 %v2421, %v2743
      %v2810 = vadd.f32 %v2422, %v2748
      %v2811 = vadd.f32 %v2423, %v2753
      %v2812 = vadd.f32 %v2424, %v2758
      %v2813 = vadd.f32 %v2425, %v2763
      %v2814 = vadd.f32 %v2426, %v2768
      %v2815 = vadd.f32 %v2427, %v2773
      %v2816 = vadd.f32 %v2428, %v2778
      %v2817 = vadd.f32 %v2429, %v2783
      %v2820 = vrot.slane %v767, 1
      %v2821 = vsel %vm1065, %v1129, %v2820
      %v2822 = vrot.slane %v768, 1
      %v2823 = vsel %vm1065, %v2820, %v2822
      %v2824 = vsel %vm1133, %v2821, 0
      %v2826 = vsel %vm1133, %v2823, 0
      %v2829 = vsel %vm1198, %v773, 0
      %2831 = vmatprep.subr.mxu0 0.0
      %2832 = vmatpush1.msra.mxu0 %v2829
      %2833 = vmatprep.subr.mxu0 0.0
      %2834 = vmatpush1.msra.mxu0 0.0
      %2835 = vmatprep.subr.mxu0 0.0
      %2836 = vmatpush1.msra.mxu0 0.0
      %2837 = vmatprep.subr.mxu0 0.0
      %2838 = vmatpush1.msra.mxu0 0.0
      %2839 = vmatprep.subr.mxu0 0.0
      %2840 = vmatpush1.msra.mxu0 0.0
      %2841 = vmatprep.subr.mxu0 0.0
      %2842 = vmatpush1.msra.mxu0 0.0
      %2843 = vmatprep.subr.mxu0 0.0
      %2844 = vmatpush1.msra.mxu0 0.0
      %2845 = vmatprep.subr.mxu0 0.0
      %2846 = vmatpush1.msra.mxu0 0.0
      %2847 = vmatprep.subr.mxu0 0.0
      %2848 = vmatpush1.msra.mxu0 0.0
      %2849 = vmatprep.subr.mxu0 0.0
      %2850 = vmatpush1.msra.mxu0 0.0
      %2851 = vmatprep.subr.mxu0 0.0
      %2852 = vmatpush1.msra.mxu0 0.0
      %2853 = vmatprep.subr.mxu0 0.0
      %2854 = vmatpush1.msra.mxu0 0.0
      %2855 = vmatprep.subr.mxu0 0.0
      %2856 = vmatpush1.msra.mxu0 0.0
      %2857 = vmatprep.subr.mxu0 0.0
      %2858 = vmatpush1.msra.mxu0 0.0
      %2859 = vmatprep.subr.mxu0 0.0
      %2860 = vmatpush1.msra.mxu0 0.0
      %2861 = vmatprep.subr.mxu0 0.0
      %2862 = vmatpush1.msra.mxu0 0.0
      %2863 = vmatprep.subr.mxu0 0.0
      %2864 = vmatpush1.msra.mxu0 0.0
      %2865 = vmatprep.subr.mxu0 0.0
      %2866 = vmatpush1.msra.mxu0 0.0
      %2867 = vmatprep.subr.mxu0 0.0
      %2868 = vmatpush1.msra.mxu0 0.0
      %2869 = vmatprep.subr.mxu0 0.0
      %2870 = vmatpush1.msra.mxu0 0.0
      %2871 = vmatprep.subr.mxu0 0.0
      %2872 = vmatpush1.msra.mxu0 0.0
      %2873 = vmatprep.subr.mxu0 0.0
      %2874 = vmatpush1.msra.mxu0 0.0
      %2875 = vmatprep.subr.mxu0 0.0
      %2876 = vmatpush1.msra.mxu0 0.0
      %2877 = vmatprep.subr.mxu0 0.0
      %2878 = vmatpush1.msra.mxu0 0.0
      %2879 = vmatprep.subr.mxu0 0.0
      %2880 = vmatpush1.msra.mxu0 0.0
      %2881 = vmatprep.subr.mxu0 0.0
      %2882 = vmatpush1.msra.mxu0 0.0
      %2883 = vmatprep.subr.mxu0 0.0
      %2884 = vmatpush1.msra.mxu0 0.0
      %2885 = vmatprep.subr.mxu0 0.0
      %2886 = vmatpush1.msra.mxu0 0.0
      %2887 = vmatprep.subr.mxu0 0.0
      %2888 = vmatpush1.msra.mxu0 0.0
      %2889 = vmatprep.subr.mxu0 0.0
      %2890 = vmatpush1.msra.mxu0 0.0
      %2891 = vmatprep.subr.mxu0 0.0
      %2892 = vmatpush1.msra.mxu0 0.0
      %2893 = vmatprep.subr.mxu0 0.0
      %2894 = vmatpush1.msra.mxu0 0.0
      %2895 = vmatprep.mubr.f32.mxu0 0.0
      %2896 = vmatmul.mubr.f32.gmra.mrb[0].mxu0 %v1138
      %v2897 = vpop.f32.mrb[0].mxu0
      %v2898 = vadd.f32 0.0, %v2897
      %v2899 = vpop.f32.mrb[0].mxu0
      %2900 = vmatprep.mubr.f32.mxu0 0.0
      %2901 = vmatmul.mubr.f32.gmra.mrb[0].mxu0 %v1140
      %v2902 = vpop.f32.mrb[0].mxu0
      %v2903 = vadd.f32 0.0, %v2902
      %v2904 = vpop.f32.mrb[0].mxu0
      %2905 = vmatprep.mubr.f32.mxu0 0.0
      %2906 = vmatmul.mubr.f32.gmra.mrb[0].mxu0 %v1142
      %v2907 = vpop.f32.mrb[0].mxu0
      %v2908 = vadd.f32 0.0, %v2907
      %v2909 = vpop.f32.mrb[0].mxu0
      %2910 = vmatprep.mubr.f32.mxu0 0.0
      %2911 = vmatmul.mubr.f32.gmra.mrb[0].mxu0 %v1144
      %v2912 = vpop.f32.mrb[0].mxu0
      %v2913 = vadd.f32 0.0, %v2912
      %v2914 = vpop.f32.mrb[0].mxu0
      %2915 = vmatprep.mubr.f32.mxu0 0.0
      %2916 = vmatmul.mubr.f32.gmra.mrb[0].mxu0 %v1146
      %v2917 = vpop.f32.mrb[0].mxu0
      %v2918 = vadd.f32 0.0, %v2917
      %v2919 = vpop.f32.mrb[0].mxu0
      %2920 = vmatprep.mubr.f32.mxu0 0.0
      %2921 = vmatmul.mubr.f32.gmra.mrb[0].mxu0 %v1148
      %v2922 = vpop.f32.mrb[0].mxu0
      %v2923 = vadd.f32 0.0, %v2922
      %v2924 = vpop.f32.mrb[0].mxu0
      %2925 = vmatprep.mubr.f32.mxu0 0.0
      %2926 = vmatmul.mubr.f32.gmra.mrb[0].mxu0 %v1150
      %v2927 = vpop.f32.mrb[0].mxu0
      %v2928 = vadd.f32 0.0, %v2927
      %v2929 = vpop.f32.mrb[0].mxu0
      %2930 = vmatprep.mubr.f32.mxu0 0.0
      %2931 = vmatmul.mubr.f32.gmra.mrb[0].mxu0 %v1152
      %v2932 = vpop.f32.mrb[0].mxu0
      %v2933 = vadd.f32 0.0, %v2932
      %v2934 = vpop.f32.mrb[0].mxu0
      %2935 = vmatprep.mubr.f32.mxu0 0.0
      %2936 = vmatmul.mubr.f32.gmra.mrb[0].mxu0 %v1154
      %v2937 = vpop.f32.mrb[0].mxu0
      %v2938 = vadd.f32 0.0, %v2937
      %v2939 = vpop.f32.mrb[0].mxu0
      %2940 = vmatprep.mubr.f32.mxu0 0.0
      %2941 = vmatmul.mubr.f32.gmra.mrb[0].mxu0 %v1156
      %v2942 = vpop.f32.mrb[0].mxu0
      %v2943 = vadd.f32 0.0, %v2942
      %v2944 = vpop.f32.mrb[0].mxu0
      %2945 = vmatprep.mubr.f32.mxu0 0.0
      %2946 = vmatmul.mubr.f32.gmra.mrb[0].mxu0 %v1158
      %v2947 = vpop.f32.mrb[0].mxu0
      %v2948 = vadd.f32 0.0, %v2947
      %v2949 = vpop.f32.mrb[0].mxu0
      %2950 = vmatprep.mubr.f32.mxu0 0.0
      %2951 = vmatmul.mubr.f32.gmra.mrb[0].mxu0 %v1160
      %v2952 = vpop.f32.mrb[0].mxu0
      %v2953 = vadd.f32 0.0, %v2952
      %v2954 = vpop.f32.mrb[0].mxu0
      %2955 = vmatprep.mubr.f32.mxu0 0.0
      %2956 = vmatmul.mubr.f32.gmra.mrb[0].mxu0 %v1162
      %v2957 = vpop.f32.mrb[0].mxu0
      %v2958 = vadd.f32 0.0, %v2957
      %v2959 = vpop.f32.mrb[0].mxu0
      %2960 = vmatprep.mubr.f32.mxu0 0.0
      %2961 = vmatmul.mubr.f32.gmra.mrb[0].mxu0 %v1164
      %v2962 = vpop.f32.mrb[0].mxu0
      %v2963 = vadd.f32 0.0, %v2962
      %v2964 = vpop.f32.mrb[0].mxu0
      %2965 = vmatprep.mubr.f32.mxu0 0.0
      %2966 = vmatmul.mubr.f32.gmra.mrb[0].mxu0 %v1166
      %v2967 = vpop.f32.mrb[0].mxu0
      %v2968 = vadd.f32 0.0, %v2967
      %v2969 = vpop.f32.mrb[0].mxu0
      %2970 = vmatprep.mubr.f32.mxu0 0.0
      %2971 = vmatmul.mubr.f32.gmra.mrb[0].mxu0 %v1168
      %v2972 = vpop.f32.mrb[0].mxu0
      %v2973 = vadd.f32 0.0, %v2972
      %v2974 = vpop.f32.mrb[0].mxu0
      %2975 = vmatprep.mubr.f32.mxu0 0.0
      %2976 = vmatmul.mubr.f32.gmra.mrb[0].mxu0 %v1170
      %v2977 = vpop.f32.mrb[0].mxu0
      %v2978 = vadd.f32 0.0, %v2977
      %v2979 = vpop.f32.mrb[0].mxu0
      %2980 = vmatprep.mubr.f32.mxu0 0.0
      %2981 = vmatmul.mubr.f32.gmra.mrb[0].mxu0 %v1172
      %v2982 = vpop.f32.mrb[0].mxu0
      %v2983 = vadd.f32 0.0, %v2982
      %v2984 = vpop.f32.mrb[0].mxu0
      %2985 = vmatprep.mubr.f32.mxu0 0.0
      %2986 = vmatmul.mubr.f32.gmra.mrb[0].mxu0 %v1174
      %v2987 = vpop.f32.mrb[0].mxu0
      %v2988 = vadd.f32 0.0, %v2987
      %v2989 = vpop.f32.mrb[0].mxu0
      %2990 = vmatprep.mubr.f32.mxu0 0.0
      %2991 = vmatmul.mubr.f32.gmra.mrb[0].mxu0 %v1176
      %v2992 = vpop.f32.mrb[0].mxu0
      %v2993 = vadd.f32 0.0, %v2992
      %v2994 = vpop.f32.mrb[0].mxu0
      %2995 = vmatprep.mubr.f32.mxu0 0.0
      %2996 = vmatmul.mubr.f32.gmra.mrb[0].mxu0 %v1178
      %v2997 = vpop.f32.mrb[0].mxu0
      %v2998 = vadd.f32 0.0, %v2997
      %v2999 = vpop.f32.mrb[0].mxu0
      %3000 = vmatprep.mubr.f32.mxu0 0.0
      %3001 = vmatmul.mubr.f32.gmra.mrb[0].mxu0 %v1180
      %v3002 = vpop.f32.mrb[0].mxu0
      %v3003 = vadd.f32 0.0, %v3002
      %v3004 = vpop.f32.mrb[0].mxu0
      %3005 = vmatprep.mubr.f32.mxu0 0.0
      %3006 = vmatmul.mubr.f32.gmra.mrb[0].mxu0 %v1182
      %v3007 = vpop.f32.mrb[0].mxu0
      %v3008 = vadd.f32 0.0, %v3007
      %v3009 = vpop.f32.mrb[0].mxu0
      %3010 = vmatprep.mubr.f32.mxu0 0.0
      %3011 = vmatmul.mubr.f32.gmra.mrb[0].mxu0 %v1184
      %v3012 = vpop.f32.mrb[0].mxu0
      %v3013 = vadd.f32 0.0, %v3012
      %v3014 = vpop.f32.mrb[0].mxu0
      %3015 = vmatprep.mubr.f32.mxu0 0.0
      %3016 = vmatmul.mubr.f32.gmra.mrb[0].mxu0 %v1186
      %v3017 = vpop.f32.mrb[0].mxu0
      %v3018 = vadd.f32 0.0, %v3017
      %v3019 = vpop.f32.mrb[0].mxu0
      %3020 = vmatprep.mubr.f32.mxu0 0.0
      %3021 = vmatmul.mubr.f32.gmra.mrb[0].mxu0 %v1188
      %v3022 = vpop.f32.mrb[0].mxu0
      %v3023 = vadd.f32 0.0, %v3022
      %v3024 = vpop.f32.mrb[0].mxu0
      %3025 = vmatprep.mubr.f32.mxu0 0.0
      %3026 = vmatmul.mubr.f32.gmra.mrb[0].mxu0 %v1190
      %v3027 = vpop.f32.mrb[0].mxu0
      %v3028 = vadd.f32 0.0, %v3027
      %v3029 = vpop.f32.mrb[0].mxu0
      %3030 = vmatprep.mubr.f32.mxu0 0.0
      %3031 = vmatmul.mubr.f32.gmra.mrb[0].mxu0 %v1192
      %v3032 = vpop.f32.mrb[0].mxu0
      %v3033 = vadd.f32 0.0, %v3032
      %v3034 = vpop.f32.mrb[0].mxu0
      %3035 = vmatprep.mubr.f32.mxu0 0.0
      %3036 = vmatmul.mubr.f32.gmra.mrb[0].mxu0 %v1194
      %v3037 = vpop.f32.mrb[0].mxu0
      %v3038 = vadd.f32 0.0, %v3037
      %v3039 = vpop.f32.mrb[0].mxu0
      %3040 = vmatprep.mubr.f32.mxu0 0.0
      %3041 = vmatmul.mubr.f32.gmra.mrb[0].mxu0 %v1196
      %v3042 = vpop.f32.mrb[0].mxu0
      %v3043 = vadd.f32 0.0, %v3042
      %v3044 = vpop.f32.mrb[0].mxu0
      %3045 = vmatprep.mubr.f32.mxu0 0.0
      %3046 = vmatmul.mubr.f32.gmra.mrb[0].mxu0 %v2824
      %v3047 = vpop.f32.mrb[0].mxu0
      %v3048 = vadd.f32 0.0, %v3047
      %v3049 = vpop.f32.mrb[0].mxu0
      %3050 = vmatprep.mubr.f32.mxu0 0.0
      %3051 = vmatmul.mubr.f32.gmra.mrb[0].mxu0 %v2826
      %v3052 = vpop.f32.mrb[0].mxu0
      %v3053 = vadd.f32 0.0, %v3052
      %v3054 = vpop.f32.mrb[0].mxu0
      %3055 = vdwg.mxu0
      %v3056 = vadd.f32 %v2786, %v2898
      %v3057 = vadd.f32 %v2787, %v2903
      %v3058 = vadd.f32 %v2788, %v2908
      %v3059 = vadd.f32 %v2789, %v2913
      %v3060 = vadd.f32 %v2790, %v2918
      %v3061 = vadd.f32 %v2791, %v2923
      %v3062 = vadd.f32 %v2792, %v2928
      %v3063 = vadd.f32 %v2793, %v2933
      %v3064 = vadd.f32 %v2794, %v2938
      %v3065 = vadd.f32 %v2795, %v2943
      %v3066 = vadd.f32 %v2796, %v2948
      %v3067 = vadd.f32 %v2797, %v2953
      %v3068 = vadd.f32 %v2798, %v2958
      %v3069 = vadd.f32 %v2799, %v2963
      %v3070 = vadd.f32 %v2800, %v2968
      %v3071 = vadd.f32 %v2801, %v2973
      %v3072 = vadd.f32 %v2802, %v2978
      %v3073 = vadd.f32 %v2803, %v2983
      %v3074 = vadd.f32 %v2804, %v2988
      %v3075 = vadd.f32 %v2805, %v2993
      %v3076 = vadd.f32 %v2806, %v2998
      %v3077 = vadd.f32 %v2807, %v3003
      %v3078 = vadd.f32 %v2808, %v3008
      %v3079 = vadd.f32 %v2809, %v3013
      %v3080 = vadd.f32 %v2810, %v3018
      %v3081 = vadd.f32 %v2811, %v3023
      %v3082 = vadd.f32 %v2812, %v3028
      %v3083 = vadd.f32 %v2813, %v3033
      %v3084 = vadd.f32 %v2814, %v3038
      %v3085 = vadd.f32 %v2815, %v3043
      %v3086 = vadd.f32 %v2816, %v3048
      %v3087 = vadd.f32 %v2817, %v3053
      %v3088 = vmul.f32 %v736, %v1878
      %v3089 = vmul.f32 %v737, %v1880
      %v3090 = vmul.f32 %v738, %v1882
      %v3091 = vmul.f32 %v739, %v1884
      %v3092 = vmul.f32 %v740, %v1886
      %v3093 = vmul.f32 %v741, %v1888
      %v3094 = vmul.f32 %v742, %v1890
      %v3095 = vmul.f32 %v743, %v1892
      %v3096 = vmul.f32 %v744, %v1894
      %v3097 = vmul.f32 %v745, %v1896
      %v3098 = vmul.f32 %v746, %v1898
      %v3099 = vmul.f32 %v747, %v1900
      %v3100 = vmul.f32 %v748, %v1902
      %v3101 = vmul.f32 %v749, %v1904
      %v3102 = vmul.f32 %v750, %v1906
      %v3103 = vmul.f32 %v751, %v1908
      %v3104 = vmul.f32 %v752, %v1910
      %v3105 = vmul.f32 %v753, %v1912
      %v3106 = vmul.f32 %v754, %v1914
      %v3107 = vmul.f32 %v755, %v1916
      %v3108 = vmul.f32 %v756, %v1918
      %v3109 = vmul.f32 %v757, %v1920
      %v3110 = vmul.f32 %v758, %v1922
      %v3111 = vmul.f32 %v759, %v1924
      %v3112 = vmul.f32 %v760, %v1926
      %v3113 = vmul.f32 %v761, %v1928
      %v3114 = vmul.f32 %v762, %v1930
      %v3115 = vmul.f32 %v763, %v1932
      %v3116 = vmul.f32 %v764, %v1934
      %v3117 = vmul.f32 %v765, %v1936
      %v3118 = vmul.f32 %v766, %v1938
      %v3119 = vmul.f32 %v767, %v1940
      %v3120 = vmul.f32 %v768, %v1939
      %v3154 = vrot.slane %v3088, 2
      %v3155 = vrot.slane %v3089, 2
      %v3156 = vsel %vm2040, %v3154, %v3155
      %v3157 = vrot.slane %v3090, 2
      %v3158 = vsel %vm2040, %v3155, %v3157
      %v3159 = vrot.slane %v3091, 2
      %v3160 = vsel %vm2040, %v3157, %v3159
      %v3161 = vrot.slane %v3092, 2
      %v3162 = vsel %vm2040, %v3159, %v3161
      %v3163 = vrot.slane %v3093, 2
      %v3164 = vsel %vm2040, %v3161, %v3163
      %v3165 = vrot.slane %v3094, 2
      %v3166 = vsel %vm2040, %v3163, %v3165
      %v3167 = vrot.slane %v3095, 2
      %v3168 = vsel %vm2040, %v3165, %v3167
      %v3169 = vrot.slane %v3096, 2
      %v3170 = vsel %vm2040, %v3167, %v3169
      %v3171 = vrot.slane %v3097, 2
      %v3172 = vsel %vm2040, %v3169, %v3171
      %v3173 = vrot.slane %v3098, 2
      %v3174 = vsel %vm2040, %v3171, %v3173
      %v3175 = vrot.slane %v3099, 2
      %v3176 = vsel %vm2040, %v3173, %v3175
      %v3177 = vrot.slane %v3100, 2
      %v3178 = vsel %vm2040, %v3175, %v3177
      %v3179 = vrot.slane %v3101, 2
      %v3180 = vsel %vm2040, %v3177, %v3179
      %v3181 = vrot.slane %v3102, 2
      %v3182 = vsel %vm2040, %v3179, %v3181
      %v3183 = vrot.slane %v3103, 2
      %v3184 = vsel %vm2040, %v3181, %v3183
      %v3185 = vrot.slane %v3104, 2
      %v3186 = vsel %vm2040, %v3183, %v3185
      %v3187 = vrot.slane %v3105, 2
      %v3188 = vsel %vm2040, %v3185, %v3187
      %v3189 = vrot.slane %v3106, 2
      %v3190 = vsel %vm2040, %v3187, %v3189
      %v3191 = vrot.slane %v3107, 2
      %v3192 = vsel %vm2040, %v3189, %v3191
      %v3193 = vrot.slane %v3108, 2
      %v3194 = vsel %vm2040, %v3191, %v3193
      %v3195 = vrot.slane %v3109, 2
      %v3196 = vsel %vm2040, %v3193, %v3195
      %v3197 = vrot.slane %v3110, 2
      %v3198 = vsel %vm2040, %v3195, %v3197
      %v3199 = vrot.slane %v3111, 2
      %v3200 = vsel %vm2040, %v3197, %v3199
      %v3201 = vrot.slane %v3112, 2
      %v3202 = vsel %vm2040, %v3199, %v3201
      %v3203 = vrot.slane %v3113, 2
      %v3204 = vsel %vm2040, %v3201, %v3203
      %v3205 = vrot.slane %v3114, 2
      %v3206 = vsel %vm2040, %v3203, %v3205
      %v3207 = vrot.slane %v3115, 2
      %v3208 = vsel %vm2040, %v3205, %v3207
      %v3209 = vrot.slane %v3116, 2
      %v3210 = vsel %vm2040, %v3207, %v3209
      %v3211 = vrot.slane %v3117, 2
      %v3212 = vsel %vm2040, %v3209, %v3211
      %v3213 = vrot.slane %v3118, 2
      %v3214 = vsel %vm2040, %v3211, %v3213
      %v3215 = vrot.slane %v3119, 2
      %v3216 = vsel %vm2040, %v3213, %v3215
      %v3217 = vrot.slane %v3120, 2
      %v3218 = vsel %vm2040, %v3215, %v3217
      %v3219 = vrot.slane %v773, 4
      %v3220 = vsel %vm1133, %v3156, 0
      %v3222 = vsel %vm1133, %v3158, 0
      %v3224 = vsel %vm1133, %v3160, 0
      %v3226 = vsel %vm1133, %v3162, 0
      %v3228 = vsel %vm1133, %v3164, 0
      %v3230 = vsel %vm1133, %v3166, 0
      %v3232 = vsel %vm1133, %v3168, 0
      %v3234 = vsel %vm1133, %v3170, 0
      %v3236 = vsel %vm1133, %v3172, 0
      %v3238 = vsel %vm1133, %v3174, 0
      %v3240 = vsel %vm1133, %v3176, 0
      %v3242 = vsel %vm1133, %v3178, 0
      %v3244 = vsel %vm1133, %v3180, 0
      %v3246 = vsel %vm1133, %v3182, 0
      %v3248 = vsel %vm1133, %v3184, 0
      %v3250 = vsel %vm1133, %v3186, 0
      %v3252 = vsel %vm1133, %v3188, 0
      %v3254 = vsel %vm1133, %v3190, 0
      %v3256 = vsel %vm1133, %v3192, 0
      %v3258 = vsel %vm1133, %v3194, 0
      %v3260 = vsel %vm1133, %v3196, 0
      %v3262 = vsel %vm1133, %v3198, 0
      %v3264 = vsel %vm1133, %v3200, 0
      %v3266 = vsel %vm1133, %v3202, 0
      %v3268 = vsel %vm1133, %v3204, 0
      %v3270 = vsel %vm1133, %v3206, 0
      %v3272 = vsel %vm1133, %v3208, 0
      %v3274 = vsel %vm1133, %v3210, 0
      %v3276 = vsel %vm1133, %v3212, 0
      %v3278 = vsel %vm1133, %v3214, 0
      %v3280 = vsel %vm1133, %v3216, 0
      %v3282 = vsel %vm1133, %v3218, 0
      %v3284 = vsel %vm1198, %v3219, 0
      %3286 = vmatprep.subr.mxu0 0.0
      %3287 = vmatpush1.msra.mxu0 %v3284
      %3288 = vmatprep.subr.mxu0 0.0
      %3289 = vmatpush1.msra.mxu0 0.0
      %3290 = vmatprep.subr.mxu0 0.0
      %3291 = vmatpush1.msra.mxu0 0.0
      %3292 = vmatprep.subr.mxu0 0.0
      %3293 = vmatpush1.msra.mxu0 0.0
      %3294 = vmatprep.subr.mxu0 0.0
      %3295 = vmatpush1.msra.mxu0 0.0
      %3296 = vmatprep.subr.mxu0 0.0
      %3297 = vmatpush1.msra.mxu0 0.0
      %3298 = vmatprep.subr.mxu0 0.0
      %3299 = vmatpush1.msra.mxu0 0.0
      %3300 = vmatprep.subr.mxu0 0.0
      %3301 = vmatpush1.msra.mxu0 0.0
      %3302 = vmatprep.subr.mxu0 0.0
      %3303 = vmatpush1.msra.mxu0 0.0
      %3304 = vmatprep.subr.mxu0 0.0
      %3305 = vmatpush1.msra.mxu0 0.0
      %3306 = vmatprep.subr.mxu0 0.0
      %3307 = vmatpush1.msra.mxu0 0.0
      %3308 = vmatprep.subr.mxu0 0.0
      %3309 = vmatpush1.msra.mxu0 0.0
      %3310 = vmatprep.subr.mxu0 0.0
      %3311 = vmatpush1.msra.mxu0 0.0
      %3312 = vmatprep.subr.mxu0 0.0
      %3313 = vmatpush1.msra.mxu0 0.0
      %3314 = vmatprep.subr.mxu0 0.0
      %3315 = vmatpush1.msra.mxu0 0.0
      %3316 = vmatprep.subr.mxu0 0.0
      %3317 = vmatpush1.msra.mxu0 0.0
      %3318 = vmatprep.subr.mxu0 0.0
      %3319 = vmatpush1.msra.mxu0 0.0
      %3320 = vmatprep.subr.mxu0 0.0
      %3321 = vmatpush1.msra.mxu0 0.0
      %3322 = vmatprep.subr.mxu0 0.0
      %3323 = vmatpush1.msra.mxu0 0.0
      %3324 = vmatprep.subr.mxu0 0.0
      %3325 = vmatpush1.msra.mxu0 0.0
      %3326 = vmatprep.subr.mxu0 0.0
      %3327 = vmatpush1.msra.mxu0 0.0
      %3328 = vmatprep.subr.mxu0 0.0
      %3329 = vmatpush1.msra.mxu0 0.0
      %3330 = vmatprep.subr.mxu0 0.0
      %3331 = vmatpush1.msra.mxu0 0.0
      %3332 = vmatprep.subr.mxu0 0.0
      %3333 = vmatpush1.msra.mxu0 0.0
      %3334 = vmatprep.subr.mxu0 0.0
      %3335 = vmatpush1.msra.mxu0 0.0
      %3336 = vmatprep.subr.mxu0 0.0
      %3337 = vmatpush1.msra.mxu0 0.0
      %3338 = vmatprep.subr.mxu0 0.0
      %3339 = vmatpush1.msra.mxu0 0.0
      %3340 = vmatprep.subr.mxu0 0.0
      %3341 = vmatpush1.msra.mxu0 0.0
      %3342 = vmatprep.subr.mxu0 0.0
      %3343 = vmatpush1.msra.mxu0 0.0
      %3344 = vmatprep.subr.mxu0 0.0
      %3345 = vmatpush1.msra.mxu0 0.0
      %3346 = vmatprep.subr.mxu0 0.0
      %3347 = vmatpush1.msra.mxu0 0.0
      %3348 = vmatprep.subr.mxu0 0.0
      %3349 = vmatpush1.msra.mxu0 0.0
      %3350 = vmatprep.mubr.f32.mxu0 0.0
      %3351 = vmatmul.mubr.f32.gmra.mrb[0].mxu0 %v3220
      %v3352 = vpop.f32.mrb[0].mxu0
      %v3353 = vadd.f32 0.0, %v3352
      %v3354 = vpop.f32.mrb[0].mxu0
      %3355 = vmatprep.mubr.f32.mxu0 0.0
      %3356 = vmatmul.mubr.f32.gmra.mrb[0].mxu0 %v3222
      %v3357 = vpop.f32.mrb[0].mxu0
      %v3358 = vadd.f32 0.0, %v3357
      %v3359 = vpop.f32.mrb[0].mxu0
      %3360 = vmatprep.mubr.f32.mxu0 0.0
      %3361 = vmatmul.mubr.f32.gmra.mrb[0].mxu0 %v3224
      %v3362 = vpop.f32.mrb[0].mxu0
      %v3363 = vadd.f32 0.0, %v3362
      %v3364 = vpop.f32.mrb[0].mxu0
      %3365 = vmatprep.mubr.f32.mxu0 0.0
      %3366 = vmatmul.mubr.f32.gmra.mrb[0].mxu0 %v3226
      %v3367 = vpop.f32.mrb[0].mxu0
      %v3368 = vadd.f32 0.0, %v3367
      %v3369 = vpop.f32.mrb[0].mxu0
      %3370 = vmatprep.mubr.f32.mxu0 0.0
      %3371 = vmatmul.mubr.f32.gmra.mrb[0].mxu0 %v3228
      %v3372 = vpop.f32.mrb[0].mxu0
      %v3373 = vadd.f32 0.0, %v3372
      %v3374 = vpop.f32.mrb[0].mxu0
      %3375 = vmatprep.mubr.f32.mxu0 0.0
      %3376 = vmatmul.mubr.f32.gmra.mrb[0].mxu0 %v3230
      %v3377 = vpop.f32.mrb[0].mxu0
      %v3378 = vadd.f32 0.0, %v3377
      %v3379 = vpop.f32.mrb[0].mxu0
      %3380 = vmatprep.mubr.f32.mxu0 0.0
      %3381 = vmatmul.mubr.f32.gmra.mrb[0].mxu0 %v3232
      %v3382 = vpop.f32.mrb[0].mxu0
      %v3383 = vadd.f32 0.0, %v3382
      %v3384 = vpop.f32.mrb[0].mxu0
      %3385 = vmatprep.mubr.f32.mxu0 0.0
      %3386 = vmatmul.mubr.f32.gmra.mrb[0].mxu0 %v3234
      %v3387 = vpop.f32.mrb[0].mxu0
      %v3388 = vadd.f32 0.0, %v3387
      %v3389 = vpop.f32.mrb[0].mxu0
      %3390 = vmatprep.mubr.f32.mxu0 0.0
      %3391 = vmatmul.mubr.f32.gmra.mrb[0].mxu0 %v3236
      %v3392 = vpop.f32.mrb[0].mxu0
      %v3393 = vadd.f32 0.0, %v3392
      %v3394 = vpop.f32.mrb[0].mxu0
      %3395 = vmatprep.mubr.f32.mxu0 0.0
      %3396 = vmatmul.mubr.f32.gmra.mrb[0].mxu0 %v3238
      %v3397 = vpop.f32.mrb[0].mxu0
      %v3398 = vadd.f32 0.0, %v3397
      %v3399 = vpop.f32.mrb[0].mxu0
      %3400 = vmatprep.mubr.f32.mxu0 0.0
      %3401 = vmatmul.mubr.f32.gmra.mrb[0].mxu0 %v3240
      %v3402 = vpop.f32.mrb[0].mxu0
      %v3403 = vadd.f32 0.0, %v3402
      %v3404 = vpop.f32.mrb[0].mxu0
      %3405 = vmatprep.mubr.f32.mxu0 0.0
      %3406 = vmatmul.mubr.f32.gmra.mrb[0].mxu0 %v3242
      %v3407 = vpop.f32.mrb[0].mxu0
      %v3408 = vadd.f32 0.0, %v3407
      %v3409 = vpop.f32.mrb[0].mxu0
      %3410 = vmatprep.mubr.f32.mxu0 0.0
      %3411 = vmatmul.mubr.f32.gmra.mrb[0].mxu0 %v3244
      %v3412 = vpop.f32.mrb[0].mxu0
      %v3413 = vadd.f32 0.0, %v3412
      %v3414 = vpop.f32.mrb[0].mxu0
      %3415 = vmatprep.mubr.f32.mxu0 0.0
      %3416 = vmatmul.mubr.f32.gmra.mrb[0].mxu0 %v3246
      %v3417 = vpop.f32.mrb[0].mxu0
      %v3418 = vadd.f32 0.0, %v3417
      %v3419 = vpop.f32.mrb[0].mxu0
      %3420 = vmatprep.mubr.f32.mxu0 0.0
      %3421 = vmatmul.mubr.f32.gmra.mrb[0].mxu0 %v3248
      %v3422 = vpop.f32.mrb[0].mxu0
      %v3423 = vadd.f32 0.0, %v3422
      %v3424 = vpop.f32.mrb[0].mxu0
      %3425 = vmatprep.mubr.f32.mxu0 0.0
      %3426 = vmatmul.mubr.f32.gmra.mrb[0].mxu0 %v3250
      %v3427 = vpop.f32.mrb[0].mxu0
      %v3428 = vadd.f32 0.0, %v3427
      %v3429 = vpop.f32.mrb[0].mxu0
      %3430 = vmatprep.mubr.f32.mxu0 0.0
      %3431 = vmatmul.mubr.f32.gmra.mrb[0].mxu0 %v3252
      %v3432 = vpop.f32.mrb[0].mxu0
      %v3433 = vadd.f32 0.0, %v3432
      %v3434 = vpop.f32.mrb[0].mxu0
      %3435 = vmatprep.mubr.f32.mxu0 0.0
      %3436 = vmatmul.mubr.f32.gmra.mrb[0].mxu0 %v3254
      %v3437 = vpop.f32.mrb[0].mxu0
      %v3438 = vadd.f32 0.0, %v3437
      %v3439 = vpop.f32.mrb[0].mxu0
      %3440 = vmatprep.mubr.f32.mxu0 0.0
      %3441 = vmatmul.mubr.f32.gmra.mrb[0].mxu0 %v3256
      %v3442 = vpop.f32.mrb[0].mxu0
      %v3443 = vadd.f32 0.0, %v3442
      %v3444 = vpop.f32.mrb[0].mxu0
      %3445 = vmatprep.mubr.f32.mxu0 0.0
      %3446 = vmatmul.mubr.f32.gmra.mrb[0].mxu0 %v3258
      %v3447 = vpop.f32.mrb[0].mxu0
      %v3448 = vadd.f32 0.0, %v3447
      %v3449 = vpop.f32.mrb[0].mxu0
      %3450 = vmatprep.mubr.f32.mxu0 0.0
      %3451 = vmatmul.mubr.f32.gmra.mrb[0].mxu0 %v3260
      %v3452 = vpop.f32.mrb[0].mxu0
      %v3453 = vadd.f32 0.0, %v3452
      %v3454 = vpop.f32.mrb[0].mxu0
      %3455 = vmatprep.mubr.f32.mxu0 0.0
      %3456 = vmatmul.mubr.f32.gmra.mrb[0].mxu0 %v3262
      %v3457 = vpop.f32.mrb[0].mxu0
      %v3458 = vadd.f32 0.0, %v3457
      %v3459 = vpop.f32.mrb[0].mxu0
      %3460 = vmatprep.mubr.f32.mxu0 0.0
      %3461 = vmatmul.mubr.f32.gmra.mrb[0].mxu0 %v3264
      %v3462 = vpop.f32.mrb[0].mxu0
      %v3463 = vadd.f32 0.0, %v3462
      %v3464 = vpop.f32.mrb[0].mxu0
      %3465 = vmatprep.mubr.f32.mxu0 0.0
      %3466 = vmatmul.mubr.f32.gmra.mrb[0].mxu0 %v3266
      %v3467 = vpop.f32.mrb[0].mxu0
      %v3468 = vadd.f32 0.0, %v3467
      %v3469 = vpop.f32.mrb[0].mxu0
      %3470 = vmatprep.mubr.f32.mxu0 0.0
      %3471 = vmatmul.mubr.f32.gmra.mrb[0].mxu0 %v3268
      %v3472 = vpop.f32.mrb[0].mxu0
      %v3473 = vadd.f32 0.0, %v3472
      %v3474 = vpop.f32.mrb[0].mxu0
      %3475 = vmatprep.mubr.f32.mxu0 0.0
      %3476 = vmatmul.mubr.f32.gmra.mrb[0].mxu0 %v3270
      %v3477 = vpop.f32.mrb[0].mxu0
      %v3478 = vadd.f32 0.0, %v3477
      %v3479 = vpop.f32.mrb[0].mxu0
      %3480 = vmatprep.mubr.f32.mxu0 0.0
      %3481 = vmatmul.mubr.f32.gmra.mrb[0].mxu0 %v3272
      %v3482 = vpop.f32.mrb[0].mxu0
      %v3483 = vadd.f32 0.0, %v3482
      %v3484 = vpop.f32.mrb[0].mxu0
      %3485 = vmatprep.mubr.f32.mxu0 0.0
      %3486 = vmatmul.mubr.f32.gmra.mrb[0].mxu0 %v3274
      %v3487 = vpop.f32.mrb[0].mxu0
      %v3488 = vadd.f32 0.0, %v3487
      %v3489 = vpop.f32.mrb[0].mxu0
      %3490 = vmatprep.mubr.f32.mxu0 0.0
      %3491 = vmatmul.mubr.f32.gmra.mrb[0].mxu0 %v3276
      %v3492 = vpop.f32.mrb[0].mxu0
      %v3493 = vadd.f32 0.0, %v3492
      %v3494 = vpop.f32.mrb[0].mxu0
      %3495 = vmatprep.mubr.f32.mxu0 0.0
      %3496 = vmatmul.mubr.f32.gmra.mrb[0].mxu0 %v3278
      %v3497 = vpop.f32.mrb[0].mxu0
      %v3498 = vadd.f32 0.0, %v3497
      %v3499 = vpop.f32.mrb[0].mxu0
      %3500 = vmatprep.mubr.f32.mxu0 0.0
      %3501 = vmatmul.mubr.f32.gmra.mrb[0].mxu0 %v3280
      %v3502 = vpop.f32.mrb[0].mxu0
      %v3503 = vadd.f32 0.0, %v3502
      %v3504 = vpop.f32.mrb[0].mxu0
      %3505 = vmatprep.mubr.f32.mxu0 0.0
      %3506 = vmatmul.mubr.f32.gmra.mrb[0].mxu0 %v3282
      %v3507 = vpop.f32.mrb[0].mxu0
      %v3508 = vadd.f32 0.0, %v3507
      %v3509 = vpop.f32.mrb[0].mxu0
      %3510 = vdwg.mxu0
      %v3511 = vadd.f32 %v3056, %v3353
      %v3512 = vadd.f32 %v3057, %v3358
      %v3513 = vadd.f32 %v3058, %v3363
      %v3514 = vadd.f32 %v3059, %v3368
      %v3515 = vadd.f32 %v3060, %v3373
      %v3516 = vadd.f32 %v3061, %v3378
      %v3517 = vadd.f32 %v3062, %v3383
      %v3518 = vadd.f32 %v3063, %v3388
      %v3519 = vadd.f32 %v3064, %v3393
      %v3520 = vadd.f32 %v3065, %v3398
      %v3521 = vadd.f32 %v3066, %v3403
      %v3522 = vadd.f32 %v3067, %v3408
      %v3523 = vadd.f32 %v3068, %v3413
      %v3524 = vadd.f32 %v3069, %v3418
      %v3525 = vadd.f32 %v3070, %v3423
      %v3526 = vadd.f32 %v3071, %v3428
      %v3527 = vadd.f32 %v3072, %v3433
      %v3528 = vadd.f32 %v3073, %v3438
      %v3529 = vadd.f32 %v3074, %v3443
      %v3530 = vadd.f32 %v3075, %v3448
      %v3531 = vadd.f32 %v3076, %v3453
      %v3532 = vadd.f32 %v3077, %v3458
      %v3533 = vadd.f32 %v3078, %v3463
      %v3534 = vadd.f32 %v3079, %v3468
      %v3535 = vadd.f32 %v3080, %v3473
      %v3536 = vadd.f32 %v3081, %v3478
      %v3537 = vadd.f32 %v3082, %v3483
      %v3538 = vadd.f32 %v3083, %v3488
      %v3539 = vadd.f32 %v3084, %v3493
      %v3540 = vadd.f32 %v3085, %v3498
      %v3541 = vadd.f32 %v3086, %v3503
      %v3542 = vadd.f32 %v3087, %v3508
      %v3543 = vmul.f32 %v738, %v843
      %v3544 = vmul.f32 %v739, %v848
      %v3545 = vmul.f32 %v740, %v853
      %v3546 = vmul.f32 %v741, %v858
      %v3547 = vmul.f32 %v742, %v863
      %v3548 = vmul.f32 %v743, %v868
      %v3549 = vmul.f32 %v744, %v873
      %v3550 = vmul.f32 %v745, %v878
      %v3551 = vmul.f32 %v746, %v883
      %v3552 = vmul.f32 %v747, %v888
      %v3553 = vmul.f32 %v748, %v893
      %v3554 = vmul.f32 %v749, %v898
      %v3555 = vmul.f32 %v750, %v903
      %v3556 = vmul.f32 %v751, %v908
      %v3557 = vmul.f32 %v752, %v913
      %v3558 = vmul.f32 %v753, %v918
      %v3559 = vmul.f32 %v754, %v923
      %v3560 = vmul.f32 %v755, %v928
      %v3561 = vmul.f32 %v756, %v933
      %v3562 = vmul.f32 %v757, %v938
      %v3563 = vmul.f32 %v758, %v943
      %v3564 = vmul.f32 %v759, %v948
      %v3565 = vmul.f32 %v760, %v953
      %v3566 = vmul.f32 %v761, %v958
      %v3567 = vmul.f32 %v762, %v963
      %v3568 = vmul.f32 %v763, %v968
      %v3569 = vmul.f32 %v764, %v973
      %v3570 = vmul.f32 %v765, %v978
      %v3571 = vmul.f32 %v766, %v983
      %v3572 = vmul.f32 %v767, %v988
      %v3573 = vmul.f32 %v768, %v993
      %v3574 = vmul.f32 %v769, %v998
      %v3576 = vsel %vm1133, %v3543, 0
      %v3579 = vsel %vm1133, %v3544, 0
      %v3582 = vsel %vm1133, %v3545, 0
      %v3585 = vsel %vm1133, %v3546, 0
      %v3588 = vsel %vm1133, %v3547, 0
      %v3591 = vsel %vm1133, %v3548, 0
      %v3594 = vsel %vm1133, %v3549, 0
      %v3597 = vsel %vm1133, %v3550, 0
      %v3600 = vsel %vm1133, %v3551, 0
      %v3603 = vsel %vm1133, %v3552, 0
      %v3606 = vsel %vm1133, %v3553, 0
      %v3609 = vsel %vm1133, %v3554, 0
      %v3612 = vsel %vm1133, %v3555, 0
      %v3615 = vsel %vm1133, %v3556, 0
      %v3618 = vsel %vm1133, %v3557, 0
      %v3621 = vsel %vm1133, %v3558, 0
      %v3624 = vsel %vm1133, %v3559, 0
      %v3627 = vsel %vm1133, %v3560, 0
      %v3630 = vsel %vm1133, %v3561, 0
      %v3633 = vsel %vm1133, %v3562, 0
      %v3636 = vsel %vm1133, %v3563, 0
      %v3639 = vsel %vm1133, %v3564, 0
      %v3642 = vsel %vm1133, %v3565, 0
      %v3645 = vsel %vm1133, %v3566, 0
      %v3648 = vsel %vm1133, %v3567, 0
      %v3651 = vsel %vm1133, %v3568, 0
      %v3654 = vsel %vm1133, %v3569, 0
      %v3657 = vsel %vm1133, %v3570, 0
      %v3660 = vsel %vm1133, %v3571, 0
      %v3663 = vsel %vm1133, %v3572, 0
      %v3666 = vsel %vm1133, %v3573, 0
      %v3669 = vsel %vm1133, %v3574, 0
      %v3672 = vsel %vm1198, %v774, 0
      %3674 = vmatprep.subr.mxu0 0.0
      %3675 = vmatpush1.msra.mxu0 %v3672
      %3676 = vmatprep.subr.mxu0 0.0
      %3677 = vmatpush1.msra.mxu0 0.0
      %3678 = vmatprep.subr.mxu0 0.0
      %3679 = vmatpush1.msra.mxu0 0.0
      %3680 = vmatprep.subr.mxu0 0.0
      %3681 = vmatpush1.msra.mxu0 0.0
      %3682 = vmatprep.subr.mxu0 0.0
      %3683 = vmatpush1.msra.mxu0 0.0
      %3684 = vmatprep.subr.mxu0 0.0
      %3685 = vmatpush1.msra.mxu0 0.0
      %3686 = vmatprep.subr.mxu0 0.0
      %3687 = vmatpush1.msra.mxu0 0.0
      %3688 = vmatprep.subr.mxu0 0.0
      %3689 = vmatpush1.msra.mxu0 0.0
      %3690 = vmatprep.subr.mxu0 0.0
      %3691 = vmatpush1.msra.mxu0 0.0
      %3692 = vmatprep.subr.mxu0 0.0
      %3693 = vmatpush1.msra.mxu0 0.0
      %3694 = vmatprep.subr.mxu0 0.0
      %3695 = vmatpush1.msra.mxu0 0.0
      %3696 = vmatprep.subr.mxu0 0.0
      %3697 = vmatpush1.msra.mxu0 0.0
      %3698 = vmatprep.subr.mxu0 0.0
      %3699 = vmatpush1.msra.mxu0 0.0
      %3700 = vmatprep.subr.mxu0 0.0
      %3701 = vmatpush1.msra.mxu0 0.0
      %3702 = vmatprep.subr.mxu0 0.0
      %3703 = vmatpush1.msra.mxu0 0.0
      %3704 = vmatprep.subr.mxu0 0.0
      %3705 = vmatpush1.msra.mxu0 0.0
      %3706 = vmatprep.subr.mxu0 0.0
      %3707 = vmatpush1.msra.mxu0 0.0
      %3708 = vmatprep.subr.mxu0 0.0
      %3709 = vmatpush1.msra.mxu0 0.0
      %3710 = vmatprep.subr.mxu0 0.0
      %3711 = vmatpush1.msra.mxu0 0.0
      %3712 = vmatprep.subr.mxu0 0.0
      %3713 = vmatpush1.msra.mxu0 0.0
      %3714 = vmatprep.subr.mxu0 0.0
      %3715 = vmatpush1.msra.mxu0 0.0
      %3716 = vmatprep.subr.mxu0 0.0
      %3717 = vmatpush1.msra.mxu0 0.0
      %3718 = vmatprep.subr.mxu0 0.0
      %3719 = vmatpush1.msra.mxu0 0.0
      %3720 = vmatprep.subr.mxu0 0.0
      %3721 = vmatpush1.msra.mxu0 0.0
      %3722 = vmatprep.subr.mxu0 0.0
      %3723 = vmatpush1.msra.mxu0 0.0
      %3724 = vmatprep.subr.mxu0 0.0
      %3725 = vmatpush1.msra.mxu0 0.0
      %3726 = vmatprep.subr.mxu0 0.0
      %3727 = vmatpush1.msra.mxu0 0.0
      %3728 = vmatprep.subr.mxu0 0.0
      %3729 = vmatpush1.msra.mxu0 0.0
      %3730 = vmatprep.subr.mxu0 0.0
      %3731 = vmatpush1.msra.mxu0 0.0
      %3732 = vmatprep.subr.mxu0 0.0
      %3733 = vmatpush1.msra.mxu0 0.0
      %3734 = vmatprep.subr.mxu0 0.0
      %3735 = vmatpush1.msra.mxu0 0.0
      %3736 = vmatprep.subr.mxu0 0.0
      %3737 = vmatpush1.msra.mxu0 0.0
      %3738 = vmatprep.mubr.f32.mxu0 0.0
      %3739 = vmatmul.mubr.f32.gmra.mrb[0].mxu0 %v3576
      %v3740 = vpop.f32.mrb[0].mxu0
      %v3741 = vadd.f32 0.0, %v3740
      %v3742 = vpop.f32.mrb[0].mxu0
      %3743 = vmatprep.mubr.f32.mxu0 0.0
      %3744 = vmatmul.mubr.f32.gmra.mrb[0].mxu0 %v3579
      %v3745 = vpop.f32.mrb[0].mxu0
      %v3746 = vadd.f32 0.0, %v3745
      %v3747 = vpop.f32.mrb[0].mxu0
      %3748 = vmatprep.mubr.f32.mxu0 0.0
      %3749 = vmatmul.mubr.f32.gmra.mrb[0].mxu0 %v3582
      %v3750 = vpop.f32.mrb[0].mxu0
      %v3751 = vadd.f32 0.0, %v3750
      %v3752 = vpop.f32.mrb[0].mxu0
      %3753 = vmatprep.mubr.f32.mxu0 0.0
      %3754 = vmatmul.mubr.f32.gmra.mrb[0].mxu0 %v3585
      %v3755 = vpop.f32.mrb[0].mxu0
      %v3756 = vadd.f32 0.0, %v3755
      %v3757 = vpop.f32.mrb[0].mxu0
      %3758 = vmatprep.mubr.f32.mxu0 0.0
      %3759 = vmatmul.mubr.f32.gmra.mrb[0].mxu0 %v3588
      %v3760 = vpop.f32.mrb[0].mxu0
      %v3761 = vadd.f32 0.0, %v3760
      %v3762 = vpop.f32.mrb[0].mxu0
      %3763 = vmatprep.mubr.f32.mxu0 0.0
      %3764 = vmatmul.mubr.f32.gmra.mrb[0].mxu0 %v3591
      %v3765 = vpop.f32.mrb[0].mxu0
      %v3766 = vadd.f32 0.0, %v3765
      %v3767 = vpop.f32.mrb[0].mxu0
      %3768 = vmatprep.mubr.f32.mxu0 0.0
      %3769 = vmatmul.mubr.f32.gmra.mrb[0].mxu0 %v3594
      %v3770 = vpop.f32.mrb[0].mxu0
      %v3771 = vadd.f32 0.0, %v3770
      %v3772 = vpop.f32.mrb[0].mxu0
      %3773 = vmatprep.mubr.f32.mxu0 0.0
      %3774 = vmatmul.mubr.f32.gmra.mrb[0].mxu0 %v3597
      %v3775 = vpop.f32.mrb[0].mxu0
      %v3776 = vadd.f32 0.0, %v3775
      %v3777 = vpop.f32.mrb[0].mxu0
      %3778 = vmatprep.mubr.f32.mxu0 0.0
      %3779 = vmatmul.mubr.f32.gmra.mrb[0].mxu0 %v3600
      %v3780 = vpop.f32.mrb[0].mxu0
      %v3781 = vadd.f32 0.0, %v3780
      %v3782 = vpop.f32.mrb[0].mxu0
      %3783 = vmatprep.mubr.f32.mxu0 0.0
      %3784 = vmatmul.mubr.f32.gmra.mrb[0].mxu0 %v3603
      %v3785 = vpop.f32.mrb[0].mxu0
      %v3786 = vadd.f32 0.0, %v3785
      %v3787 = vpop.f32.mrb[0].mxu0
      %3788 = vmatprep.mubr.f32.mxu0 0.0
      %3789 = vmatmul.mubr.f32.gmra.mrb[0].mxu0 %v3606
      %v3790 = vpop.f32.mrb[0].mxu0
      %v3791 = vadd.f32 0.0, %v3790
      %v3792 = vpop.f32.mrb[0].mxu0
      %3793 = vmatprep.mubr.f32.mxu0 0.0
      %3794 = vmatmul.mubr.f32.gmra.mrb[0].mxu0 %v3609
      %v3795 = vpop.f32.mrb[0].mxu0
      %v3796 = vadd.f32 0.0, %v3795
      %v3797 = vpop.f32.mrb[0].mxu0
      %3798 = vmatprep.mubr.f32.mxu0 0.0
      %3799 = vmatmul.mubr.f32.gmra.mrb[0].mxu0 %v3612
      %v3800 = vpop.f32.mrb[0].mxu0
      %v3801 = vadd.f32 0.0, %v3800
      %v3802 = vpop.f32.mrb[0].mxu0
      %3803 = vmatprep.mubr.f32.mxu0 0.0
      %3804 = vmatmul.mubr.f32.gmra.mrb[0].mxu0 %v3615
      %v3805 = vpop.f32.mrb[0].mxu0
      %v3806 = vadd.f32 0.0, %v3805
      %v3807 = vpop.f32.mrb[0].mxu0
      %3808 = vmatprep.mubr.f32.mxu0 0.0
      %3809 = vmatmul.mubr.f32.gmra.mrb[0].mxu0 %v3618
      %v3810 = vpop.f32.mrb[0].mxu0
      %v3811 = vadd.f32 0.0, %v3810
      %v3812 = vpop.f32.mrb[0].mxu0
      %3813 = vmatprep.mubr.f32.mxu0 0.0
      %3814 = vmatmul.mubr.f32.gmra.mrb[0].mxu0 %v3621
      %v3815 = vpop.f32.mrb[0].mxu0
      %v3816 = vadd.f32 0.0, %v3815
      %v3817 = vpop.f32.mrb[0].mxu0
      %3818 = vmatprep.mubr.f32.mxu0 0.0
      %3819 = vmatmul.mubr.f32.gmra.mrb[0].mxu0 %v3624
      %v3820 = vpop.f32.mrb[0].mxu0
      %v3821 = vadd.f32 0.0, %v3820
      %v3822 = vpop.f32.mrb[0].mxu0
      %3823 = vmatprep.mubr.f32.mxu0 0.0
      %3824 = vmatmul.mubr.f32.gmra.mrb[0].mxu0 %v3627
      %v3825 = vpop.f32.mrb[0].mxu0
      %v3826 = vadd.f32 0.0, %v3825
      %v3827 = vpop.f32.mrb[0].mxu0
      %3828 = vmatprep.mubr.f32.mxu0 0.0
      %3829 = vmatmul.mubr.f32.gmra.mrb[0].mxu0 %v3630
      %v3830 = vpop.f32.mrb[0].mxu0
      %v3831 = vadd.f32 0.0, %v3830
      %v3832 = vpop.f32.mrb[0].mxu0
      %3833 = vmatprep.mubr.f32.mxu0 0.0
      %3834 = vmatmul.mubr.f32.gmra.mrb[0].mxu0 %v3633
      %v3835 = vpop.f32.mrb[0].mxu0
      %v3836 = vadd.f32 0.0, %v3835
      %v3837 = vpop.f32.mrb[0].mxu0
      %3838 = vmatprep.mubr.f32.mxu0 0.0
      %3839 = vmatmul.mubr.f32.gmra.mrb[0].mxu0 %v3636
      %v3840 = vpop.f32.mrb[0].mxu0
      %v3841 = vadd.f32 0.0, %v3840
      %v3842 = vpop.f32.mrb[0].mxu0
      %3843 = vmatprep.mubr.f32.mxu0 0.0
      %3844 = vmatmul.mubr.f32.gmra.mrb[0].mxu0 %v3639
      %v3845 = vpop.f32.mrb[0].mxu0
      %v3846 = vadd.f32 0.0, %v3845
      %v3847 = vpop.f32.mrb[0].mxu0
      %3848 = vmatprep.mubr.f32.mxu0 0.0
      %3849 = vmatmul.mubr.f32.gmra.mrb[0].mxu0 %v3642
      %v3850 = vpop.f32.mrb[0].mxu0
      %v3851 = vadd.f32 0.0, %v3850
      %v3852 = vpop.f32.mrb[0].mxu0
      %3853 = vmatprep.mubr.f32.mxu0 0.0
      %3854 = vmatmul.mubr.f32.gmra.mrb[0].mxu0 %v3645
      %v3855 = vpop.f32.mrb[0].mxu0
      %v3856 = vadd.f32 0.0, %v3855
      %v3857 = vpop.f32.mrb[0].mxu0
      %3858 = vmatprep.mubr.f32.mxu0 0.0
      %3859 = vmatmul.mubr.f32.gmra.mrb[0].mxu0 %v3648
      %v3860 = vpop.f32.mrb[0].mxu0
      %v3861 = vadd.f32 0.0, %v3860
      %v3862 = vpop.f32.mrb[0].mxu0
      %3863 = vmatprep.mubr.f32.mxu0 0.0
      %3864 = vmatmul.mubr.f32.gmra.mrb[0].mxu0 %v3651
      %v3865 = vpop.f32.mrb[0].mxu0
      %v3866 = vadd.f32 0.0, %v3865
      %v3867 = vpop.f32.mrb[0].mxu0
      %3868 = vmatprep.mubr.f32.mxu0 0.0
      %3869 = vmatmul.mubr.f32.gmra.mrb[0].mxu0 %v3654
      %v3870 = vpop.f32.mrb[0].mxu0
      %v3871 = vadd.f32 0.0, %v3870
      %v3872 = vpop.f32.mrb[0].mxu0
      %3873 = vmatprep.mubr.f32.mxu0 0.0
      %3874 = vmatmul.mubr.f32.gmra.mrb[0].mxu0 %v3657
      %v3875 = vpop.f32.mrb[0].mxu0
      %v3876 = vadd.f32 0.0, %v3875
      %v3877 = vpop.f32.mrb[0].mxu0
      %3878 = vmatprep.mubr.f32.mxu0 0.0
      %3879 = vmatmul.mubr.f32.gmra.mrb[0].mxu0 %v3660
      %v3880 = vpop.f32.mrb[0].mxu0
      %v3881 = vadd.f32 0.0, %v3880
      %v3882 = vpop.f32.mrb[0].mxu0
      %3883 = vmatprep.mubr.f32.mxu0 0.0
      %3884 = vmatmul.mubr.f32.gmra.mrb[0].mxu0 %v3663
      %v3885 = vpop.f32.mrb[0].mxu0
      %v3886 = vadd.f32 0.0, %v3885
      %v3887 = vpop.f32.mrb[0].mxu0
      %3888 = vmatprep.mubr.f32.mxu0 0.0
      %3889 = vmatmul.mubr.f32.gmra.mrb[0].mxu0 %v3666
      %v3890 = vpop.f32.mrb[0].mxu0
      %v3891 = vadd.f32 0.0, %v3890
      %v3892 = vpop.f32.mrb[0].mxu0
      %3893 = vmatprep.mubr.f32.mxu0 0.0
      %3894 = vmatmul.mubr.f32.gmra.mrb[0].mxu0 %v3669
      %v3895 = vpop.f32.mrb[0].mxu0
      %v3896 = vadd.f32 0.0, %v3895
      %v3897 = vpop.f32.mrb[0].mxu0
      %3898 = vdwg.mxu0
      %v3899 = vadd.f32 %v3511, %v3741
      %v3900 = vadd.f32 %v3512, %v3746
      %v3901 = vadd.f32 %v3513, %v3751
      %v3902 = vadd.f32 %v3514, %v3756
      %v3903 = vadd.f32 %v3515, %v3761
      %v3904 = vadd.f32 %v3516, %v3766
      %v3905 = vadd.f32 %v3517, %v3771
      %v3906 = vadd.f32 %v3518, %v3776
      %v3907 = vadd.f32 %v3519, %v3781
      %v3908 = vadd.f32 %v3520, %v3786
      %v3909 = vadd.f32 %v3521, %v3791
      %v3910 = vadd.f32 %v3522, %v3796
      %v3911 = vadd.f32 %v3523, %v3801
      %v3912 = vadd.f32 %v3524, %v3806
      %v3913 = vadd.f32 %v3525, %v3811
      %v3914 = vadd.f32 %v3526, %v3816
      %v3915 = vadd.f32 %v3527, %v3821
      %v3916 = vadd.f32 %v3528, %v3826
      %v3917 = vadd.f32 %v3529, %v3831
      %v3918 = vadd.f32 %v3530, %v3836
      %v3919 = vadd.f32 %v3531, %v3841
      %v3920 = vadd.f32 %v3532, %v3846
      %v3921 = vadd.f32 %v3533, %v3851
      %v3922 = vadd.f32 %v3534, %v3856
      %v3923 = vadd.f32 %v3535, %v3861
      %v3924 = vadd.f32 %v3536, %v3866
      %v3925 = vadd.f32 %v3537, %v3871
      %v3926 = vadd.f32 %v3538, %v3876
      %v3927 = vadd.f32 %v3539, %v3881
      %v3928 = vadd.f32 %v3540, %v3886
      %v3929 = vadd.f32 %v3541, %v3891
      %v3930 = vadd.f32 %v3542, %v3896
      %v3933 = vrot.slane %v769, 1
      %v3934 = vsel %vm1065, %v2822, %v3933
      %v3935 = vrot.slane %v770, 1
      %v3936 = vsel %vm1065, %v3933, %v3935
      %v3937 = vrot.slane %v774, 4
      %v3938 = vsel %vm1133, %v3934, 0
      %v3940 = vsel %vm1133, %v3936, 0
      %v3942 = vsel %vm1198, %v3937, 0
      %3944 = vmatprep.subr.mxu0 0.0
      %3945 = vmatpush1.msra.mxu0 %v3942
      %3946 = vmatprep.subr.mxu0 0.0
      %3947 = vmatpush1.msra.mxu0 0.0
      %3948 = vmatprep.subr.mxu0 0.0
      %3949 = vmatpush1.msra.mxu0 0.0
      %3950 = vmatprep.subr.mxu0 0.0
      %3951 = vmatpush1.msra.mxu0 0.0
      %3952 = vmatprep.subr.mxu0 0.0
      %3953 = vmatpush1.msra.mxu0 0.0
      %3954 = vmatprep.subr.mxu0 0.0
      %3955 = vmatpush1.msra.mxu0 0.0
      %3956 = vmatprep.subr.mxu0 0.0
      %3957 = vmatpush1.msra.mxu0 0.0
      %3958 = vmatprep.subr.mxu0 0.0
      %3959 = vmatpush1.msra.mxu0 0.0
      %3960 = vmatprep.subr.mxu0 0.0
      %3961 = vmatpush1.msra.mxu0 0.0
      %3962 = vmatprep.subr.mxu0 0.0
      %3963 = vmatpush1.msra.mxu0 0.0
      %3964 = vmatprep.subr.mxu0 0.0
      %3965 = vmatpush1.msra.mxu0 0.0
      %3966 = vmatprep.subr.mxu0 0.0
      %3967 = vmatpush1.msra.mxu0 0.0
      %3968 = vmatprep.subr.mxu0 0.0
      %3969 = vmatpush1.msra.mxu0 0.0
      %3970 = vmatprep.subr.mxu0 0.0
      %3971 = vmatpush1.msra.mxu0 0.0
      %3972 = vmatprep.subr.mxu0 0.0
      %3973 = vmatpush1.msra.mxu0 0.0
      %3974 = vmatprep.subr.mxu0 0.0
      %3975 = vmatpush1.msra.mxu0 0.0
      %3976 = vmatprep.subr.mxu0 0.0
      %3977 = vmatpush1.msra.mxu0 0.0
      %3978 = vmatprep.subr.mxu0 0.0
      %3979 = vmatpush1.msra.mxu0 0.0
      %3980 = vmatprep.subr.mxu0 0.0
      %3981 = vmatpush1.msra.mxu0 0.0
      %3982 = vmatprep.subr.mxu0 0.0
      %3983 = vmatpush1.msra.mxu0 0.0
      %3984 = vmatprep.subr.mxu0 0.0
      %3985 = vmatpush1.msra.mxu0 0.0
      %3986 = vmatprep.subr.mxu0 0.0
      %3987 = vmatpush1.msra.mxu0 0.0
      %3988 = vmatprep.subr.mxu0 0.0
      %3989 = vmatpush1.msra.mxu0 0.0
      %3990 = vmatprep.subr.mxu0 0.0
      %3991 = vmatpush1.msra.mxu0 0.0
      %3992 = vmatprep.subr.mxu0 0.0
      %3993 = vmatpush1.msra.mxu0 0.0
      %3994 = vmatprep.subr.mxu0 0.0
      %3995 = vmatpush1.msra.mxu0 0.0
      %3996 = vmatprep.subr.mxu0 0.0
      %3997 = vmatpush1.msra.mxu0 0.0
      %3998 = vmatprep.subr.mxu0 0.0
      %3999 = vmatpush1.msra.mxu0 0.0
      %4000 = vmatprep.subr.mxu0 0.0
      %4001 = vmatpush1.msra.mxu0 0.0
      %4002 = vmatprep.subr.mxu0 0.0
      %4003 = vmatpush1.msra.mxu0 0.0
      %4004 = vmatprep.subr.mxu0 0.0
      %4005 = vmatpush1.msra.mxu0 0.0
      %4006 = vmatprep.subr.mxu0 0.0
      %4007 = vmatpush1.msra.mxu0 0.0
      %4008 = vmatprep.mubr.f32.mxu0 0.0
      %4009 = vmatmul.mubr.f32.gmra.mrb[0].mxu0 %v1142
      %v4010 = vpop.f32.mrb[0].mxu0
      %v4011 = vadd.f32 0.0, %v4010
      %v4012 = vpop.f32.mrb[0].mxu0
      %4013 = vmatprep.mubr.f32.mxu0 0.0
      %4014 = vmatmul.mubr.f32.gmra.mrb[0].mxu0 %v1144
      %v4015 = vpop.f32.mrb[0].mxu0
      %v4016 = vadd.f32 0.0, %v4015
      %v4017 = vpop.f32.mrb[0].mxu0
      %4018 = vmatprep.mubr.f32.mxu0 0.0
      %4019 = vmatmul.mubr.f32.gmra.mrb[0].mxu0 %v1146
      %v4020 = vpop.f32.mrb[0].mxu0
      %v4021 = vadd.f32 0.0, %v4020
      %v4022 = vpop.f32.mrb[0].mxu0
      %4023 = vmatprep.mubr.f32.mxu0 0.0
      %4024 = vmatmul.mubr.f32.gmra.mrb[0].mxu0 %v1148
      %v4025 = vpop.f32.mrb[0].mxu0
      %v4026 = vadd.f32 0.0, %v4025
      %v4027 = vpop.f32.mrb[0].mxu0
      %4028 = vmatprep.mubr.f32.mxu0 0.0
      %4029 = vmatmul.mubr.f32.gmra.mrb[0].mxu0 %v1150
      %v4030 = vpop.f32.mrb[0].mxu0
      %v4031 = vadd.f32 0.0, %v4030
      %v4032 = vpop.f32.mrb[0].mxu0
      %4033 = vmatprep.mubr.f32.mxu0 0.0
      %4034 = vmatmul.mubr.f32.gmra.mrb[0].mxu0 %v1152
      %v4035 = vpop.f32.mrb[0].mxu0
      %v4036 = vadd.f32 0.0, %v4035
      %v4037 = vpop.f32.mrb[0].mxu0
      %4038 = vmatprep.mubr.f32.mxu0 0.0
      %4039 = vmatmul.mubr.f32.gmra.mrb[0].mxu0 %v1154
      %v4040 = vpop.f32.mrb[0].mxu0
      %v4041 = vadd.f32 0.0, %v4040
      %v4042 = vpop.f32.mrb[0].mxu0
      %4043 = vmatprep.mubr.f32.mxu0 0.0
      %4044 = vmatmul.mubr.f32.gmra.mrb[0].mxu0 %v1156
      %v4045 = vpop.f32.mrb[0].mxu0
      %v4046 = vadd.f32 0.0, %v4045
      %v4047 = vpop.f32.mrb[0].mxu0
      %4048 = vmatprep.mubr.f32.mxu0 0.0
      %4049 = vmatmul.mubr.f32.gmra.mrb[0].mxu0 %v1158
      %v4050 = vpop.f32.mrb[0].mxu0
      %v4051 = vadd.f32 0.0, %v4050
      %v4052 = vpop.f32.mrb[0].mxu0
      %4053 = vmatprep.mubr.f32.mxu0 0.0
      %4054 = vmatmul.mubr.f32.gmra.mrb[0].mxu0 %v1160
      %v4055 = vpop.f32.mrb[0].mxu0
      %v4056 = vadd.f32 0.0, %v4055
      %v4057 = vpop.f32.mrb[0].mxu0
      %4058 = vmatprep.mubr.f32.mxu0 0.0
      %4059 = vmatmul.mubr.f32.gmra.mrb[0].mxu0 %v1162
      %v4060 = vpop.f32.mrb[0].mxu0
      %v4061 = vadd.f32 0.0, %v4060
      %v4062 = vpop.f32.mrb[0].mxu0
      %4063 = vmatprep.mubr.f32.mxu0 0.0
      %4064 = vmatmul.mubr.f32.gmra.mrb[0].mxu0 %v1164
      %v4065 = vpop.f32.mrb[0].mxu0
      %v4066 = vadd.f32 0.0, %v4065
      %v4067 = vpop.f32.mrb[0].mxu0
      %4068 = vmatprep.mubr.f32.mxu0 0.0
      %4069 = vmatmul.mubr.f32.gmra.mrb[0].mxu0 %v1166
      %v4070 = vpop.f32.mrb[0].mxu0
      %v4071 = vadd.f32 0.0, %v4070
      %v4072 = vpop.f32.mrb[0].mxu0
      %4073 = vmatprep.mubr.f32.mxu0 0.0
      %4074 = vmatmul.mubr.f32.gmra.mrb[0].mxu0 %v1168
      %v4075 = vpop.f32.mrb[0].mxu0
      %v4076 = vadd.f32 0.0, %v4075
      %v4077 = vpop.f32.mrb[0].mxu0
      %4078 = vmatprep.mubr.f32.mxu0 0.0
      %4079 = vmatmul.mubr.f32.gmra.mrb[0].mxu0 %v1170
      %v4080 = vpop.f32.mrb[0].mxu0
      %v4081 = vadd.f32 0.0, %v4080
      %v4082 = vpop.f32.mrb[0].mxu0
      %4083 = vmatprep.mubr.f32.mxu0 0.0
      %4084 = vmatmul.mubr.f32.gmra.mrb[0].mxu0 %v1172
      %v4085 = vpop.f32.mrb[0].mxu0
      %v4086 = vadd.f32 0.0, %v4085
      %v4087 = vpop.f32.mrb[0].mxu0
      %4088 = vmatprep.mubr.f32.mxu0 0.0
      %4089 = vmatmul.mubr.f32.gmra.mrb[0].mxu0 %v1174
      %v4090 = vpop.f32.mrb[0].mxu0
      %v4091 = vadd.f32 0.0, %v4090
      %v4092 = vpop.f32.mrb[0].mxu0
      %4093 = vmatprep.mubr.f32.mxu0 0.0
      %4094 = vmatmul.mubr.f32.gmra.mrb[0].mxu0 %v1176
      %v4095 = vpop.f32.mrb[0].mxu0
      %v4096 = vadd.f32 0.0, %v4095
      %v4097 = vpop.f32.mrb[0].mxu0
      %4098 = vmatprep.mubr.f32.mxu0 0.0
      %4099 = vmatmul.mubr.f32.gmra.mrb[0].mxu0 %v1178
      %v4100 = vpop.f32.mrb[0].mxu0
      %v4101 = vadd.f32 0.0, %v4100
      %v4102 = vpop.f32.mrb[0].mxu0
      %4103 = vmatprep.mubr.f32.mxu0 0.0
      %4104 = vmatmul.mubr.f32.gmra.mrb[0].mxu0 %v1180
      %v4105 = vpop.f32.mrb[0].mxu0
      %v4106 = vadd.f32 0.0, %v4105
      %v4107 = vpop.f32.mrb[0].mxu0
      %4108 = vmatprep.mubr.f32.mxu0 0.0
      %4109 = vmatmul.mubr.f32.gmra.mrb[0].mxu0 %v1182
      %v4110 = vpop.f32.mrb[0].mxu0
      %v4111 = vadd.f32 0.0, %v4110
      %v4112 = vpop.f32.mrb[0].mxu0
      %4113 = vmatprep.mubr.f32.mxu0 0.0
      %4114 = vmatmul.mubr.f32.gmra.mrb[0].mxu0 %v1184
      %v4115 = vpop.f32.mrb[0].mxu0
      %v4116 = vadd.f32 0.0, %v4115
      %v4117 = vpop.f32.mrb[0].mxu0
      %4118 = vmatprep.mubr.f32.mxu0 0.0
      %4119 = vmatmul.mubr.f32.gmra.mrb[0].mxu0 %v1186
      %v4120 = vpop.f32.mrb[0].mxu0
      %v4121 = vadd.f32 0.0, %v4120
      %v4122 = vpop.f32.mrb[0].mxu0
      %4123 = vmatprep.mubr.f32.mxu0 0.0
      %4124 = vmatmul.mubr.f32.gmra.mrb[0].mxu0 %v1188
      %v4125 = vpop.f32.mrb[0].mxu0
      %v4126 = vadd.f32 0.0, %v4125
      %v4127 = vpop.f32.mrb[0].mxu0
      %4128 = vmatprep.mubr.f32.mxu0 0.0
      %4129 = vmatmul.mubr.f32.gmra.mrb[0].mxu0 %v1190
      %v4130 = vpop.f32.mrb[0].mxu0
      %v4131 = vadd.f32 0.0, %v4130
      %v4132 = vpop.f32.mrb[0].mxu0
      %4133 = vmatprep.mubr.f32.mxu0 0.0
      %4134 = vmatmul.mubr.f32.gmra.mrb[0].mxu0 %v1192
      %v4135 = vpop.f32.mrb[0].mxu0
      %v4136 = vadd.f32 0.0, %v4135
      %v4137 = vpop.f32.mrb[0].mxu0
      %4138 = vmatprep.mubr.f32.mxu0 0.0
      %4139 = vmatmul.mubr.f32.gmra.mrb[0].mxu0 %v1194
      %v4140 = vpop.f32.mrb[0].mxu0
      %v4141 = vadd.f32 0.0, %v4140
      %v4142 = vpop.f32.mrb[0].mxu0
      %4143 = vmatprep.mubr.f32.mxu0 0.0
      %4144 = vmatmul.mubr.f32.gmra.mrb[0].mxu0 %v1196
      %v4145 = vpop.f32.mrb[0].mxu0
      %v4146 = vadd.f32 0.0, %v4145
      %v4147 = vpop.f32.mrb[0].mxu0
      %4148 = vmatprep.mubr.f32.mxu0 0.0
      %4149 = vmatmul.mubr.f32.gmra.mrb[0].mxu0 %v2824
      %v4150 = vpop.f32.mrb[0].mxu0
      %v4151 = vadd.f32 0.0, %v4150
      %v4152 = vpop.f32.mrb[0].mxu0
      %4153 = vmatprep.mubr.f32.mxu0 0.0
      %4154 = vmatmul.mubr.f32.gmra.mrb[0].mxu0 %v2826
      %v4155 = vpop.f32.mrb[0].mxu0
      %v4156 = vadd.f32 0.0, %v4155
      %v4157 = vpop.f32.mrb[0].mxu0
      %4158 = vmatprep.mubr.f32.mxu0 0.0
      %4159 = vmatmul.mubr.f32.gmra.mrb[0].mxu0 %v3938
      %v4160 = vpop.f32.mrb[0].mxu0
      %v4161 = vadd.f32 0.0, %v4160
      %v4162 = vpop.f32.mrb[0].mxu0
      %4163 = vmatprep.mubr.f32.mxu0 0.0
      %4164 = vmatmul.mubr.f32.gmra.mrb[0].mxu0 %v3940
      %v4165 = vpop.f32.mrb[0].mxu0
      %v4166 = vadd.f32 0.0, %v4165
      %v4167 = vpop.f32.mrb[0].mxu0
      %4168 = vdwg.mxu0
      %v4169 = vadd.f32 %v3899, %v4011
      %v4170 = vadd.f32 %v3900, %v4016
      %v4171 = vadd.f32 %v3901, %v4021
      %v4172 = vadd.f32 %v3902, %v4026
      %v4173 = vadd.f32 %v3903, %v4031
      %v4174 = vadd.f32 %v3904, %v4036
      %v4175 = vadd.f32 %v3905, %v4041
      %v4176 = vadd.f32 %v3906, %v4046
      %v4177 = vadd.f32 %v3907, %v4051
      %v4178 = vadd.f32 %v3908, %v4056
      %v4179 = vadd.f32 %v3909, %v4061
      %v4180 = vadd.f32 %v3910, %v4066
      %v4181 = vadd.f32 %v3911, %v4071
      %v4182 = vadd.f32 %v3912, %v4076
      %v4183 = vadd.f32 %v3913, %v4081
      %v4184 = vadd.f32 %v3914, %v4086
      %v4185 = vadd.f32 %v3915, %v4091
      %v4186 = vadd.f32 %v3916, %v4096
      %v4187 = vadd.f32 %v3917, %v4101
      %v4188 = vadd.f32 %v3918, %v4106
      %v4189 = vadd.f32 %v3919, %v4111
      %v4190 = vadd.f32 %v3920, %v4116
      %v4191 = vadd.f32 %v3921, %v4121
      %v4192 = vadd.f32 %v3922, %v4126
      %v4193 = vadd.f32 %v3923, %v4131
      %v4194 = vadd.f32 %v3924, %v4136
      %v4195 = vadd.f32 %v3925, %v4141
      %v4196 = vadd.f32 %v3926, %v4146
      %v4197 = vadd.f32 %v3927, %v4151
      %v4198 = vadd.f32 %v3928, %v4156
      %v4199 = vadd.f32 %v3929, %v4161
      %v4200 = vadd.f32 %v3930, %v4166
      %v4201 = vmul.f32 %v738, %v1878
      %v4202 = vmul.f32 %v739, %v1880
      %v4203 = vmul.f32 %v740, %v1882
      %v4204 = vmul.f32 %v741, %v1884
      %v4205 = vmul.f32 %v742, %v1886
      %v4206 = vmul.f32 %v743, %v1888
      %v4207 = vmul.f32 %v744, %v1890
      %v4208 = vmul.f32 %v745, %v1892
      %v4209 = vmul.f32 %v746, %v1894
      %v4210 = vmul.f32 %v747, %v1896
      %v4211 = vmul.f32 %v748, %v1898
      %v4212 = vmul.f32 %v749, %v1900
      %v4213 = vmul.f32 %v750, %v1902
      %v4214 = vmul.f32 %v751, %v1904
      %v4215 = vmul.f32 %v752, %v1906
      %v4216 = vmul.f32 %v753, %v1908
      %v4217 = vmul.f32 %v754, %v1910
      %v4218 = vmul.f32 %v755, %v1912
      %v4219 = vmul.f32 %v756, %v1914
      %v4220 = vmul.f32 %v757, %v1916
      %v4221 = vmul.f32 %v758, %v1918
      %v4222 = vmul.f32 %v759, %v1920
      %v4223 = vmul.f32 %v760, %v1922
      %v4224 = vmul.f32 %v761, %v1924
      %v4225 = vmul.f32 %v762, %v1926
      %v4226 = vmul.f32 %v763, %v1928
      %v4227 = vmul.f32 %v764, %v1930
      %v4228 = vmul.f32 %v765, %v1932
      %v4229 = vmul.f32 %v766, %v1934
      %v4230 = vmul.f32 %v767, %v1936
      %v4231 = vmul.f32 %v768, %v1938
      %v4232 = vmul.f32 %v769, %v1940
      %v4233 = vmul.f32 %v770, %v1939
      %v4267 = vrot.slane %v4201, 2
      %v4268 = vrot.slane %v4202, 2
      %v4269 = vsel %vm2040, %v4267, %v4268
      %v4270 = vrot.slane %v4203, 2
      %v4271 = vsel %vm2040, %v4268, %v4270
      %v4272 = vrot.slane %v4204, 2
      %v4273 = vsel %vm2040, %v4270, %v4272
      %v4274 = vrot.slane %v4205, 2
      %v4275 = vsel %vm2040, %v4272, %v4274
      %v4276 = vrot.slane %v4206, 2
      %v4277 = vsel %vm2040, %v4274, %v4276
      %v4278 = vrot.slane %v4207, 2
      %v4279 = vsel %vm2040, %v4276, %v4278
      %v4280 = vrot.slane %v4208, 2
      %v4281 = vsel %vm2040, %v4278, %v4280
      %v4282 = vrot.slane %v4209, 2
      %v4283 = vsel %vm2040, %v4280, %v4282
      %v4284 = vrot.slane %v4210, 2
      %v4285 = vsel %vm2040, %v4282, %v4284
      %v4286 = vrot.slane %v4211, 2
      %v4287 = vsel %vm2040, %v4284, %v4286
      %v4288 = vrot.slane %v4212, 2
      %v4289 = vsel %vm2040, %v4286, %v4288
      %v4290 = vrot.slane %v4213, 2
      %v4291 = vsel %vm2040, %v4288, %v4290
      %v4292 = vrot.slane %v4214, 2
      %v4293 = vsel %vm2040, %v4290, %v4292
      %v4294 = vrot.slane %v4215, 2
      %v4295 = vsel %vm2040, %v4292, %v4294
      %v4296 = vrot.slane %v4216, 2
      %v4297 = vsel %vm2040, %v4294, %v4296
      %v4298 = vrot.slane %v4217, 2
      %v4299 = vsel %vm2040, %v4296, %v4298
      %v4300 = vrot.slane %v4218, 2
      %v4301 = vsel %vm2040, %v4298, %v4300
      %v4302 = vrot.slane %v4219, 2
      %v4303 = vsel %vm2040, %v4300, %v4302
      %v4304 = vrot.slane %v4220, 2
      %v4305 = vsel %vm2040, %v4302, %v4304
      %v4306 = vrot.slane %v4221, 2
      %v4307 = vsel %vm2040, %v4304, %v4306
      %v4308 = vrot.slane %v4222, 2
      %v4309 = vsel %vm2040, %v4306, %v4308
      %v4310 = vrot.slane %v4223, 2
      %v4311 = vsel %vm2040, %v4308, %v4310
      %v4312 = vrot.slane %v4224, 2
      %v4313 = vsel %vm2040, %v4310, %v4312
      %v4314 = vrot.slane %v4225, 2
      %v4315 = vsel %vm2040, %v4312, %v4314
      %v4316 = vrot.slane %v4226, 2
      %v4317 = vsel %vm2040, %v4314, %v4316
      %v4318 = vrot.slane %v4227, 2
      %v4319 = vsel %vm2040, %v4316, %v4318
      %v4320 = vrot.slane %v4228, 2
      %v4321 = vsel %vm2040, %v4318, %v4320
      %v4322 = vrot.slane %v4229, 2
      %v4323 = vsel %vm2040, %v4320, %v4322
      %v4324 = vrot.slane %v4230, 2
      %v4325 = vsel %vm2040, %v4322, %v4324
      %v4326 = vrot.slane %v4231, 2
      %v4327 = vsel %vm2040, %v4324, %v4326
      %v4328 = vrot.slane %v4232, 2
      %v4329 = vsel %vm2040, %v4326, %v4328
      %v4330 = vrot.slane %v4233, 2
      %v4331 = vsel %vm2040, %v4328, %v4330
      %v4332 = vsel %vm1133, %v4269, 0
      %v4334 = vsel %vm1133, %v4271, 0
      %v4336 = vsel %vm1133, %v4273, 0
      %v4338 = vsel %vm1133, %v4275, 0
      %v4340 = vsel %vm1133, %v4277, 0
      %v4342 = vsel %vm1133, %v4279, 0
      %v4344 = vsel %vm1133, %v4281, 0
      %v4346 = vsel %vm1133, %v4283, 0
      %v4348 = vsel %vm1133, %v4285, 0
      %v4350 = vsel %vm1133, %v4287, 0
      %v4352 = vsel %vm1133, %v4289, 0
      %v4354 = vsel %vm1133, %v4291, 0
      %v4356 = vsel %vm1133, %v4293, 0
      %v4358 = vsel %vm1133, %v4295, 0
      %v4360 = vsel %vm1133, %v4297, 0
      %v4362 = vsel %vm1133, %v4299, 0
      %v4364 = vsel %vm1133, %v4301, 0
      %v4366 = vsel %vm1133, %v4303, 0
      %v4368 = vsel %vm1133, %v4305, 0
      %v4370 = vsel %vm1133, %v4307, 0
      %v4372 = vsel %vm1133, %v4309, 0
      %v4374 = vsel %vm1133, %v4311, 0
      %v4376 = vsel %vm1133, %v4313, 0
      %v4378 = vsel %vm1133, %v4315, 0
      %v4380 = vsel %vm1133, %v4317, 0
      %v4382 = vsel %vm1133, %v4319, 0
      %v4384 = vsel %vm1133, %v4321, 0
      %v4386 = vsel %vm1133, %v4323, 0
      %v4388 = vsel %vm1133, %v4325, 0
      %v4390 = vsel %vm1133, %v4327, 0
      %v4392 = vsel %vm1133, %v4329, 0
      %v4394 = vsel %vm1133, %v4331, 0
      %v4397 = vsel %vm1198, %v775, 0
      %4399 = vmatprep.subr.mxu0 0.0
      %4400 = vmatpush1.msra.mxu0 %v4397
      %4401 = vmatprep.subr.mxu0 0.0
      %4402 = vmatpush1.msra.mxu0 0.0
      %4403 = vmatprep.subr.mxu0 0.0
      %4404 = vmatpush1.msra.mxu0 0.0
      %4405 = vmatprep.subr.mxu0 0.0
      %4406 = vmatpush1.msra.mxu0 0.0
      %4407 = vmatprep.subr.mxu0 0.0
      %4408 = vmatpush1.msra.mxu0 0.0
      %4409 = vmatprep.subr.mxu0 0.0
      %4410 = vmatpush1.msra.mxu0 0.0
      %4411 = vmatprep.subr.mxu0 0.0
      %4412 = vmatpush1.msra.mxu0 0.0
      %4413 = vmatprep.subr.mxu0 0.0
      %4414 = vmatpush1.msra.mxu0 0.0
      %4415 = vmatprep.subr.mxu0 0.0
      %4416 = vmatpush1.msra.mxu0 0.0
      %4417 = vmatprep.subr.mxu0 0.0
      %4418 = vmatpush1.msra.mxu0 0.0
      %4419 = vmatprep.subr.mxu0 0.0
      %4420 = vmatpush1.msra.mxu0 0.0
      %4421 = vmatprep.subr.mxu0 0.0
      %4422 = vmatpush1.msra.mxu0 0.0
      %4423 = vmatprep.subr.mxu0 0.0
      %4424 = vmatpush1.msra.mxu0 0.0
      %4425 = vmatprep.subr.mxu0 0.0
      %4426 = vmatpush1.msra.mxu0 0.0
      %4427 = vmatprep.subr.mxu0 0.0
      %4428 = vmatpush1.msra.mxu0 0.0
      %4429 = vmatprep.subr.mxu0 0.0
      %4430 = vmatpush1.msra.mxu0 0.0
      %4431 = vmatprep.subr.mxu0 0.0
      %4432 = vmatpush1.msra.mxu0 0.0
      %4433 = vmatprep.subr.mxu0 0.0
      %4434 = vmatpush1.msra.mxu0 0.0
      %4435 = vmatprep.subr.mxu0 0.0
      %4436 = vmatpush1.msra.mxu0 0.0
      %4437 = vmatprep.subr.mxu0 0.0
      %4438 = vmatpush1.msra.mxu0 0.0
      %4439 = vmatprep.subr.mxu0 0.0
      %4440 = vmatpush1.msra.mxu0 0.0
      %4441 = vmatprep.subr.mxu0 0.0
      %4442 = vmatpush1.msra.mxu0 0.0
      %4443 = vmatprep.subr.mxu0 0.0
      %4444 = vmatpush1.msra.mxu0 0.0
      %4445 = vmatprep.subr.mxu0 0.0
      %4446 = vmatpush1.msra.mxu0 0.0
      %4447 = vmatprep.subr.mxu0 0.0
      %4448 = vmatpush1.msra.mxu0 0.0
      %4449 = vmatprep.subr.mxu0 0.0
      %4450 = vmatpush1.msra.mxu0 0.0
      %4451 = vmatprep.subr.mxu0 0.0
      %4452 = vmatpush1.msra.mxu0 0.0
      %4453 = vmatprep.subr.mxu0 0.0
      %4454 = vmatpush1.msra.mxu0 0.0
      %4455 = vmatprep.subr.mxu0 0.0
      %4456 = vmatpush1.msra.mxu0 0.0
      %4457 = vmatprep.subr.mxu0 0.0
      %4458 = vmatpush1.msra.mxu0 0.0
      %4459 = vmatprep.subr.mxu0 0.0
      %4460 = vmatpush1.msra.mxu0 0.0
      %4461 = vmatprep.subr.mxu0 0.0
      %4462 = vmatpush1.msra.mxu0 0.0
      %4463 = vmatprep.mubr.f32.mxu0 0.0
      %4464 = vmatmul.mubr.f32.gmra.mrb[0].mxu0 %v4332
      %v4465 = vpop.f32.mrb[0].mxu0
      %v4466 = vadd.f32 0.0, %v4465
      %v4467 = vpop.f32.mrb[0].mxu0
      %4468 = vmatprep.mubr.f32.mxu0 0.0
      %4469 = vmatmul.mubr.f32.gmra.mrb[0].mxu0 %v4334
      %v4470 = vpop.f32.mrb[0].mxu0
      %v4471 = vadd.f32 0.0, %v4470
      %v4472 = vpop.f32.mrb[0].mxu0
      %4473 = vmatprep.mubr.f32.mxu0 0.0
      %4474 = vmatmul.mubr.f32.gmra.mrb[0].mxu0 %v4336
      %v4475 = vpop.f32.mrb[0].mxu0
      %v4476 = vadd.f32 0.0, %v4475
      %v4477 = vpop.f32.mrb[0].mxu0
      %4478 = vmatprep.mubr.f32.mxu0 0.0
      %4479 = vmatmul.mubr.f32.gmra.mrb[0].mxu0 %v4338
      %v4480 = vpop.f32.mrb[0].mxu0
      %v4481 = vadd.f32 0.0, %v4480
      %v4482 = vpop.f32.mrb[0].mxu0
      %4483 = vmatprep.mubr.f32.mxu0 0.0
      %4484 = vmatmul.mubr.f32.gmra.mrb[0].mxu0 %v4340
      %v4485 = vpop.f32.mrb[0].mxu0
      %v4486 = vadd.f32 0.0, %v4485
      %v4487 = vpop.f32.mrb[0].mxu0
      %4488 = vmatprep.mubr.f32.mxu0 0.0
      %4489 = vmatmul.mubr.f32.gmra.mrb[0].mxu0 %v4342
      %v4490 = vpop.f32.mrb[0].mxu0
      %v4491 = vadd.f32 0.0, %v4490
      %v4492 = vpop.f32.mrb[0].mxu0
      %4493 = vmatprep.mubr.f32.mxu0 0.0
      %4494 = vmatmul.mubr.f32.gmra.mrb[0].mxu0 %v4344
      %v4495 = vpop.f32.mrb[0].mxu0
      %v4496 = vadd.f32 0.0, %v4495
      %v4497 = vpop.f32.mrb[0].mxu0
      %4498 = vmatprep.mubr.f32.mxu0 0.0
      %4499 = vmatmul.mubr.f32.gmra.mrb[0].mxu0 %v4346
      %v4500 = vpop.f32.mrb[0].mxu0
      %v4501 = vadd.f32 0.0, %v4500
      %v4502 = vpop.f32.mrb[0].mxu0
      %4503 = vmatprep.mubr.f32.mxu0 0.0
      %4504 = vmatmul.mubr.f32.gmra.mrb[0].mxu0 %v4348
      %v4505 = vpop.f32.mrb[0].mxu0
      %v4506 = vadd.f32 0.0, %v4505
      %v4507 = vpop.f32.mrb[0].mxu0
      %4508 = vmatprep.mubr.f32.mxu0 0.0
      %4509 = vmatmul.mubr.f32.gmra.mrb[0].mxu0 %v4350
      %v4510 = vpop.f32.mrb[0].mxu0
      %v4511 = vadd.f32 0.0, %v4510
      %v4512 = vpop.f32.mrb[0].mxu0
      %4513 = vmatprep.mubr.f32.mxu0 0.0
      %4514 = vmatmul.mubr.f32.gmra.mrb[0].mxu0 %v4352
      %v4515 = vpop.f32.mrb[0].mxu0
      %v4516 = vadd.f32 0.0, %v4515
      %v4517 = vpop.f32.mrb[0].mxu0
      %4518 = vmatprep.mubr.f32.mxu0 0.0
      %4519 = vmatmul.mubr.f32.gmra.mrb[0].mxu0 %v4354
      %v4520 = vpop.f32.mrb[0].mxu0
      %v4521 = vadd.f32 0.0, %v4520
      %v4522 = vpop.f32.mrb[0].mxu0
      %4523 = vmatprep.mubr.f32.mxu0 0.0
      %4524 = vmatmul.mubr.f32.gmra.mrb[0].mxu0 %v4356
      %v4525 = vpop.f32.mrb[0].mxu0
      %v4526 = vadd.f32 0.0, %v4525
      %v4527 = vpop.f32.mrb[0].mxu0
      %4528 = vmatprep.mubr.f32.mxu0 0.0
      %4529 = vmatmul.mubr.f32.gmra.mrb[0].mxu0 %v4358
      %v4530 = vpop.f32.mrb[0].mxu0
      %v4531 = vadd.f32 0.0, %v4530
      %v4532 = vpop.f32.mrb[0].mxu0
      %4533 = vmatprep.mubr.f32.mxu0 0.0
      %4534 = vmatmul.mubr.f32.gmra.mrb[0].mxu0 %v4360
      %v4535 = vpop.f32.mrb[0].mxu0
      %v4536 = vadd.f32 0.0, %v4535
      %v4537 = vpop.f32.mrb[0].mxu0
      %4538 = vmatprep.mubr.f32.mxu0 0.0
      %4539 = vmatmul.mubr.f32.gmra.mrb[0].mxu0 %v4362
      %v4540 = vpop.f32.mrb[0].mxu0
      %v4541 = vadd.f32 0.0, %v4540
      %v4542 = vpop.f32.mrb[0].mxu0
      %4543 = vmatprep.mubr.f32.mxu0 0.0
      %4544 = vmatmul.mubr.f32.gmra.mrb[0].mxu0 %v4364
      %v4545 = vpop.f32.mrb[0].mxu0
      %v4546 = vadd.f32 0.0, %v4545
      %v4547 = vpop.f32.mrb[0].mxu0
      %4548 = vmatprep.mubr.f32.mxu0 0.0
      %4549 = vmatmul.mubr.f32.gmra.mrb[0].mxu0 %v4366
      %v4550 = vpop.f32.mrb[0].mxu0
      %v4551 = vadd.f32 0.0, %v4550
      %v4552 = vpop.f32.mrb[0].mxu0
      %4553 = vmatprep.mubr.f32.mxu0 0.0
      %4554 = vmatmul.mubr.f32.gmra.mrb[0].mxu0 %v4368
      %v4555 = vpop.f32.mrb[0].mxu0
      %v4556 = vadd.f32 0.0, %v4555
      %v4557 = vpop.f32.mrb[0].mxu0
      %4558 = vmatprep.mubr.f32.mxu0 0.0
      %4559 = vmatmul.mubr.f32.gmra.mrb[0].mxu0 %v4370
      %v4560 = vpop.f32.mrb[0].mxu0
      %v4561 = vadd.f32 0.0, %v4560
      %v4562 = vpop.f32.mrb[0].mxu0
      %4563 = vmatprep.mubr.f32.mxu0 0.0
      %4564 = vmatmul.mubr.f32.gmra.mrb[0].mxu0 %v4372
      %v4565 = vpop.f32.mrb[0].mxu0
      %v4566 = vadd.f32 0.0, %v4565
      %v4567 = vpop.f32.mrb[0].mxu0
      %4568 = vmatprep.mubr.f32.mxu0 0.0
      %4569 = vmatmul.mubr.f32.gmra.mrb[0].mxu0 %v4374
      %v4570 = vpop.f32.mrb[0].mxu0
      %v4571 = vadd.f32 0.0, %v4570
      %v4572 = vpop.f32.mrb[0].mxu0
      %4573 = vmatprep.mubr.f32.mxu0 0.0
      %4574 = vmatmul.mubr.f32.gmra.mrb[0].mxu0 %v4376
      %v4575 = vpop.f32.mrb[0].mxu0
      %v4576 = vadd.f32 0.0, %v4575
      %v4577 = vpop.f32.mrb[0].mxu0
      %4578 = vmatprep.mubr.f32.mxu0 0.0
      %4579 = vmatmul.mubr.f32.gmra.mrb[0].mxu0 %v4378
      %v4580 = vpop.f32.mrb[0].mxu0
      %v4581 = vadd.f32 0.0, %v4580
      %v4582 = vpop.f32.mrb[0].mxu0
      %4583 = vmatprep.mubr.f32.mxu0 0.0
      %4584 = vmatmul.mubr.f32.gmra.mrb[0].mxu0 %v4380
      %v4585 = vpop.f32.mrb[0].mxu0
      %v4586 = vadd.f32 0.0, %v4585
      %v4587 = vpop.f32.mrb[0].mxu0
      %4588 = vmatprep.mubr.f32.mxu0 0.0
      %4589 = vmatmul.mubr.f32.gmra.mrb[0].mxu0 %v4382
      %v4590 = vpop.f32.mrb[0].mxu0
      %v4591 = vadd.f32 0.0, %v4590
      %v4592 = vpop.f32.mrb[0].mxu0
      %4593 = vmatprep.mubr.f32.mxu0 0.0
      %4594 = vmatmul.mubr.f32.gmra.mrb[0].mxu0 %v4384
      %v4595 = vpop.f32.mrb[0].mxu0
      %v4596 = vadd.f32 0.0, %v4595
      %v4597 = vpop.f32.mrb[0].mxu0
      %4598 = vmatprep.mubr.f32.mxu0 0.0
      %4599 = vmatmul.mubr.f32.gmra.mrb[0].mxu0 %v4386
      %v4600 = vpop.f32.mrb[0].mxu0
      %v4601 = vadd.f32 0.0, %v4600
      %v4602 = vpop.f32.mrb[0].mxu0
      %4603 = vmatprep.mubr.f32.mxu0 0.0
      %4604 = vmatmul.mubr.f32.gmra.mrb[0].mxu0 %v4388
      %v4605 = vpop.f32.mrb[0].mxu0
      %v4606 = vadd.f32 0.0, %v4605
      %v4607 = vpop.f32.mrb[0].mxu0
      %4608 = vmatprep.mubr.f32.mxu0 0.0
      %4609 = vmatmul.mubr.f32.gmra.mrb[0].mxu0 %v4390
      %v4610 = vpop.f32.mrb[0].mxu0
      %v4611 = vadd.f32 0.0, %v4610
      %v4612 = vpop.f32.mrb[0].mxu0
      %4613 = vmatprep.mubr.f32.mxu0 0.0
      %4614 = vmatmul.mubr.f32.gmra.mrb[0].mxu0 %v4392
      %v4615 = vpop.f32.mrb[0].mxu0
      %v4616 = vadd.f32 0.0, %v4615
      %v4617 = vpop.f32.mrb[0].mxu0
      %4618 = vmatprep.mubr.f32.mxu0 0.0
      %4619 = vmatmul.mubr.f32.gmra.mrb[0].mxu0 %v4394
      %v4620 = vpop.f32.mrb[0].mxu0
      %v4621 = vadd.f32 0.0, %v4620
      %v4622 = vpop.f32.mrb[0].mxu0
      %4623 = vdwg.mxu0
      %v4624 = vadd.f32 %v4169, %v4466
      %v4625 = vadd.f32 %v4170, %v4471
      %v4626 = vadd.f32 %v4171, %v4476
      %v4627 = vadd.f32 %v4172, %v4481
      %v4628 = vadd.f32 %v4173, %v4486
      %v4629 = vadd.f32 %v4174, %v4491
      %v4630 = vadd.f32 %v4175, %v4496
      %v4631 = vadd.f32 %v4176, %v4501
      %v4632 = vadd.f32 %v4177, %v4506
      %v4633 = vadd.f32 %v4178, %v4511
      %v4634 = vadd.f32 %v4179, %v4516
      %v4635 = vadd.f32 %v4180, %v4521
      %v4636 = vadd.f32 %v4181, %v4526
      %v4637 = vadd.f32 %v4182, %v4531
      %v4638 = vadd.f32 %v4183, %v4536
      %v4639 = vadd.f32 %v4184, %v4541
      %v4640 = vadd.f32 %v4185, %v4546
      %v4641 = vadd.f32 %v4186, %v4551
      %v4642 = vadd.f32 %v4187, %v4556
      %v4643 = vadd.f32 %v4188, %v4561
      %v4644 = vadd.f32 %v4189, %v4566
      %v4645 = vadd.f32 %v4190, %v4571
      %v4646 = vadd.f32 %v4191, %v4576
      %v4647 = vadd.f32 %v4192, %v4581
      %v4648 = vadd.f32 %v4193, %v4586
      %v4649 = vadd.f32 %v4194, %v4591
      %v4650 = vadd.f32 %v4195, %v4596
      %v4651 = vadd.f32 %v4196, %v4601
      %v4652 = vadd.f32 %v4197, %v4606
      %v4653 = vadd.f32 %v4198, %v4611
      %v4654 = vadd.f32 %v4199, %v4616
      %v4655 = vadd.f32 %v4200, %v4621
      %4656 = vst.msk [vmem:[%s343] sm:$0xff] %vm1133, %v4624
      %4657 = vst.msk [vmem:[%s343 + $0x8] sm:$0xff] %vm1133, %v4625
      %4658 = vst.msk [vmem:[%s343 + $0x10] sm:$0xff] %vm1133, %v4626
      %4659 = vst.msk [vmem:[%s343 + $0x18] sm:$0xff] %vm1133, %v4627
      %4660 = vst.msk [vmem:[%s343 + $0x20] sm:$0xff] %vm1133, %v4628
      %4661 = vst.msk [vmem:[%s343 + $0x28] sm:$0xff] %vm1133, %v4629
      %4662 = vst.msk [vmem:[%s343 + $0x30] sm:$0xff] %vm1133, %v4630
      %4663 = vst.msk [vmem:[%s343 + $0x38] sm:$0xff] %vm1133, %v4631
      %4664 = vst.msk [vmem:[%s343 + $0x40] sm:$0xff] %vm1133, %v4632
      %4665 = vst.msk [vmem:[%s343 + $0x48] sm:$0xff] %vm1133, %v4633
      %4666 = vst.msk [vmem:[%s343 + $0x50] sm:$0xff] %vm1133, %v4634
      %4667 = vst.msk [vmem:[%s343 + $0x58] sm:$0xff] %vm1133, %v4635
      %4668 = vst.msk [vmem:[%s343 + $0x60] sm:$0xff] %vm1133, %v4636
      %4669 = vst.msk [vmem:[%s343 + $0x68] sm:$0xff] %vm1133, %v4637
      %4670 = vst.msk [vmem:[%s343 + $0x70] sm:$0xff] %vm1133, %v4638
      %4671 = vst.msk [vmem:[%s343 + $0x78] sm:$0xff] %vm1133, %v4639
      %4672 = vst.msk [vmem:[%s343 + $0x80] sm:$0xff] %vm1133, %v4640
      %4673 = vst.msk [vmem:[%s343 + $0x88] sm:$0xff] %vm1133, %v4641
      %4674 = vst.msk [vmem:[%s343 + $0x90] sm:$0xff] %vm1133, %v4642
      %4675 = vst.msk [vmem:[%s343 + $0x98] sm:$0xff] %vm1133, %v4643
      %4676 = vst.msk [vmem:[%s343 + $0xa0] sm:$0xff] %vm1133, %v4644
      %4677 = vst.msk [vmem:[%s343 + $0xa8] sm:$0xff] %vm1133, %v4645
      %4678 = vst.msk [vmem:[%s343 + $0xb0] sm:$0xff] %vm1133, %v4646
      %4679 = vst.msk [vmem:[%s343 + $0xb8] sm:$0xff] %vm1133, %v4647
      %4680 = vst.msk [vmem:[%s343 + $0xc0] sm:$0xff] %vm1133, %v4648
      %4681 = vst.msk [vmem:[%s343 + $0xc8] sm:$0xff] %vm1133, %v4649
      %4682 = vst.msk [vmem:[%s343 + $0xd0] sm:$0xff] %vm1133, %v4650
      %4683 = vst.msk [vmem:[%s343 + $0xd8] sm:$0xff] %vm1133, %v4651
      %4684 = vst.msk [vmem:[%s343 + $0xe0] sm:$0xff] %vm1133, %v4652
      %4685 = vst.msk [vmem:[%s343 + $0xe8] sm:$0xff] %vm1133, %v4653
      %4686 = vst.msk [vmem:[%s343 + $0xf0] sm:$0xff] %vm1133, %v4654
      %4687 = vst.msk [vmem:[%s343 + $0xf8] sm:$0xff] %vm1133, %v4655
      %v4688 = vsel %vm1133, %v4624, 0.0
      %v4689 = vsel %vm1133, %v4625, 0.0
      %v4690 = vadd.f32 %v4688, %v4689
      %v4691 = vsel %vm1133, %v4626, 0.0
      %v4692 = vadd.f32 %v4690, %v4691
      %v4693 = vsel %vm1133, %v4627, 0.0
      %v4694 = vadd.f32 %v4692, %v4693
      %v4695 = vsel %vm1133, %v4628, 0.0
      %v4696 = vadd.f32 %v4694, %v4695
      %v4697 = vsel %vm1133, %v4629, 0.0
      %v4698 = vadd.f32 %v4696, %v4697
      %v4699 = vsel %vm1133, %v4630, 0.0
      %v4700 = vadd.f32 %v4698, %v4699
      %v4701 = vsel %vm1133, %v4631, 0.0
      %v4702 = vadd.f32 %v4700, %v4701
      %v4703 = vsel %vm1133, %v4632, 0.0
      %v4704 = vadd.f32 %v4702, %v4703
      %v4705 = vsel %vm1133, %v4633, 0.0
      %v4706 = vadd.f32 %v4704, %v4705
      %v4707 = vsel %vm1133, %v4634, 0.0
      %v4708 = vadd.f32 %v4706, %v4707
      %v4709 = vsel %vm1133, %v4635, 0.0
      %v4710 = vadd.f32 %v4708, %v4709
      %v4711 = vsel %vm1133, %v4636, 0.0
      %v4712 = vadd.f32 %v4710, %v4711
      %v4713 = vsel %vm1133, %v4637, 0.0
      %v4714 = vadd.f32 %v4712, %v4713
      %v4715 = vsel %vm1133, %v4638, 0.0
      %v4716 = vadd.f32 %v4714, %v4715
      %v4717 = vsel %vm1133, %v4639, 0.0
      %v4718 = vadd.f32 %v4716, %v4717
      %v4719 = vsel %vm1133, %v4640, 0.0
      %v4720 = vadd.f32 %v4718, %v4719
      %v4721 = vsel %vm1133, %v4641, 0.0
      %v4722 = vadd.f32 %v4720, %v4721
      %v4723 = vsel %vm1133, %v4642, 0.0
      %v4724 = vadd.f32 %v4722, %v4723
      %v4725 = vsel %vm1133, %v4643, 0.0
      %v4726 = vadd.f32 %v4724, %v4725
      %v4727 = vsel %vm1133, %v4644, 0.0
      %v4728 = vadd.f32 %v4726, %v4727
      %v4729 = vsel %vm1133, %v4645, 0.0
      %v4730 = vadd.f32 %v4728, %v4729
      %v4731 = vsel %vm1133, %v4646, 0.0
      %v4732 = vadd.f32 %v4730, %v4731
      %v4733 = vsel %vm1133, %v4647, 0.0
      %v4734 = vadd.f32 %v4732, %v4733
      %v4735 = vsel %vm1133, %v4648, 0.0
      %v4736 = vadd.f32 %v4734, %v4735
      %v4737 = vsel %vm1133, %v4649, 0.0
      %v4738 = vadd.f32 %v4736, %v4737
      %v4739 = vsel %vm1133, %v4650, 0.0
      %v4740 = vadd.f32 %v4738, %v4739
      %v4741 = vsel %vm1133, %v4651, 0.0
      %v4742 = vadd.f32 %v4740, %v4741
      %v4743 = vsel %vm1133, %v4652, 0.0
      %v4744 = vadd.f32 %v4742, %v4743
      %v4745 = vsel %vm1133, %v4653, 0.0
      %v4746 = vadd.f32 %v4744, %v4745
      %v4747 = vsel %vm1133, %v4654, 0.0
      %v4748 = vadd.f32 %v4746, %v4747
      %v4749 = vsel %vm1133, %v4655, 0.0
      %v4750 = vadd.f32 %v4748, %v4749
      %v4751 = vrot.slane %v4750, 4
      %v4752 = vadd.f32 %v4750, %v4751
      %v4753 = vrot.slane %v4752, 2
      %v4754 = vadd.f32 %v4752, %v4753
      %v4755 = vrot.slane %v4754, 1
      %v4756 = vadd.f32 %v4754, %v4755
      %vm4757 = vcmask 24576
      %4758 = vst.msk [vmem:[%s346] sm:$0x1] %vm4757, %v4756
      %v4759 = vmul.f32 %v4624, %v4624
      %v4760 = vmul.f32 %v4625, %v4625
      %v4761 = vmul.f32 %v4626, %v4626
      %v4762 = vmul.f32 %v4627, %v4627
      %v4763 = vmul.f32 %v4628, %v4628
      %v4764 = vmul.f32 %v4629, %v4629
      %v4765 = vmul.f32 %v4630, %v4630
      %v4766 = vmul.f32 %v4631, %v4631
      %v4767 = vmul.f32 %v4632, %v4632
      %v4768 = vmul.f32 %v4633, %v4633
      %v4769 = vmul.f32 %v4634, %v4634
      %v4770 = vmul.f32 %v4635, %v4635
      %v4771 = vmul.f32 %v4636, %v4636
      %v4772 = vmul.f32 %v4637, %v4637
      %v4773 = vmul.f32 %v4638, %v4638
      %v4774 = vmul.f32 %v4639, %v4639
      %v4775 = vmul.f32 %v4640, %v4640
      %v4776 = vmul.f32 %v4641, %v4641
      %v4777 = vmul.f32 %v4642, %v4642
      %v4778 = vmul.f32 %v4643, %v4643
      %v4779 = vmul.f32 %v4644, %v4644
      %v4780 = vmul.f32 %v4645, %v4645
      %v4781 = vmul.f32 %v4646, %v4646
      %v4782 = vmul.f32 %v4647, %v4647
      %v4783 = vmul.f32 %v4648, %v4648
      %v4784 = vmul.f32 %v4649, %v4649
      %v4785 = vmul.f32 %v4650, %v4650
      %v4786 = vmul.f32 %v4651, %v4651
      %v4787 = vmul.f32 %v4652, %v4652
      %v4788 = vmul.f32 %v4653, %v4653
      %v4789 = vmul.f32 %v4654, %v4654
      %v4790 = vmul.f32 %v4655, %v4655
      %v4791 = vsel %vm1133, %v4759, 0.0
      %v4792 = vsel %vm1133, %v4760, 0.0
      %v4793 = vadd.f32 %v4791, %v4792
      %v4794 = vsel %vm1133, %v4761, 0.0
      %v4795 = vadd.f32 %v4793, %v4794
      %v4796 = vsel %vm1133, %v4762, 0.0
      %v4797 = vadd.f32 %v4795, %v4796
      %v4798 = vsel %vm1133, %v4763, 0.0
      %v4799 = vadd.f32 %v4797, %v4798
      %v4800 = vsel %vm1133, %v4764, 0.0
      %v4801 = vadd.f32 %v4799, %v4800
      %v4802 = vsel %vm1133, %v4765, 0.0
      %v4803 = vadd.f32 %v4801, %v4802
      %v4804 = vsel %vm1133, %v4766, 0.0
      %v4805 = vadd.f32 %v4803, %v4804
      %v4806 = vsel %vm1133, %v4767, 0.0
      %v4807 = vadd.f32 %v4805, %v4806
      %v4808 = vsel %vm1133, %v4768, 0.0
      %v4809 = vadd.f32 %v4807, %v4808
      %v4810 = vsel %vm1133, %v4769, 0.0
      %v4811 = vadd.f32 %v4809, %v4810
      %v4812 = vsel %vm1133, %v4770, 0.0
      %v4813 = vadd.f32 %v4811, %v4812
      %v4814 = vsel %vm1133, %v4771, 0.0
      %v4815 = vadd.f32 %v4813, %v4814
      %v4816 = vsel %vm1133, %v4772, 0.0
      %v4817 = vadd.f32 %v4815, %v4816
      %v4818 = vsel %vm1133, %v4773, 0.0
      %v4819 = vadd.f32 %v4817, %v4818
      %v4820 = vsel %vm1133, %v4774, 0.0
      %v4821 = vadd.f32 %v4819, %v4820
      %v4822 = vsel %vm1133, %v4775, 0.0
      %v4823 = vadd.f32 %v4821, %v4822
      %v4824 = vsel %vm1133, %v4776, 0.0
      %v4825 = vadd.f32 %v4823, %v4824
      %v4826 = vsel %vm1133, %v4777, 0.0
      %v4827 = vadd.f32 %v4825, %v4826
      %v4828 = vsel %vm1133, %v4778, 0.0
      %v4829 = vadd.f32 %v4827, %v4828
      %v4830 = vsel %vm1133, %v4779, 0.0
      %v4831 = vadd.f32 %v4829, %v4830
      %v4832 = vsel %vm1133, %v4780, 0.0
      %v4833 = vadd.f32 %v4831, %v4832
      %v4834 = vsel %vm1133, %v4781, 0.0
      %v4835 = vadd.f32 %v4833, %v4834
      %v4836 = vsel %vm1133, %v4782, 0.0
      %v4837 = vadd.f32 %v4835, %v4836
      %v4838 = vsel %vm1133, %v4783, 0.0
      %v4839 = vadd.f32 %v4837, %v4838
      %v4840 = vsel %vm1133, %v4784, 0.0
      %v4841 = vadd.f32 %v4839, %v4840
      %v4842 = vsel %vm1133, %v4785, 0.0
      %v4843 = vadd.f32 %v4841, %v4842
      %v4844 = vsel %vm1133, %v4786, 0.0
      %v4845 = vadd.f32 %v4843, %v4844
      %v4846 = vsel %vm1133, %v4787, 0.0
      %v4847 = vadd.f32 %v4845, %v4846
      %v4848 = vsel %vm1133, %v4788, 0.0
      %v4849 = vadd.f32 %v4847, %v4848
      %v4850 = vsel %vm1133, %v4789, 0.0
      %v4851 = vadd.f32 %v4849, %v4850
      %v4852 = vsel %vm1133, %v4790, 0.0
      %v4853 = vadd.f32 %v4851, %v4852
      %v4854 = vrot.slane %v4853, 4
      %v4855 = vadd.f32 %v4853, %v4854
      %v4856 = vrot.slane %v4855, 2
      %v4857 = vadd.f32 %v4855, %v4856
      %v4858 = vrot.slane %v4857, 1
      %v4859 = vadd.f32 %v4857, %v4858
      %4860 = vst.msk [vmem:[%s349] sm:$0x1] %vm4757, %v4859
      %p4861 = scmp.lt.s32.totalorder %s21, 1
      %s4862 = scalar_select %p4861, %s21, 1
      %s4863 = smul.addr %s4862, 32
      %s4864 = smul.addr %s4863, 8
      %s4865 = scalar_lea.vmem %s7, %s4864
      %p4866 = scmp.lt.s32.totalorder %s21, 1
      %s4867 = scalar_select %p4866, %s21, 1
      %s4868 = scalar_lea.vmem %s8, %s4867
      %p4869 = scmp.lt.s32.totalorder %s21, 1
      %s4870 = scalar_select %p4869, %s21, 1
      %s4871 = scalar_lea.vmem %s9, %s4870
      // Predicated region
      $region49: #{residual_block.4} parent=47 // pred_check
        %p4872 = pneg %p191
      $region50: #{residual_block.4} parent=47 // pred_check_branch
        %4874 = sbr.rel (%p4872) target = $region52
      $region51: #{residual_block.4} parent=47 // pred_region
        _
      $region52: #{residual_block.4} parent=47 // pred_fallthru
        _
      // Predicated region
      $region53: #{residual_block.4} parent=47 // pred_check
        %p4875 = pneg %p217
      $region54: #{residual_block.4} parent=47 // pred_check_branch
        %4877 = sbr.rel (%p4875) target = $region56
      $region55: #{residual_block.4} parent=47 // pred_region
        _
      $region56: #{residual_block.4} parent=47 // pred_fallthru
        _
      // Predicated region
      $region57: #{residual_block.4} parent=47 // pred_check
        %p4878 = pneg %p243
      $region58: #{residual_block.4} parent=47 // pred_check_branch
        %4880 = sbr.rel (%p4878) target = $region60
      $region59: #{residual_block.4} parent=47 // pred_region
        _
      $region60: #{residual_block.4} parent=47 // pred_fallthru
        _
    $region48: #{residual_block.4} parent=5 // pred_fallthru
      _
    %p4881 = scmp.le.s32.totalorder 2, %s16
    // Predicated region
    $region61: #{residual_block.4} parent=5 // pred_check
      %p4882 = pneg %p4881
    $region62: #{residual_block.4} parent=5 // pred_check_branch
      %4884 = sbr.rel (%p4882) target = $region64
    $region63: #{residual_block.4} parent=5 // pred_region
      %s4885 = ssub.s32 %s16, 2
      // Predicated region
      $region65: #{residual_block.4} parent=63 // pred_check
        %p4886 = pneg %p197
      $region66: #{residual_block.4} parent=63 // pred_check_branch
        %4888 = sbr.rel (%p4886) target = $region68
      $region67: #{residual_block.4} parent=63 // pred_region
        %p4889 = scmp.lt.s32.totalorder %s22, 1
        %s4890 = scalar_select %p4889, %s22, 1
        %s4891 = smul.addr %s4890, 32
        %s4892 = smul.addr %s4891, 8
        %s4893 = scalar_lea.vmem %s7, %s4892
      $region68: #{residual_block.4} parent=63 // pred_fallthru
        _
      // Predicated region
      $region69: #{residual_block.4} parent=63 // pred_check
        %p4894 = pneg %p223
      $region70: #{residual_block.4} parent=63 // pred_check_branch
        %4896 = sbr.rel (%p4894) target = $region72
      $region71: #{residual_block.4} parent=63 // pred_region
        %p4897 = scmp.lt.s32.totalorder %s22, 1
        %s4898 = scalar_select %p4897, %s22, 1
        %s4899 = scalar_lea.vmem %s8, %s4898
      $region72: #{residual_block.4} parent=63 // pred_fallthru
        _
      // Predicated region
      $region73: #{residual_block.4} parent=63 // pred_check
        %p4900 = pneg %p249
      $region74: #{residual_block.4} parent=63 // pred_check_branch
        %4902 = sbr.rel (%p4900) target = $region76
      $region75: #{residual_block.4} parent=63 // pred_region
        %p4903 = scmp.lt.s32.totalorder %s22, 1
        %s4904 = scalar_select %p4903, %s22, 1
        %s4905 = scalar_lea.vmem %s9, %s4904
      $region76: #{residual_block.4} parent=63 // pred_fallthru
        _
    $region64: #{residual_block.4} parent=5 // pred_fallthru
      _
  $region6: #{residual_block.4} parent=0 // loop_footer
    %s20 = sadd.s32 1, %s16
  $region7: #{residual_block.4} parent=0 // loop_footer_branch
    %15 = sbr.rel target = $region3
  $region8: #{residual_block.4} parent=0 // loop_exit
    _

</llo_original>
